<compile_context>
chip_gen: v6e
topology: v6e:2x2x1
jax: 0.10.0
libtpu: 0.0.40
codegen_flags: <defaults>
</compile_context>

<pallas_src>
import functools

import jax
import jax.numpy as jnp
from jax.experimental import pallas as pl
from jax.experimental.pallas import tpu as pltpu

_EPS = 1e-5


# ------------------------------ kernel body -------------------------------- #

def _basic_block_kernel(x_ref, w1_ref, w2_ref, p_ref, o_ref,
                        xp_ref, patch_ref, *, N, H, W, C):
  """Fused conv1+bn1+relu+conv2+bn2+add+relu.

  x_ref     : (N, H, W, C)      f32 input (NHWC)
  w*_ref    : (9*C, C)          bf16 im2col weight matrices
  p_ref     : (4, C)            f32 rows = (gamma1, beta1, gamma2, beta2)
  o_ref     : (N*H*W, C)        f32 output (row-major NHWC, flattened)
  xp_ref    : (N, H+2, W+2, C)  f32  VMEM scratch - zero-padded activation
  patch_ref : (N*H*W, 9*C)      bf16 VMEM scratch - im2col patch matrix
  """
  M = N * H * W
  inv_m = 1.0 / M
  taps = tuple((dy, dx) for dy in range(3) for dx in range(3))

  def im2col():
    # 9 shifted windows of the padded activation -> bf16 patch columns.
    # reshape only merges leading dims (minor dim C preserved) -> no relayout.
    for t, (dy, dx) in enumerate(taps):
      patch_ref[:, t * C:(t + 1) * C] = (
          xp_ref[:, dy:dy + H, dx:dx + W, :]
          .reshape(M, C).astype(jnp.bfloat16))

  def conv_bn(w_ref, gamma, beta):
    # One (M, 9C) x (9C, C) MXU matmul; bf16 operands, f32 accumulation.
    # Result stays a register-resident value (no scratch round trip).
    acc = jnp.dot(patch_ref[...], w_ref[...],
                  preferred_element_type=jnp.float32)
    # Train-mode BatchNorm with two-pass (numerically robust) batch stats.
    mean = jnp.sum(acc, axis=0, keepdims=True) * inv_m
    d = acc - mean
    var = jnp.sum(d * d, axis=0, keepdims=True) * inv_m
    scale = gamma * jax.lax.rsqrt(var + _EPS)
    return d * scale + beta

  g1 = p_ref[0:1, :]
  b1 = p_ref[1:2, :]
  g2 = p_ref[2:3, :]
  b2 = p_ref[3:4, :]

  # Halo-only zeroing; the interior is fully overwritten by each stage.
  zrow = jnp.zeros((N, 1, W + 2, C), jnp.float32)
  zcol = jnp.zeros((N, H + 2, 1, C), jnp.float32)
  xp_ref[:, 0:1, :, :] = zrow
  xp_ref[:, H + 1:H + 2, :, :] = zrow
  xp_ref[:, :, 0:1, :] = zcol
  xp_ref[:, :, W + 1:W + 2, :] = zcol

  # ---- stage 1: conv1 + bn1 + relu -----------------------------------------
  xp_ref[:, 1:H + 1, 1:W + 1, :] = x_ref[...]
  im2col()
  h1 = jnp.maximum(conv_bn(w1_ref, g1, b1), 0.0)   # (M, C) f32, VMEM only

  # ---- stage 2: conv2 + bn2 + identity residual + relu ----------------------
  xp_ref[:, 1:H + 1, 1:W + 1, :] = h1.reshape(N, H, W, C)
  im2col()
  y = conv_bn(w2_ref, g2, b2) + x_ref[...].reshape(M, C)
  o_ref[...] = jnp.maximum(y, 0.0)


# -------------------------------- wrapper ----------------------------------- #

def _full_spec(shape):
  # whole-array block (legal: block dims equal the full array dims)
  return pl.BlockSpec(shape, lambda i: (0,) * len(shape))


def basic_block_forward(x_nchw, w1, g1, b1, w2, g2, b2):
  """BasicBlock forward.

  x_nchw: (N, C, H, W) f32;  w1/w2: (3, 3, Cin, Cout) HWIO;  g*/b*: (1, C).
  """
  N, C, H, W = x_nchw.shape
  M = N * H * W
  x = jnp.transpose(x_nchw, (0, 2, 3, 1)).astype(jnp.float32)   # NCHW -> NHWC

  # 3x3 HWIO weights -> (9*Cin, Cout) im2col matrices, bf16 for the MXU.
  w1m = w1.reshape(9 * C, C).astype(jnp.bfloat16)
  w2m = w2.reshape(9 * C, C).astype(jnp.bfloat16)
  # Pack gamma/beta into one small tile: rows = (g1, b1, g2, b2).
  params = jnp.concatenate([g1, b1, g2, b2], axis=0).astype(jnp.float32)

  kern = functools.partial(_basic_block_kernel, N=N, H=H, W=W, C=C)
  out = pl.pallas_call(
      kern,
      out_shape=jax.ShapeDtypeStruct((M, C), jnp.float32),
      grid=(1,),
      in_specs=[_full_spec(x.shape), _full_spec(w1m.shape),
                _full_spec(w2m.shape), _full_spec(params.shape)],
      out_specs=_full_spec((M, C)),
      scratch_shapes=[
          pltpu.VMEM((N, H + 2, W + 2, C), jnp.float32),   # padded activation
          pltpu.VMEM((M, 9 * C), jnp.bfloat16),            # im2col patches
      ],
      compiler_params=pltpu.CompilerParams(
          dimension_semantics=("arbitrary",),
          # Current scratch use is ~60 KiB; explicit limit keeps headroom for
          # bigger tiles and overrides v5e's 16 MiB scoped default while
          # staying within v7x's 64 MiB physical VMEM.
          vmem_limit_bytes=32 * 1024 * 1024),
  )(x, w1m, w2m, params)

  # (M, C) row-major == NHWC flat, so the reshape is free; the transpose is
  # the unavoidable PyTorch-NCHW interface cost.
  return jnp.transpose(out.reshape(N, H, W, C), (0, 3, 1, 2))


# --------------------------- pure-JAX reference ------------------------------ #

def _ref_block(x_nchw, w1, g1, b1, w2, g2, b2):
  """Reference using the same MXU input precision (bf16 operands, f32 acc)."""
  x = jnp.transpose(x_nchw, (0, 2, 3, 1)).astype(jnp.float32)

  def conv_bn(t, w, g, b):
    y = jax.lax.conv_general_dilated(
        t.astype(jnp.bfloat16), w.astype(jnp.bfloat16),
        window_strides=(1, 1), padding="SAME",
        dimension_numbers=("NHWC", "HWIO", "NHWC"),
        preferred_element_type=jnp.float32)
    mean = jnp.mean(y, axis=(0, 1, 2), keepdims=True)
    var = jnp.mean((y - mean) ** 2, axis=(0, 1, 2), keepdims=True)
    return (y - mean) * jax.lax.rsqrt(var + _EPS) * g.reshape(1, 1, 1, -1) \
        + b.reshape(1, 1, 1, -1)

  out = jnp.maximum(conv_bn(x, w1, g1, b1), 0.0)
  out = conv_bn(out, w2, g2, b2) + x
  out = jnp.maximum(out, 0.0)
  return jnp.transpose(out, (0, 3, 1, 2))


# ---------------------------------- main ------------------------------------- #

if __name__ == "__main__":
  N, C, H, W = 2, 4, 16, 16          # inplanes = planes = 4, stride = 1
  key = jax.random.PRNGKey(0)
  kx, kw1, kw2, kg1, kb1, kg2, kb2 = jax.random.split(key, 7)

  x = jax.random.normal(kx, (N, C, H, W), jnp.float32)

  # PyTorch conv weight layout (Cout, Cin, kh, kw) -> HWIO (kh, kw, Cin, Cout)
  w1_pt = 0.1 * jax.random.normal(kw1, (C, C, 3, 3), jnp.float32)
  w2_pt = 0.1 * jax.random.normal(kw2, (C, C, 3, 3), jnp.float32)
  w1 = jnp.transpose(w1_pt, (2, 3, 1, 0))
  w2 = jnp.transpose(w2_pt, (2, 3, 1, 0))

  g1 = (1.0 + 0.1 * jax.random.normal(kg1, (C,), jnp.float32)).reshape(1, C)
  b1 = (0.1 * jax.random.normal(kb1, (C,), jnp.float32)).reshape(1, C)
  g2 = (1.0 + 0.1 * jax.random.normal(kg2, (C,), jnp.float32)).reshape(1, C)
  b2 = (0.1 * jax.random.normal(kb2, (C,), jnp.float32)).reshape(1, C)

  out = jax.block_until_ready(basic_block_forward(x, w1, g1, b1, w2, g2, b2))
  ref = _ref_block(x, w1, g1, b1, w2, g2, b2)

  err = float(jnp.max(jnp.abs(out - ref)))
  assert out.shape == (N, C, H, W), out.shape
  # Reference uses the same bf16 MXU operand precision; remaining error is
  # only f32 accumulation order and rare bf16 rounding flips of the
  # intermediate activation.
  assert err < 1e-2, f"mismatch vs reference: {err}"

  print("KERNEL_OK")
</pallas_src>

<mosaic_0001>
module attributes {stable_mosaic.version = 11 : i64} {
  func.func @_basic_block_kernel(%arg0: i32, %arg1: memref<2x16x16x4xf32, #tpu.memory_space<vmem>>, %arg2: memref<36x4xbf16, #tpu.memory_space<vmem>>, %arg3: memref<36x4xbf16, #tpu.memory_space<vmem>>, %arg4: memref<4x4xf32, #tpu.memory_space<vmem>>, %arg5: memref<512x4xf32, #tpu.memory_space<vmem>>, %arg6: memref<2x18x18x4xf32, #tpu.memory_space<vmem>>, %arg7: memref<512x36xbf16, #tpu.memory_space<vmem>>) attributes {dimension_semantics = [#tpu.dimension_semantics<arbitrary>], iteration_bounds = array<i64: 1>, scalar_prefetch = 0 : i64, scratch_operands = 2 : i64, tpu.core_type = #tpu.core_type<tc>, window_params = [{pipeline_mode = #tpu.pipeline_mode<synchronous>, transform_indices = @transform_0, window_bounds = array<i64: 2, 16, 16, 4>}, {pipeline_mode = #tpu.pipeline_mode<synchronous>, transform_indices = @transform_1, window_bounds = array<i64: 36, 4>}, {pipeline_mode = #tpu.pipeline_mode<synchronous>, transform_indices = @transform_2, window_bounds = array<i64: 36, 4>}, {pipeline_mode = #tpu.pipeline_mode<synchronous>, transform_indices = @transform_3, window_bounds = array<i64: 4, 4>}, {pipeline_mode = #tpu.pipeline_mode<synchronous>, transform_indices = @transform_4, window_bounds = array<i64: 512, 4>}]} {
    %c0 = arith.constant 0 : index
    %c0_0 = arith.constant 0 : index
    %0 = vector.load %arg4[%c0, %c0_0] : memref<4x4xf32, #tpu.memory_space<vmem>>, vector<1x4xf32>
    %c1 = arith.constant 1 : index
    %c0_1 = arith.constant 0 : index
    %1 = vector.load %arg4[%c1, %c0_1] : memref<4x4xf32, #tpu.memory_space<vmem>>, vector<1x4xf32>
    %c2 = arith.constant 2 : index
    %c0_2 = arith.constant 0 : index
    %2 = vector.load %arg4[%c2, %c0_2] : memref<4x4xf32, #tpu.memory_space<vmem>>, vector<1x4xf32>
    %c3 = arith.constant 3 : index
    %c0_3 = arith.constant 0 : index
    %3 = vector.load %arg4[%c3, %c0_3] : memref<4x4xf32, #tpu.memory_space<vmem>>, vector<1x4xf32>
    %cst = arith.constant 0.000000e+00 : f32
    %4 = vector.broadcast %cst : f32 to vector<2x1x18x4xf32>
    %cst_4 = arith.constant 0.000000e+00 : f32
    %5 = vector.broadcast %cst_4 : f32 to vector<2x18x1x4xf32>
    %c0_5 = arith.constant 0 : index
    %c0_6 = arith.constant 0 : index
    %c0_7 = arith.constant 0 : index
    %c0_8 = arith.constant 0 : index
    %6 = vector.load %arg6[%c0_5, %c0_6, %c0_7, %c0_8] : memref<2x18x18x4xf32, #tpu.memory_space<vmem>>, vector<2x1x18x4xf32>
    tpu.vector_store %arg6[%c0_5, %c0_6, %c0_7, %c0_8], %4 {strides = array<i32>} : memref<2x18x18x4xf32, #tpu.memory_space<vmem>>, vector<2x1x18x4xf32>,
    %c0_9 = arith.constant 0 : index
    %c17 = arith.constant 17 : index
    %c0_10 = arith.constant 0 : index
    %c0_11 = arith.constant 0 : index
    %7 = vector.load %arg6[%c0_9, %c17, %c0_10, %c0_11] : memref<2x18x18x4xf32, #tpu.memory_space<vmem>>, vector<2x1x18x4xf32>
    tpu.vector_store %arg6[%c0_9, %c17, %c0_10, %c0_11], %4 {strides = array<i32>} : memref<2x18x18x4xf32, #tpu.memory_space<vmem>>, vector<2x1x18x4xf32>,
    %c0_12 = arith.constant 0 : index
    %c0_13 = arith.constant 0 : index
    %c0_14 = arith.constant 0 : index
    %c0_15 = arith.constant 0 : index
    %8 = vector.load %arg6[%c0_12, %c0_13, %c0_14, %c0_15] : memref<2x18x18x4xf32, #tpu.memory_space<vmem>>, vector<2x18x1x4xf32>
    tpu.vector_store %arg6[%c0_12, %c0_13, %c0_14, %c0_15], %5 {strides = array<i32>} : memref<2x18x18x4xf32, #tpu.memory_space<vmem>>, vector<2x18x1x4xf32>,
    %c0_16 = arith.constant 0 : index
    %c0_17 = arith.constant 0 : index
    %c17_18 = arith.constant 17 : index
    %c0_19 = arith.constant 0 : index
    %9 = vector.load %arg6[%c0_16, %c0_17, %c17_18, %c0_19] : memref<2x18x18x4xf32, #tpu.memory_space<vmem>>, vector<2x18x1x4xf32>
    tpu.vector_store %arg6[%c0_16, %c0_17, %c17_18, %c0_19], %5 {strides = array<i32>} : memref<2x18x18x4xf32, #tpu.memory_space<vmem>>, vector<2x18x1x4xf32>,
    %c0_20 = arith.constant 0 : index
    %c0_21 = arith.constant 0 : index
    %c0_22 = arith.constant 0 : index
    %c0_23 = arith.constant 0 : index
    %10 = vector.load %arg1[%c0_20, %c0_21, %c0_22, %c0_23] : memref<2x16x16x4xf32, #tpu.memory_space<vmem>>, vector<2x16x16x4xf32>
    %c0_24 = arith.constant 0 : index
    %c1_25 = arith.constant 1 : index
    %c1_26 = arith.constant 1 : index
    %c0_27 = arith.constant 0 : index
    %11 = vector.load %arg6[%c0_24, %c1_25, %c1_26, %c0_27] : memref<2x18x18x4xf32, #tpu.memory_space<vmem>>, vector<2x16x16x4xf32>
    tpu.vector_store %arg6[%c0_24, %c1_25, %c1_26, %c0_27], %10 {strides = array<i32>} : memref<2x18x18x4xf32, #tpu.memory_space<vmem>>, vector<2x16x16x4xf32>,
    %c0_28 = arith.constant 0 : index
    %c0_29 = arith.constant 0 : index
    %c0_30 = arith.constant 0 : index
    %c0_31 = arith.constant 0 : index
    %12 = vector.load %arg6[%c0_28, %c0_29, %c0_30, %c0_31] : memref<2x18x18x4xf32, #tpu.memory_space<vmem>>, vector<2x16x16x4xf32>
    %13 = vector.shape_cast %12 : vector<2x16x16x4xf32> to vector<512x4xf32>
    %14 = arith.truncf %13 : vector<512x4xf32> to vector<512x4xbf16>
    %c0_32 = arith.constant 0 : index
    %c0_33 = arith.constant 0 : index
    %15 = vector.load %arg7[%c0_32, %c0_33] : memref<512x36xbf16, #tpu.memory_space<vmem>>, vector<512x4xbf16>
    tpu.vector_store %arg7[%c0_32, %c0_33], %14 {strides = array<i32>} : memref<512x36xbf16, #tpu.memory_space<vmem>>, vector<512x4xbf16>,
    %c0_34 = arith.constant 0 : index
    %c0_35 = arith.constant 0 : index
    %c1_36 = arith.constant 1 : index
    %c0_37 = arith.constant 0 : index
    %16 = vector.load %arg6[%c0_34, %c0_35, %c1_36, %c0_37] : memref<2x18x18x4xf32, #tpu.memory_space<vmem>>, vector<2x16x16x4xf32>
    %17 = vector.shape_cast %16 : vector<2x16x16x4xf32> to vector<512x4xf32>
    %18 = arith.truncf %17 : vector<512x4xf32> to vector<512x4xbf16>
    %c0_38 = arith.constant 0 : index
    %c4 = arith.constant 4 : index
    %19 = vector.load %arg7[%c0_38, %c4] : memref<512x36xbf16, #tpu.memory_space<vmem>>, vector<512x4xbf16>
    tpu.vector_store %arg7[%c0_38, %c4], %18 {strides = array<i32>} : memref<512x36xbf16, #tpu.memory_space<vmem>>, vector<512x4xbf16>,
    %c0_39 = arith.constant 0 : index
    %c0_40 = arith.constant 0 : index
    %c2_41 = arith.constant 2 : index
    %c0_42 = arith.constant 0 : index
    %20 = vector.load %arg6[%c0_39, %c0_40, %c2_41, %c0_42] : memref<2x18x18x4xf32, #tpu.memory_space<vmem>>, vector<2x16x16x4xf32>
    %21 = vector.shape_cast %20 : vector<2x16x16x4xf32> to vector<512x4xf32>
    %22 = arith.truncf %21 : vector<512x4xf32> to vector<512x4xbf16>
    %c0_43 = arith.constant 0 : index
    %c8 = arith.constant 8 : index
    %23 = vector.load %arg7[%c0_43, %c8] : memref<512x36xbf16, #tpu.memory_space<vmem>>, vector<512x4xbf16>
    tpu.vector_store %arg7[%c0_43, %c8], %22 {strides = array<i32>} : memref<512x36xbf16, #tpu.memory_space<vmem>>, vector<512x4xbf16>,
    %c0_44 = arith.constant 0 : index
    %c1_45 = arith.constant 1 : index
    %c0_46 = arith.constant 0 : index
    %c0_47 = arith.constant 0 : index
    %24 = vector.load %arg6[%c0_44, %c1_45, %c0_46, %c0_47] : memref<2x18x18x4xf32, #tpu.memory_space<vmem>>, vector<2x16x16x4xf32>
    %25 = vector.shape_cast %24 : vector<2x16x16x4xf32> to vector<512x4xf32>
    %26 = arith.truncf %25 : vector<512x4xf32> to vector<512x4xbf16>
    %c0_48 = arith.constant 0 : index
    %c12 = arith.constant 12 : index
    %27 = vector.load %arg7[%c0_48, %c12] : memref<512x36xbf16, #tpu.memory_space<vmem>>, vector<512x4xbf16>
    tpu.vector_store %arg7[%c0_48, %c12], %26 {strides = array<i32>} : memref<512x36xbf16, #tpu.memory_space<vmem>>, vector<512x4xbf16>,
    %c0_49 = arith.constant 0 : index
    %c1_50 = arith.constant 1 : index
    %c1_51 = arith.constant 1 : index
    %c0_52 = arith.constant 0 : index
    %28 = vector.load %arg6[%c0_49, %c1_50, %c1_51, %c0_52] : memref<2x18x18x4xf32, #tpu.memory_space<vmem>>, vector<2x16x16x4xf32>
    %29 = vector.shape_cast %28 : vector<2x16x16x4xf32> to vector<512x4xf32>
    %30 = arith.truncf %29 : vector<512x4xf32> to vector<512x4xbf16>
    %c0_53 = arith.constant 0 : index
    %c16 = arith.constant 16 : index
    %31 = vector.load %arg7[%c0_53, %c16] : memref<512x36xbf16, #tpu.memory_space<vmem>>, vector<512x4xbf16>
    tpu.vector_store %arg7[%c0_53, %c16], %30 {strides = array<i32>} : memref<512x36xbf16, #tpu.memory_space<vmem>>, vector<512x4xbf16>,
    %c0_54 = arith.constant 0 : index
    %c1_55 = arith.constant 1 : index
    %c2_56 = arith.constant 2 : index
    %c0_57 = arith.constant 0 : index
    %32 = vector.load %arg6[%c0_54, %c1_55, %c2_56, %c0_57] : memref<2x18x18x4xf32, #tpu.memory_space<vmem>>, vector<2x16x16x4xf32>
    %33 = vector.shape_cast %32 : vector<2x16x16x4xf32> to vector<512x4xf32>
    %34 = arith.truncf %33 : vector<512x4xf32> to vector<512x4xbf16>
    %c0_58 = arith.constant 0 : index
    %c20 = arith.constant 20 : index
    %35 = vector.load %arg7[%c0_58, %c20] : memref<512x36xbf16, #tpu.memory_space<vmem>>, vector<512x4xbf16>
    tpu.vector_store %arg7[%c0_58, %c20], %34 {strides = array<i32>} : memref<512x36xbf16, #tpu.memory_space<vmem>>, vector<512x4xbf16>,
    %c0_59 = arith.constant 0 : index
    %c2_60 = arith.constant 2 : index
    %c0_61 = arith.constant 0 : index
    %c0_62 = arith.constant 0 : index
    %36 = vector.load %arg6[%c0_59, %c2_60, %c0_61, %c0_62] : memref<2x18x18x4xf32, #tpu.memory_space<vmem>>, vector<2x16x16x4xf32>
    %37 = vector.shape_cast %36 : vector<2x16x16x4xf32> to vector<512x4xf32>
    %38 = arith.truncf %37 : vector<512x4xf32> to vector<512x4xbf16>
    %c0_63 = arith.constant 0 : index
    %c24 = arith.constant 24 : index
    %39 = vector.load %arg7[%c0_63, %c24] : memref<512x36xbf16, #tpu.memory_space<vmem>>, vector<512x4xbf16>
    tpu.vector_store %arg7[%c0_63, %c24], %38 {strides = array<i32>} : memref<512x36xbf16, #tpu.memory_space<vmem>>, vector<512x4xbf16>,
    %c0_64 = arith.constant 0 : index
    %c2_65 = arith.constant 2 : index
    %c1_66 = arith.constant 1 : index
    %c0_67 = arith.constant 0 : index
    %40 = vector.load %arg6[%c0_64, %c2_65, %c1_66, %c0_67] : memref<2x18x18x4xf32, #tpu.memory_space<vmem>>, vector<2x16x16x4xf32>
    %41 = vector.shape_cast %40 : vector<2x16x16x4xf32> to vector<512x4xf32>
    %42 = arith.truncf %41 : vector<512x4xf32> to vector<512x4xbf16>
    %c0_68 = arith.constant 0 : index
    %c28 = arith.constant 28 : index
    %43 = vector.load %arg7[%c0_68, %c28] : memref<512x36xbf16, #tpu.memory_space<vmem>>, vector<512x4xbf16>
    tpu.vector_store %arg7[%c0_68, %c28], %42 {strides = array<i32>} : memref<512x36xbf16, #tpu.memory_space<vmem>>, vector<512x4xbf16>,
    %c0_69 = arith.constant 0 : index
    %c2_70 = arith.constant 2 : index
    %c2_71 = arith.constant 2 : index
    %c0_72 = arith.constant 0 : index
    %44 = vector.load %arg6[%c0_69, %c2_70, %c2_71, %c0_72] : memref<2x18x18x4xf32, #tpu.memory_space<vmem>>, vector<2x16x16x4xf32>
    %45 = vector.shape_cast %44 : vector<2x16x16x4xf32> to vector<512x4xf32>
    %46 = arith.truncf %45 : vector<512x4xf32> to vector<512x4xbf16>
    %c0_73 = arith.constant 0 : index
    %c32 = arith.constant 32 : index
    %47 = vector.load %arg7[%c0_73, %c32] : memref<512x36xbf16, #tpu.memory_space<vmem>>, vector<512x4xbf16>
    tpu.vector_store %arg7[%c0_73, %c32], %46 {strides = array<i32>} : memref<512x36xbf16, #tpu.memory_space<vmem>>, vector<512x4xbf16>,
    %c0_74 = arith.constant 0 : index
    %c0_75 = arith.constant 0 : index
    %48 = vector.load %arg7[%c0_74, %c0_75] : memref<512x36xbf16, #tpu.memory_space<vmem>>, vector<512x36xbf16>
    %c0_76 = arith.constant 0 : index
    %c0_77 = arith.constant 0 : index
    %49 = vector.load %arg2[%c0_76, %c0_77] : memref<36x4xbf16, #tpu.memory_space<vmem>>, vector<36x4xbf16>
    %cst_78 = arith.constant dense<0.000000e+00> : vector<512x4xf32>
    %50 = tpu.matmul %48, %49, %cst_78 {dimension_numbers = #tpu.dot_dimension_numbers<[1], [0], [0], [1], [0, 0, 1, 1], [], []>} : vector<512x36xbf16>, vector<36x4xbf16>, vector<512x4xf32> -> vector<512x4xf32>
    %cst_79 = arith.constant dense<0.000000e+00> : vector<4xf32>
    %51 = vector.multi_reduction <add>, %50, %cst_79 [0] : vector<512x4xf32> to vector<4xf32>
    %52 = vector.shape_cast %51 : vector<4xf32> to vector<1x4xf32>
    %cst_80 = arith.constant 0.001953125 : f32
    %53 = vector.broadcast %cst_80 : f32 to vector<1x4xf32>
    %54 = arith.mulf %52, %53 : vector<1x4xf32>
    %55 = vector.broadcast %54 : vector<1x4xf32> to vector<512x4xf32>
    %56 = arith.subf %50, %55 : vector<512x4xf32>
    %57 = arith.mulf %56, %56 : vector<512x4xf32>
    %cst_81 = arith.constant dense<0.000000e+00> : vector<4xf32>
    %58 = vector.multi_reduction <add>, %57, %cst_81 [0] : vector<512x4xf32> to vector<4xf32>
    %59 = vector.shape_cast %58 : vector<4xf32> to vector<1x4xf32>
    %cst_82 = arith.constant 0.001953125 : f32
    %60 = vector.broadcast %cst_82 : f32 to vector<1x4xf32>
    %61 = arith.mulf %59, %60 : vector<1x4xf32>
    %cst_83 = arith.constant 9.99999974E-6 : f32
    %62 = vector.broadcast %cst_83 : f32 to vector<1x4xf32>
    %63 = arith.addf %61, %62 : vector<1x4xf32>
    %64 = math.rsqrt %63 : vector<1x4xf32>
    %65 = arith.mulf %0, %64 : vector<1x4xf32>
    %66 = vector.broadcast %65 : vector<1x4xf32> to vector<512x4xf32>
    %67 = arith.mulf %56, %66 : vector<512x4xf32>
    %68 = vector.broadcast %1 : vector<1x4xf32> to vector<512x4xf32>
    %69 = arith.addf %67, %68 : vector<512x4xf32>
    %cst_84 = arith.constant 0.000000e+00 : f32
    %70 = vector.broadcast %cst_84 : f32 to vector<512x4xf32>
    %71 = arith.maximumf %69, %70 : vector<512x4xf32>
    %72 = vector.shape_cast %71 : vector<512x4xf32> to vector<2x16x16x4xf32>
    %c0_85 = arith.constant 0 : index
    %c1_86 = arith.constant 1 : index
    %c1_87 = arith.constant 1 : index
    %c0_88 = arith.constant 0 : index
    %73 = vector.load %arg6[%c0_85, %c1_86, %c1_87, %c0_88] : memref<2x18x18x4xf32, #tpu.memory_space<vmem>>, vector<2x16x16x4xf32>
    tpu.vector_store %arg6[%c0_85, %c1_86, %c1_87, %c0_88], %72 {strides = array<i32>} : memref<2x18x18x4xf32, #tpu.memory_space<vmem>>, vector<2x16x16x4xf32>,
    %c0_89 = arith.constant 0 : index
    %c0_90 = arith.constant 0 : index
    %c0_91 = arith.constant 0 : index
    %c0_92 = arith.constant 0 : index
    %74 = vector.load %arg6[%c0_89, %c0_90, %c0_91, %c0_92] : memref<2x18x18x4xf32, #tpu.memory_space<vmem>>, vector<2x16x16x4xf32>
    %75 = vector.shape_cast %74 : vector<2x16x16x4xf32> to vector<512x4xf32>
    %76 = arith.truncf %75 : vector<512x4xf32> to vector<512x4xbf16>
    %c0_93 = arith.constant 0 : index
    %c0_94 = arith.constant 0 : index
    %77 = vector.load %arg7[%c0_93, %c0_94] : memref<512x36xbf16, #tpu.memory_space<vmem>>, vector<512x4xbf16>
    tpu.vector_store %arg7[%c0_93, %c0_94], %76 {strides = array<i32>} : memref<512x36xbf16, #tpu.memory_space<vmem>>, vector<512x4xbf16>,
    %c0_95 = arith.constant 0 : index
    %c0_96 = arith.constant 0 : index
    %c1_97 = arith.constant 1 : index
    %c0_98 = arith.constant 0 : index
    %78 = vector.load %arg6[%c0_95, %c0_96, %c1_97, %c0_98] : memref<2x18x18x4xf32, #tpu.memory_space<vmem>>, vector<2x16x16x4xf32>
    %79 = vector.shape_cast %78 : vector<2x16x16x4xf32> to vector<512x4xf32>
    %80 = arith.truncf %79 : vector<512x4xf32> to vector<512x4xbf16>
    %c0_99 = arith.constant 0 : index
    %c4_100 = arith.constant 4 : index
    %81 = vector.load %arg7[%c0_99, %c4_100] : memref<512x36xbf16, #tpu.memory_space<vmem>>, vector<512x4xbf16>
    tpu.vector_store %arg7[%c0_99, %c4_100], %80 {strides = array<i32>} : memref<512x36xbf16, #tpu.memory_space<vmem>>, vector<512x4xbf16>,
    %c0_101 = arith.constant 0 : index
    %c0_102 = arith.constant 0 : index
    %c2_103 = arith.constant 2 : index
    %c0_104 = arith.constant 0 : index
    %82 = vector.load %arg6[%c0_101, %c0_102, %c2_103, %c0_104] : memref<2x18x18x4xf32, #tpu.memory_space<vmem>>, vector<2x16x16x4xf32>
    %83 = vector.shape_cast %82 : vector<2x16x16x4xf32> to vector<512x4xf32>
    %84 = arith.truncf %83 : vector<512x4xf32> to vector<512x4xbf16>
    %c0_105 = arith.constant 0 : index
    %c8_106 = arith.constant 8 : index
    %85 = vector.load %arg7[%c0_105, %c8_106] : memref<512x36xbf16, #tpu.memory_space<vmem>>, vector<512x4xbf16>
    tpu.vector_store %arg7[%c0_105, %c8_106], %84 {strides = array<i32>} : memref<512x36xbf16, #tpu.memory_space<vmem>>, vector<512x4xbf16>,
    %c0_107 = arith.constant 0 : index
    %c1_108 = arith.constant 1 : index
    %c0_109 = arith.constant 0 : index
    %c0_110 = arith.constant 0 : index
    %86 = vector.load %arg6[%c0_107, %c1_108, %c0_109, %c0_110] : memref<2x18x18x4xf32, #tpu.memory_space<vmem>>, vector<2x16x16x4xf32>
    %87 = vector.shape_cast %86 : vector<2x16x16x4xf32> to vector<512x4xf32>
    %88 = arith.truncf %87 : vector<512x4xf32> to vector<512x4xbf16>
    %c0_111 = arith.constant 0 : index
    %c12_112 = arith.constant 12 : index
    %89 = vector.load %arg7[%c0_111, %c12_112] : memref<512x36xbf16, #tpu.memory_space<vmem>>, vector<512x4xbf16>
    tpu.vector_store %arg7[%c0_111, %c12_112], %88 {strides = array<i32>} : memref<512x36xbf16, #tpu.memory_space<vmem>>, vector<512x4xbf16>,
    %c0_113 = arith.constant 0 : index
    %c1_114 = arith.constant 1 : index
    %c1_115 = arith.constant 1 : index
    %c0_116 = arith.constant 0 : index
    %90 = vector.load %arg6[%c0_113, %c1_114, %c1_115, %c0_116] : memref<2x18x18x4xf32, #tpu.memory_space<vmem>>, vector<2x16x16x4xf32>
    %91 = vector.shape_cast %90 : vector<2x16x16x4xf32> to vector<512x4xf32>
    %92 = arith.truncf %91 : vector<512x4xf32> to vector<512x4xbf16>
    %c0_117 = arith.constant 0 : index
    %c16_118 = arith.constant 16 : index
    %93 = vector.load %arg7[%c0_117, %c16_118] : memref<512x36xbf16, #tpu.memory_space<vmem>>, vector<512x4xbf16>
    tpu.vector_store %arg7[%c0_117, %c16_118], %92 {strides = array<i32>} : memref<512x36xbf16, #tpu.memory_space<vmem>>, vector<512x4xbf16>,
    %c0_119 = arith.constant 0 : index
    %c1_120 = arith.constant 1 : index
    %c2_121 = arith.constant 2 : index
    %c0_122 = arith.constant 0 : index
    %94 = vector.load %arg6[%c0_119, %c1_120, %c2_121, %c0_122] : memref<2x18x18x4xf32, #tpu.memory_space<vmem>>, vector<2x16x16x4xf32>
    %95 = vector.shape_cast %94 : vector<2x16x16x4xf32> to vector<512x4xf32>
    %96 = arith.truncf %95 : vector<512x4xf32> to vector<512x4xbf16>
    %c0_123 = arith.constant 0 : index
    %c20_124 = arith.constant 20 : index
    %97 = vector.load %arg7[%c0_123, %c20_124] : memref<512x36xbf16, #tpu.memory_space<vmem>>, vector<512x4xbf16>
    tpu.vector_store %arg7[%c0_123, %c20_124], %96 {strides = array<i32>} : memref<512x36xbf16, #tpu.memory_space<vmem>>, vector<512x4xbf16>,
    %c0_125 = arith.constant 0 : index
    %c2_126 = arith.constant 2 : index
    %c0_127 = arith.constant 0 : index
    %c0_128 = arith.constant 0 : index
    %98 = vector.load %arg6[%c0_125, %c2_126, %c0_127, %c0_128] : memref<2x18x18x4xf32, #tpu.memory_space<vmem>>, vector<2x16x16x4xf32>
    %99 = vector.shape_cast %98 : vector<2x16x16x4xf32> to vector<512x4xf32>
    %100 = arith.truncf %99 : vector<512x4xf32> to vector<512x4xbf16>
    %c0_129 = arith.constant 0 : index
    %c24_130 = arith.constant 24 : index
    %101 = vector.load %arg7[%c0_129, %c24_130] : memref<512x36xbf16, #tpu.memory_space<vmem>>, vector<512x4xbf16>
    tpu.vector_store %arg7[%c0_129, %c24_130], %100 {strides = array<i32>} : memref<512x36xbf16, #tpu.memory_space<vmem>>, vector<512x4xbf16>,
    %c0_131 = arith.constant 0 : index
    %c2_132 = arith.constant 2 : index
    %c1_133 = arith.constant 1 : index
    %c0_134 = arith.constant 0 : index
    %102 = vector.load %arg6[%c0_131, %c2_132, %c1_133, %c0_134] : memref<2x18x18x4xf32, #tpu.memory_space<vmem>>, vector<2x16x16x4xf32>
    %103 = vector.shape_cast %102 : vector<2x16x16x4xf32> to vector<512x4xf32>
    %104 = arith.truncf %103 : vector<512x4xf32> to vector<512x4xbf16>
    %c0_135 = arith.constant 0 : index
    %c28_136 = arith.constant 28 : index
    %105 = vector.load %arg7[%c0_135, %c28_136] : memref<512x36xbf16, #tpu.memory_space<vmem>>, vector<512x4xbf16>
    tpu.vector_store %arg7[%c0_135, %c28_136], %104 {strides = array<i32>} : memref<512x36xbf16, #tpu.memory_space<vmem>>, vector<512x4xbf16>,
    %c0_137 = arith.constant 0 : index
    %c2_138 = arith.constant 2 : index
    %c2_139 = arith.constant 2 : index
    %c0_140 = arith.constant 0 : index
    %106 = vector.load %arg6[%c0_137, %c2_138, %c2_139, %c0_140] : memref<2x18x18x4xf32, #tpu.memory_space<vmem>>, vector<2x16x16x4xf32>
    %107 = vector.shape_cast %106 : vector<2x16x16x4xf32> to vector<512x4xf32>
    %108 = arith.truncf %107 : vector<512x4xf32> to vector<512x4xbf16>
    %c0_141 = arith.constant 0 : index
    %c32_142 = arith.constant 32 : index
    %109 = vector.load %arg7[%c0_141, %c32_142] : memref<512x36xbf16, #tpu.memory_space<vmem>>, vector<512x4xbf16>
    tpu.vector_store %arg7[%c0_141, %c32_142], %108 {strides = array<i32>} : memref<512x36xbf16, #tpu.memory_space<vmem>>, vector<512x4xbf16>,
    %c0_143 = arith.constant 0 : index
    %c0_144 = arith.constant 0 : index
    %110 = vector.load %arg7[%c0_143, %c0_144] : memref<512x36xbf16, #tpu.memory_space<vmem>>, vector<512x36xbf16>
    %c0_145 = arith.constant 0 : index
    %c0_146 = arith.constant 0 : index
    %111 = vector.load %arg3[%c0_145, %c0_146] : memref<36x4xbf16, #tpu.memory_space<vmem>>, vector<36x4xbf16>
    %cst_147 = arith.constant dense<0.000000e+00> : vector<512x4xf32>
    %112 = tpu.matmul %110, %111, %cst_147 {dimension_numbers = #tpu.dot_dimension_numbers<[1], [0], [0], [1], [0, 0, 1, 1], [], []>} : vector<512x36xbf16>, vector<36x4xbf16>, vector<512x4xf32> -> vector<512x4xf32>
    %cst_148 = arith.constant dense<0.000000e+00> : vector<4xf32>
    %113 = vector.multi_reduction <add>, %112, %cst_148 [0] : vector<512x4xf32> to vector<4xf32>
    %114 = vector.shape_cast %113 : vector<4xf32> to vector<1x4xf32>
    %cst_149 = arith.constant 0.001953125 : f32
    %115 = vector.broadcast %cst_149 : f32 to vector<1x4xf32>
    %116 = arith.mulf %114, %115 : vector<1x4xf32>
    %117 = vector.broadcast %116 : vector<1x4xf32> to vector<512x4xf32>
    %118 = arith.subf %112, %117 : vector<512x4xf32>
    %119 = arith.mulf %118, %118 : vector<512x4xf32>
    %cst_150 = arith.constant dense<0.000000e+00> : vector<4xf32>
    %120 = vector.multi_reduction <add>, %119, %cst_150 [0] : vector<512x4xf32> to vector<4xf32>
    %121 = vector.shape_cast %120 : vector<4xf32> to vector<1x4xf32>
    %cst_151 = arith.constant 0.001953125 : f32
    %122 = vector.broadcast %cst_151 : f32 to vector<1x4xf32>
    %123 = arith.mulf %121, %122 : vector<1x4xf32>
    %cst_152 = arith.constant 9.99999974E-6 : f32
    %124 = vector.broadcast %cst_152 : f32 to vector<1x4xf32>
    %125 = arith.addf %123, %124 : vector<1x4xf32>
    %126 = math.rsqrt %125 : vector<1x4xf32>
    %127 = arith.mulf %2, %126 : vector<1x4xf32>
    %128 = vector.broadcast %127 : vector<1x4xf32> to vector<512x4xf32>
    %129 = arith.mulf %118, %128 : vector<512x4xf32>
    %130 = vector.broadcast %3 : vector<1x4xf32> to vector<512x4xf32>
    %131 = arith.addf %129, %130 : vector<512x4xf32>
    %c0_153 = arith.constant 0 : index
    %c0_154 = arith.constant 0 : index
    %c0_155 = arith.constant 0 : index
    %c0_156 = arith.constant 0 : index
    %132 = vector.load %arg1[%c0_153, %c0_154, %c0_155, %c0_156] : memref<2x16x16x4xf32, #tpu.memory_space<vmem>>, vector<2x16x16x4xf32>
    %133 = vector.shape_cast %132 : vector<2x16x16x4xf32> to vector<512x4xf32>
    %134 = arith.addf %131, %133 : vector<512x4xf32>
    %cst_157 = arith.constant 0.000000e+00 : f32
    %135 = vector.broadcast %cst_157 : f32 to vector<512x4xf32>
    %136 = arith.maximumf %134, %135 : vector<512x4xf32>
    %c0_158 = arith.constant 0 : index
    %c0_159 = arith.constant 0 : index
    %137 = vector.load %arg5[%c0_158, %c0_159] : memref<512x4xf32, #tpu.memory_space<vmem>>, vector<512x4xf32>
    tpu.vector_store %arg5[%c0_158, %c0_159], %136 {strides = array<i32>} : memref<512x4xf32, #tpu.memory_space<vmem>>, vector<512x4xf32>,
    return
  }
  func.func @transform_0(%arg0: i32) -> (i32, i32, i32, i32) {
    %c0_i32 = arith.constant 0 : i32
    %c0_i32_0 = arith.constant 0 : i32
    %c0_i32_1 = arith.constant 0 : i32
    %c0_i32_2 = arith.constant 0 : i32
    %c0_i32_3 = arith.constant 0 : i32
    return %c0_i32, %c0_i32_0, %c0_i32_1, %c0_i32_2 : i32, i32, i32, i32
  }
  func.func @transform_1(%arg0: i32) -> (i32, i32) {
    %c0_i32 = arith.constant 0 : i32
    %c0_i32_0 = arith.constant 0 : i32
    %c0_i32_1 = arith.constant 0 : i32
    return %c0_i32, %c0_i32_0 : i32, i32
  }
  func.func @transform_2(%arg0: i32) -> (i32, i32) {
    %c0_i32 = arith.constant 0 : i32
    %c0_i32_0 = arith.constant 0 : i32
    %c0_i32_1 = arith.constant 0 : i32
    return %c0_i32, %c0_i32_0 : i32, i32
  }
  func.func @transform_3(%arg0: i32) -> (i32, i32) {
    %c0_i32 = arith.constant 0 : i32
    %c0_i32_0 = arith.constant 0 : i32
    %c0_i32_1 = arith.constant 0 : i32
    return %c0_i32, %c0_i32_0 : i32, i32
  }
  func.func @transform_4(%arg0: i32) -> (i32, i32) {
    %c0_i32 = arith.constant 0 : i32
    %c0_i32_0 = arith.constant 0 : i32
    %c0_i32_1 = arith.constant 0 : i32
    return %c0_i32, %c0_i32_0 : i32, i32
  }
}

</mosaic_0001>

<llo_original>
// kernel: tpu_custom_call.1
$region0: #{tpu_custom_call.1}
  #allocation0 [shape = 'u32[]', space=smem, size = 0x4, offset = 0x4, fixed_abs, tag = 'smem constant byte address 0x4 - core index']
  #allocation1 [shape = 'u32[144,128]{1,0:T(1,128)}', space=vmem, size = 0x12000, scoped, tag = 'internal scratch']
  #allocation2 [shape = 'f32[2,18,18,4]{3,2,1,0:T(8,128)}', space=vmem, size = 0x6c000, scoped, tag = 'scratch operand']
  #allocation3 [shape = 'bf16[512,36]{1,0:T(8,128)(2,1)}', space=vmem, size = 0x20000, scoped, tag = 'scratch operand']
  %s0 = inlined_call_operand.vmem [shape: f32[2,16,16,4], index: 0, kind: input, shape index: {}]
  %s1 = inlined_call_operand.vmem [shape: bf16[36,4], index: 1, kind: input, shape index: {}]
  %s2 = inlined_call_operand.vmem [shape: bf16[36,4], index: 2, kind: input, shape index: {}]
  %s3 = inlined_call_operand.vmem [shape: f32[4,4], index: 3, kind: input, shape index: {}]
  %s4 = inlined_call_operand.vmem [shape: f32[512,4], index: 4, kind: output, shape index: {}]
  %s5 = sld [smem:[#allocation0]]
  $region26: #{tpu_custom_call.1} parent=0
    _
  %s7 = ssub.s32 1, %s5
  %s8 = scalar_select 0, %s7, %s5
  // Predicated region
  $region2: #{tpu_custom_call.1} parent=0 // pred_check
    _
  $region3: #{tpu_custom_call.1} parent=0 // pred_check_branch
    %10 = sbr.rel (0) target = $region5
  $region4: #{tpu_custom_call.1} parent=0 // pred_region
    _
  $region5: #{tpu_custom_call.1} parent=0 // pred_fallthru
    _
  // Predicated region
  $region6: #{tpu_custom_call.1} parent=0 // pred_check
    _
  $region7: #{tpu_custom_call.1} parent=0 // pred_check_branch
    %12 = sbr.rel (0) target = $region9
  $region8: #{tpu_custom_call.1} parent=0 // pred_region
    _
  $region9: #{tpu_custom_call.1} parent=0 // pred_fallthru
    _
  // Predicated region
  $region10: #{tpu_custom_call.1} parent=0 // pred_check
    _
  $region11: #{tpu_custom_call.1} parent=0 // pred_check_branch
    %14 = sbr.rel (0) target = $region13
  $region12: #{tpu_custom_call.1} parent=0 // pred_region
    _
  $region13: #{tpu_custom_call.1} parent=0 // pred_fallthru
    _
  // Predicated region
  $region14: #{tpu_custom_call.1} parent=0 // pred_check
    _
  $region15: #{tpu_custom_call.1} parent=0 // pred_check_branch
    %16 = sbr.rel (0) target = $region17
  $region16: #{tpu_custom_call.1} parent=0 // pred_region
    _
  $region17: #{tpu_custom_call.1} parent=0 // pred_fallthru
    _
  %v18 = vld [vmem:[%s3] sm:$0x1]
  %v19 = vld [vmem:[%s3 + $0x1] sm:$0x1]
  %v20 = vld [vmem:[%s3 + $0x2] sm:$0x1]
  %v21 = vld [vmem:[%s3 + $0x3] sm:$0x1]
  %vm22 = vcmask 31744
  %23 = vst.msk [vmem:[#allocation2] sm:$0xff] %vm22, 0.0
  %24 = vst.msk [vmem:[#allocation2 + $0x8] sm:$0xff] %vm22, 0.0
  %vm25 = vcmask 25600
  %26 = vst.msk [vmem:[#allocation2 + $0x10] sm:$0x3] %vm25, 0.0
  %27 = vst.msk [vmem:[#allocation2 + $0x1b0] sm:$0xff] %vm22, 0.0
  %28 = vst.msk [vmem:[#allocation2 + $0x1b8] sm:$0xff] %vm22, 0.0
  %29 = vst.msk [vmem:[#allocation2 + $0x1c0] sm:$0x3] %vm25, 0.0
  %s30 = scalar_lea.vmem [#allocation2], 408
  %31 = vst.msk [vmem:[%s30] sm:$0xff] %vm22, 0.0
  %32 = vst.msk [vmem:[%s30 + $0x8] sm:$0xff] %vm22, 0.0
  %33 = vst.msk [vmem:[%s30 + $0x10] sm:$0x3] %vm25, 0.0
  %34 = vst.msk [vmem:[%s30 + $0x1b0] sm:$0xff] %vm22, 0.0
  %35 = vst.msk [vmem:[%s30 + $0x1b8] sm:$0xff] %vm22, 0.0
  %36 = vst.msk [vmem:[%s30 + $0x1c0] sm:$0x3] %vm25, 0.0
  %vm37 = vcmask 24576
  %38 = vst.msk [vmem:[#allocation2] sm:$0x1] %vm37, 0.0
  %39 = vst.msk [vmem:[#allocation2 + $0x18] sm:$0x1] %vm37, 0.0
  %40 = vst.msk [vmem:[#allocation2 + $0x30] sm:$0x1] %vm37, 0.0
  %41 = vst.msk [vmem:[#allocation2 + $0x48] sm:$0x1] %vm37, 0.0
  %42 = vst.msk [vmem:[#allocation2 + $0x60] sm:$0x1] %vm37, 0.0
  %43 = vst.msk [vmem:[#allocation2 + $0x78] sm:$0x1] %vm37, 0.0
  %44 = vst.msk [vmem:[#allocation2 + $0x90] sm:$0x1] %vm37, 0.0
  %45 = vst.msk [vmem:[#allocation2 + $0xa8] sm:$0x1] %vm37, 0.0
  %46 = vst.msk [vmem:[#allocation2 + $0xc0] sm:$0x1] %vm37, 0.0
  %47 = vst.msk [vmem:[#allocation2 + $0xd8] sm:$0x1] %vm37, 0.0
  %48 = vst.msk [vmem:[#allocation2 + $0xf0] sm:$0x1] %vm37, 0.0
  %49 = vst.msk [vmem:[#allocation2 + $0x108] sm:$0x1] %vm37, 0.0
  %50 = vst.msk [vmem:[#allocation2 + $0x120] sm:$0x1] %vm37, 0.0
  %51 = vst.msk [vmem:[#allocation2 + $0x138] sm:$0x1] %vm37, 0.0
  %52 = vst.msk [vmem:[#allocation2 + $0x150] sm:$0x1] %vm37, 0.0
  %53 = vst.msk [vmem:[#allocation2 + $0x168] sm:$0x1] %vm37, 0.0
  %54 = vst.msk [vmem:[#allocation2 + $0x180] sm:$0x1] %vm37, 0.0
  %55 = vst.msk [vmem:[#allocation2 + $0x198] sm:$0x1] %vm37, 0.0
  %56 = vst.msk [vmem:[#allocation2 + $0x1b0] sm:$0x1] %vm37, 0.0
  %57 = vst.msk [vmem:[#allocation2 + $0x1c8] sm:$0x1] %vm37, 0.0
  %58 = vst.msk [vmem:[#allocation2 + $0x1e0] sm:$0x1] %vm37, 0.0
  %59 = vst.msk [vmem:[#allocation2 + $0x1f8] sm:$0x1] %vm37, 0.0
  %60 = vst.msk [vmem:[#allocation2 + $0x210] sm:$0x1] %vm37, 0.0
  %61 = vst.msk [vmem:[#allocation2 + $0x228] sm:$0x1] %vm37, 0.0
  %62 = vst.msk [vmem:[#allocation2 + $0x240] sm:$0x1] %vm37, 0.0
  %63 = vst.msk [vmem:[#allocation2 + $0x258] sm:$0x1] %vm37, 0.0
  %64 = vst.msk [vmem:[#allocation2 + $0x270] sm:$0x1] %vm37, 0.0
  %65 = vst.msk [vmem:[#allocation2 + $0x288] sm:$0x1] %vm37, 0.0
  %66 = vst.msk [vmem:[#allocation2 + $0x2a0] sm:$0x1] %vm37, 0.0
  %67 = vst.msk [vmem:[#allocation2 + $0x2b8] sm:$0x1] %vm37, 0.0
  %68 = vst.msk [vmem:[#allocation2 + $0x2d0] sm:$0x1] %vm37, 0.0
  %69 = vst.msk [vmem:[#allocation2 + $0x2e8] sm:$0x1] %vm37, 0.0
  %70 = vst.msk [vmem:[#allocation2 + $0x300] sm:$0x1] %vm37, 0.0
  %71 = vst.msk [vmem:[#allocation2 + $0x318] sm:$0x1] %vm37, 0.0
  %72 = vst.msk [vmem:[#allocation2 + $0x330] sm:$0x1] %vm37, 0.0
  %73 = vst.msk [vmem:[#allocation2 + $0x348] sm:$0x1] %vm37, 0.0
  %74 = vst.msk [vmem:[#allocation2 + $0x11] sm:$0x1] %vm37, 0.0
  %75 = vst.msk [vmem:[#allocation2 + $0x29] sm:$0x1] %vm37, 0.0
  %76 = vst.msk [vmem:[#allocation2 + $0x41] sm:$0x1] %vm37, 0.0
  %77 = vst.msk [vmem:[#allocation2 + $0x59] sm:$0x1] %vm37, 0.0
  %78 = vst.msk [vmem:[#allocation2 + $0x71] sm:$0x1] %vm37, 0.0
  %79 = vst.msk [vmem:[#allocation2 + $0x89] sm:$0x1] %vm37, 0.0
  %80 = vst.msk [vmem:[#allocation2 + $0xa1] sm:$0x1] %vm37, 0.0
  %81 = vst.msk [vmem:[#allocation2 + $0xb9] sm:$0x1] %vm37, 0.0
  %82 = vst.msk [vmem:[#allocation2 + $0xd1] sm:$0x1] %vm37, 0.0
  %83 = vst.msk [vmem:[#allocation2 + $0xe9] sm:$0x1] %vm37, 0.0
  %84 = vst.msk [vmem:[#allocation2 + $0x101] sm:$0x1] %vm37, 0.0
  %85 = vst.msk [vmem:[#allocation2 + $0x119] sm:$0x1] %vm37, 0.0
  %86 = vst.msk [vmem:[#allocation2 + $0x131] sm:$0x1] %vm37, 0.0
  %87 = vst.msk [vmem:[#allocation2 + $0x149] sm:$0x1] %vm37, 0.0
  %88 = vst.msk [vmem:[#allocation2 + $0x161] sm:$0x1] %vm37, 0.0
  %89 = vst.msk [vmem:[#allocation2 + $0x179] sm:$0x1] %vm37, 0.0
  %90 = vst.msk [vmem:[#allocation2 + $0x191] sm:$0x1] %vm37, 0.0
  %91 = vst.msk [vmem:[#allocation2 + $0x1a9] sm:$0x1] %vm37, 0.0
  %92 = vst.msk [vmem:[#allocation2 + $0x1c1] sm:$0x1] %vm37, 0.0
  %93 = vst.msk [vmem:[#allocation2 + $0x1d9] sm:$0x1] %vm37, 0.0
  %94 = vst.msk [vmem:[#allocation2 + $0x1f1] sm:$0x1] %vm37, 0.0
  %95 = vst.msk [vmem:[#allocation2 + $0x209] sm:$0x1] %vm37, 0.0
  %96 = vst.msk [vmem:[#allocation2 + $0x221] sm:$0x1] %vm37, 0.0
  %97 = vst.msk [vmem:[#allocation2 + $0x239] sm:$0x1] %vm37, 0.0
  %98 = vst.msk [vmem:[#allocation2 + $0x251] sm:$0x1] %vm37, 0.0
  %99 = vst.msk [vmem:[#allocation2 + $0x269] sm:$0x1] %vm37, 0.0
  %100 = vst.msk [vmem:[#allocation2 + $0x281] sm:$0x1] %vm37, 0.0
  %101 = vst.msk [vmem:[#allocation2 + $0x299] sm:$0x1] %vm37, 0.0
  %102 = vst.msk [vmem:[#allocation2 + $0x2b1] sm:$0x1] %vm37, 0.0
  %103 = vst.msk [vmem:[#allocation2 + $0x2c9] sm:$0x1] %vm37, 0.0
  %104 = vst.msk [vmem:[#allocation2 + $0x2e1] sm:$0x1] %vm37, 0.0
  %105 = vst.msk [vmem:[#allocation2 + $0x2f9] sm:$0x1] %vm37, 0.0
  %106 = vst.msk [vmem:[#allocation2 + $0x311] sm:$0x1] %vm37, 0.0
  %107 = vst.msk [vmem:[#allocation2 + $0x329] sm:$0x1] %vm37, 0.0
  %108 = vst.msk [vmem:[#allocation2 + $0x341] sm:$0x1] %vm37, 0.0
  %109 = vst.msk [vmem:[#allocation2 + $0x359] sm:$0x1] %vm37, 0.0
  %v110 = vld [vmem:[%s0] sm:$0xff]
  %v111 = vld [vmem:[%s0 + $0x8] sm:$0xff]
  %v112 = vld [vmem:[%s0 + $0x10] sm:$0xff]
  %v113 = vld [vmem:[%s0 + $0x18] sm:$0xff]
  %v114 = vld [vmem:[%s0 + $0x20] sm:$0xff]
  %v115 = vld [vmem:[%s0 + $0x28] sm:$0xff]
  %v116 = vld [vmem:[%s0 + $0x30] sm:$0xff]
  %v117 = vld [vmem:[%s0 + $0x38] sm:$0xff]
  %v118 = vld [vmem:[%s0 + $0x40] sm:$0xff]
  %v119 = vld [vmem:[%s0 + $0x48] sm:$0xff]
  %v120 = vld [vmem:[%s0 + $0x50] sm:$0xff]
  %v121 = vld [vmem:[%s0 + $0x58] sm:$0xff]
  %v122 = vld [vmem:[%s0 + $0x60] sm:$0xff]
  %v123 = vld [vmem:[%s0 + $0x68] sm:$0xff]
  %v124 = vld [vmem:[%s0 + $0x70] sm:$0xff]
  %v125 = vld [vmem:[%s0 + $0x78] sm:$0xff]
  %v126 = vld [vmem:[%s0 + $0x80] sm:$0xff]
  %v127 = vld [vmem:[%s0 + $0x88] sm:$0xff]
  %v128 = vld [vmem:[%s0 + $0x90] sm:$0xff]
  %v129 = vld [vmem:[%s0 + $0x98] sm:$0xff]
  %v130 = vld [vmem:[%s0 + $0xa0] sm:$0xff]
  %v131 = vld [vmem:[%s0 + $0xa8] sm:$0xff]
  %v132 = vld [vmem:[%s0 + $0xb0] sm:$0xff]
  %v133 = vld [vmem:[%s0 + $0xb8] sm:$0xff]
  %v134 = vld [vmem:[%s0 + $0xc0] sm:$0xff]
  %v135 = vld [vmem:[%s0 + $0xc8] sm:$0xff]
  %v136 = vld [vmem:[%s0 + $0xd0] sm:$0xff]
  %v137 = vld [vmem:[%s0 + $0xd8] sm:$0xff]
  %v138 = vld [vmem:[%s0 + $0xe0] sm:$0xff]
  %v139 = vld [vmem:[%s0 + $0xe8] sm:$0xff]
  %v140 = vld [vmem:[%s0 + $0xf0] sm:$0xff]
  %v141 = vld [vmem:[%s0 + $0xf8] sm:$0xff]
  %v142 = vld [vmem:[%s0 + $0x100] sm:$0xff]
  %v143 = vld [vmem:[%s0 + $0x108] sm:$0xff]
  %v144 = vld [vmem:[%s0 + $0x110] sm:$0xff]
  %v145 = vld [vmem:[%s0 + $0x118] sm:$0xff]
  %v146 = vld [vmem:[%s0 + $0x120] sm:$0xff]
  %v147 = vld [vmem:[%s0 + $0x128] sm:$0xff]
  %v148 = vld [vmem:[%s0 + $0x130] sm:$0xff]
  %v149 = vld [vmem:[%s0 + $0x138] sm:$0xff]
  %v150 = vld [vmem:[%s0 + $0x140] sm:$0xff]
  %v151 = vld [vmem:[%s0 + $0x148] sm:$0xff]
  %v152 = vld [vmem:[%s0 + $0x150] sm:$0xff]
  %v153 = vld [vmem:[%s0 + $0x158] sm:$0xff]
  %v154 = vld [vmem:[%s0 + $0x160] sm:$0xff]
  %v155 = vld [vmem:[%s0 + $0x168] sm:$0xff]
  %v156 = vld [vmem:[%s0 + $0x170] sm:$0xff]
  %v157 = vld [vmem:[%s0 + $0x178] sm:$0xff]
  %v158 = vld [vmem:[%s0 + $0x180] sm:$0xff]
  %v159 = vld [vmem:[%s0 + $0x188] sm:$0xff]
  %v160 = vld [vmem:[%s0 + $0x190] sm:$0xff]
  %v161 = vld [vmem:[%s0 + $0x198] sm:$0xff]
  %v162 = vld [vmem:[%s0 + $0x1a0] sm:$0xff]
  %v163 = vld [vmem:[%s0 + $0x1a8] sm:$0xff]
  %v164 = vld [vmem:[%s0 + $0x1b0] sm:$0xff]
  %v165 = vld [vmem:[%s0 + $0x1b8] sm:$0xff]
  %v166 = vld [vmem:[%s0 + $0x1c0] sm:$0xff]
  %v167 = vld [vmem:[%s0 + $0x1c8] sm:$0xff]
  %v168 = vld [vmem:[%s0 + $0x1d0] sm:$0xff]
  %v169 = vld [vmem:[%s0 + $0x1d8] sm:$0xff]
  %v170 = vld [vmem:[%s0 + $0x1e0] sm:$0xff]
  %v171 = vld [vmem:[%s0 + $0x1e8] sm:$0xff]
  %v172 = vld [vmem:[%s0 + $0x1f0] sm:$0xff]
  %v173 = vld [vmem:[%s0 + $0x1f8] sm:$0xff]
  %s174 = scalar_lea.vmem [#allocation2], 24
  %175 = vst.msk [vmem:[%s174 + $0x1] sm:$0xff] %vm22, %v110
  %176 = vst.msk [vmem:[%s174 + $0x9] sm:$0xff] %vm22, %v111
  %177 = vst.msk [vmem:[%s174 + $0x19] sm:$0xff] %vm22, %v112
  %178 = vst.msk [vmem:[%s174 + $0x21] sm:$0xff] %vm22, %v113
  %179 = vst.msk [vmem:[%s174 + $0x31] sm:$0xff] %vm22, %v114
  %180 = vst.msk [vmem:[%s174 + $0x39] sm:$0xff] %vm22, %v115
  %181 = vst.msk [vmem:[%s174 + $0x49] sm:$0xff] %vm22, %v116
  %182 = vst.msk [vmem:[%s174 + $0x51] sm:$0xff] %vm22, %v117
  %183 = vst.msk [vmem:[%s174 + $0x61] sm:$0xff] %vm22, %v118
  %184 = vst.msk [vmem:[%s174 + $0x69] sm:$0xff] %vm22, %v119
  %185 = vst.msk [vmem:[%s174 + $0x79] sm:$0xff] %vm22, %v120
  %186 = vst.msk [vmem:[%s174 + $0x81] sm:$0xff] %vm22, %v121
  %187 = vst.msk [vmem:[%s174 + $0x91] sm:$0xff] %vm22, %v122
  %188 = vst.msk [vmem:[%s174 + $0x99] sm:$0xff] %vm22, %v123
  %189 = vst.msk [vmem:[%s174 + $0xa9] sm:$0xff] %vm22, %v124
  %190 = vst.msk [vmem:[%s174 + $0xb1] sm:$0xff] %vm22, %v125
  %191 = vst.msk [vmem:[%s174 + $0xc1] sm:$0xff] %vm22, %v126
  %192 = vst.msk [vmem:[%s174 + $0xc9] sm:$0xff] %vm22, %v127
  %193 = vst.msk [vmem:[%s174 + $0xd9] sm:$0xff] %vm22, %v128
  %194 = vst.msk [vmem:[%s174 + $0xe1] sm:$0xff] %vm22, %v129
  %195 = vst.msk [vmem:[%s174 + $0xf1] sm:$0xff] %vm22, %v130
  %196 = vst.msk [vmem:[%s174 + $0xf9] sm:$0xff] %vm22, %v131
  %197 = vst.msk [vmem:[%s174 + $0x109] sm:$0xff] %vm22, %v132
  %198 = vst.msk [vmem:[%s174 + $0x111] sm:$0xff] %vm22, %v133
  %199 = vst.msk [vmem:[%s174 + $0x121] sm:$0xff] %vm22, %v134
  %200 = vst.msk [vmem:[%s174 + $0x129] sm:$0xff] %vm22, %v135
  %201 = vst.msk [vmem:[%s174 + $0x139] sm:$0xff] %vm22, %v136
  %202 = vst.msk [vmem:[%s174 + $0x141] sm:$0xff] %vm22, %v137
  %203 = vst.msk [vmem:[%s174 + $0x151] sm:$0xff] %vm22, %v138
  %204 = vst.msk [vmem:[%s174 + $0x159] sm:$0xff] %vm22, %v139
  %205 = vst.msk [vmem:[%s174 + $0x169] sm:$0xff] %vm22, %v140
  %206 = vst.msk [vmem:[%s174 + $0x171] sm:$0xff] %vm22, %v141
  %207 = vst.msk [vmem:[%s174 + $0x1b1] sm:$0xff] %vm22, %v142
  %208 = vst.msk [vmem:[%s174 + $0x1b9] sm:$0xff] %vm22, %v143
  %209 = vst.msk [vmem:[%s174 + $0x1c9] sm:$0xff] %vm22, %v144
  %210 = vst.msk [vmem:[%s174 + $0x1d1] sm:$0xff] %vm22, %v145
  %211 = vst.msk [vmem:[%s174 + $0x1e1] sm:$0xff] %vm22, %v146
  %212 = vst.msk [vmem:[%s174 + $0x1e9] sm:$0xff] %vm22, %v147
  %213 = vst.msk [vmem:[%s174 + $0x1f9] sm:$0xff] %vm22, %v148
  %214 = vst.msk [vmem:[%s174 + $0x201] sm:$0xff] %vm22, %v149
  %215 = vst.msk [vmem:[%s174 + $0x211] sm:$0xff] %vm22, %v150
  %216 = vst.msk [vmem:[%s174 + $0x219] sm:$0xff] %vm22, %v151
  %217 = vst.msk [vmem:[%s174 + $0x229] sm:$0xff] %vm22, %v152
  %218 = vst.msk [vmem:[%s174 + $0x231] sm:$0xff] %vm22, %v153
  %219 = vst.msk [vmem:[%s174 + $0x241] sm:$0xff] %vm22, %v154
  %220 = vst.msk [vmem:[%s174 + $0x249] sm:$0xff] %vm22, %v155
  %221 = vst.msk [vmem:[%s174 + $0x259] sm:$0xff] %vm22, %v156
  %222 = vst.msk [vmem:[%s174 + $0x261] sm:$0xff] %vm22, %v157
  %223 = vst.msk [vmem:[%s174 + $0x271] sm:$0xff] %vm22, %v158
  %224 = vst.msk [vmem:[%s174 + $0x279] sm:$0xff] %vm22, %v159
  %225 = vst.msk [vmem:[%s174 + $0x289] sm:$0xff] %vm22, %v160
  %226 = vst.msk [vmem:[%s174 + $0x291] sm:$0xff] %vm22, %v161
  %227 = vst.msk [vmem:[%s174 + $0x2a1] sm:$0xff] %vm22, %v162
  %228 = vst.msk [vmem:[%s174 + $0x2a9] sm:$0xff] %vm22, %v163
  %229 = vst.msk [vmem:[%s174 + $0x2b9] sm:$0xff] %vm22, %v164
  %230 = vst.msk [vmem:[%s174 + $0x2c1] sm:$0xff] %vm22, %v165
  %231 = vst.msk [vmem:[%s174 + $0x2d1] sm:$0xff] %vm22, %v166
  %232 = vst.msk [vmem:[%s174 + $0x2d9] sm:$0xff] %vm22, %v167
  %233 = vst.msk [vmem:[%s174 + $0x2e9] sm:$0xff] %vm22, %v168
  %234 = vst.msk [vmem:[%s174 + $0x2f1] sm:$0xff] %vm22, %v169
  %235 = vst.msk [vmem:[%s174 + $0x301] sm:$0xff] %vm22, %v170
  %236 = vst.msk [vmem:[%s174 + $0x309] sm:$0xff] %vm22, %v171
  %237 = vst.msk [vmem:[%s174 + $0x319] sm:$0xff] %vm22, %v172
  %238 = vst.msk [vmem:[%s174 + $0x321] sm:$0xff] %vm22, %v173
  %v239 = vld [vmem:[#allocation2] sm:$0xff]
  %v240 = vld [vmem:[#allocation2 + $0x8] sm:$0xff]
  %v241 = vld [vmem:[#allocation2 + $0x18] sm:$0xff]
  %v242 = vld [vmem:[#allocation2 + $0x20] sm:$0xff]
  %v243 = vld [vmem:[#allocation2 + $0x30] sm:$0xff]
  %v244 = vld [vmem:[#allocation2 + $0x38] sm:$0xff]
  %v245 = vld [vmem:[#allocation2 + $0x48] sm:$0xff]
  %v246 = vld [vmem:[#allocation2 + $0x50] sm:$0xff]
  %v247 = vld [vmem:[#allocation2 + $0x60] sm:$0xff]
  %v248 = vld [vmem:[#allocation2 + $0x68] sm:$0xff]
  %v249 = vld [vmem:[#allocation2 + $0x78] sm:$0xff]
  %v250 = vld [vmem:[#allocation2 + $0x80] sm:$0xff]
  %v251 = vld [vmem:[#allocation2 + $0x90] sm:$0xff]
  %v252 = vld [vmem:[#allocation2 + $0x98] sm:$0xff]
  %v253 = vld [vmem:[#allocation2 + $0xa8] sm:$0xff]
  %v254 = vld [vmem:[#allocation2 + $0xb0] sm:$0xff]
  %v255 = vld [vmem:[#allocation2 + $0xc0] sm:$0xff]
  %v256 = vld [vmem:[#allocation2 + $0xc8] sm:$0xff]
  %v257 = vld [vmem:[#allocation2 + $0xd8] sm:$0xff]
  %v258 = vld [vmem:[#allocation2 + $0xe0] sm:$0xff]
  %v259 = vld [vmem:[#allocation2 + $0xf0] sm:$0xff]
  %v260 = vld [vmem:[#allocation2 + $0xf8] sm:$0xff]
  %v261 = vld [vmem:[#allocation2 + $0x108] sm:$0xff]
  %v262 = vld [vmem:[#allocation2 + $0x110] sm:$0xff]
  %v263 = vld [vmem:[#allocation2 + $0x120] sm:$0xff]
  %v264 = vld [vmem:[#allocation2 + $0x128] sm:$0xff]
  %v265 = vld [vmem:[#allocation2 + $0x138] sm:$0xff]
  %v266 = vld [vmem:[#allocation2 + $0x140] sm:$0xff]
  %v267 = vld [vmem:[#allocation2 + $0x150] sm:$0xff]
  %v268 = vld [vmem:[#allocation2 + $0x158] sm:$0xff]
  %v269 = vld [vmem:[#allocation2 + $0x168] sm:$0xff]
  %v270 = vld [vmem:[#allocation2 + $0x170] sm:$0xff]
  %v271 = vld [vmem:[#allocation2 + $0x1b0] sm:$0xff]
  %v272 = vld [vmem:[#allocation2 + $0x1b8] sm:$0xff]
  %v273 = vld [vmem:[#allocation2 + $0x1c8] sm:$0xff]
  %v274 = vld [vmem:[#allocation2 + $0x1d0] sm:$0xff]
  %v275 = vld [vmem:[#allocation2 + $0x1e0] sm:$0xff]
  %v276 = vld [vmem:[#allocation2 + $0x1e8] sm:$0xff]
  %v277 = vld [vmem:[#allocation2 + $0x1f8] sm:$0xff]
  %v278 = vld [vmem:[#allocation2 + $0x200] sm:$0xff]
  %v279 = vld [vmem:[#allocation2 + $0x210] sm:$0xff]
  %v280 = vld [vmem:[#allocation2 + $0x218] sm:$0xff]
  %v281 = vld [vmem:[#allocation2 + $0x228] sm:$0xff]
  %v282 = vld [vmem:[#allocation2 + $0x230] sm:$0xff]
  %v283 = vld [vmem:[#allocation2 + $0x240] sm:$0xff]
  %v284 = vld [vmem:[#allocation2 + $0x248] sm:$0xff]
  %v285 = vld [vmem:[#allocation2 + $0x258] sm:$0xff]
  %v286 = vld [vmem:[#allocation2 + $0x260] sm:$0xff]
  %v287 = vld [vmem:[#allocation2 + $0x270] sm:$0xff]
  %v288 = vld [vmem:[#allocation2 + $0x278] sm:$0xff]
  %v289 = vld [vmem:[#allocation2 + $0x288] sm:$0xff]
  %v290 = vld [vmem:[#allocation2 + $0x290] sm:$0xff]
  %v291 = vld [vmem:[#allocation2 + $0x2a0] sm:$0xff]
  %v292 = vld [vmem:[#allocation2 + $0x2a8] sm:$0xff]
  %v293 = vld [vmem:[#allocation2 + $0x2b8] sm:$0xff]
  %v294 = vld [vmem:[#allocation2 + $0x2c0] sm:$0xff]
  %v295 = vld [vmem:[#allocation2 + $0x2d0] sm:$0xff]
  %v296 = vld [vmem:[#allocation2 + $0x2d8] sm:$0xff]
  %v297 = vld [vmem:[#allocation2 + $0x2e8] sm:$0xff]
  %v298 = vld [vmem:[#allocation2 + $0x2f0] sm:$0xff]
  %v299 = vld [vmem:[#allocation2 + $0x300] sm:$0xff]
  %v300 = vld [vmem:[#allocation2 + $0x308] sm:$0xff]
  %v301 = vld [vmem:[#allocation2 + $0x318] sm:$0xff]
  %v302 = vld [vmem:[#allocation2 + $0x320] sm:$0xff]
  %v303 = vpack.c.bf16 %v240, %v239
  %v304 = vpack.c.bf16 %v242, %v241
  %v305 = vpack.c.bf16 %v244, %v243
  %v306 = vpack.c.bf16 %v246, %v245
  %v307 = vpack.c.bf16 %v248, %v247
  %v308 = vpack.c.bf16 %v250, %v249
  %v309 = vpack.c.bf16 %v252, %v251
  %v310 = vpack.c.bf16 %v254, %v253
  %v311 = vpack.c.bf16 %v256, %v255
  %v312 = vpack.c.bf16 %v258, %v257
  %v313 = vpack.c.bf16 %v260, %v259
  %v314 = vpack.c.bf16 %v262, %v261
  %v315 = vpack.c.bf16 %v264, %v263
  %v316 = vpack.c.bf16 %v266, %v265
  %v317 = vpack.c.bf16 %v268, %v267
  %v318 = vpack.c.bf16 %v270, %v269
  %v319 = vpack.c.bf16 %v272, %v271
  %v320 = vpack.c.bf16 %v274, %v273
  %v321 = vpack.c.bf16 %v276, %v275
  %v322 = vpack.c.bf16 %v278, %v277
  %v323 = vpack.c.bf16 %v280, %v279
  %v324 = vpack.c.bf16 %v282, %v281
  %v325 = vpack.c.bf16 %v284, %v283
  %v326 = vpack.c.bf16 %v286, %v285
  %v327 = vpack.c.bf16 %v288, %v287
  %v328 = vpack.c.bf16 %v290, %v289
  %v329 = vpack.c.bf16 %v292, %v291
  %v330 = vpack.c.bf16 %v294, %v293
  %v331 = vpack.c.bf16 %v296, %v295
  %v332 = vpack.c.bf16 %v298, %v297
  %v333 = vpack.c.bf16 %v300, %v299
  %v334 = vpack.c.bf16 %v302, %v301
  %v367 = vunpack.c.l.b16 %v303
  %v368 = vunpack.c.h.b16 %v303
  %v369 = vunpack.c.l.b16 %v304
  %v370 = vunpack.c.h.b16 %v304
  %v371 = vunpack.c.l.b16 %v305
  %v372 = vunpack.c.h.b16 %v305
  %v373 = vunpack.c.l.b16 %v306
  %v374 = vunpack.c.h.b16 %v306
  %v375 = vunpack.c.l.b16 %v307
  %v376 = vunpack.c.h.b16 %v307
  %v377 = vunpack.c.l.b16 %v308
  %v378 = vunpack.c.h.b16 %v308
  %v379 = vunpack.c.l.b16 %v309
  %v380 = vunpack.c.h.b16 %v309
  %v381 = vunpack.c.l.b16 %v310
  %v382 = vunpack.c.h.b16 %v310
  %v383 = vunpack.c.l.b16 %v311
  %v384 = vunpack.c.h.b16 %v311
  %v385 = vunpack.c.l.b16 %v312
  %v386 = vunpack.c.h.b16 %v312
  %v387 = vunpack.c.l.b16 %v313
  %v388 = vunpack.c.h.b16 %v313
  %v389 = vunpack.c.l.b16 %v314
  %v390 = vunpack.c.h.b16 %v314
  %v391 = vunpack.c.l.b16 %v315
  %v392 = vunpack.c.h.b16 %v315
  %v393 = vunpack.c.l.b16 %v316
  %v394 = vunpack.c.h.b16 %v316
  %v395 = vunpack.c.l.b16 %v317
  %v396 = vunpack.c.h.b16 %v317
  %v397 = vunpack.c.l.b16 %v318
  %v398 = vunpack.c.h.b16 %v318
  %v399 = vunpack.c.l.b16 %v319
  %v400 = vunpack.c.h.b16 %v319
  %v401 = vunpack.c.l.b16 %v320
  %v402 = vunpack.c.h.b16 %v320
  %v403 = vunpack.c.l.b16 %v321
  %v404 = vunpack.c.h.b16 %v321
  %v405 = vunpack.c.l.b16 %v322
  %v406 = vunpack.c.h.b16 %v322
  %v407 = vunpack.c.l.b16 %v323
  %v408 = vunpack.c.h.b16 %v323
  %v409 = vunpack.c.l.b16 %v324
  %v410 = vunpack.c.h.b16 %v324
  %v411 = vunpack.c.l.b16 %v325
  %v412 = vunpack.c.h.b16 %v325
  %v413 = vunpack.c.l.b16 %v326
  %v414 = vunpack.c.h.b16 %v326
  %v415 = vunpack.c.l.b16 %v327
  %v416 = vunpack.c.h.b16 %v327
  %v417 = vunpack.c.l.b16 %v328
  %v418 = vunpack.c.h.b16 %v328
  %v419 = vunpack.c.l.b16 %v329
  %v420 = vunpack.c.h.b16 %v329
  %v421 = vunpack.c.l.b16 %v330
  %v422 = vunpack.c.h.b16 %v330
  %v423 = vunpack.c.l.b16 %v331
  %v424 = vunpack.c.h.b16 %v331
  %v425 = vunpack.c.l.b16 %v332
  %v426 = vunpack.c.h.b16 %v332
  %v427 = vunpack.c.l.b16 %v333
  %v428 = vunpack.c.h.b16 %v333
  %v429 = vunpack.c.l.b16 %v334
  %v430 = vunpack.c.h.b16 %v334
  %v431 = vpack.c.b16 %v367, %v367
  %v432 = vpack.c.b16 %v368, %v368
  %v433 = vpack.c.b16 %v369, %v369
  %v434 = vpack.c.b16 %v370, %v370
  %v435 = vpack.c.b16 %v371, %v371
  %v436 = vpack.c.b16 %v372, %v372
  %v437 = vpack.c.b16 %v373, %v373
  %v438 = vpack.c.b16 %v374, %v374
  %v439 = vpack.c.b16 %v375, %v375
  %v440 = vpack.c.b16 %v376, %v376
  %v441 = vpack.c.b16 %v377, %v377
  %v442 = vpack.c.b16 %v378, %v378
  %v443 = vpack.c.b16 %v379, %v379
  %v444 = vpack.c.b16 %v380, %v380
  %v445 = vpack.c.b16 %v381, %v381
  %v446 = vpack.c.b16 %v382, %v382
  %v447 = vpack.c.b16 %v383, %v383
  %v448 = vpack.c.b16 %v384, %v384
  %v449 = vpack.c.b16 %v385, %v385
  %v450 = vpack.c.b16 %v386, %v386
  %v451 = vpack.c.b16 %v387, %v387
  %v452 = vpack.c.b16 %v388, %v388
  %v453 = vpack.c.b16 %v389, %v389
  %v454 = vpack.c.b16 %v390, %v390
  %v455 = vpack.c.b16 %v391, %v391
  %v456 = vpack.c.b16 %v392, %v392
  %v457 = vpack.c.b16 %v393, %v393
  %v458 = vpack.c.b16 %v394, %v394
  %v459 = vpack.c.b16 %v395, %v395
  %v460 = vpack.c.b16 %v396, %v396
  %v461 = vpack.c.b16 %v397, %v397
  %v462 = vpack.c.b16 %v398, %v398
  %v463 = vpack.c.b16 %v399, %v399
  %v464 = vpack.c.b16 %v400, %v400
  %v465 = vpack.c.b16 %v401, %v401
  %v466 = vpack.c.b16 %v402, %v402
  %v467 = vpack.c.b16 %v403, %v403
  %v468 = vpack.c.b16 %v404, %v404
  %v469 = vpack.c.b16 %v405, %v405
  %v470 = vpack.c.b16 %v406, %v406
  %v471 = vpack.c.b16 %v407, %v407
  %v472 = vpack.c.b16 %v408, %v408
  %v473 = vpack.c.b16 %v409, %v409
  %v474 = vpack.c.b16 %v410, %v410
  %v475 = vpack.c.b16 %v411, %v411
  %v476 = vpack.c.b16 %v412, %v412
  %v477 = vpack.c.b16 %v413, %v413
  %v478 = vpack.c.b16 %v414, %v414
  %v479 = vpack.c.b16 %v415, %v415
  %v480 = vpack.c.b16 %v416, %v416
  %v481 = vpack.c.b16 %v417, %v417
  %v482 = vpack.c.b16 %v418, %v418
  %v483 = vpack.c.b16 %v419, %v419
  %v484 = vpack.c.b16 %v420, %v420
  %v485 = vpack.c.b16 %v421, %v421
  %v486 = vpack.c.b16 %v422, %v422
  %v487 = vpack.c.b16 %v423, %v423
  %v488 = vpack.c.b16 %v424, %v424
  %v489 = vpack.c.b16 %v425, %v425
  %v490 = vpack.c.b16 %v426, %v426
  %v491 = vpack.c.b16 %v427, %v427
  %v492 = vpack.c.b16 %v428, %v428
  %v493 = vpack.c.b16 %v429, %v429
  %v494 = vpack.c.b16 %v430, %v430
  %vm559 = vcmask 27648
  %560 = vst.msk [vmem:[#allocation3] sm:$0xf] %vm559, %v431
  %561 = vst.msk [vmem:[#allocation3 + $0x4] sm:$0xf] %vm559, %v432
  %562 = vst.msk [vmem:[#allocation3 + $0x8] sm:$0xf] %vm559, %v433
  %563 = vst.msk [vmem:[#allocation3 + $0xc] sm:$0xf] %vm559, %v434
  %564 = vst.msk [vmem:[#allocation3 + $0x10] sm:$0xf] %vm559, %v435
  %565 = vst.msk [vmem:[#allocation3 + $0x14] sm:$0xf] %vm559, %v436
  %566 = vst.msk [vmem:[#allocation3 + $0x18] sm:$0xf] %vm559, %v437
  %567 = vst.msk [vmem:[#allocation3 + $0x1c] sm:$0xf] %vm559, %v438
  %568 = vst.msk [vmem:[#allocation3 + $0x20] sm:$0xf] %vm559, %v439
  %569 = vst.msk [vmem:[#allocation3 + $0x24] sm:$0xf] %vm559, %v440
  %570 = vst.msk [vmem:[#allocation3 + $0x28] sm:$0xf] %vm559, %v441
  %571 = vst.msk [vmem:[#allocation3 + $0x2c] sm:$0xf] %vm559, %v442
  %572 = vst.msk [vmem:[#allocation3 + $0x30] sm:$0xf] %vm559, %v443
  %573 = vst.msk [vmem:[#allocation3 + $0x34] sm:$0xf] %vm559, %v444
  %574 = vst.msk [vmem:[#allocation3 + $0x38] sm:$0xf] %vm559, %v445
  %575 = vst.msk [vmem:[#allocation3 + $0x3c] sm:$0xf] %vm559, %v446
  %576 = vst.msk [vmem:[#allocation3 + $0x40] sm:$0xf] %vm559, %v447
  %577 = vst.msk [vmem:[#allocation3 + $0x44] sm:$0xf] %vm559, %v448
  %578 = vst.msk [vmem:[#allocation3 + $0x48] sm:$0xf] %vm559, %v449
  %579 = vst.msk [vmem:[#allocation3 + $0x4c] sm:$0xf] %vm559, %v450
  %580 = vst.msk [vmem:[#allocation3 + $0x50] sm:$0xf] %vm559, %v451
  %581 = vst.msk [vmem:[#allocation3 + $0x54] sm:$0xf] %vm559, %v452
  %582 = vst.msk [vmem:[#allocation3 + $0x58] sm:$0xf] %vm559, %v453
  %583 = vst.msk [vmem:[#allocation3 + $0x5c] sm:$0xf] %vm559, %v454
  %584 = vst.msk [vmem:[#allocation3 + $0x60] sm:$0xf] %vm559, %v455
  %585 = vst.msk [vmem:[#allocation3 + $0x64] sm:$0xf] %vm559, %v456
  %586 = vst.msk [vmem:[#allocation3 + $0x68] sm:$0xf] %vm559, %v457
  %587 = vst.msk [vmem:[#allocation3 + $0x6c] sm:$0xf] %vm559, %v458
  %588 = vst.msk [vmem:[#allocation3 + $0x70] sm:$0xf] %vm559, %v459
  %589 = vst.msk [vmem:[#allocation3 + $0x74] sm:$0xf] %vm559, %v460
  %590 = vst.msk [vmem:[#allocation3 + $0x78] sm:$0xf] %vm559, %v461
  %591 = vst.msk [vmem:[#allocation3 + $0x7c] sm:$0xf] %vm559, %v462
  %592 = vst.msk [vmem:[#allocation3 + $0x80] sm:$0xf] %vm559, %v463
  %593 = vst.msk [vmem:[#allocation3 + $0x84] sm:$0xf] %vm559, %v464
  %594 = vst.msk [vmem:[#allocation3 + $0x88] sm:$0xf] %vm559, %v465
  %595 = vst.msk [vmem:[#allocation3 + $0x8c] sm:$0xf] %vm559, %v466
  %596 = vst.msk [vmem:[#allocation3 + $0x90] sm:$0xf] %vm559, %v467
  %597 = vst.msk [vmem:[#allocation3 + $0x94] sm:$0xf] %vm559, %v468
  %598 = vst.msk [vmem:[#allocation3 + $0x98] sm:$0xf] %vm559, %v469
  %599 = vst.msk [vmem:[#allocation3 + $0x9c] sm:$0xf] %vm559, %v470
  %600 = vst.msk [vmem:[#allocation3 + $0xa0] sm:$0xf] %vm559, %v471
  %601 = vst.msk [vmem:[#allocation3 + $0xa4] sm:$0xf] %vm559, %v472
  %602 = vst.msk [vmem:[#allocation3 + $0xa8] sm:$0xf] %vm559, %v473
  %603 = vst.msk [vmem:[#allocation3 + $0xac] sm:$0xf] %vm559, %v474
  %604 = vst.msk [vmem:[#allocation3 + $0xb0] sm:$0xf] %vm559, %v475
  %605 = vst.msk [vmem:[#allocation3 + $0xb4] sm:$0xf] %vm559, %v476
  %606 = vst.msk [vmem:[#allocation3 + $0xb8] sm:$0xf] %vm559, %v477
  %607 = vst.msk [vmem:[#allocation3 + $0xbc] sm:$0xf] %vm559, %v478
  %608 = vst.msk [vmem:[#allocation3 + $0xc0] sm:$0xf] %vm559, %v479
  %609 = vst.msk [vmem:[#allocation3 + $0xc4] sm:$0xf] %vm559, %v480
  %610 = vst.msk [vmem:[#allocation3 + $0xc8] sm:$0xf] %vm559, %v481
  %611 = vst.msk [vmem:[#allocation3 + $0xcc] sm:$0xf] %vm559, %v482
  %612 = vst.msk [vmem:[#allocation3 + $0xd0] sm:$0xf] %vm559, %v483
  %613 = vst.msk [vmem:[#allocation3 + $0xd4] sm:$0xf] %vm559, %v484
  %614 = vst.msk [vmem:[#allocation3 + $0xd8] sm:$0xf] %vm559, %v485
  %615 = vst.msk [vmem:[#allocation3 + $0xdc] sm:$0xf] %vm559, %v486
  %616 = vst.msk [vmem:[#allocation3 + $0xe0] sm:$0xf] %vm559, %v487
  %617 = vst.msk [vmem:[#allocation3 + $0xe4] sm:$0xf] %vm559, %v488
  %618 = vst.msk [vmem:[#allocation3 + $0xe8] sm:$0xf] %vm559, %v489
  %619 = vst.msk [vmem:[#allocation3 + $0xec] sm:$0xf] %vm559, %v490
  %620 = vst.msk [vmem:[#allocation3 + $0xf0] sm:$0xf] %vm559, %v491
  %621 = vst.msk [vmem:[#allocation3 + $0xf4] sm:$0xf] %vm559, %v492
  %622 = vst.msk [vmem:[#allocation3 + $0xf8] sm:$0xf] %vm559, %v493
  %623 = vst.msk [vmem:[#allocation3 + $0xfc] sm:$0xf] %vm559, %v494
  %v624 = vld [vmem:[#allocation2 + $0x1] sm:$0xff]
  %v625 = vld [vmem:[#allocation2 + $0x9] sm:$0xff]
  %v626 = vld [vmem:[#allocation2 + $0x19] sm:$0xff]
  %v627 = vld [vmem:[#allocation2 + $0x21] sm:$0xff]
  %v628 = vld [vmem:[#allocation2 + $0x31] sm:$0xff]
  %v629 = vld [vmem:[#allocation2 + $0x39] sm:$0xff]
  %v630 = vld [vmem:[#allocation2 + $0x49] sm:$0xff]
  %v631 = vld [vmem:[#allocation2 + $0x51] sm:$0xff]
  %v632 = vld [vmem:[#allocation2 + $0x61] sm:$0xff]
  %v633 = vld [vmem:[#allocation2 + $0x69] sm:$0xff]
  %v634 = vld [vmem:[#allocation2 + $0x79] sm:$0xff]
  %v635 = vld [vmem:[#allocation2 + $0x81] sm:$0xff]
  %v636 = vld [vmem:[#allocation2 + $0x91] sm:$0xff]
  %v637 = vld [vmem:[#allocation2 + $0x99] sm:$0xff]
  %v638 = vld [vmem:[#allocation2 + $0xa9] sm:$0xff]
  %v639 = vld [vmem:[#allocation2 + $0xb1] sm:$0xff]
  %v640 = vld [vmem:[#allocation2 + $0xc1] sm:$0xff]
  %v641 = vld [vmem:[#allocation2 + $0xc9] sm:$0xff]
  %v642 = vld [vmem:[#allocation2 + $0xd9] sm:$0xff]
  %v643 = vld [vmem:[#allocation2 + $0xe1] sm:$0xff]
  %v644 = vld [vmem:[#allocation2 + $0xf1] sm:$0xff]
  %v645 = vld [vmem:[#allocation2 + $0xf9] sm:$0xff]
  %v646 = vld [vmem:[#allocation2 + $0x109] sm:$0xff]
  %v647 = vld [vmem:[#allocation2 + $0x111] sm:$0xff]
  %v648 = vld [vmem:[#allocation2 + $0x121] sm:$0xff]
  %v649 = vld [vmem:[#allocation2 + $0x129] sm:$0xff]
  %v650 = vld [vmem:[#allocation2 + $0x139] sm:$0xff]
  %v651 = vld [vmem:[#allocation2 + $0x141] sm:$0xff]
  %v652 = vld [vmem:[#allocation2 + $0x151] sm:$0xff]
  %v653 = vld [vmem:[#allocation2 + $0x159] sm:$0xff]
  %v654 = vld [vmem:[#allocation2 + $0x169] sm:$0xff]
  %v655 = vld [vmem:[#allocation2 + $0x171] sm:$0xff]
  %v656 = vld [vmem:[#allocation2 + $0x1b1] sm:$0xff]
  %v657 = vld [vmem:[#allocation2 + $0x1b9] sm:$0xff]
  %v658 = vld [vmem:[#allocation2 + $0x1c9] sm:$0xff]
  %v659 = vld [vmem:[#allocation2 + $0x1d1] sm:$0xff]
  %v660 = vld [vmem:[#allocation2 + $0x1e1] sm:$0xff]
  %v661 = vld [vmem:[#allocation2 + $0x1e9] sm:$0xff]
  %v662 = vld [vmem:[#allocation2 + $0x1f9] sm:$0xff]
  %v663 = vld [vmem:[#allocation2 + $0x201] sm:$0xff]
  %v664 = vld [vmem:[#allocation2 + $0x211] sm:$0xff]
  %v665 = vld [vmem:[#allocation2 + $0x219] sm:$0xff]
  %v666 = vld [vmem:[#allocation2 + $0x229] sm:$0xff]
  %v667 = vld [vmem:[#allocation2 + $0x231] sm:$0xff]
  %v668 = vld [vmem:[#allocation2 + $0x241] sm:$0xff]
  %v669 = vld [vmem:[#allocation2 + $0x249] sm:$0xff]
  %v670 = vld [vmem:[#allocation2 + $0x259] sm:$0xff]
  %v671 = vld [vmem:[#allocation2 + $0x261] sm:$0xff]
  %v672 = vld [vmem:[#allocation2 + $0x271] sm:$0xff]
  %v673 = vld [vmem:[#allocation2 + $0x279] sm:$0xff]
  %v674 = vld [vmem:[#allocation2 + $0x289] sm:$0xff]
  %v675 = vld [vmem:[#allocation2 + $0x291] sm:$0xff]
  %v676 = vld [vmem:[#allocation2 + $0x2a1] sm:$0xff]
  %v677 = vld [vmem:[#allocation2 + $0x2a9] sm:$0xff]
  %v678 = vld [vmem:[#allocation2 + $0x2b9] sm:$0xff]
  %v679 = vld [vmem:[#allocation2 + $0x2c1] sm:$0xff]
  %v680 = vld [vmem:[#allocation2 + $0x2d1] sm:$0xff]
  %v681 = vld [vmem:[#allocation2 + $0x2d9] sm:$0xff]
  %v682 = vld [vmem:[#allocation2 + $0x2e9] sm:$0xff]
  %v683 = vld [vmem:[#allocation2 + $0x2f1] sm:$0xff]
  %v684 = vld [vmem:[#allocation2 + $0x301] sm:$0xff]
  %v685 = vld [vmem:[#allocation2 + $0x309] sm:$0xff]
  %v686 = vld [vmem:[#allocation2 + $0x319] sm:$0xff]
  %v687 = vld [vmem:[#allocation2 + $0x321] sm:$0xff]
  %v688 = vpack.c.bf16 %v625, %v624
  %v689 = vpack.c.bf16 %v627, %v626
  %v690 = vpack.c.bf16 %v629, %v628
  %v691 = vpack.c.bf16 %v631, %v630
  %v692 = vpack.c.bf16 %v633, %v632
  %v693 = vpack.c.bf16 %v635, %v634
  %v694 = vpack.c.bf16 %v637, %v636
  %v695 = vpack.c.bf16 %v639, %v638
  %v696 = vpack.c.bf16 %v641, %v640
  %v697 = vpack.c.bf16 %v643, %v642
  %v698 = vpack.c.bf16 %v645, %v644
  %v699 = vpack.c.bf16 %v647, %v646
  %v700 = vpack.c.bf16 %v649, %v648
  %v701 = vpack.c.bf16 %v651, %v650
  %v702 = vpack.c.bf16 %v653, %v652
  %v703 = vpack.c.bf16 %v655, %v654
  %v704 = vpack.c.bf16 %v657, %v656
  %v705 = vpack.c.bf16 %v659, %v658
  %v706 = vpack.c.bf16 %v661, %v660
  %v707 = vpack.c.bf16 %v663, %v662
  %v708 = vpack.c.bf16 %v665, %v664
  %v709 = vpack.c.bf16 %v667, %v666
  %v710 = vpack.c.bf16 %v669, %v668
  %v711 = vpack.c.bf16 %v671, %v670
  %v712 = vpack.c.bf16 %v673, %v672
  %v713 = vpack.c.bf16 %v675, %v674
  %v714 = vpack.c.bf16 %v677, %v676
  %v715 = vpack.c.bf16 %v679, %v678
  %v716 = vpack.c.bf16 %v681, %v680
  %v717 = vpack.c.bf16 %v683, %v682
  %v718 = vpack.c.bf16 %v685, %v684
  %v719 = vpack.c.bf16 %v687, %v686
  %v752 = vunpack.c.l.b16 %v688
  %v753 = vunpack.c.h.b16 %v688
  %v754 = vunpack.c.l.b16 %v689
  %v755 = vunpack.c.h.b16 %v689
  %v756 = vunpack.c.l.b16 %v690
  %v757 = vunpack.c.h.b16 %v690
  %v758 = vunpack.c.l.b16 %v691
  %v759 = vunpack.c.h.b16 %v691
  %v760 = vunpack.c.l.b16 %v692
  %v761 = vunpack.c.h.b16 %v692
  %v762 = vunpack.c.l.b16 %v693
  %v763 = vunpack.c.h.b16 %v693
  %v764 = vunpack.c.l.b16 %v694
  %v765 = vunpack.c.h.b16 %v694
  %v766 = vunpack.c.l.b16 %v695
  %v767 = vunpack.c.h.b16 %v695
  %v768 = vunpack.c.l.b16 %v696
  %v769 = vunpack.c.h.b16 %v696
  %v770 = vunpack.c.l.b16 %v697
  %v771 = vunpack.c.h.b16 %v697
  %v772 = vunpack.c.l.b16 %v698
  %v773 = vunpack.c.h.b16 %v698
  %v774 = vunpack.c.l.b16 %v699
  %v775 = vunpack.c.h.b16 %v699
  %v776 = vunpack.c.l.b16 %v700
  %v777 = vunpack.c.h.b16 %v700
  %v778 = vunpack.c.l.b16 %v701
  %v779 = vunpack.c.h.b16 %v701
  %v780 = vunpack.c.l.b16 %v702
  %v781 = vunpack.c.h.b16 %v702
  %v782 = vunpack.c.l.b16 %v703
  %v783 = vunpack.c.h.b16 %v703
  %v784 = vunpack.c.l.b16 %v704
  %v785 = vunpack.c.h.b16 %v704
  %v786 = vunpack.c.l.b16 %v705
  %v787 = vunpack.c.h.b16 %v705
  %v788 = vunpack.c.l.b16 %v706
  %v789 = vunpack.c.h.b16 %v706
  %v790 = vunpack.c.l.b16 %v707
  %v791 = vunpack.c.h.b16 %v707
  %v792 = vunpack.c.l.b16 %v708
  %v793 = vunpack.c.h.b16 %v708
  %v794 = vunpack.c.l.b16 %v709
  %v795 = vunpack.c.h.b16 %v709
  %v796 = vunpack.c.l.b16 %v710
  %v797 = vunpack.c.h.b16 %v710
  %v798 = vunpack.c.l.b16 %v711
  %v799 = vunpack.c.h.b16 %v711
  %v800 = vunpack.c.l.b16 %v712
  %v801 = vunpack.c.h.b16 %v712
  %v802 = vunpack.c.l.b16 %v713
  %v803 = vunpack.c.h.b16 %v713
  %v804 = vunpack.c.l.b16 %v714
  %v805 = vunpack.c.h.b16 %v714
  %v806 = vunpack.c.l.b16 %v715
  %v807 = vunpack.c.h.b16 %v715
  %v808 = vunpack.c.l.b16 %v716
  %v809 = vunpack.c.h.b16 %v716
  %v810 = vunpack.c.l.b16 %v717
  %v811 = vunpack.c.h.b16 %v717
  %v812 = vunpack.c.l.b16 %v718
  %v813 = vunpack.c.h.b16 %v718
  %v814 = vunpack.c.l.b16 %v719
  %v815 = vunpack.c.h.b16 %v719
  %v816 = vpack.c.b16 %v752, %v752
  %v817 = vpack.c.b16 %v753, %v753
  %v818 = vpack.c.b16 %v754, %v754
  %v819 = vpack.c.b16 %v755, %v755
  %v820 = vpack.c.b16 %v756, %v756
  %v821 = vpack.c.b16 %v757, %v757
  %v822 = vpack.c.b16 %v758, %v758
  %v823 = vpack.c.b16 %v759, %v759
  %v824 = vpack.c.b16 %v760, %v760
  %v825 = vpack.c.b16 %v761, %v761
  %v826 = vpack.c.b16 %v762, %v762
  %v827 = vpack.c.b16 %v763, %v763
  %v828 = vpack.c.b16 %v764, %v764
  %v829 = vpack.c.b16 %v765, %v765
  %v830 = vpack.c.b16 %v766, %v766
  %v831 = vpack.c.b16 %v767, %v767
  %v832 = vpack.c.b16 %v768, %v768
  %v833 = vpack.c.b16 %v769, %v769
  %v834 = vpack.c.b16 %v770, %v770
  %v835 = vpack.c.b16 %v771, %v771
  %v836 = vpack.c.b16 %v772, %v772
  %v837 = vpack.c.b16 %v773, %v773
  %v838 = vpack.c.b16 %v774, %v774
  %v839 = vpack.c.b16 %v775, %v775
  %v840 = vpack.c.b16 %v776, %v776
  %v841 = vpack.c.b16 %v777, %v777
  %v842 = vpack.c.b16 %v778, %v778
  %v843 = vpack.c.b16 %v779, %v779
  %v844 = vpack.c.b16 %v780, %v780
  %v845 = vpack.c.b16 %v781, %v781
  %v846 = vpack.c.b16 %v782, %v782
  %v847 = vpack.c.b16 %v783, %v783
  %v848 = vpack.c.b16 %v784, %v784
  %v849 = vpack.c.b16 %v785, %v785
  %v850 = vpack.c.b16 %v786, %v786
  %v851 = vpack.c.b16 %v787, %v787
  %v852 = vpack.c.b16 %v788, %v788
  %v853 = vpack.c.b16 %v789, %v789
  %v854 = vpack.c.b16 %v790, %v790
  %v855 = vpack.c.b16 %v791, %v791
  %v856 = vpack.c.b16 %v792, %v792
  %v857 = vpack.c.b16 %v793, %v793
  %v858 = vpack.c.b16 %v794, %v794
  %v859 = vpack.c.b16 %v795, %v795
  %v860 = vpack.c.b16 %v796, %v796
  %v861 = vpack.c.b16 %v797, %v797
  %v862 = vpack.c.b16 %v798, %v798
  %v863 = vpack.c.b16 %v799, %v799
  %v864 = vpack.c.b16 %v800, %v800
  %v865 = vpack.c.b16 %v801, %v801
  %v866 = vpack.c.b16 %v802, %v802
  %v867 = vpack.c.b16 %v803, %v803
  %v868 = vpack.c.b16 %v804, %v804
  %v869 = vpack.c.b16 %v805, %v805
  %v870 = vpack.c.b16 %v806, %v806
  %v871 = vpack.c.b16 %v807, %v807
  %v872 = vpack.c.b16 %v808, %v808
  %v873 = vpack.c.b16 %v809, %v809
  %v874 = vpack.c.b16 %v810, %v810
  %v875 = vpack.c.b16 %v811, %v811
  %v876 = vpack.c.b16 %v812, %v812
  %v877 = vpack.c.b16 %v813, %v813
  %v878 = vpack.c.b16 %v814, %v814
  %v879 = vpack.c.b16 %v815, %v815
  %880 = vrot.lane.b32.xlu0 %v816, 4
  %v881 = vpop.permute.xlu0 %880
  %882 = vrot.lane.b32.xlu0 %v817, 4
  %v883 = vpop.permute.xlu0 %882
  %884 = vrot.lane.b32.xlu0 %v818, 4
  %v885 = vpop.permute.xlu0 %884
  %886 = vrot.lane.b32.xlu0 %v819, 4
  %v887 = vpop.permute.xlu0 %886
  %888 = vrot.lane.b32.xlu0 %v820, 4
  %v889 = vpop.permute.xlu0 %888
  %890 = vrot.lane.b32.xlu0 %v821, 4
  %v891 = vpop.permute.xlu0 %890
  %892 = vrot.lane.b32.xlu0 %v822, 4
  %v893 = vpop.permute.xlu0 %892
  %894 = vrot.lane.b32.xlu0 %v823, 4
  %v895 = vpop.permute.xlu0 %894
  %896 = vrot.lane.b32.xlu0 %v824, 4
  %v897 = vpop.permute.xlu0 %896
  %898 = vrot.lane.b32.xlu0 %v825, 4
  %v899 = vpop.permute.xlu0 %898
  %900 = vrot.lane.b32.xlu0 %v826, 4
  %v901 = vpop.permute.xlu0 %900
  %902 = vrot.lane.b32.xlu0 %v827, 4
  %v903 = vpop.permute.xlu0 %902
  %904 = vrot.lane.b32.xlu0 %v828, 4
  %v905 = vpop.permute.xlu0 %904
  %906 = vrot.lane.b32.xlu0 %v829, 4
  %v907 = vpop.permute.xlu0 %906
  %908 = vrot.lane.b32.xlu0 %v830, 4
  %v909 = vpop.permute.xlu0 %908
  %910 = vrot.lane.b32.xlu0 %v831, 4
  %v911 = vpop.permute.xlu0 %910
  %912 = vrot.lane.b32.xlu0 %v832, 4
  %v913 = vpop.permute.xlu0 %912
  %914 = vrot.lane.b32.xlu0 %v833, 4
  %v915 = vpop.permute.xlu0 %914
  %916 = vrot.lane.b32.xlu0 %v834, 4
  %v917 = vpop.permute.xlu0 %916
  %918 = vrot.lane.b32.xlu0 %v835, 4
  %v919 = vpop.permute.xlu0 %918
  %920 = vrot.lane.b32.xlu0 %v836, 4
  %v921 = vpop.permute.xlu0 %920
  %922 = vrot.lane.b32.xlu0 %v837, 4
  %v923 = vpop.permute.xlu0 %922
  %924 = vrot.lane.b32.xlu0 %v838, 4
  %v925 = vpop.permute.xlu0 %924
  %926 = vrot.lane.b32.xlu0 %v839, 4
  %v927 = vpop.permute.xlu0 %926
  %928 = vrot.lane.b32.xlu0 %v840, 4
  %v929 = vpop.permute.xlu0 %928
  %930 = vrot.lane.b32.xlu0 %v841, 4
  %v931 = vpop.permute.xlu0 %930
  %932 = vrot.lane.b32.xlu0 %v842, 4
  %v933 = vpop.permute.xlu0 %932
  %934 = vrot.lane.b32.xlu0 %v843, 4
  %v935 = vpop.permute.xlu0 %934
  %936 = vrot.lane.b32.xlu0 %v844, 4
  %v937 = vpop.permute.xlu0 %936
  %938 = vrot.lane.b32.xlu0 %v845, 4
  %v939 = vpop.permute.xlu0 %938
  %940 = vrot.lane.b32.xlu0 %v846, 4
  %v941 = vpop.permute.xlu0 %940
  %942 = vrot.lane.b32.xlu0 %v847, 4
  %v943 = vpop.permute.xlu0 %942
  %944 = vrot.lane.b32.xlu0 %v848, 4
  %v945 = vpop.permute.xlu0 %944
  %946 = vrot.lane.b32.xlu0 %v849, 4
  %v947 = vpop.permute.xlu0 %946
  %948 = vrot.lane.b32.xlu0 %v850, 4
  %v949 = vpop.permute.xlu0 %948
  %950 = vrot.lane.b32.xlu0 %v851, 4
  %v951 = vpop.permute.xlu0 %950
  %952 = vrot.lane.b32.xlu0 %v852, 4
  %v953 = vpop.permute.xlu0 %952
  %954 = vrot.lane.b32.xlu0 %v853, 4
  %v955 = vpop.permute.xlu0 %954
  %956 = vrot.lane.b32.xlu0 %v854, 4
  %v957 = vpop.permute.xlu0 %956
  %958 = vrot.lane.b32.xlu0 %v855, 4
  %v959 = vpop.permute.xlu0 %958
  %960 = vrot.lane.b32.xlu0 %v856, 4
  %v961 = vpop.permute.xlu0 %960
  %962 = vrot.lane.b32.xlu0 %v857, 4
  %v963 = vpop.permute.xlu0 %962
  %964 = vrot.lane.b32.xlu0 %v858, 4
  %v965 = vpop.permute.xlu0 %964
  %966 = vrot.lane.b32.xlu0 %v859, 4
  %v967 = vpop.permute.xlu0 %966
  %968 = vrot.lane.b32.xlu0 %v860, 4
  %v969 = vpop.permute.xlu0 %968
  %970 = vrot.lane.b32.xlu0 %v861, 4
  %v971 = vpop.permute.xlu0 %970
  %972 = vrot.lane.b32.xlu0 %v862, 4
  %v973 = vpop.permute.xlu0 %972
  %974 = vrot.lane.b32.xlu0 %v863, 4
  %v975 = vpop.permute.xlu0 %974
  %976 = vrot.lane.b32.xlu0 %v864, 4
  %v977 = vpop.permute.xlu0 %976
  %978 = vrot.lane.b32.xlu0 %v865, 4
  %v979 = vpop.permute.xlu0 %978
  %980 = vrot.lane.b32.xlu0 %v866, 4
  %v981 = vpop.permute.xlu0 %980
  %982 = vrot.lane.b32.xlu0 %v867, 4
  %v983 = vpop.permute.xlu0 %982
  %984 = vrot.lane.b32.xlu0 %v868, 4
  %v985 = vpop.permute.xlu0 %984
  %986 = vrot.lane.b32.xlu0 %v869, 4
  %v987 = vpop.permute.xlu0 %986
  %988 = vrot.lane.b32.xlu0 %v870, 4
  %v989 = vpop.permute.xlu0 %988
  %990 = vrot.lane.b32.xlu0 %v871, 4
  %v991 = vpop.permute.xlu0 %990
  %992 = vrot.lane.b32.xlu0 %v872, 4
  %v993 = vpop.permute.xlu0 %992
  %994 = vrot.lane.b32.xlu0 %v873, 4
  %v995 = vpop.permute.xlu0 %994
  %996 = vrot.lane.b32.xlu0 %v874, 4
  %v997 = vpop.permute.xlu0 %996
  %998 = vrot.lane.b32.xlu0 %v875, 4
  %v999 = vpop.permute.xlu0 %998
  %1000 = vrot.lane.b32.xlu0 %v876, 4
  %v1001 = vpop.permute.xlu0 %1000
  %1002 = vrot.lane.b32.xlu0 %v877, 4
  %v1003 = vpop.permute.xlu0 %1002
  %1004 = vrot.lane.b32.xlu0 %v878, 4
  %v1005 = vpop.permute.xlu0 %1004
  %1006 = vrot.lane.b32.xlu0 %v879, 4
  %v1007 = vpop.permute.xlu0 %1006
  %vm1072 = vcmask 60448
  %1073 = vst.msk [vmem:[#allocation3] sm:$0xf] %vm1072, %v881
  %1074 = vst.msk [vmem:[#allocation3 + $0x4] sm:$0xf] %vm1072, %v883
  %1075 = vst.msk [vmem:[#allocation3 + $0x8] sm:$0xf] %vm1072, %v885
  %1076 = vst.msk [vmem:[#allocation3 + $0xc] sm:$0xf] %vm1072, %v887
  %1077 = vst.msk [vmem:[#allocation3 + $0x10] sm:$0xf] %vm1072, %v889
  %1078 = vst.msk [vmem:[#allocation3 + $0x14] sm:$0xf] %vm1072, %v891
  %1079 = vst.msk [vmem:[#allocation3 + $0x18] sm:$0xf] %vm1072, %v893
  %1080 = vst.msk [vmem:[#allocation3 + $0x1c] sm:$0xf] %vm1072, %v895
  %1081 = vst.msk [vmem:[#allocation3 + $0x20] sm:$0xf] %vm1072, %v897
  %1082 = vst.msk [vmem:[#allocation3 + $0x24] sm:$0xf] %vm1072, %v899
  %1083 = vst.msk [vmem:[#allocation3 + $0x28] sm:$0xf] %vm1072, %v901
  %1084 = vst.msk [vmem:[#allocation3 + $0x2c] sm:$0xf] %vm1072, %v903
  %1085 = vst.msk [vmem:[#allocation3 + $0x30] sm:$0xf] %vm1072, %v905
  %1086 = vst.msk [vmem:[#allocation3 + $0x34] sm:$0xf] %vm1072, %v907
  %1087 = vst.msk [vmem:[#allocation3 + $0x38] sm:$0xf] %vm1072, %v909
  %1088 = vst.msk [vmem:[#allocation3 + $0x3c] sm:$0xf] %vm1072, %v911
  %1089 = vst.msk [vmem:[#allocation3 + $0x40] sm:$0xf] %vm1072, %v913
  %1090 = vst.msk [vmem:[#allocation3 + $0x44] sm:$0xf] %vm1072, %v915
  %1091 = vst.msk [vmem:[#allocation3 + $0x48] sm:$0xf] %vm1072, %v917
  %1092 = vst.msk [vmem:[#allocation3 + $0x4c] sm:$0xf] %vm1072, %v919
  %1093 = vst.msk [vmem:[#allocation3 + $0x50] sm:$0xf] %vm1072, %v921
  %1094 = vst.msk [vmem:[#allocation3 + $0x54] sm:$0xf] %vm1072, %v923
  %1095 = vst.msk [vmem:[#allocation3 + $0x58] sm:$0xf] %vm1072, %v925
  %1096 = vst.msk [vmem:[#allocation3 + $0x5c] sm:$0xf] %vm1072, %v927
  %1097 = vst.msk [vmem:[#allocation3 + $0x60] sm:$0xf] %vm1072, %v929
  %1098 = vst.msk [vmem:[#allocation3 + $0x64] sm:$0xf] %vm1072, %v931
  %1099 = vst.msk [vmem:[#allocation3 + $0x68] sm:$0xf] %vm1072, %v933
  %1100 = vst.msk [vmem:[#allocation3 + $0x6c] sm:$0xf] %vm1072, %v935
  %1101 = vst.msk [vmem:[#allocation3 + $0x70] sm:$0xf] %vm1072, %v937
  %1102 = vst.msk [vmem:[#allocation3 + $0x74] sm:$0xf] %vm1072, %v939
  %1103 = vst.msk [vmem:[#allocation3 + $0x78] sm:$0xf] %vm1072, %v941
  %1104 = vst.msk [vmem:[#allocation3 + $0x7c] sm:$0xf] %vm1072, %v943
  %1105 = vst.msk [vmem:[#allocation3 + $0x80] sm:$0xf] %vm1072, %v945
  %1106 = vst.msk [vmem:[#allocation3 + $0x84] sm:$0xf] %vm1072, %v947
  %1107 = vst.msk [vmem:[#allocation3 + $0x88] sm:$0xf] %vm1072, %v949
  %1108 = vst.msk [vmem:[#allocation3 + $0x8c] sm:$0xf] %vm1072, %v951
  %1109 = vst.msk [vmem:[#allocation3 + $0x90] sm:$0xf] %vm1072, %v953
  %1110 = vst.msk [vmem:[#allocation3 + $0x94] sm:$0xf] %vm1072, %v955
  %1111 = vst.msk [vmem:[#allocation3 + $0x98] sm:$0xf] %vm1072, %v957
  %1112 = vst.msk [vmem:[#allocation3 + $0x9c] sm:$0xf] %vm1072, %v959
  %1113 = vst.msk [vmem:[#allocation3 + $0xa0] sm:$0xf] %vm1072, %v961
  %1114 = vst.msk [vmem:[#allocation3 + $0xa4] sm:$0xf] %vm1072, %v963
  %1115 = vst.msk [vmem:[#allocation3 + $0xa8] sm:$0xf] %vm1072, %v965
  %1116 = vst.msk [vmem:[#allocation3 + $0xac] sm:$0xf] %vm1072, %v967
  %1117 = vst.msk [vmem:[#allocation3 + $0xb0] sm:$0xf] %vm1072, %v969
  %1118 = vst.msk [vmem:[#allocation3 + $0xb4] sm:$0xf] %vm1072, %v971
  %1119 = vst.msk [vmem:[#allocation3 + $0xb8] sm:$0xf] %vm1072, %v973
  %1120 = vst.msk [vmem:[#allocation3 + $0xbc] sm:$0xf] %vm1072, %v975
  %1121 = vst.msk [vmem:[#allocation3 + $0xc0] sm:$0xf] %vm1072, %v977
  %1122 = vst.msk [vmem:[#allocation3 + $0xc4] sm:$0xf] %vm1072, %v979
  %1123 = vst.msk [vmem:[#allocation3 + $0xc8] sm:$0xf] %vm1072, %v981
  %1124 = vst.msk [vmem:[#allocation3 + $0xcc] sm:$0xf] %vm1072, %v983
  %1125 = vst.msk [vmem:[#allocation3 + $0xd0] sm:$0xf] %vm1072, %v985
  %1126 = vst.msk [vmem:[#allocation3 + $0xd4] sm:$0xf] %vm1072, %v987
  %1127 = vst.msk [vmem:[#allocation3 + $0xd8] sm:$0xf] %vm1072, %v989
  %1128 = vst.msk [vmem:[#allocation3 + $0xdc] sm:$0xf] %vm1072, %v991
  %1129 = vst.msk [vmem:[#allocation3 + $0xe0] sm:$0xf] %vm1072, %v993
  %1130 = vst.msk [vmem:[#allocation3 + $0xe4] sm:$0xf] %vm1072, %v995
  %1131 = vst.msk [vmem:[#allocation3 + $0xe8] sm:$0xf] %vm1072, %v997
  %1132 = vst.msk [vmem:[#allocation3 + $0xec] sm:$0xf] %vm1072, %v999
  %1133 = vst.msk [vmem:[#allocation3 + $0xf0] sm:$0xf] %vm1072, %v1001
  %1134 = vst.msk [vmem:[#allocation3 + $0xf4] sm:$0xf] %vm1072, %v1003
  %1135 = vst.msk [vmem:[#allocation3 + $0xf8] sm:$0xf] %vm1072, %v1005
  %1136 = vst.msk [vmem:[#allocation3 + $0xfc] sm:$0xf] %vm1072, %v1007
  %v1137 = vld [vmem:[#allocation2 + $0x2] sm:$0xff]
  %v1138 = vld [vmem:[#allocation2 + $0xa] sm:$0xff]
  %v1139 = vld [vmem:[#allocation2 + $0x1a] sm:$0xff]
  %v1140 = vld [vmem:[#allocation2 + $0x22] sm:$0xff]
  %v1141 = vld [vmem:[#allocation2 + $0x32] sm:$0xff]
  %v1142 = vld [vmem:[#allocation2 + $0x3a] sm:$0xff]
  %v1143 = vld [vmem:[#allocation2 + $0x4a] sm:$0xff]
  %v1144 = vld [vmem:[#allocation2 + $0x52] sm:$0xff]
  %v1145 = vld [vmem:[#allocation2 + $0x62] sm:$0xff]
  %v1146 = vld [vmem:[#allocation2 + $0x6a] sm:$0xff]
  %v1147 = vld [vmem:[#allocation2 + $0x7a] sm:$0xff]
  %v1148 = vld [vmem:[#allocation2 + $0x82] sm:$0xff]
  %v1149 = vld [vmem:[#allocation2 + $0x92] sm:$0xff]
  %v1150 = vld [vmem:[#allocation2 + $0x9a] sm:$0xff]
  %v1151 = vld [vmem:[#allocation2 + $0xaa] sm:$0xff]
  %v1152 = vld [vmem:[#allocation2 + $0xb2] sm:$0xff]
  %v1153 = vld [vmem:[#allocation2 + $0xc2] sm:$0xff]
  %v1154 = vld [vmem:[#allocation2 + $0xca] sm:$0xff]
  %v1155 = vld [vmem:[#allocation2 + $0xda] sm:$0xff]
  %v1156 = vld [vmem:[#allocation2 + $0xe2] sm:$0xff]
  %v1157 = vld [vmem:[#allocation2 + $0xf2] sm:$0xff]
  %v1158 = vld [vmem:[#allocation2 + $0xfa] sm:$0xff]
  %v1159 = vld [vmem:[#allocation2 + $0x10a] sm:$0xff]
  %v1160 = vld [vmem:[#allocation2 + $0x112] sm:$0xff]
  %v1161 = vld [vmem:[#allocation2 + $0x122] sm:$0xff]
  %v1162 = vld [vmem:[#allocation2 + $0x12a] sm:$0xff]
  %v1163 = vld [vmem:[#allocation2 + $0x13a] sm:$0xff]
  %v1164 = vld [vmem:[#allocation2 + $0x142] sm:$0xff]
  %v1165 = vld [vmem:[#allocation2 + $0x152] sm:$0xff]
  %v1166 = vld [vmem:[#allocation2 + $0x15a] sm:$0xff]
  %v1167 = vld [vmem:[#allocation2 + $0x16a] sm:$0xff]
  %v1168 = vld [vmem:[#allocation2 + $0x172] sm:$0xff]
  %v1169 = vld [vmem:[#allocation2 + $0x1b2] sm:$0xff]
  %v1170 = vld [vmem:[#allocation2 + $0x1ba] sm:$0xff]
  %v1171 = vld [vmem:[#allocation2 + $0x1ca] sm:$0xff]
  %v1172 = vld [vmem:[#allocation2 + $0x1d2] sm:$0xff]
  %v1173 = vld [vmem:[#allocation2 + $0x1e2] sm:$0xff]
  %v1174 = vld [vmem:[#allocation2 + $0x1ea] sm:$0xff]
  %v1175 = vld [vmem:[#allocation2 + $0x1fa] sm:$0xff]
  %v1176 = vld [vmem:[#allocation2 + $0x202] sm:$0xff]
  %v1177 = vld [vmem:[#allocation2 + $0x212] sm:$0xff]
  %v1178 = vld [vmem:[#allocation2 + $0x21a] sm:$0xff]
  %v1179 = vld [vmem:[#allocation2 + $0x22a] sm:$0xff]
  %v1180 = vld [vmem:[#allocation2 + $0x232] sm:$0xff]
  %v1181 = vld [vmem:[#allocation2 + $0x242] sm:$0xff]
  %v1182 = vld [vmem:[#allocation2 + $0x24a] sm:$0xff]
  %v1183 = vld [vmem:[#allocation2 + $0x25a] sm:$0xff]
  %v1184 = vld [vmem:[#allocation2 + $0x262] sm:$0xff]
  %v1185 = vld [vmem:[#allocation2 + $0x272] sm:$0xff]
  %v1186 = vld [vmem:[#allocation2 + $0x27a] sm:$0xff]
  %v1187 = vld [vmem:[#allocation2 + $0x28a] sm:$0xff]
  %v1188 = vld [vmem:[#allocation2 + $0x292] sm:$0xff]
  %v1189 = vld [vmem:[#allocation2 + $0x2a2] sm:$0xff]
  %v1190 = vld [vmem:[#allocation2 + $0x2aa] sm:$0xff]
  %v1191 = vld [vmem:[#allocation2 + $0x2ba] sm:$0xff]
  %v1192 = vld [vmem:[#allocation2 + $0x2c2] sm:$0xff]
  %v1193 = vld [vmem:[#allocation2 + $0x2d2] sm:$0xff]
  %v1194 = vld [vmem:[#allocation2 + $0x2da] sm:$0xff]
  %v1195 = vld [vmem:[#allocation2 + $0x2ea] sm:$0xff]
  %v1196 = vld [vmem:[#allocation2 + $0x2f2] sm:$0xff]
  %v1197 = vld [vmem:[#allocation2 + $0x302] sm:$0xff]
  %v1198 = vld [vmem:[#allocation2 + $0x30a] sm:$0xff]
  %v1199 = vld [vmem:[#allocation2 + $0x31a] sm:$0xff]
  %v1200 = vld [vmem:[#allocation2 + $0x322] sm:$0xff]
  %v1201 = vpack.c.bf16 %v1138, %v1137
  %v1202 = vpack.c.bf16 %v1140, %v1139
  %v1203 = vpack.c.bf16 %v1142, %v1141
  %v1204 = vpack.c.bf16 %v1144, %v1143
  %v1205 = vpack.c.bf16 %v1146, %v1145
  %v1206 = vpack.c.bf16 %v1148, %v1147
  %v1207 = vpack.c.bf16 %v1150, %v1149
  %v1208 = vpack.c.bf16 %v1152, %v1151
  %v1209 = vpack.c.bf16 %v1154, %v1153
  %v1210 = vpack.c.bf16 %v1156, %v1155
  %v1211 = vpack.c.bf16 %v1158, %v1157
  %v1212 = vpack.c.bf16 %v1160, %v1159
  %v1213 = vpack.c.bf16 %v1162, %v1161
  %v1214 = vpack.c.bf16 %v1164, %v1163
  %v1215 = vpack.c.bf16 %v1166, %v1165
  %v1216 = vpack.c.bf16 %v1168, %v1167
  %v1217 = vpack.c.bf16 %v1170, %v1169
  %v1218 = vpack.c.bf16 %v1172, %v1171
  %v1219 = vpack.c.bf16 %v1174, %v1173
  %v1220 = vpack.c.bf16 %v1176, %v1175
  %v1221 = vpack.c.bf16 %v1178, %v1177
  %v1222 = vpack.c.bf16 %v1180, %v1179
  %v1223 = vpack.c.bf16 %v1182, %v1181
  %v1224 = vpack.c.bf16 %v1184, %v1183
  %v1225 = vpack.c.bf16 %v1186, %v1185
  %v1226 = vpack.c.bf16 %v1188, %v1187
  %v1227 = vpack.c.bf16 %v1190, %v1189
  %v1228 = vpack.c.bf16 %v1192, %v1191
  %v1229 = vpack.c.bf16 %v1194, %v1193
  %v1230 = vpack.c.bf16 %v1196, %v1195
  %v1231 = vpack.c.bf16 %v1198, %v1197
  %v1232 = vpack.c.bf16 %v1200, %v1199
  %v1265 = vunpack.c.l.b16 %v1201
  %v1266 = vunpack.c.h.b16 %v1201
  %v1267 = vunpack.c.l.b16 %v1202
  %v1268 = vunpack.c.h.b16 %v1202
  %v1269 = vunpack.c.l.b16 %v1203
  %v1270 = vunpack.c.h.b16 %v1203
  %v1271 = vunpack.c.l.b16 %v1204
  %v1272 = vunpack.c.h.b16 %v1204
  %v1273 = vunpack.c.l.b16 %v1205
  %v1274 = vunpack.c.h.b16 %v1205
  %v1275 = vunpack.c.l.b16 %v1206
  %v1276 = vunpack.c.h.b16 %v1206
  %v1277 = vunpack.c.l.b16 %v1207
  %v1278 = vunpack.c.h.b16 %v1207
  %v1279 = vunpack.c.l.b16 %v1208
  %v1280 = vunpack.c.h.b16 %v1208
  %v1281 = vunpack.c.l.b16 %v1209
  %v1282 = vunpack.c.h.b16 %v1209
  %v1283 = vunpack.c.l.b16 %v1210
  %v1284 = vunpack.c.h.b16 %v1210
  %v1285 = vunpack.c.l.b16 %v1211
  %v1286 = vunpack.c.h.b16 %v1211
  %v1287 = vunpack.c.l.b16 %v1212
  %v1288 = vunpack.c.h.b16 %v1212
  %v1289 = vunpack.c.l.b16 %v1213
  %v1290 = vunpack.c.h.b16 %v1213
  %v1291 = vunpack.c.l.b16 %v1214
  %v1292 = vunpack.c.h.b16 %v1214
  %v1293 = vunpack.c.l.b16 %v1215
  %v1294 = vunpack.c.h.b16 %v1215
  %v1295 = vunpack.c.l.b16 %v1216
  %v1296 = vunpack.c.h.b16 %v1216
  %v1297 = vunpack.c.l.b16 %v1217
  %v1298 = vunpack.c.h.b16 %v1217
  %v1299 = vunpack.c.l.b16 %v1218
  %v1300 = vunpack.c.h.b16 %v1218
  %v1301 = vunpack.c.l.b16 %v1219
  %v1302 = vunpack.c.h.b16 %v1219
  %v1303 = vunpack.c.l.b16 %v1220
  %v1304 = vunpack.c.h.b16 %v1220
  %v1305 = vunpack.c.l.b16 %v1221
  %v1306 = vunpack.c.h.b16 %v1221
  %v1307 = vunpack.c.l.b16 %v1222
  %v1308 = vunpack.c.h.b16 %v1222
  %v1309 = vunpack.c.l.b16 %v1223
  %v1310 = vunpack.c.h.b16 %v1223
  %v1311 = vunpack.c.l.b16 %v1224
  %v1312 = vunpack.c.h.b16 %v1224
  %v1313 = vunpack.c.l.b16 %v1225
  %v1314 = vunpack.c.h.b16 %v1225
  %v1315 = vunpack.c.l.b16 %v1226
  %v1316 = vunpack.c.h.b16 %v1226
  %v1317 = vunpack.c.l.b16 %v1227
  %v1318 = vunpack.c.h.b16 %v1227
  %v1319 = vunpack.c.l.b16 %v1228
  %v1320 = vunpack.c.h.b16 %v1228
  %v1321 = vunpack.c.l.b16 %v1229
  %v1322 = vunpack.c.h.b16 %v1229
  %v1323 = vunpack.c.l.b16 %v1230
  %v1324 = vunpack.c.h.b16 %v1230
  %v1325 = vunpack.c.l.b16 %v1231
  %v1326 = vunpack.c.h.b16 %v1231
  %v1327 = vunpack.c.l.b16 %v1232
  %v1328 = vunpack.c.h.b16 %v1232
  %v1329 = vpack.c.b16 %v1265, %v1265
  %v1330 = vpack.c.b16 %v1266, %v1266
  %v1331 = vpack.c.b16 %v1267, %v1267
  %v1332 = vpack.c.b16 %v1268, %v1268
  %v1333 = vpack.c.b16 %v1269, %v1269
  %v1334 = vpack.c.b16 %v1270, %v1270
  %v1335 = vpack.c.b16 %v1271, %v1271
  %v1336 = vpack.c.b16 %v1272, %v1272
  %v1337 = vpack.c.b16 %v1273, %v1273
  %v1338 = vpack.c.b16 %v1274, %v1274
  %v1339 = vpack.c.b16 %v1275, %v1275
  %v1340 = vpack.c.b16 %v1276, %v1276
  %v1341 = vpack.c.b16 %v1277, %v1277
  %v1342 = vpack.c.b16 %v1278, %v1278
  %v1343 = vpack.c.b16 %v1279, %v1279
  %v1344 = vpack.c.b16 %v1280, %v1280
  %v1345 = vpack.c.b16 %v1281, %v1281
  %v1346 = vpack.c.b16 %v1282, %v1282
  %v1347 = vpack.c.b16 %v1283, %v1283
  %v1348 = vpack.c.b16 %v1284, %v1284
  %v1349 = vpack.c.b16 %v1285, %v1285
  %v1350 = vpack.c.b16 %v1286, %v1286
  %v1351 = vpack.c.b16 %v1287, %v1287
  %v1352 = vpack.c.b16 %v1288, %v1288
  %v1353 = vpack.c.b16 %v1289, %v1289
  %v1354 = vpack.c.b16 %v1290, %v1290
  %v1355 = vpack.c.b16 %v1291, %v1291
  %v1356 = vpack.c.b16 %v1292, %v1292
  %v1357 = vpack.c.b16 %v1293, %v1293
  %v1358 = vpack.c.b16 %v1294, %v1294
  %v1359 = vpack.c.b16 %v1295, %v1295
  %v1360 = vpack.c.b16 %v1296, %v1296
  %v1361 = vpack.c.b16 %v1297, %v1297
  %v1362 = vpack.c.b16 %v1298, %v1298
  %v1363 = vpack.c.b16 %v1299, %v1299
  %v1364 = vpack.c.b16 %v1300, %v1300
  %v1365 = vpack.c.b16 %v1301, %v1301
  %v1366 = vpack.c.b16 %v1302, %v1302
  %v1367 = vpack.c.b16 %v1303, %v1303
  %v1368 = vpack.c.b16 %v1304, %v1304
  %v1369 = vpack.c.b16 %v1305, %v1305
  %v1370 = vpack.c.b16 %v1306, %v1306
  %v1371 = vpack.c.b16 %v1307, %v1307
  %v1372 = vpack.c.b16 %v1308, %v1308
  %v1373 = vpack.c.b16 %v1309, %v1309
  %v1374 = vpack.c.b16 %v1310, %v1310
  %v1375 = vpack.c.b16 %v1311, %v1311
  %v1376 = vpack.c.b16 %v1312, %v1312
  %v1377 = vpack.c.b16 %v1313, %v1313
  %v1378 = vpack.c.b16 %v1314, %v1314
  %v1379 = vpack.c.b16 %v1315, %v1315
  %v1380 = vpack.c.b16 %v1316, %v1316
  %v1381 = vpack.c.b16 %v1317, %v1317
  %v1382 = vpack.c.b16 %v1318, %v1318
  %v1383 = vpack.c.b16 %v1319, %v1319
  %v1384 = vpack.c.b16 %v1320, %v1320
  %v1385 = vpack.c.b16 %v1321, %v1321
  %v1386 = vpack.c.b16 %v1322, %v1322
  %v1387 = vpack.c.b16 %v1323, %v1323
  %v1388 = vpack.c.b16 %v1324, %v1324
  %v1389 = vpack.c.b16 %v1325, %v1325
  %v1390 = vpack.c.b16 %v1326, %v1326
  %v1391 = vpack.c.b16 %v1327, %v1327
  %v1392 = vpack.c.b16 %v1328, %v1328
  %1393 = vrot.lane.b32.xlu0 %v1329, 8
  %v1394 = vpop.permute.xlu0 %1393
  %1395 = vrot.lane.b32.xlu0 %v1330, 8
  %v1396 = vpop.permute.xlu0 %1395
  %1397 = vrot.lane.b32.xlu0 %v1331, 8
  %v1398 = vpop.permute.xlu0 %1397
  %1399 = vrot.lane.b32.xlu0 %v1332, 8
  %v1400 = vpop.permute.xlu0 %1399
  %1401 = vrot.lane.b32.xlu0 %v1333, 8
  %v1402 = vpop.permute.xlu0 %1401
  %1403 = vrot.lane.b32.xlu0 %v1334, 8
  %v1404 = vpop.permute.xlu0 %1403
  %1405 = vrot.lane.b32.xlu0 %v1335, 8
  %v1406 = vpop.permute.xlu0 %1405
  %1407 = vrot.lane.b32.xlu0 %v1336, 8
  %v1408 = vpop.permute.xlu0 %1407
  %1409 = vrot.lane.b32.xlu0 %v1337, 8
  %v1410 = vpop.permute.xlu0 %1409
  %1411 = vrot.lane.b32.xlu0 %v1338, 8
  %v1412 = vpop.permute.xlu0 %1411
  %1413 = vrot.lane.b32.xlu0 %v1339, 8
  %v1414 = vpop.permute.xlu0 %1413
  %1415 = vrot.lane.b32.xlu0 %v1340, 8
  %v1416 = vpop.permute.xlu0 %1415
  %1417 = vrot.lane.b32.xlu0 %v1341, 8
  %v1418 = vpop.permute.xlu0 %1417
  %1419 = vrot.lane.b32.xlu0 %v1342, 8
  %v1420 = vpop.permute.xlu0 %1419
  %1421 = vrot.lane.b32.xlu0 %v1343, 8
  %v1422 = vpop.permute.xlu0 %1421
  %1423 = vrot.lane.b32.xlu0 %v1344, 8
  %v1424 = vpop.permute.xlu0 %1423
  %1425 = vrot.lane.b32.xlu0 %v1345, 8
  %v1426 = vpop.permute.xlu0 %1425
  %1427 = vrot.lane.b32.xlu0 %v1346, 8
  %v1428 = vpop.permute.xlu0 %1427
  %1429 = vrot.lane.b32.xlu0 %v1347, 8
  %v1430 = vpop.permute.xlu0 %1429
  %1431 = vrot.lane.b32.xlu0 %v1348, 8
  %v1432 = vpop.permute.xlu0 %1431
  %1433 = vrot.lane.b32.xlu0 %v1349, 8
  %v1434 = vpop.permute.xlu0 %1433
  %1435 = vrot.lane.b32.xlu0 %v1350, 8
  %v1436 = vpop.permute.xlu0 %1435
  %1437 = vrot.lane.b32.xlu0 %v1351, 8
  %v1438 = vpop.permute.xlu0 %1437
  %1439 = vrot.lane.b32.xlu0 %v1352, 8
  %v1440 = vpop.permute.xlu0 %1439
  %1441 = vrot.lane.b32.xlu0 %v1353, 8
  %v1442 = vpop.permute.xlu0 %1441
  %1443 = vrot.lane.b32.xlu0 %v1354, 8
  %v1444 = vpop.permute.xlu0 %1443
  %1445 = vrot.lane.b32.xlu0 %v1355, 8
  %v1446 = vpop.permute.xlu0 %1445
  %1447 = vrot.lane.b32.xlu0 %v1356, 8
  %v1448 = vpop.permute.xlu0 %1447
  %1449 = vrot.lane.b32.xlu0 %v1357, 8
  %v1450 = vpop.permute.xlu0 %1449
  %1451 = vrot.lane.b32.xlu0 %v1358, 8
  %v1452 = vpop.permute.xlu0 %1451
  %1453 = vrot.lane.b32.xlu0 %v1359, 8
  %v1454 = vpop.permute.xlu0 %1453
  %1455 = vrot.lane.b32.xlu0 %v1360, 8
  %v1456 = vpop.permute.xlu0 %1455
  %1457 = vrot.lane.b32.xlu0 %v1361, 8
  %v1458 = vpop.permute.xlu0 %1457
  %1459 = vrot.lane.b32.xlu0 %v1362, 8
  %v1460 = vpop.permute.xlu0 %1459
  %1461 = vrot.lane.b32.xlu0 %v1363, 8
  %v1462 = vpop.permute.xlu0 %1461
  %1463 = vrot.lane.b32.xlu0 %v1364, 8
  %v1464 = vpop.permute.xlu0 %1463
  %1465 = vrot.lane.b32.xlu0 %v1365, 8
  %v1466 = vpop.permute.xlu0 %1465
  %1467 = vrot.lane.b32.xlu0 %v1366, 8
  %v1468 = vpop.permute.xlu0 %1467
  %1469 = vrot.lane.b32.xlu0 %v1367, 8
  %v1470 = vpop.permute.xlu0 %1469
  %1471 = vrot.lane.b32.xlu0 %v1368, 8
  %v1472 = vpop.permute.xlu0 %1471
  %1473 = vrot.lane.b32.xlu0 %v1369, 8
  %v1474 = vpop.permute.xlu0 %1473
  %1475 = vrot.lane.b32.xlu0 %v1370, 8
  %v1476 = vpop.permute.xlu0 %1475
  %1477 = vrot.lane.b32.xlu0 %v1371, 8
  %v1478 = vpop.permute.xlu0 %1477
  %1479 = vrot.lane.b32.xlu0 %v1372, 8
  %v1480 = vpop.permute.xlu0 %1479
  %1481 = vrot.lane.b32.xlu0 %v1373, 8
  %v1482 = vpop.permute.xlu0 %1481
  %1483 = vrot.lane.b32.xlu0 %v1374, 8
  %v1484 = vpop.permute.xlu0 %1483
  %1485 = vrot.lane.b32.xlu0 %v1375, 8
  %v1486 = vpop.permute.xlu0 %1485
  %1487 = vrot.lane.b32.xlu0 %v1376, 8
  %v1488 = vpop.permute.xlu0 %1487
  %1489 = vrot.lane.b32.xlu0 %v1377, 8
  %v1490 = vpop.permute.xlu0 %1489
  %1491 = vrot.lane.b32.xlu0 %v1378, 8
  %v1492 = vpop.permute.xlu0 %1491
  %1493 = vrot.lane.b32.xlu0 %v1379, 8
  %v1494 = vpop.permute.xlu0 %1493
  %1495 = vrot.lane.b32.xlu0 %v1380, 8
  %v1496 = vpop.permute.xlu0 %1495
  %1497 = vrot.lane.b32.xlu0 %v1381, 8
  %v1498 = vpop.permute.xlu0 %1497
  %1499 = vrot.lane.b32.xlu0 %v1382, 8
  %v1500 = vpop.permute.xlu0 %1499
  %1501 = vrot.lane.b32.xlu0 %v1383, 8
  %v1502 = vpop.permute.xlu0 %1501
  %1503 = vrot.lane.b32.xlu0 %v1384, 8
  %v1504 = vpop.permute.xlu0 %1503
  %1505 = vrot.lane.b32.xlu0 %v1385, 8
  %v1506 = vpop.permute.xlu0 %1505
  %1507 = vrot.lane.b32.xlu0 %v1386, 8
  %v1508 = vpop.permute.xlu0 %1507
  %1509 = vrot.lane.b32.xlu0 %v1387, 8
  %v1510 = vpop.permute.xlu0 %1509
  %1511 = vrot.lane.b32.xlu0 %v1388, 8
  %v1512 = vpop.permute.xlu0 %1511
  %1513 = vrot.lane.b32.xlu0 %v1389, 8
  %v1514 = vpop.permute.xlu0 %1513
  %1515 = vrot.lane.b32.xlu0 %v1390, 8
  %v1516 = vpop.permute.xlu0 %1515
  %1517 = vrot.lane.b32.xlu0 %v1391, 8
  %v1518 = vpop.permute.xlu0 %1517
  %1519 = vrot.lane.b32.xlu0 %v1392, 8
  %v1520 = vpop.permute.xlu0 %1519
  %vm1585 = vcmask 93248
  %1586 = vst.msk [vmem:[#allocation3] sm:$0xf] %vm1585, %v1394
  %1587 = vst.msk [vmem:[#allocation3 + $0x4] sm:$0xf] %vm1585, %v1396
  %1588 = vst.msk [vmem:[#allocation3 + $0x8] sm:$0xf] %vm1585, %v1398
  %1589 = vst.msk [vmem:[#allocation3 + $0xc] sm:$0xf] %vm1585, %v1400
  %1590 = vst.msk [vmem:[#allocation3 + $0x10] sm:$0xf] %vm1585, %v1402
  %1591 = vst.msk [vmem:[#allocation3 + $0x14] sm:$0xf] %vm1585, %v1404
  %1592 = vst.msk [vmem:[#allocation3 + $0x18] sm:$0xf] %vm1585, %v1406
  %1593 = vst.msk [vmem:[#allocation3 + $0x1c] sm:$0xf] %vm1585, %v1408
  %1594 = vst.msk [vmem:[#allocation3 + $0x20] sm:$0xf] %vm1585, %v1410
  %1595 = vst.msk [vmem:[#allocation3 + $0x24] sm:$0xf] %vm1585, %v1412
  %1596 = vst.msk [vmem:[#allocation3 + $0x28] sm:$0xf] %vm1585, %v1414
  %1597 = vst.msk [vmem:[#allocation3 + $0x2c] sm:$0xf] %vm1585, %v1416
  %1598 = vst.msk [vmem:[#allocation3 + $0x30] sm:$0xf] %vm1585, %v1418
  %1599 = vst.msk [vmem:[#allocation3 + $0x34] sm:$0xf] %vm1585, %v1420
  %1600 = vst.msk [vmem:[#allocation3 + $0x38] sm:$0xf] %vm1585, %v1422
  %1601 = vst.msk [vmem:[#allocation3 + $0x3c] sm:$0xf] %vm1585, %v1424
  %1602 = vst.msk [vmem:[#allocation3 + $0x40] sm:$0xf] %vm1585, %v1426
  %1603 = vst.msk [vmem:[#allocation3 + $0x44] sm:$0xf] %vm1585, %v1428
  %1604 = vst.msk [vmem:[#allocation3 + $0x48] sm:$0xf] %vm1585, %v1430
  %1605 = vst.msk [vmem:[#allocation3 + $0x4c] sm:$0xf] %vm1585, %v1432
  %1606 = vst.msk [vmem:[#allocation3 + $0x50] sm:$0xf] %vm1585, %v1434
  %1607 = vst.msk [vmem:[#allocation3 + $0x54] sm:$0xf] %vm1585, %v1436
  %1608 = vst.msk [vmem:[#allocation3 + $0x58] sm:$0xf] %vm1585, %v1438
  %1609 = vst.msk [vmem:[#allocation3 + $0x5c] sm:$0xf] %vm1585, %v1440
  %1610 = vst.msk [vmem:[#allocation3 + $0x60] sm:$0xf] %vm1585, %v1442
  %1611 = vst.msk [vmem:[#allocation3 + $0x64] sm:$0xf] %vm1585, %v1444
  %1612 = vst.msk [vmem:[#allocation3 + $0x68] sm:$0xf] %vm1585, %v1446
  %1613 = vst.msk [vmem:[#allocation3 + $0x6c] sm:$0xf] %vm1585, %v1448
  %1614 = vst.msk [vmem:[#allocation3 + $0x70] sm:$0xf] %vm1585, %v1450
  %1615 = vst.msk [vmem:[#allocation3 + $0x74] sm:$0xf] %vm1585, %v1452
  %1616 = vst.msk [vmem:[#allocation3 + $0x78] sm:$0xf] %vm1585, %v1454
  %1617 = vst.msk [vmem:[#allocation3 + $0x7c] sm:$0xf] %vm1585, %v1456
  %1618 = vst.msk [vmem:[#allocation3 + $0x80] sm:$0xf] %vm1585, %v1458
  %1619 = vst.msk [vmem:[#allocation3 + $0x84] sm:$0xf] %vm1585, %v1460
  %1620 = vst.msk [vmem:[#allocation3 + $0x88] sm:$0xf] %vm1585, %v1462
  %1621 = vst.msk [vmem:[#allocation3 + $0x8c] sm:$0xf] %vm1585, %v1464
  %1622 = vst.msk [vmem:[#allocation3 + $0x90] sm:$0xf] %vm1585, %v1466
  %1623 = vst.msk [vmem:[#allocation3 + $0x94] sm:$0xf] %vm1585, %v1468
  %1624 = vst.msk [vmem:[#allocation3 + $0x98] sm:$0xf] %vm1585, %v1470
  %1625 = vst.msk [vmem:[#allocation3 + $0x9c] sm:$0xf] %vm1585, %v1472
  %1626 = vst.msk [vmem:[#allocation3 + $0xa0] sm:$0xf] %vm1585, %v1474
  %1627 = vst.msk [vmem:[#allocation3 + $0xa4] sm:$0xf] %vm1585, %v1476
  %1628 = vst.msk [vmem:[#allocation3 + $0xa8] sm:$0xf] %vm1585, %v1478
  %1629 = vst.msk [vmem:[#allocation3 + $0xac] sm:$0xf] %vm1585, %v1480
  %1630 = vst.msk [vmem:[#allocation3 + $0xb0] sm:$0xf] %vm1585, %v1482
  %1631 = vst.msk [vmem:[#allocation3 + $0xb4] sm:$0xf] %vm1585, %v1484
  %1632 = vst.msk [vmem:[#allocation3 + $0xb8] sm:$0xf] %vm1585, %v1486
  %1633 = vst.msk [vmem:[#allocation3 + $0xbc] sm:$0xf] %vm1585, %v1488
  %1634 = vst.msk [vmem:[#allocation3 + $0xc0] sm:$0xf] %vm1585, %v1490
  %1635 = vst.msk [vmem:[#allocation3 + $0xc4] sm:$0xf] %vm1585, %v1492
  %1636 = vst.msk [vmem:[#allocation3 + $0xc8] sm:$0xf] %vm1585, %v1494
  %1637 = vst.msk [vmem:[#allocation3 + $0xcc] sm:$0xf] %vm1585, %v1496
  %1638 = vst.msk [vmem:[#allocation3 + $0xd0] sm:$0xf] %vm1585, %v1498
  %1639 = vst.msk [vmem:[#allocation3 + $0xd4] sm:$0xf] %vm1585, %v1500
  %1640 = vst.msk [vmem:[#allocation3 + $0xd8] sm:$0xf] %vm1585, %v1502
  %1641 = vst.msk [vmem:[#allocation3 + $0xdc] sm:$0xf] %vm1585, %v1504
  %1642 = vst.msk [vmem:[#allocation3 + $0xe0] sm:$0xf] %vm1585, %v1506
  %1643 = vst.msk [vmem:[#allocation3 + $0xe4] sm:$0xf] %vm1585, %v1508
  %1644 = vst.msk [vmem:[#allocation3 + $0xe8] sm:$0xf] %vm1585, %v1510
  %1645 = vst.msk [vmem:[#allocation3 + $0xec] sm:$0xf] %vm1585, %v1512
  %1646 = vst.msk [vmem:[#allocation3 + $0xf0] sm:$0xf] %vm1585, %v1514
  %1647 = vst.msk [vmem:[#allocation3 + $0xf4] sm:$0xf] %vm1585, %v1516
  %1648 = vst.msk [vmem:[#allocation3 + $0xf8] sm:$0xf] %vm1585, %v1518
  %1649 = vst.msk [vmem:[#allocation3 + $0xfc] sm:$0xf] %vm1585, %v1520
  %v1650 = vld [vmem:[%s174] sm:$0xff]
  %v1651 = vld [vmem:[%s174 + $0x8] sm:$0xff]
  %v1652 = vld [vmem:[%s174 + $0x18] sm:$0xff]
  %v1653 = vld [vmem:[%s174 + $0x20] sm:$0xff]
  %v1654 = vld [vmem:[%s174 + $0x30] sm:$0xff]
  %v1655 = vld [vmem:[%s174 + $0x38] sm:$0xff]
  %v1656 = vld [vmem:[%s174 + $0x48] sm:$0xff]
  %v1657 = vld [vmem:[%s174 + $0x50] sm:$0xff]
  %v1658 = vld [vmem:[%s174 + $0x60] sm:$0xff]
  %v1659 = vld [vmem:[%s174 + $0x68] sm:$0xff]
  %v1660 = vld [vmem:[%s174 + $0x78] sm:$0xff]
  %v1661 = vld [vmem:[%s174 + $0x80] sm:$0xff]
  %v1662 = vld [vmem:[%s174 + $0x90] sm:$0xff]
  %v1663 = vld [vmem:[%s174 + $0x98] sm:$0xff]
  %v1664 = vld [vmem:[%s174 + $0xa8] sm:$0xff]
  %v1665 = vld [vmem:[%s174 + $0xb0] sm:$0xff]
  %v1666 = vld [vmem:[%s174 + $0xc0] sm:$0xff]
  %v1667 = vld [vmem:[%s174 + $0xc8] sm:$0xff]
  %v1668 = vld [vmem:[%s174 + $0xd8] sm:$0xff]
  %v1669 = vld [vmem:[%s174 + $0xe0] sm:$0xff]
  %v1670 = vld [vmem:[%s174 + $0xf0] sm:$0xff]
  %v1671 = vld [vmem:[%s174 + $0xf8] sm:$0xff]
  %v1672 = vld [vmem:[%s174 + $0x108] sm:$0xff]
  %v1673 = vld [vmem:[%s174 + $0x110] sm:$0xff]
  %v1674 = vld [vmem:[%s174 + $0x120] sm:$0xff]
  %v1675 = vld [vmem:[%s174 + $0x128] sm:$0xff]
  %v1676 = vld [vmem:[%s174 + $0x138] sm:$0xff]
  %v1677 = vld [vmem:[%s174 + $0x140] sm:$0xff]
  %v1678 = vld [vmem:[%s174 + $0x150] sm:$0xff]
  %v1679 = vld [vmem:[%s174 + $0x158] sm:$0xff]
  %v1680 = vld [vmem:[%s174 + $0x168] sm:$0xff]
  %v1681 = vld [vmem:[%s174 + $0x170] sm:$0xff]
  %v1682 = vld [vmem:[%s174 + $0x1b0] sm:$0xff]
  %v1683 = vld [vmem:[%s174 + $0x1b8] sm:$0xff]
  %v1684 = vld [vmem:[%s174 + $0x1c8] sm:$0xff]
  %v1685 = vld [vmem:[%s174 + $0x1d0] sm:$0xff]
  %v1686 = vld [vmem:[%s174 + $0x1e0] sm:$0xff]
  %v1687 = vld [vmem:[%s174 + $0x1e8] sm:$0xff]
  %v1688 = vld [vmem:[%s174 + $0x1f8] sm:$0xff]
  %v1689 = vld [vmem:[%s174 + $0x200] sm:$0xff]
  %v1690 = vld [vmem:[%s174 + $0x210] sm:$0xff]
  %v1691 = vld [vmem:[%s174 + $0x218] sm:$0xff]
  %v1692 = vld [vmem:[%s174 + $0x228] sm:$0xff]
  %v1693 = vld [vmem:[%s174 + $0x230] sm:$0xff]
  %v1694 = vld [vmem:[%s174 + $0x240] sm:$0xff]
  %v1695 = vld [vmem:[%s174 + $0x248] sm:$0xff]
  %v1696 = vld [vmem:[%s174 + $0x258] sm:$0xff]
  %v1697 = vld [vmem:[%s174 + $0x260] sm:$0xff]
  %v1698 = vld [vmem:[%s174 + $0x270] sm:$0xff]
  %v1699 = vld [vmem:[%s174 + $0x278] sm:$0xff]
  %v1700 = vld [vmem:[%s174 + $0x288] sm:$0xff]
  %v1701 = vld [vmem:[%s174 + $0x290] sm:$0xff]
  %v1702 = vld [vmem:[%s174 + $0x2a0] sm:$0xff]
  %v1703 = vld [vmem:[%s174 + $0x2a8] sm:$0xff]
  %v1704 = vld [vmem:[%s174 + $0x2b8] sm:$0xff]
  %v1705 = vld [vmem:[%s174 + $0x2c0] sm:$0xff]
  %v1706 = vld [vmem:[%s174 + $0x2d0] sm:$0xff]
  %v1707 = vld [vmem:[%s174 + $0x2d8] sm:$0xff]
  %v1708 = vld [vmem:[%s174 + $0x2e8] sm:$0xff]
  %v1709 = vld [vmem:[%s174 + $0x2f0] sm:$0xff]
  %v1710 = vld [vmem:[%s174 + $0x300] sm:$0xff]
  %v1711 = vld [vmem:[%s174 + $0x308] sm:$0xff]
  %v1712 = vld [vmem:[%s174 + $0x318] sm:$0xff]
  %v1713 = vld [vmem:[%s174 + $0x320] sm:$0xff]
  %v1714 = vpack.c.bf16 %v1651, %v1650
  %v1715 = vpack.c.bf16 %v1653, %v1652
  %v1716 = vpack.c.bf16 %v1655, %v1654
  %v1717 = vpack.c.bf16 %v1657, %v1656
  %v1718 = vpack.c.bf16 %v1659, %v1658
  %v1719 = vpack.c.bf16 %v1661, %v1660
  %v1720 = vpack.c.bf16 %v1663, %v1662
  %v1721 = vpack.c.bf16 %v1665, %v1664
  %v1722 = vpack.c.bf16 %v1667, %v1666
  %v1723 = vpack.c.bf16 %v1669, %v1668
  %v1724 = vpack.c.bf16 %v1671, %v1670
  %v1725 = vpack.c.bf16 %v1673, %v1672
  %v1726 = vpack.c.bf16 %v1675, %v1674
  %v1727 = vpack.c.bf16 %v1677, %v1676
  %v1728 = vpack.c.bf16 %v1679, %v1678
  %v1729 = vpack.c.bf16 %v1681, %v1680
  %v1730 = vpack.c.bf16 %v1683, %v1682
  %v1731 = vpack.c.bf16 %v1685, %v1684
  %v1732 = vpack.c.bf16 %v1687, %v1686
  %v1733 = vpack.c.bf16 %v1689, %v1688
  %v1734 = vpack.c.bf16 %v1691, %v1690
  %v1735 = vpack.c.bf16 %v1693, %v1692
  %v1736 = vpack.c.bf16 %v1695, %v1694
  %v1737 = vpack.c.bf16 %v1697, %v1696
  %v1738 = vpack.c.bf16 %v1699, %v1698
  %v1739 = vpack.c.bf16 %v1701, %v1700
  %v1740 = vpack.c.bf16 %v1703, %v1702
  %v1741 = vpack.c.bf16 %v1705, %v1704
  %v1742 = vpack.c.bf16 %v1707, %v1706
  %v1743 = vpack.c.bf16 %v1709, %v1708
  %v1744 = vpack.c.bf16 %v1711, %v1710
  %v1745 = vpack.c.bf16 %v1713, %v1712
  %v1778 = vunpack.c.l.b16 %v1714
  %v1779 = vunpack.c.h.b16 %v1714
  %v1780 = vunpack.c.l.b16 %v1715
  %v1781 = vunpack.c.h.b16 %v1715
  %v1782 = vunpack.c.l.b16 %v1716
  %v1783 = vunpack.c.h.b16 %v1716
  %v1784 = vunpack.c.l.b16 %v1717
  %v1785 = vunpack.c.h.b16 %v1717
  %v1786 = vunpack.c.l.b16 %v1718
  %v1787 = vunpack.c.h.b16 %v1718
  %v1788 = vunpack.c.l.b16 %v1719
  %v1789 = vunpack.c.h.b16 %v1719
  %v1790 = vunpack.c.l.b16 %v1720
  %v1791 = vunpack.c.h.b16 %v1720
  %v1792 = vunpack.c.l.b16 %v1721
  %v1793 = vunpack.c.h.b16 %v1721
  %v1794 = vunpack.c.l.b16 %v1722
  %v1795 = vunpack.c.h.b16 %v1722
  %v1796 = vunpack.c.l.b16 %v1723
  %v1797 = vunpack.c.h.b16 %v1723
  %v1798 = vunpack.c.l.b16 %v1724
  %v1799 = vunpack.c.h.b16 %v1724
  %v1800 = vunpack.c.l.b16 %v1725
  %v1801 = vunpack.c.h.b16 %v1725
  %v1802 = vunpack.c.l.b16 %v1726
  %v1803 = vunpack.c.h.b16 %v1726
  %v1804 = vunpack.c.l.b16 %v1727
  %v1805 = vunpack.c.h.b16 %v1727
  %v1806 = vunpack.c.l.b16 %v1728
  %v1807 = vunpack.c.h.b16 %v1728
  %v1808 = vunpack.c.l.b16 %v1729
  %v1809 = vunpack.c.h.b16 %v1729
  %v1810 = vunpack.c.l.b16 %v1730
  %v1811 = vunpack.c.h.b16 %v1730
  %v1812 = vunpack.c.l.b16 %v1731
  %v1813 = vunpack.c.h.b16 %v1731
  %v1814 = vunpack.c.l.b16 %v1732
  %v1815 = vunpack.c.h.b16 %v1732
  %v1816 = vunpack.c.l.b16 %v1733
  %v1817 = vunpack.c.h.b16 %v1733
  %v1818 = vunpack.c.l.b16 %v1734
  %v1819 = vunpack.c.h.b16 %v1734
  %v1820 = vunpack.c.l.b16 %v1735
  %v1821 = vunpack.c.h.b16 %v1735
  %v1822 = vunpack.c.l.b16 %v1736
  %v1823 = vunpack.c.h.b16 %v1736
  %v1824 = vunpack.c.l.b16 %v1737
  %v1825 = vunpack.c.h.b16 %v1737
  %v1826 = vunpack.c.l.b16 %v1738
  %v1827 = vunpack.c.h.b16 %v1738
  %v1828 = vunpack.c.l.b16 %v1739
  %v1829 = vunpack.c.h.b16 %v1739
  %v1830 = vunpack.c.l.b16 %v1740
  %v1831 = vunpack.c.h.b16 %v1740
  %v1832 = vunpack.c.l.b16 %v1741
  %v1833 = vunpack.c.h.b16 %v1741
  %v1834 = vunpack.c.l.b16 %v1742
  %v1835 = vunpack.c.h.b16 %v1742
  %v1836 = vunpack.c.l.b16 %v1743
  %v1837 = vunpack.c.h.b16 %v1743
  %v1838 = vunpack.c.l.b16 %v1744
  %v1839 = vunpack.c.h.b16 %v1744
  %v1840 = vunpack.c.l.b16 %v1745
  %v1841 = vunpack.c.h.b16 %v1745
  %v1842 = vpack.c.b16 %v1778, %v1778
  %v1843 = vpack.c.b16 %v1779, %v1779
  %v1844 = vpack.c.b16 %v1780, %v1780
  %v1845 = vpack.c.b16 %v1781, %v1781
  %v1846 = vpack.c.b16 %v1782, %v1782
  %v1847 = vpack.c.b16 %v1783, %v1783
  %v1848 = vpack.c.b16 %v1784, %v1784
  %v1849 = vpack.c.b16 %v1785, %v1785
  %v1850 = vpack.c.b16 %v1786, %v1786
  %v1851 = vpack.c.b16 %v1787, %v1787
  %v1852 = vpack.c.b16 %v1788, %v1788
  %v1853 = vpack.c.b16 %v1789, %v1789
  %v1854 = vpack.c.b16 %v1790, %v1790
  %v1855 = vpack.c.b16 %v1791, %v1791
  %v1856 = vpack.c.b16 %v1792, %v1792
  %v1857 = vpack.c.b16 %v1793, %v1793
  %v1858 = vpack.c.b16 %v1794, %v1794
  %v1859 = vpack.c.b16 %v1795, %v1795
  %v1860 = vpack.c.b16 %v1796, %v1796
  %v1861 = vpack.c.b16 %v1797, %v1797
  %v1862 = vpack.c.b16 %v1798, %v1798
  %v1863 = vpack.c.b16 %v1799, %v1799
  %v1864 = vpack.c.b16 %v1800, %v1800
  %v1865 = vpack.c.b16 %v1801, %v1801
  %v1866 = vpack.c.b16 %v1802, %v1802
  %v1867 = vpack.c.b16 %v1803, %v1803
  %v1868 = vpack.c.b16 %v1804, %v1804
  %v1869 = vpack.c.b16 %v1805, %v1805
  %v1870 = vpack.c.b16 %v1806, %v1806
  %v1871 = vpack.c.b16 %v1807, %v1807
  %v1872 = vpack.c.b16 %v1808, %v1808
  %v1873 = vpack.c.b16 %v1809, %v1809
  %v1874 = vpack.c.b16 %v1810, %v1810
  %v1875 = vpack.c.b16 %v1811, %v1811
  %v1876 = vpack.c.b16 %v1812, %v1812
  %v1877 = vpack.c.b16 %v1813, %v1813
  %v1878 = vpack.c.b16 %v1814, %v1814
  %v1879 = vpack.c.b16 %v1815, %v1815
  %v1880 = vpack.c.b16 %v1816, %v1816
  %v1881 = vpack.c.b16 %v1817, %v1817
  %v1882 = vpack.c.b16 %v1818, %v1818
  %v1883 = vpack.c.b16 %v1819, %v1819
  %v1884 = vpack.c.b16 %v1820, %v1820
  %v1885 = vpack.c.b16 %v1821, %v1821
  %v1886 = vpack.c.b16 %v1822, %v1822
  %v1887 = vpack.c.b16 %v1823, %v1823
  %v1888 = vpack.c.b16 %v1824, %v1824
  %v1889 = vpack.c.b16 %v1825, %v1825
  %v1890 = vpack.c.b16 %v1826, %v1826
  %v1891 = vpack.c.b16 %v1827, %v1827
  %v1892 = vpack.c.b16 %v1828, %v1828
  %v1893 = vpack.c.b16 %v1829, %v1829
  %v1894 = vpack.c.b16 %v1830, %v1830
  %v1895 = vpack.c.b16 %v1831, %v1831
  %v1896 = vpack.c.b16 %v1832, %v1832
  %v1897 = vpack.c.b16 %v1833, %v1833
  %v1898 = vpack.c.b16 %v1834, %v1834
  %v1899 = vpack.c.b16 %v1835, %v1835
  %v1900 = vpack.c.b16 %v1836, %v1836
  %v1901 = vpack.c.b16 %v1837, %v1837
  %v1902 = vpack.c.b16 %v1838, %v1838
  %v1903 = vpack.c.b16 %v1839, %v1839
  %v1904 = vpack.c.b16 %v1840, %v1840
  %v1905 = vpack.c.b16 %v1841, %v1841
  %1906 = vrot.lane.b32.xlu0 %v1842, 12
  %v1907 = vpop.permute.xlu0 %1906
  %1908 = vrot.lane.b32.xlu0 %v1843, 12
  %v1909 = vpop.permute.xlu0 %1908
  %1910 = vrot.lane.b32.xlu0 %v1844, 12
  %v1911 = vpop.permute.xlu0 %1910
  %1912 = vrot.lane.b32.xlu0 %v1845, 12
  %v1913 = vpop.permute.xlu0 %1912
  %1914 = vrot.lane.b32.xlu0 %v1846, 12
  %v1915 = vpop.permute.xlu0 %1914
  %1916 = vrot.lane.b32.xlu0 %v1847, 12
  %v1917 = vpop.permute.xlu0 %1916
  %1918 = vrot.lane.b32.xlu0 %v1848, 12
  %v1919 = vpop.permute.xlu0 %1918
  %1920 = vrot.lane.b32.xlu0 %v1849, 12
  %v1921 = vpop.permute.xlu0 %1920
  %1922 = vrot.lane.b32.xlu0 %v1850, 12
  %v1923 = vpop.permute.xlu0 %1922
  %1924 = vrot.lane.b32.xlu0 %v1851, 12
  %v1925 = vpop.permute.xlu0 %1924
  %1926 = vrot.lane.b32.xlu0 %v1852, 12
  %v1927 = vpop.permute.xlu0 %1926
  %1928 = vrot.lane.b32.xlu0 %v1853, 12
  %v1929 = vpop.permute.xlu0 %1928
  %1930 = vrot.lane.b32.xlu0 %v1854, 12
  %v1931 = vpop.permute.xlu0 %1930
  %1932 = vrot.lane.b32.xlu0 %v1855, 12
  %v1933 = vpop.permute.xlu0 %1932
  %1934 = vrot.lane.b32.xlu0 %v1856, 12
  %v1935 = vpop.permute.xlu0 %1934
  %1936 = vrot.lane.b32.xlu0 %v1857, 12
  %v1937 = vpop.permute.xlu0 %1936
  %1938 = vrot.lane.b32.xlu0 %v1858, 12
  %v1939 = vpop.permute.xlu0 %1938
  %1940 = vrot.lane.b32.xlu0 %v1859, 12
  %v1941 = vpop.permute.xlu0 %1940
  %1942 = vrot.lane.b32.xlu0 %v1860, 12
  %v1943 = vpop.permute.xlu0 %1942
  %1944 = vrot.lane.b32.xlu0 %v1861, 12
  %v1945 = vpop.permute.xlu0 %1944
  %1946 = vrot.lane.b32.xlu0 %v1862, 12
  %v1947 = vpop.permute.xlu0 %1946
  %1948 = vrot.lane.b32.xlu0 %v1863, 12
  %v1949 = vpop.permute.xlu0 %1948
  %1950 = vrot.lane.b32.xlu0 %v1864, 12
  %v1951 = vpop.permute.xlu0 %1950
  %1952 = vrot.lane.b32.xlu0 %v1865, 12
  %v1953 = vpop.permute.xlu0 %1952
  %1954 = vrot.lane.b32.xlu0 %v1866, 12
  %v1955 = vpop.permute.xlu0 %1954
  %1956 = vrot.lane.b32.xlu0 %v1867, 12
  %v1957 = vpop.permute.xlu0 %1956
  %1958 = vrot.lane.b32.xlu0 %v1868, 12
  %v1959 = vpop.permute.xlu0 %1958
  %1960 = vrot.lane.b32.xlu0 %v1869, 12
  %v1961 = vpop.permute.xlu0 %1960
  %1962 = vrot.lane.b32.xlu0 %v1870, 12
  %v1963 = vpop.permute.xlu0 %1962
  %1964 = vrot.lane.b32.xlu0 %v1871, 12
  %v1965 = vpop.permute.xlu0 %1964
  %1966 = vrot.lane.b32.xlu0 %v1872, 12
  %v1967 = vpop.permute.xlu0 %1966
  %1968 = vrot.lane.b32.xlu0 %v1873, 12
  %v1969 = vpop.permute.xlu0 %1968
  %1970 = vrot.lane.b32.xlu0 %v1874, 12
  %v1971 = vpop.permute.xlu0 %1970
  %1972 = vrot.lane.b32.xlu0 %v1875, 12
  %v1973 = vpop.permute.xlu0 %1972
  %1974 = vrot.lane.b32.xlu0 %v1876, 12
  %v1975 = vpop.permute.xlu0 %1974
  %1976 = vrot.lane.b32.xlu0 %v1877, 12
  %v1977 = vpop.permute.xlu0 %1976
  %1978 = vrot.lane.b32.xlu0 %v1878, 12
  %v1979 = vpop.permute.xlu0 %1978
  %1980 = vrot.lane.b32.xlu0 %v1879, 12
  %v1981 = vpop.permute.xlu0 %1980
  %1982 = vrot.lane.b32.xlu0 %v1880, 12
  %v1983 = vpop.permute.xlu0 %1982
  %1984 = vrot.lane.b32.xlu0 %v1881, 12
  %v1985 = vpop.permute.xlu0 %1984
  %1986 = vrot.lane.b32.xlu0 %v1882, 12
  %v1987 = vpop.permute.xlu0 %1986
  %1988 = vrot.lane.b32.xlu0 %v1883, 12
  %v1989 = vpop.permute.xlu0 %1988
  %1990 = vrot.lane.b32.xlu0 %v1884, 12
  %v1991 = vpop.permute.xlu0 %1990
  %1992 = vrot.lane.b32.xlu0 %v1885, 12
  %v1993 = vpop.permute.xlu0 %1992
  %1994 = vrot.lane.b32.xlu0 %v1886, 12
  %v1995 = vpop.permute.xlu0 %1994
  %1996 = vrot.lane.b32.xlu0 %v1887, 12
  %v1997 = vpop.permute.xlu0 %1996
  %1998 = vrot.lane.b32.xlu0 %v1888, 12
  %v1999 = vpop.permute.xlu0 %1998
  %2000 = vrot.lane.b32.xlu0 %v1889, 12
  %v2001 = vpop.permute.xlu0 %2000
  %2002 = vrot.lane.b32.xlu0 %v1890, 12
  %v2003 = vpop.permute.xlu0 %2002
  %2004 = vrot.lane.b32.xlu0 %v1891, 12
  %v2005 = vpop.permute.xlu0 %2004
  %2006 = vrot.lane.b32.xlu0 %v1892, 12
  %v2007 = vpop.permute.xlu0 %2006
  %2008 = vrot.lane.b32.xlu0 %v1893, 12
  %v2009 = vpop.permute.xlu0 %2008
  %2010 = vrot.lane.b32.xlu0 %v1894, 12
  %v2011 = vpop.permute.xlu0 %2010
  %2012 = vrot.lane.b32.xlu0 %v1895, 12
  %v2013 = vpop.permute.xlu0 %2012
  %2014 = vrot.lane.b32.xlu0 %v1896, 12
  %v2015 = vpop.permute.xlu0 %2014
  %2016 = vrot.lane.b32.xlu0 %v1897, 12
  %v2017 = vpop.permute.xlu0 %2016
  %2018 = vrot.lane.b32.xlu0 %v1898, 12
  %v2019 = vpop.permute.xlu0 %2018
  %2020 = vrot.lane.b32.xlu0 %v1899, 12
  %v2021 = vpop.permute.xlu0 %2020
  %2022 = vrot.lane.b32.xlu0 %v1900, 12
  %v2023 = vpop.permute.xlu0 %2022
  %2024 = vrot.lane.b32.xlu0 %v1901, 12
  %v2025 = vpop.permute.xlu0 %2024
  %2026 = vrot.lane.b32.xlu0 %v1902, 12
  %v2027 = vpop.permute.xlu0 %2026
  %2028 = vrot.lane.b32.xlu0 %v1903, 12
  %v2029 = vpop.permute.xlu0 %2028
  %2030 = vrot.lane.b32.xlu0 %v1904, 12
  %v2031 = vpop.permute.xlu0 %2030
  %2032 = vrot.lane.b32.xlu0 %v1905, 12
  %v2033 = vpop.permute.xlu0 %2032
  %vm2098 = vcmask 126048
  %2099 = vst.msk [vmem:[#allocation3] sm:$0xf] %vm2098, %v1907
  %2100 = vst.msk [vmem:[#allocation3 + $0x4] sm:$0xf] %vm2098, %v1909
  %2101 = vst.msk [vmem:[#allocation3 + $0x8] sm:$0xf] %vm2098, %v1911
  %2102 = vst.msk [vmem:[#allocation3 + $0xc] sm:$0xf] %vm2098, %v1913
  %2103 = vst.msk [vmem:[#allocation3 + $0x10] sm:$0xf] %vm2098, %v1915
  %2104 = vst.msk [vmem:[#allocation3 + $0x14] sm:$0xf] %vm2098, %v1917
  %2105 = vst.msk [vmem:[#allocation3 + $0x18] sm:$0xf] %vm2098, %v1919
  %2106 = vst.msk [vmem:[#allocation3 + $0x1c] sm:$0xf] %vm2098, %v1921
  %2107 = vst.msk [vmem:[#allocation3 + $0x20] sm:$0xf] %vm2098, %v1923
  %2108 = vst.msk [vmem:[#allocation3 + $0x24] sm:$0xf] %vm2098, %v1925
  %2109 = vst.msk [vmem:[#allocation3 + $0x28] sm:$0xf] %vm2098, %v1927
  %2110 = vst.msk [vmem:[#allocation3 + $0x2c] sm:$0xf] %vm2098, %v1929
  %2111 = vst.msk [vmem:[#allocation3 + $0x30] sm:$0xf] %vm2098, %v1931
  %2112 = vst.msk [vmem:[#allocation3 + $0x34] sm:$0xf] %vm2098, %v1933
  %2113 = vst.msk [vmem:[#allocation3 + $0x38] sm:$0xf] %vm2098, %v1935
  %2114 = vst.msk [vmem:[#allocation3 + $0x3c] sm:$0xf] %vm2098, %v1937
  %2115 = vst.msk [vmem:[#allocation3 + $0x40] sm:$0xf] %vm2098, %v1939
  %2116 = vst.msk [vmem:[#allocation3 + $0x44] sm:$0xf] %vm2098, %v1941
  %2117 = vst.msk [vmem:[#allocation3 + $0x48] sm:$0xf] %vm2098, %v1943
  %2118 = vst.msk [vmem:[#allocation3 + $0x4c] sm:$0xf] %vm2098, %v1945
  %2119 = vst.msk [vmem:[#allocation3 + $0x50] sm:$0xf] %vm2098, %v1947
  %2120 = vst.msk [vmem:[#allocation3 + $0x54] sm:$0xf] %vm2098, %v1949
  %2121 = vst.msk [vmem:[#allocation3 + $0x58] sm:$0xf] %vm2098, %v1951
  %2122 = vst.msk [vmem:[#allocation3 + $0x5c] sm:$0xf] %vm2098, %v1953
  %2123 = vst.msk [vmem:[#allocation3 + $0x60] sm:$0xf] %vm2098, %v1955
  %2124 = vst.msk [vmem:[#allocation3 + $0x64] sm:$0xf] %vm2098, %v1957
  %2125 = vst.msk [vmem:[#allocation3 + $0x68] sm:$0xf] %vm2098, %v1959
  %2126 = vst.msk [vmem:[#allocation3 + $0x6c] sm:$0xf] %vm2098, %v1961
  %2127 = vst.msk [vmem:[#allocation3 + $0x70] sm:$0xf] %vm2098, %v1963
  %2128 = vst.msk [vmem:[#allocation3 + $0x74] sm:$0xf] %vm2098, %v1965
  %2129 = vst.msk [vmem:[#allocation3 + $0x78] sm:$0xf] %vm2098, %v1967
  %2130 = vst.msk [vmem:[#allocation3 + $0x7c] sm:$0xf] %vm2098, %v1969
  %2131 = vst.msk [vmem:[#allocation3 + $0x80] sm:$0xf] %vm2098, %v1971
  %2132 = vst.msk [vmem:[#allocation3 + $0x84] sm:$0xf] %vm2098, %v1973
  %2133 = vst.msk [vmem:[#allocation3 + $0x88] sm:$0xf] %vm2098, %v1975
  %2134 = vst.msk [vmem:[#allocation3 + $0x8c] sm:$0xf] %vm2098, %v1977
  %2135 = vst.msk [vmem:[#allocation3 + $0x90] sm:$0xf] %vm2098, %v1979
  %2136 = vst.msk [vmem:[#allocation3 + $0x94] sm:$0xf] %vm2098, %v1981
  %2137 = vst.msk [vmem:[#allocation3 + $0x98] sm:$0xf] %vm2098, %v1983
  %2138 = vst.msk [vmem:[#allocation3 + $0x9c] sm:$0xf] %vm2098, %v1985
  %2139 = vst.msk [vmem:[#allocation3 + $0xa0] sm:$0xf] %vm2098, %v1987
  %2140 = vst.msk [vmem:[#allocation3 + $0xa4] sm:$0xf] %vm2098, %v1989
  %2141 = vst.msk [vmem:[#allocation3 + $0xa8] sm:$0xf] %vm2098, %v1991
  %2142 = vst.msk [vmem:[#allocation3 + $0xac] sm:$0xf] %vm2098, %v1993
  %2143 = vst.msk [vmem:[#allocation3 + $0xb0] sm:$0xf] %vm2098, %v1995
  %2144 = vst.msk [vmem:[#allocation3 + $0xb4] sm:$0xf] %vm2098, %v1997
  %2145 = vst.msk [vmem:[#allocation3 + $0xb8] sm:$0xf] %vm2098, %v1999
  %2146 = vst.msk [vmem:[#allocation3 + $0xbc] sm:$0xf] %vm2098, %v2001
  %2147 = vst.msk [vmem:[#allocation3 + $0xc0] sm:$0xf] %vm2098, %v2003
  %2148 = vst.msk [vmem:[#allocation3 + $0xc4] sm:$0xf] %vm2098, %v2005
  %2149 = vst.msk [vmem:[#allocation3 + $0xc8] sm:$0xf] %vm2098, %v2007
  %2150 = vst.msk [vmem:[#allocation3 + $0xcc] sm:$0xf] %vm2098, %v2009
  %2151 = vst.msk [vmem:[#allocation3 + $0xd0] sm:$0xf] %vm2098, %v2011
  %2152 = vst.msk [vmem:[#allocation3 + $0xd4] sm:$0xf] %vm2098, %v2013
  %2153 = vst.msk [vmem:[#allocation3 + $0xd8] sm:$0xf] %vm2098, %v2015
  %2154 = vst.msk [vmem:[#allocation3 + $0xdc] sm:$0xf] %vm2098, %v2017
  %2155 = vst.msk [vmem:[#allocation3 + $0xe0] sm:$0xf] %vm2098, %v2019
  %2156 = vst.msk [vmem:[#allocation3 + $0xe4] sm:$0xf] %vm2098, %v2021
  %2157 = vst.msk [vmem:[#allocation3 + $0xe8] sm:$0xf] %vm2098, %v2023
  %2158 = vst.msk [vmem:[#allocation3 + $0xec] sm:$0xf] %vm2098, %v2025
  %2159 = vst.msk [vmem:[#allocation3 + $0xf0] sm:$0xf] %vm2098, %v2027
  %2160 = vst.msk [vmem:[#allocation3 + $0xf4] sm:$0xf] %vm2098, %v2029
  %2161 = vst.msk [vmem:[#allocation3 + $0xf8] sm:$0xf] %vm2098, %v2031
  %2162 = vst.msk [vmem:[#allocation3 + $0xfc] sm:$0xf] %vm2098, %v2033
  %v2163 = vld [vmem:[%s174 + $0x1] sm:$0xff]
  %v2164 = vld [vmem:[%s174 + $0x9] sm:$0xff]
  %v2165 = vld [vmem:[%s174 + $0x19] sm:$0xff]
  %v2166 = vld [vmem:[%s174 + $0x21] sm:$0xff]
  %v2167 = vld [vmem:[%s174 + $0x31] sm:$0xff]
  %v2168 = vld [vmem:[%s174 + $0x39] sm:$0xff]
  %v2169 = vld [vmem:[%s174 + $0x49] sm:$0xff]
  %v2170 = vld [vmem:[%s174 + $0x51] sm:$0xff]
  %v2171 = vld [vmem:[%s174 + $0x61] sm:$0xff]
  %v2172 = vld [vmem:[%s174 + $0x69] sm:$0xff]
  %v2173 = vld [vmem:[%s174 + $0x79] sm:$0xff]
  %v2174 = vld [vmem:[%s174 + $0x81] sm:$0xff]
  %v2175 = vld [vmem:[%s174 + $0x91] sm:$0xff]
  %v2176 = vld [vmem:[%s174 + $0x99] sm:$0xff]
  %v2177 = vld [vmem:[%s174 + $0xa9] sm:$0xff]
  %v2178 = vld [vmem:[%s174 + $0xb1] sm:$0xff]
  %v2179 = vld [vmem:[%s174 + $0xc1] sm:$0xff]
  %v2180 = vld [vmem:[%s174 + $0xc9] sm:$0xff]
  %v2181 = vld [vmem:[%s174 + $0xd9] sm:$0xff]
  %v2182 = vld [vmem:[%s174 + $0xe1] sm:$0xff]
  %v2183 = vld [vmem:[%s174 + $0xf1] sm:$0xff]
  %v2184 = vld [vmem:[%s174 + $0xf9] sm:$0xff]
  %v2185 = vld [vmem:[%s174 + $0x109] sm:$0xff]
  %v2186 = vld [vmem:[%s174 + $0x111] sm:$0xff]
  %v2187 = vld [vmem:[%s174 + $0x121] sm:$0xff]
  %v2188 = vld [vmem:[%s174 + $0x129] sm:$0xff]
  %v2189 = vld [vmem:[%s174 + $0x139] sm:$0xff]
  %v2190 = vld [vmem:[%s174 + $0x141] sm:$0xff]
  %v2191 = vld [vmem:[%s174 + $0x151] sm:$0xff]
  %v2192 = vld [vmem:[%s174 + $0x159] sm:$0xff]
  %v2193 = vld [vmem:[%s174 + $0x169] sm:$0xff]
  %v2194 = vld [vmem:[%s174 + $0x171] sm:$0xff]
  %v2195 = vld [vmem:[%s174 + $0x1b1] sm:$0xff]
  %v2196 = vld [vmem:[%s174 + $0x1b9] sm:$0xff]
  %v2197 = vld [vmem:[%s174 + $0x1c9] sm:$0xff]
  %v2198 = vld [vmem:[%s174 + $0x1d1] sm:$0xff]
  %v2199 = vld [vmem:[%s174 + $0x1e1] sm:$0xff]
  %v2200 = vld [vmem:[%s174 + $0x1e9] sm:$0xff]
  %v2201 = vld [vmem:[%s174 + $0x1f9] sm:$0xff]
  %v2202 = vld [vmem:[%s174 + $0x201] sm:$0xff]
  %v2203 = vld [vmem:[%s174 + $0x211] sm:$0xff]
  %v2204 = vld [vmem:[%s174 + $0x219] sm:$0xff]
  %v2205 = vld [vmem:[%s174 + $0x229] sm:$0xff]
  %v2206 = vld [vmem:[%s174 + $0x231] sm:$0xff]
  %v2207 = vld [vmem:[%s174 + $0x241] sm:$0xff]
  %v2208 = vld [vmem:[%s174 + $0x249] sm:$0xff]
  %v2209 = vld [vmem:[%s174 + $0x259] sm:$0xff]
  %v2210 = vld [vmem:[%s174 + $0x261] sm:$0xff]
  %v2211 = vld [vmem:[%s174 + $0x271] sm:$0xff]
  %v2212 = vld [vmem:[%s174 + $0x279] sm:$0xff]
  %v2213 = vld [vmem:[%s174 + $0x289] sm:$0xff]
  %v2214 = vld [vmem:[%s174 + $0x291] sm:$0xff]
  %v2215 = vld [vmem:[%s174 + $0x2a1] sm:$0xff]
  %v2216 = vld [vmem:[%s174 + $0x2a9] sm:$0xff]
  %v2217 = vld [vmem:[%s174 + $0x2b9] sm:$0xff]
  %v2218 = vld [vmem:[%s174 + $0x2c1] sm:$0xff]
  %v2219 = vld [vmem:[%s174 + $0x2d1] sm:$0xff]
  %v2220 = vld [vmem:[%s174 + $0x2d9] sm:$0xff]
  %v2221 = vld [vmem:[%s174 + $0x2e9] sm:$0xff]
  %v2222 = vld [vmem:[%s174 + $0x2f1] sm:$0xff]
  %v2223 = vld [vmem:[%s174 + $0x301] sm:$0xff]
  %v2224 = vld [vmem:[%s174 + $0x309] sm:$0xff]
  %v2225 = vld [vmem:[%s174 + $0x319] sm:$0xff]
  %v2226 = vld [vmem:[%s174 + $0x321] sm:$0xff]
  %v2227 = vpack.c.bf16 %v2164, %v2163
  %v2228 = vpack.c.bf16 %v2166, %v2165
  %v2229 = vpack.c.bf16 %v2168, %v2167
  %v2230 = vpack.c.bf16 %v2170, %v2169
  %v2231 = vpack.c.bf16 %v2172, %v2171
  %v2232 = vpack.c.bf16 %v2174, %v2173
  %v2233 = vpack.c.bf16 %v2176, %v2175
  %v2234 = vpack.c.bf16 %v2178, %v2177
  %v2235 = vpack.c.bf16 %v2180, %v2179
  %v2236 = vpack.c.bf16 %v2182, %v2181
  %v2237 = vpack.c.bf16 %v2184, %v2183
  %v2238 = vpack.c.bf16 %v2186, %v2185
  %v2239 = vpack.c.bf16 %v2188, %v2187
  %v2240 = vpack.c.bf16 %v2190, %v2189
  %v2241 = vpack.c.bf16 %v2192, %v2191
  %v2242 = vpack.c.bf16 %v2194, %v2193
  %v2243 = vpack.c.bf16 %v2196, %v2195
  %v2244 = vpack.c.bf16 %v2198, %v2197
  %v2245 = vpack.c.bf16 %v2200, %v2199
  %v2246 = vpack.c.bf16 %v2202, %v2201
  %v2247 = vpack.c.bf16 %v2204, %v2203
  %v2248 = vpack.c.bf16 %v2206, %v2205
  %v2249 = vpack.c.bf16 %v2208, %v2207
  %v2250 = vpack.c.bf16 %v2210, %v2209
  %v2251 = vpack.c.bf16 %v2212, %v2211
  %v2252 = vpack.c.bf16 %v2214, %v2213
  %v2253 = vpack.c.bf16 %v2216, %v2215
  %v2254 = vpack.c.bf16 %v2218, %v2217
  %v2255 = vpack.c.bf16 %v2220, %v2219
  %v2256 = vpack.c.bf16 %v2222, %v2221
  %v2257 = vpack.c.bf16 %v2224, %v2223
  %v2258 = vpack.c.bf16 %v2226, %v2225
  %v2291 = vunpack.c.l.b16 %v2227
  %v2292 = vunpack.c.h.b16 %v2227
  %v2293 = vunpack.c.l.b16 %v2228
  %v2294 = vunpack.c.h.b16 %v2228
  %v2295 = vunpack.c.l.b16 %v2229
  %v2296 = vunpack.c.h.b16 %v2229
  %v2297 = vunpack.c.l.b16 %v2230
  %v2298 = vunpack.c.h.b16 %v2230
  %v2299 = vunpack.c.l.b16 %v2231
  %v2300 = vunpack.c.h.b16 %v2231
  %v2301 = vunpack.c.l.b16 %v2232
  %v2302 = vunpack.c.h.b16 %v2232
  %v2303 = vunpack.c.l.b16 %v2233
  %v2304 = vunpack.c.h.b16 %v2233
  %v2305 = vunpack.c.l.b16 %v2234
  %v2306 = vunpack.c.h.b16 %v2234
  %v2307 = vunpack.c.l.b16 %v2235
  %v2308 = vunpack.c.h.b16 %v2235
  %v2309 = vunpack.c.l.b16 %v2236
  %v2310 = vunpack.c.h.b16 %v2236
  %v2311 = vunpack.c.l.b16 %v2237
  %v2312 = vunpack.c.h.b16 %v2237
  %v2313 = vunpack.c.l.b16 %v2238
  %v2314 = vunpack.c.h.b16 %v2238
  %v2315 = vunpack.c.l.b16 %v2239
  %v2316 = vunpack.c.h.b16 %v2239
  %v2317 = vunpack.c.l.b16 %v2240
  %v2318 = vunpack.c.h.b16 %v2240
  %v2319 = vunpack.c.l.b16 %v2241
  %v2320 = vunpack.c.h.b16 %v2241
  %v2321 = vunpack.c.l.b16 %v2242
  %v2322 = vunpack.c.h.b16 %v2242
  %v2323 = vunpack.c.l.b16 %v2243
  %v2324 = vunpack.c.h.b16 %v2243
  %v2325 = vunpack.c.l.b16 %v2244
  %v2326 = vunpack.c.h.b16 %v2244
  %v2327 = vunpack.c.l.b16 %v2245
  %v2328 = vunpack.c.h.b16 %v2245
  %v2329 = vunpack.c.l.b16 %v2246
  %v2330 = vunpack.c.h.b16 %v2246
  %v2331 = vunpack.c.l.b16 %v2247
  %v2332 = vunpack.c.h.b16 %v2247
  %v2333 = vunpack.c.l.b16 %v2248
  %v2334 = vunpack.c.h.b16 %v2248
  %v2335 = vunpack.c.l.b16 %v2249
  %v2336 = vunpack.c.h.b16 %v2249
  %v2337 = vunpack.c.l.b16 %v2250
  %v2338 = vunpack.c.h.b16 %v2250
  %v2339 = vunpack.c.l.b16 %v2251
  %v2340 = vunpack.c.h.b16 %v2251
  %v2341 = vunpack.c.l.b16 %v2252
  %v2342 = vunpack.c.h.b16 %v2252
  %v2343 = vunpack.c.l.b16 %v2253
  %v2344 = vunpack.c.h.b16 %v2253
  %v2345 = vunpack.c.l.b16 %v2254
  %v2346 = vunpack.c.h.b16 %v2254
  %v2347 = vunpack.c.l.b16 %v2255
  %v2348 = vunpack.c.h.b16 %v2255
  %v2349 = vunpack.c.l.b16 %v2256
  %v2350 = vunpack.c.h.b16 %v2256
  %v2351 = vunpack.c.l.b16 %v2257
  %v2352 = vunpack.c.h.b16 %v2257
  %v2353 = vunpack.c.l.b16 %v2258
  %v2354 = vunpack.c.h.b16 %v2258
  %v2355 = vpack.c.b16 %v2291, %v2291
  %v2356 = vpack.c.b16 %v2292, %v2292
  %v2357 = vpack.c.b16 %v2293, %v2293
  %v2358 = vpack.c.b16 %v2294, %v2294
  %v2359 = vpack.c.b16 %v2295, %v2295
  %v2360 = vpack.c.b16 %v2296, %v2296
  %v2361 = vpack.c.b16 %v2297, %v2297
  %v2362 = vpack.c.b16 %v2298, %v2298
  %v2363 = vpack.c.b16 %v2299, %v2299
  %v2364 = vpack.c.b16 %v2300, %v2300
  %v2365 = vpack.c.b16 %v2301, %v2301
  %v2366 = vpack.c.b16 %v2302, %v2302
  %v2367 = vpack.c.b16 %v2303, %v2303
  %v2368 = vpack.c.b16 %v2304, %v2304
  %v2369 = vpack.c.b16 %v2305, %v2305
  %v2370 = vpack.c.b16 %v2306, %v2306
  %v2371 = vpack.c.b16 %v2307, %v2307
  %v2372 = vpack.c.b16 %v2308, %v2308
  %v2373 = vpack.c.b16 %v2309, %v2309
  %v2374 = vpack.c.b16 %v2310, %v2310
  %v2375 = vpack.c.b16 %v2311, %v2311
  %v2376 = vpack.c.b16 %v2312, %v2312
  %v2377 = vpack.c.b16 %v2313, %v2313
  %v2378 = vpack.c.b16 %v2314, %v2314
  %v2379 = vpack.c.b16 %v2315, %v2315
  %v2380 = vpack.c.b16 %v2316, %v2316
  %v2381 = vpack.c.b16 %v2317, %v2317
  %v2382 = vpack.c.b16 %v2318, %v2318
  %v2383 = vpack.c.b16 %v2319, %v2319
  %v2384 = vpack.c.b16 %v2320, %v2320
  %v2385 = vpack.c.b16 %v2321, %v2321
  %v2386 = vpack.c.b16 %v2322, %v2322
  %v2387 = vpack.c.b16 %v2323, %v2323
  %v2388 = vpack.c.b16 %v2324, %v2324
  %v2389 = vpack.c.b16 %v2325, %v2325
  %v2390 = vpack.c.b16 %v2326, %v2326
  %v2391 = vpack.c.b16 %v2327, %v2327
  %v2392 = vpack.c.b16 %v2328, %v2328
  %v2393 = vpack.c.b16 %v2329, %v2329
  %v2394 = vpack.c.b16 %v2330, %v2330
  %v2395 = vpack.c.b16 %v2331, %v2331
  %v2396 = vpack.c.b16 %v2332, %v2332
  %v2397 = vpack.c.b16 %v2333, %v2333
  %v2398 = vpack.c.b16 %v2334, %v2334
  %v2399 = vpack.c.b16 %v2335, %v2335
  %v2400 = vpack.c.b16 %v2336, %v2336
  %v2401 = vpack.c.b16 %v2337, %v2337
  %v2402 = vpack.c.b16 %v2338, %v2338
  %v2403 = vpack.c.b16 %v2339, %v2339
  %v2404 = vpack.c.b16 %v2340, %v2340
  %v2405 = vpack.c.b16 %v2341, %v2341
  %v2406 = vpack.c.b16 %v2342, %v2342
  %v2407 = vpack.c.b16 %v2343, %v2343
  %v2408 = vpack.c.b16 %v2344, %v2344
  %v2409 = vpack.c.b16 %v2345, %v2345
  %v2410 = vpack.c.b16 %v2346, %v2346
  %v2411 = vpack.c.b16 %v2347, %v2347
  %v2412 = vpack.c.b16 %v2348, %v2348
  %v2413 = vpack.c.b16 %v2349, %v2349
  %v2414 = vpack.c.b16 %v2350, %v2350
  %v2415 = vpack.c.b16 %v2351, %v2351
  %v2416 = vpack.c.b16 %v2352, %v2352
  %v2417 = vpack.c.b16 %v2353, %v2353
  %v2418 = vpack.c.b16 %v2354, %v2354
  %2419 = vrot.lane.b32.xlu0 %v2355, 16
  %v2420 = vpop.permute.xlu0 %2419
  %2421 = vrot.lane.b32.xlu0 %v2356, 16
  %v2422 = vpop.permute.xlu0 %2421
  %2423 = vrot.lane.b32.xlu0 %v2357, 16
  %v2424 = vpop.permute.xlu0 %2423
  %2425 = vrot.lane.b32.xlu0 %v2358, 16
  %v2426 = vpop.permute.xlu0 %2425
  %2427 = vrot.lane.b32.xlu0 %v2359, 16
  %v2428 = vpop.permute.xlu0 %2427
  %2429 = vrot.lane.b32.xlu0 %v2360, 16
  %v2430 = vpop.permute.xlu0 %2429
  %2431 = vrot.lane.b32.xlu0 %v2361, 16
  %v2432 = vpop.permute.xlu0 %2431
  %2433 = vrot.lane.b32.xlu0 %v2362, 16
  %v2434 = vpop.permute.xlu0 %2433
  %2435 = vrot.lane.b32.xlu0 %v2363, 16
  %v2436 = vpop.permute.xlu0 %2435
  %2437 = vrot.lane.b32.xlu0 %v2364, 16
  %v2438 = vpop.permute.xlu0 %2437
  %2439 = vrot.lane.b32.xlu0 %v2365, 16
  %v2440 = vpop.permute.xlu0 %2439
  %2441 = vrot.lane.b32.xlu0 %v2366, 16
  %v2442 = vpop.permute.xlu0 %2441
  %2443 = vrot.lane.b32.xlu0 %v2367, 16
  %v2444 = vpop.permute.xlu0 %2443
  %2445 = vrot.lane.b32.xlu0 %v2368, 16
  %v2446 = vpop.permute.xlu0 %2445
  %2447 = vrot.lane.b32.xlu0 %v2369, 16
  %v2448 = vpop.permute.xlu0 %2447
  %2449 = vrot.lane.b32.xlu0 %v2370, 16
  %v2450 = vpop.permute.xlu0 %2449
  %2451 = vrot.lane.b32.xlu0 %v2371, 16
  %v2452 = vpop.permute.xlu0 %2451
  %2453 = vrot.lane.b32.xlu0 %v2372, 16
  %v2454 = vpop.permute.xlu0 %2453
  %2455 = vrot.lane.b32.xlu0 %v2373, 16
  %v2456 = vpop.permute.xlu0 %2455
  %2457 = vrot.lane.b32.xlu0 %v2374, 16
  %v2458 = vpop.permute.xlu0 %2457
  %2459 = vrot.lane.b32.xlu0 %v2375, 16
  %v2460 = vpop.permute.xlu0 %2459
  %2461 = vrot.lane.b32.xlu0 %v2376, 16
  %v2462 = vpop.permute.xlu0 %2461
  %2463 = vrot.lane.b32.xlu0 %v2377, 16
  %v2464 = vpop.permute.xlu0 %2463
  %2465 = vrot.lane.b32.xlu0 %v2378, 16
  %v2466 = vpop.permute.xlu0 %2465
  %2467 = vrot.lane.b32.xlu0 %v2379, 16
  %v2468 = vpop.permute.xlu0 %2467
  %2469 = vrot.lane.b32.xlu0 %v2380, 16
  %v2470 = vpop.permute.xlu0 %2469
  %2471 = vrot.lane.b32.xlu0 %v2381, 16
  %v2472 = vpop.permute.xlu0 %2471
  %2473 = vrot.lane.b32.xlu0 %v2382, 16
  %v2474 = vpop.permute.xlu0 %2473
  %2475 = vrot.lane.b32.xlu0 %v2383, 16
  %v2476 = vpop.permute.xlu0 %2475
  %2477 = vrot.lane.b32.xlu0 %v2384, 16
  %v2478 = vpop.permute.xlu0 %2477
  %2479 = vrot.lane.b32.xlu0 %v2385, 16
  %v2480 = vpop.permute.xlu0 %2479
  %2481 = vrot.lane.b32.xlu0 %v2386, 16
  %v2482 = vpop.permute.xlu0 %2481
  %2483 = vrot.lane.b32.xlu0 %v2387, 16
  %v2484 = vpop.permute.xlu0 %2483
  %2485 = vrot.lane.b32.xlu0 %v2388, 16
  %v2486 = vpop.permute.xlu0 %2485
  %2487 = vrot.lane.b32.xlu0 %v2389, 16
  %v2488 = vpop.permute.xlu0 %2487
  %2489 = vrot.lane.b32.xlu0 %v2390, 16
  %v2490 = vpop.permute.xlu0 %2489
  %2491 = vrot.lane.b32.xlu0 %v2391, 16
  %v2492 = vpop.permute.xlu0 %2491
  %2493 = vrot.lane.b32.xlu0 %v2392, 16
  %v2494 = vpop.permute.xlu0 %2493
  %2495 = vrot.lane.b32.xlu0 %v2393, 16
  %v2496 = vpop.permute.xlu0 %2495
  %2497 = vrot.lane.b32.xlu0 %v2394, 16
  %v2498 = vpop.permute.xlu0 %2497
  %2499 = vrot.lane.b32.xlu0 %v2395, 16
  %v2500 = vpop.permute.xlu0 %2499
  %2501 = vrot.lane.b32.xlu0 %v2396, 16
  %v2502 = vpop.permute.xlu0 %2501
  %2503 = vrot.lane.b32.xlu0 %v2397, 16
  %v2504 = vpop.permute.xlu0 %2503
  %2505 = vrot.lane.b32.xlu0 %v2398, 16
  %v2506 = vpop.permute.xlu0 %2505
  %2507 = vrot.lane.b32.xlu0 %v2399, 16
  %v2508 = vpop.permute.xlu0 %2507
  %2509 = vrot.lane.b32.xlu0 %v2400, 16
  %v2510 = vpop.permute.xlu0 %2509
  %2511 = vrot.lane.b32.xlu0 %v2401, 16
  %v2512 = vpop.permute.xlu0 %2511
  %2513 = vrot.lane.b32.xlu0 %v2402, 16
  %v2514 = vpop.permute.xlu0 %2513
  %2515 = vrot.lane.b32.xlu0 %v2403, 16
  %v2516 = vpop.permute.xlu0 %2515
  %2517 = vrot.lane.b32.xlu0 %v2404, 16
  %v2518 = vpop.permute.xlu0 %2517
  %2519 = vrot.lane.b32.xlu0 %v2405, 16
  %v2520 = vpop.permute.xlu0 %2519
  %2521 = vrot.lane.b32.xlu0 %v2406, 16
  %v2522 = vpop.permute.xlu0 %2521
  %2523 = vrot.lane.b32.xlu0 %v2407, 16
  %v2524 = vpop.permute.xlu0 %2523
  %2525 = vrot.lane.b32.xlu0 %v2408, 16
  %v2526 = vpop.permute.xlu0 %2525
  %2527 = vrot.lane.b32.xlu0 %v2409, 16
  %v2528 = vpop.permute.xlu0 %2527
  %2529 = vrot.lane.b32.xlu0 %v2410, 16
  %v2530 = vpop.permute.xlu0 %2529
  %2531 = vrot.lane.b32.xlu0 %v2411, 16
  %v2532 = vpop.permute.xlu0 %2531
  %2533 = vrot.lane.b32.xlu0 %v2412, 16
  %v2534 = vpop.permute.xlu0 %2533
  %2535 = vrot.lane.b32.xlu0 %v2413, 16
  %v2536 = vpop.permute.xlu0 %2535
  %2537 = vrot.lane.b32.xlu0 %v2414, 16
  %v2538 = vpop.permute.xlu0 %2537
  %2539 = vrot.lane.b32.xlu0 %v2415, 16
  %v2540 = vpop.permute.xlu0 %2539
  %2541 = vrot.lane.b32.xlu0 %v2416, 16
  %v2542 = vpop.permute.xlu0 %2541
  %2543 = vrot.lane.b32.xlu0 %v2417, 16
  %v2544 = vpop.permute.xlu0 %2543
  %2545 = vrot.lane.b32.xlu0 %v2418, 16
  %v2546 = vpop.permute.xlu0 %2545
  %vm2611 = vcmask 158848
  %2612 = vst.msk [vmem:[#allocation3] sm:$0xf] %vm2611, %v2420
  %2613 = vst.msk [vmem:[#allocation3 + $0x4] sm:$0xf] %vm2611, %v2422
  %2614 = vst.msk [vmem:[#allocation3 + $0x8] sm:$0xf] %vm2611, %v2424
  %2615 = vst.msk [vmem:[#allocation3 + $0xc] sm:$0xf] %vm2611, %v2426
  %2616 = vst.msk [vmem:[#allocation3 + $0x10] sm:$0xf] %vm2611, %v2428
  %2617 = vst.msk [vmem:[#allocation3 + $0x14] sm:$0xf] %vm2611, %v2430
  %2618 = vst.msk [vmem:[#allocation3 + $0x18] sm:$0xf] %vm2611, %v2432
  %2619 = vst.msk [vmem:[#allocation3 + $0x1c] sm:$0xf] %vm2611, %v2434
  %2620 = vst.msk [vmem:[#allocation3 + $0x20] sm:$0xf] %vm2611, %v2436
  %2621 = vst.msk [vmem:[#allocation3 + $0x24] sm:$0xf] %vm2611, %v2438
  %2622 = vst.msk [vmem:[#allocation3 + $0x28] sm:$0xf] %vm2611, %v2440
  %2623 = vst.msk [vmem:[#allocation3 + $0x2c] sm:$0xf] %vm2611, %v2442
  %2624 = vst.msk [vmem:[#allocation3 + $0x30] sm:$0xf] %vm2611, %v2444
  %2625 = vst.msk [vmem:[#allocation3 + $0x34] sm:$0xf] %vm2611, %v2446
  %2626 = vst.msk [vmem:[#allocation3 + $0x38] sm:$0xf] %vm2611, %v2448
  %2627 = vst.msk [vmem:[#allocation3 + $0x3c] sm:$0xf] %vm2611, %v2450
  %2628 = vst.msk [vmem:[#allocation3 + $0x40] sm:$0xf] %vm2611, %v2452
  %2629 = vst.msk [vmem:[#allocation3 + $0x44] sm:$0xf] %vm2611, %v2454
  %2630 = vst.msk [vmem:[#allocation3 + $0x48] sm:$0xf] %vm2611, %v2456
  %2631 = vst.msk [vmem:[#allocation3 + $0x4c] sm:$0xf] %vm2611, %v2458
  %2632 = vst.msk [vmem:[#allocation3 + $0x50] sm:$0xf] %vm2611, %v2460
  %2633 = vst.msk [vmem:[#allocation3 + $0x54] sm:$0xf] %vm2611, %v2462
  %2634 = vst.msk [vmem:[#allocation3 + $0x58] sm:$0xf] %vm2611, %v2464
  %2635 = vst.msk [vmem:[#allocation3 + $0x5c] sm:$0xf] %vm2611, %v2466
  %2636 = vst.msk [vmem:[#allocation3 + $0x60] sm:$0xf] %vm2611, %v2468
  %2637 = vst.msk [vmem:[#allocation3 + $0x64] sm:$0xf] %vm2611, %v2470
  %2638 = vst.msk [vmem:[#allocation3 + $0x68] sm:$0xf] %vm2611, %v2472
  %2639 = vst.msk [vmem:[#allocation3 + $0x6c] sm:$0xf] %vm2611, %v2474
  %2640 = vst.msk [vmem:[#allocation3 + $0x70] sm:$0xf] %vm2611, %v2476
  %2641 = vst.msk [vmem:[#allocation3 + $0x74] sm:$0xf] %vm2611, %v2478
  %2642 = vst.msk [vmem:[#allocation3 + $0x78] sm:$0xf] %vm2611, %v2480
  %2643 = vst.msk [vmem:[#allocation3 + $0x7c] sm:$0xf] %vm2611, %v2482
  %2644 = vst.msk [vmem:[#allocation3 + $0x80] sm:$0xf] %vm2611, %v2484
  %2645 = vst.msk [vmem:[#allocation3 + $0x84] sm:$0xf] %vm2611, %v2486
  %2646 = vst.msk [vmem:[#allocation3 + $0x88] sm:$0xf] %vm2611, %v2488
  %2647 = vst.msk [vmem:[#allocation3 + $0x8c] sm:$0xf] %vm2611, %v2490
  %2648 = vst.msk [vmem:[#allocation3 + $0x90] sm:$0xf] %vm2611, %v2492
  %2649 = vst.msk [vmem:[#allocation3 + $0x94] sm:$0xf] %vm2611, %v2494
  %2650 = vst.msk [vmem:[#allocation3 + $0x98] sm:$0xf] %vm2611, %v2496
  %2651 = vst.msk [vmem:[#allocation3 + $0x9c] sm:$0xf] %vm2611, %v2498
  %2652 = vst.msk [vmem:[#allocation3 + $0xa0] sm:$0xf] %vm2611, %v2500
  %2653 = vst.msk [vmem:[#allocation3 + $0xa4] sm:$0xf] %vm2611, %v2502
  %2654 = vst.msk [vmem:[#allocation3 + $0xa8] sm:$0xf] %vm2611, %v2504
  %2655 = vst.msk [vmem:[#allocation3 + $0xac] sm:$0xf] %vm2611, %v2506
  %2656 = vst.msk [vmem:[#allocation3 + $0xb0] sm:$0xf] %vm2611, %v2508
  %2657 = vst.msk [vmem:[#allocation3 + $0xb4] sm:$0xf] %vm2611, %v2510
  %2658 = vst.msk [vmem:[#allocation3 + $0xb8] sm:$0xf] %vm2611, %v2512
  %2659 = vst.msk [vmem:[#allocation3 + $0xbc] sm:$0xf] %vm2611, %v2514
  %2660 = vst.msk [vmem:[#allocation3 + $0xc0] sm:$0xf] %vm2611, %v2516
  %2661 = vst.msk [vmem:[#allocation3 + $0xc4] sm:$0xf] %vm2611, %v2518
  %2662 = vst.msk [vmem:[#allocation3 + $0xc8] sm:$0xf] %vm2611, %v2520
  %2663 = vst.msk [vmem:[#allocation3 + $0xcc] sm:$0xf] %vm2611, %v2522
  %2664 = vst.msk [vmem:[#allocation3 + $0xd0] sm:$0xf] %vm2611, %v2524
  %2665 = vst.msk [vmem:[#allocation3 + $0xd4] sm:$0xf] %vm2611, %v2526
  %2666 = vst.msk [vmem:[#allocation3 + $0xd8] sm:$0xf] %vm2611, %v2528
  %2667 = vst.msk [vmem:[#allocation3 + $0xdc] sm:$0xf] %vm2611, %v2530
  %2668 = vst.msk [vmem:[#allocation3 + $0xe0] sm:$0xf] %vm2611, %v2532
  %2669 = vst.msk [vmem:[#allocation3 + $0xe4] sm:$0xf] %vm2611, %v2534
  %2670 = vst.msk [vmem:[#allocation3 + $0xe8] sm:$0xf] %vm2611, %v2536
  %2671 = vst.msk [vmem:[#allocation3 + $0xec] sm:$0xf] %vm2611, %v2538
  %2672 = vst.msk [vmem:[#allocation3 + $0xf0] sm:$0xf] %vm2611, %v2540
  %2673 = vst.msk [vmem:[#allocation3 + $0xf4] sm:$0xf] %vm2611, %v2542
  %2674 = vst.msk [vmem:[#allocation3 + $0xf8] sm:$0xf] %vm2611, %v2544
  %2675 = vst.msk [vmem:[#allocation3 + $0xfc] sm:$0xf] %vm2611, %v2546
  %v2676 = vld [vmem:[%s174 + $0x2] sm:$0xff]
  %v2677 = vld [vmem:[%s174 + $0xa] sm:$0xff]
  %v2678 = vld [vmem:[%s174 + $0x1a] sm:$0xff]
  %v2679 = vld [vmem:[%s174 + $0x22] sm:$0xff]
  %v2680 = vld [vmem:[%s174 + $0x32] sm:$0xff]
  %v2681 = vld [vmem:[%s174 + $0x3a] sm:$0xff]
  %v2682 = vld [vmem:[%s174 + $0x4a] sm:$0xff]
  %v2683 = vld [vmem:[%s174 + $0x52] sm:$0xff]
  %v2684 = vld [vmem:[%s174 + $0x62] sm:$0xff]
  %v2685 = vld [vmem:[%s174 + $0x6a] sm:$0xff]
  %v2686 = vld [vmem:[%s174 + $0x7a] sm:$0xff]
  %v2687 = vld [vmem:[%s174 + $0x82] sm:$0xff]
  %v2688 = vld [vmem:[%s174 + $0x92] sm:$0xff]
  %v2689 = vld [vmem:[%s174 + $0x9a] sm:$0xff]
  %v2690 = vld [vmem:[%s174 + $0xaa] sm:$0xff]
  %v2691 = vld [vmem:[%s174 + $0xb2] sm:$0xff]
  %v2692 = vld [vmem:[%s174 + $0xc2] sm:$0xff]
  %v2693 = vld [vmem:[%s174 + $0xca] sm:$0xff]
  %v2694 = vld [vmem:[%s174 + $0xda] sm:$0xff]
  %v2695 = vld [vmem:[%s174 + $0xe2] sm:$0xff]
  %v2696 = vld [vmem:[%s174 + $0xf2] sm:$0xff]
  %v2697 = vld [vmem:[%s174 + $0xfa] sm:$0xff]
  %v2698 = vld [vmem:[%s174 + $0x10a] sm:$0xff]
  %v2699 = vld [vmem:[%s174 + $0x112] sm:$0xff]
  %v2700 = vld [vmem:[%s174 + $0x122] sm:$0xff]
  %v2701 = vld [vmem:[%s174 + $0x12a] sm:$0xff]
  %v2702 = vld [vmem:[%s174 + $0x13a] sm:$0xff]
  %v2703 = vld [vmem:[%s174 + $0x142] sm:$0xff]
  %v2704 = vld [vmem:[%s174 + $0x152] sm:$0xff]
  %v2705 = vld [vmem:[%s174 + $0x15a] sm:$0xff]
  %v2706 = vld [vmem:[%s174 + $0x16a] sm:$0xff]
  %v2707 = vld [vmem:[%s174 + $0x172] sm:$0xff]
  %v2708 = vld [vmem:[%s174 + $0x1b2] sm:$0xff]
  %v2709 = vld [vmem:[%s174 + $0x1ba] sm:$0xff]
  %v2710 = vld [vmem:[%s174 + $0x1ca] sm:$0xff]
  %v2711 = vld [vmem:[%s174 + $0x1d2] sm:$0xff]
  %v2712 = vld [vmem:[%s174 + $0x1e2] sm:$0xff]
  %v2713 = vld [vmem:[%s174 + $0x1ea] sm:$0xff]
  %v2714 = vld [vmem:[%s174 + $0x1fa] sm:$0xff]
  %v2715 = vld [vmem:[%s174 + $0x202] sm:$0xff]
  %v2716 = vld [vmem:[%s174 + $0x212] sm:$0xff]
  %v2717 = vld [vmem:[%s174 + $0x21a] sm:$0xff]
  %v2718 = vld [vmem:[%s174 + $0x22a] sm:$0xff]
  %v2719 = vld [vmem:[%s174 + $0x232] sm:$0xff]
  %v2720 = vld [vmem:[%s174 + $0x242] sm:$0xff]
  %v2721 = vld [vmem:[%s174 + $0x24a] sm:$0xff]
  %v2722 = vld [vmem:[%s174 + $0x25a] sm:$0xff]
  %v2723 = vld [vmem:[%s174 + $0x262] sm:$0xff]
  %v2724 = vld [vmem:[%s174 + $0x272] sm:$0xff]
  %v2725 = vld [vmem:[%s174 + $0x27a] sm:$0xff]
  %v2726 = vld [vmem:[%s174 + $0x28a] sm:$0xff]
  %v2727 = vld [vmem:[%s174 + $0x292] sm:$0xff]
  %v2728 = vld [vmem:[%s174 + $0x2a2] sm:$0xff]
  %v2729 = vld [vmem:[%s174 + $0x2aa] sm:$0xff]
  %v2730 = vld [vmem:[%s174 + $0x2ba] sm:$0xff]
  %v2731 = vld [vmem:[%s174 + $0x2c2] sm:$0xff]
  %v2732 = vld [vmem:[%s174 + $0x2d2] sm:$0xff]
  %v2733 = vld [vmem:[%s174 + $0x2da] sm:$0xff]
  %v2734 = vld [vmem:[%s174 + $0x2ea] sm:$0xff]
  %v2735 = vld [vmem:[%s174 + $0x2f2] sm:$0xff]
  %v2736 = vld [vmem:[%s174 + $0x302] sm:$0xff]
  %v2737 = vld [vmem:[%s174 + $0x30a] sm:$0xff]
  %v2738 = vld [vmem:[%s174 + $0x31a] sm:$0xff]
  %v2739 = vld [vmem:[%s174 + $0x322] sm:$0xff]
  %v2740 = vpack.c.bf16 %v2677, %v2676
  %v2741 = vpack.c.bf16 %v2679, %v2678
  %v2742 = vpack.c.bf16 %v2681, %v2680
  %v2743 = vpack.c.bf16 %v2683, %v2682
  %v2744 = vpack.c.bf16 %v2685, %v2684
  %v2745 = vpack.c.bf16 %v2687, %v2686
  %v2746 = vpack.c.bf16 %v2689, %v2688
  %v2747 = vpack.c.bf16 %v2691, %v2690
  %v2748 = vpack.c.bf16 %v2693, %v2692
  %v2749 = vpack.c.bf16 %v2695, %v2694
  %v2750 = vpack.c.bf16 %v2697, %v2696
  %v2751 = vpack.c.bf16 %v2699, %v2698
  %v2752 = vpack.c.bf16 %v2701, %v2700
  %v2753 = vpack.c.bf16 %v2703, %v2702
  %v2754 = vpack.c.bf16 %v2705, %v2704
  %v2755 = vpack.c.bf16 %v2707, %v2706
  %v2756 = vpack.c.bf16 %v2709, %v2708
  %v2757 = vpack.c.bf16 %v2711, %v2710
  %v2758 = vpack.c.bf16 %v2713, %v2712
  %v2759 = vpack.c.bf16 %v2715, %v2714
  %v2760 = vpack.c.bf16 %v2717, %v2716
  %v2761 = vpack.c.bf16 %v2719, %v2718
  %v2762 = vpack.c.bf16 %v2721, %v2720
  %v2763 = vpack.c.bf16 %v2723, %v2722
  %v2764 = vpack.c.bf16 %v2725, %v2724
  %v2765 = vpack.c.bf16 %v2727, %v2726
  %v2766 = vpack.c.bf16 %v2729, %v2728
  %v2767 = vpack.c.bf16 %v2731, %v2730
  %v2768 = vpack.c.bf16 %v2733, %v2732
  %v2769 = vpack.c.bf16 %v2735, %v2734
  %v2770 = vpack.c.bf16 %v2737, %v2736
  %v2771 = vpack.c.bf16 %v2739, %v2738
  %v2804 = vunpack.c.l.b16 %v2740
  %v2805 = vunpack.c.h.b16 %v2740
  %v2806 = vunpack.c.l.b16 %v2741
  %v2807 = vunpack.c.h.b16 %v2741
  %v2808 = vunpack.c.l.b16 %v2742
  %v2809 = vunpack.c.h.b16 %v2742
  %v2810 = vunpack.c.l.b16 %v2743
  %v2811 = vunpack.c.h.b16 %v2743
  %v2812 = vunpack.c.l.b16 %v2744
  %v2813 = vunpack.c.h.b16 %v2744
  %v2814 = vunpack.c.l.b16 %v2745
  %v2815 = vunpack.c.h.b16 %v2745
  %v2816 = vunpack.c.l.b16 %v2746
  %v2817 = vunpack.c.h.b16 %v2746
  %v2818 = vunpack.c.l.b16 %v2747
  %v2819 = vunpack.c.h.b16 %v2747
  %v2820 = vunpack.c.l.b16 %v2748
  %v2821 = vunpack.c.h.b16 %v2748
  %v2822 = vunpack.c.l.b16 %v2749
  %v2823 = vunpack.c.h.b16 %v2749
  %v2824 = vunpack.c.l.b16 %v2750
  %v2825 = vunpack.c.h.b16 %v2750
  %v2826 = vunpack.c.l.b16 %v2751
  %v2827 = vunpack.c.h.b16 %v2751
  %v2828 = vunpack.c.l.b16 %v2752
  %v2829 = vunpack.c.h.b16 %v2752
  %v2830 = vunpack.c.l.b16 %v2753
  %v2831 = vunpack.c.h.b16 %v2753
  %v2832 = vunpack.c.l.b16 %v2754
  %v2833 = vunpack.c.h.b16 %v2754
  %v2834 = vunpack.c.l.b16 %v2755
  %v2835 = vunpack.c.h.b16 %v2755
  %v2836 = vunpack.c.l.b16 %v2756
  %v2837 = vunpack.c.h.b16 %v2756
  %v2838 = vunpack.c.l.b16 %v2757
  %v2839 = vunpack.c.h.b16 %v2757
  %v2840 = vunpack.c.l.b16 %v2758
  %v2841 = vunpack.c.h.b16 %v2758
  %v2842 = vunpack.c.l.b16 %v2759
  %v2843 = vunpack.c.h.b16 %v2759
  %v2844 = vunpack.c.l.b16 %v2760
  %v2845 = vunpack.c.h.b16 %v2760
  %v2846 = vunpack.c.l.b16 %v2761
  %v2847 = vunpack.c.h.b16 %v2761
  %v2848 = vunpack.c.l.b16 %v2762
  %v2849 = vunpack.c.h.b16 %v2762
  %v2850 = vunpack.c.l.b16 %v2763
  %v2851 = vunpack.c.h.b16 %v2763
  %v2852 = vunpack.c.l.b16 %v2764
  %v2853 = vunpack.c.h.b16 %v2764
  %v2854 = vunpack.c.l.b16 %v2765
  %v2855 = vunpack.c.h.b16 %v2765
  %v2856 = vunpack.c.l.b16 %v2766
  %v2857 = vunpack.c.h.b16 %v2766
  %v2858 = vunpack.c.l.b16 %v2767
  %v2859 = vunpack.c.h.b16 %v2767
  %v2860 = vunpack.c.l.b16 %v2768
  %v2861 = vunpack.c.h.b16 %v2768
  %v2862 = vunpack.c.l.b16 %v2769
  %v2863 = vunpack.c.h.b16 %v2769
  %v2864 = vunpack.c.l.b16 %v2770
  %v2865 = vunpack.c.h.b16 %v2770
  %v2866 = vunpack.c.l.b16 %v2771
  %v2867 = vunpack.c.h.b16 %v2771
  %v2868 = vpack.c.b16 %v2804, %v2804
  %v2869 = vpack.c.b16 %v2805, %v2805
  %v2870 = vpack.c.b16 %v2806, %v2806
  %v2871 = vpack.c.b16 %v2807, %v2807
  %v2872 = vpack.c.b16 %v2808, %v2808
  %v2873 = vpack.c.b16 %v2809, %v2809
  %v2874 = vpack.c.b16 %v2810, %v2810
  %v2875 = vpack.c.b16 %v2811, %v2811
  %v2876 = vpack.c.b16 %v2812, %v2812
  %v2877 = vpack.c.b16 %v2813, %v2813
  %v2878 = vpack.c.b16 %v2814, %v2814
  %v2879 = vpack.c.b16 %v2815, %v2815
  %v2880 = vpack.c.b16 %v2816, %v2816
  %v2881 = vpack.c.b16 %v2817, %v2817
  %v2882 = vpack.c.b16 %v2818, %v2818
  %v2883 = vpack.c.b16 %v2819, %v2819
  %v2884 = vpack.c.b16 %v2820, %v2820
  %v2885 = vpack.c.b16 %v2821, %v2821
  %v2886 = vpack.c.b16 %v2822, %v2822
  %v2887 = vpack.c.b16 %v2823, %v2823
  %v2888 = vpack.c.b16 %v2824, %v2824
  %v2889 = vpack.c.b16 %v2825, %v2825
  %v2890 = vpack.c.b16 %v2826, %v2826
  %v2891 = vpack.c.b16 %v2827, %v2827
  %v2892 = vpack.c.b16 %v2828, %v2828
  %v2893 = vpack.c.b16 %v2829, %v2829
  %v2894 = vpack.c.b16 %v2830, %v2830
  %v2895 = vpack.c.b16 %v2831, %v2831
  %v2896 = vpack.c.b16 %v2832, %v2832
  %v2897 = vpack.c.b16 %v2833, %v2833
  %v2898 = vpack.c.b16 %v2834, %v2834
  %v2899 = vpack.c.b16 %v2835, %v2835
  %v2900 = vpack.c.b16 %v2836, %v2836
  %v2901 = vpack.c.b16 %v2837, %v2837
  %v2902 = vpack.c.b16 %v2838, %v2838
  %v2903 = vpack.c.b16 %v2839, %v2839
  %v2904 = vpack.c.b16 %v2840, %v2840
  %v2905 = vpack.c.b16 %v2841, %v2841
  %v2906 = vpack.c.b16 %v2842, %v2842
  %v2907 = vpack.c.b16 %v2843, %v2843
  %v2908 = vpack.c.b16 %v2844, %v2844
  %v2909 = vpack.c.b16 %v2845, %v2845
  %v2910 = vpack.c.b16 %v2846, %v2846
  %v2911 = vpack.c.b16 %v2847, %v2847
  %v2912 = vpack.c.b16 %v2848, %v2848
  %v2913 = vpack.c.b16 %v2849, %v2849
  %v2914 = vpack.c.b16 %v2850, %v2850
  %v2915 = vpack.c.b16 %v2851, %v2851
  %v2916 = vpack.c.b16 %v2852, %v2852
  %v2917 = vpack.c.b16 %v2853, %v2853
  %v2918 = vpack.c.b16 %v2854, %v2854
  %v2919 = vpack.c.b16 %v2855, %v2855
  %v2920 = vpack.c.b16 %v2856, %v2856
  %v2921 = vpack.c.b16 %v2857, %v2857
  %v2922 = vpack.c.b16 %v2858, %v2858
  %v2923 = vpack.c.b16 %v2859, %v2859
  %v2924 = vpack.c.b16 %v2860, %v2860
  %v2925 = vpack.c.b16 %v2861, %v2861
  %v2926 = vpack.c.b16 %v2862, %v2862
  %v2927 = vpack.c.b16 %v2863, %v2863
  %v2928 = vpack.c.b16 %v2864, %v2864
  %v2929 = vpack.c.b16 %v2865, %v2865
  %v2930 = vpack.c.b16 %v2866, %v2866
  %v2931 = vpack.c.b16 %v2867, %v2867
  %2932 = vrot.lane.b32.xlu0 %v2868, 20
  %v2933 = vpop.permute.xlu0 %2932
  %2934 = vrot.lane.b32.xlu0 %v2869, 20
  %v2935 = vpop.permute.xlu0 %2934
  %2936 = vrot.lane.b32.xlu0 %v2870, 20
  %v2937 = vpop.permute.xlu0 %2936
  %2938 = vrot.lane.b32.xlu0 %v2871, 20
  %v2939 = vpop.permute.xlu0 %2938
  %2940 = vrot.lane.b32.xlu0 %v2872, 20
  %v2941 = vpop.permute.xlu0 %2940
  %2942 = vrot.lane.b32.xlu0 %v2873, 20
  %v2943 = vpop.permute.xlu0 %2942
  %2944 = vrot.lane.b32.xlu0 %v2874, 20
  %v2945 = vpop.permute.xlu0 %2944
  %2946 = vrot.lane.b32.xlu0 %v2875, 20
  %v2947 = vpop.permute.xlu0 %2946
  %2948 = vrot.lane.b32.xlu0 %v2876, 20
  %v2949 = vpop.permute.xlu0 %2948
  %2950 = vrot.lane.b32.xlu0 %v2877, 20
  %v2951 = vpop.permute.xlu0 %2950
  %2952 = vrot.lane.b32.xlu0 %v2878, 20
  %v2953 = vpop.permute.xlu0 %2952
  %2954 = vrot.lane.b32.xlu0 %v2879, 20
  %v2955 = vpop.permute.xlu0 %2954
  %2956 = vrot.lane.b32.xlu0 %v2880, 20
  %v2957 = vpop.permute.xlu0 %2956
  %2958 = vrot.lane.b32.xlu0 %v2881, 20
  %v2959 = vpop.permute.xlu0 %2958
  %2960 = vrot.lane.b32.xlu0 %v2882, 20
  %v2961 = vpop.permute.xlu0 %2960
  %2962 = vrot.lane.b32.xlu0 %v2883, 20
  %v2963 = vpop.permute.xlu0 %2962
  %2964 = vrot.lane.b32.xlu0 %v2884, 20
  %v2965 = vpop.permute.xlu0 %2964
  %2966 = vrot.lane.b32.xlu0 %v2885, 20
  %v2967 = vpop.permute.xlu0 %2966
  %2968 = vrot.lane.b32.xlu0 %v2886, 20
  %v2969 = vpop.permute.xlu0 %2968
  %2970 = vrot.lane.b32.xlu0 %v2887, 20
  %v2971 = vpop.permute.xlu0 %2970
  %2972 = vrot.lane.b32.xlu0 %v2888, 20
  %v2973 = vpop.permute.xlu0 %2972
  %2974 = vrot.lane.b32.xlu0 %v2889, 20
  %v2975 = vpop.permute.xlu0 %2974
  %2976 = vrot.lane.b32.xlu0 %v2890, 20
  %v2977 = vpop.permute.xlu0 %2976
  %2978 = vrot.lane.b32.xlu0 %v2891, 20
  %v2979 = vpop.permute.xlu0 %2978
  %2980 = vrot.lane.b32.xlu0 %v2892, 20
  %v2981 = vpop.permute.xlu0 %2980
  %2982 = vrot.lane.b32.xlu0 %v2893, 20
  %v2983 = vpop.permute.xlu0 %2982
  %2984 = vrot.lane.b32.xlu0 %v2894, 20
  %v2985 = vpop.permute.xlu0 %2984
  %2986 = vrot.lane.b32.xlu0 %v2895, 20
  %v2987 = vpop.permute.xlu0 %2986
  %2988 = vrot.lane.b32.xlu0 %v2896, 20
  %v2989 = vpop.permute.xlu0 %2988
  %2990 = vrot.lane.b32.xlu0 %v2897, 20
  %v2991 = vpop.permute.xlu0 %2990
  %2992 = vrot.lane.b32.xlu0 %v2898, 20
  %v2993 = vpop.permute.xlu0 %2992
  %2994 = vrot.lane.b32.xlu0 %v2899, 20
  %v2995 = vpop.permute.xlu0 %2994
  %2996 = vrot.lane.b32.xlu0 %v2900, 20
  %v2997 = vpop.permute.xlu0 %2996
  %2998 = vrot.lane.b32.xlu0 %v2901, 20
  %v2999 = vpop.permute.xlu0 %2998
  %3000 = vrot.lane.b32.xlu0 %v2902, 20
  %v3001 = vpop.permute.xlu0 %3000
  %3002 = vrot.lane.b32.xlu0 %v2903, 20
  %v3003 = vpop.permute.xlu0 %3002
  %3004 = vrot.lane.b32.xlu0 %v2904, 20
  %v3005 = vpop.permute.xlu0 %3004
  %3006 = vrot.lane.b32.xlu0 %v2905, 20
  %v3007 = vpop.permute.xlu0 %3006
  %3008 = vrot.lane.b32.xlu0 %v2906, 20
  %v3009 = vpop.permute.xlu0 %3008
  %3010 = vrot.lane.b32.xlu0 %v2907, 20
  %v3011 = vpop.permute.xlu0 %3010
  %3012 = vrot.lane.b32.xlu0 %v2908, 20
  %v3013 = vpop.permute.xlu0 %3012
  %3014 = vrot.lane.b32.xlu0 %v2909, 20
  %v3015 = vpop.permute.xlu0 %3014
  %3016 = vrot.lane.b32.xlu0 %v2910, 20
  %v3017 = vpop.permute.xlu0 %3016
  %3018 = vrot.lane.b32.xlu0 %v2911, 20
  %v3019 = vpop.permute.xlu0 %3018
  %3020 = vrot.lane.b32.xlu0 %v2912, 20
  %v3021 = vpop.permute.xlu0 %3020
  %3022 = vrot.lane.b32.xlu0 %v2913, 20
  %v3023 = vpop.permute.xlu0 %3022
  %3024 = vrot.lane.b32.xlu0 %v2914, 20
  %v3025 = vpop.permute.xlu0 %3024
  %3026 = vrot.lane.b32.xlu0 %v2915, 20
  %v3027 = vpop.permute.xlu0 %3026
  %3028 = vrot.lane.b32.xlu0 %v2916, 20
  %v3029 = vpop.permute.xlu0 %3028
  %3030 = vrot.lane.b32.xlu0 %v2917, 20
  %v3031 = vpop.permute.xlu0 %3030
  %3032 = vrot.lane.b32.xlu0 %v2918, 20
  %v3033 = vpop.permute.xlu0 %3032
  %3034 = vrot.lane.b32.xlu0 %v2919, 20
  %v3035 = vpop.permute.xlu0 %3034
  %3036 = vrot.lane.b32.xlu0 %v2920, 20
  %v3037 = vpop.permute.xlu0 %3036
  %3038 = vrot.lane.b32.xlu0 %v2921, 20
  %v3039 = vpop.permute.xlu0 %3038
  %3040 = vrot.lane.b32.xlu0 %v2922, 20
  %v3041 = vpop.permute.xlu0 %3040
  %3042 = vrot.lane.b32.xlu0 %v2923, 20
  %v3043 = vpop.permute.xlu0 %3042
  %3044 = vrot.lane.b32.xlu0 %v2924, 20
  %v3045 = vpop.permute.xlu0 %3044
  %3046 = vrot.lane.b32.xlu0 %v2925, 20
  %v3047 = vpop.permute.xlu0 %3046
  %3048 = vrot.lane.b32.xlu0 %v2926, 20
  %v3049 = vpop.permute.xlu0 %3048
  %3050 = vrot.lane.b32.xlu0 %v2927, 20
  %v3051 = vpop.permute.xlu0 %3050
  %3052 = vrot.lane.b32.xlu0 %v2928, 20
  %v3053 = vpop.permute.xlu0 %3052
  %3054 = vrot.lane.b32.xlu0 %v2929, 20
  %v3055 = vpop.permute.xlu0 %3054
  %3056 = vrot.lane.b32.xlu0 %v2930, 20
  %v3057 = vpop.permute.xlu0 %3056
  %3058 = vrot.lane.b32.xlu0 %v2931, 20
  %v3059 = vpop.permute.xlu0 %3058
  %vm3124 = vcmask 191648
  %3125 = vst.msk [vmem:[#allocation3] sm:$0xf] %vm3124, %v2933
  %3126 = vst.msk [vmem:[#allocation3 + $0x4] sm:$0xf] %vm3124, %v2935
  %3127 = vst.msk [vmem:[#allocation3 + $0x8] sm:$0xf] %vm3124, %v2937
  %3128 = vst.msk [vmem:[#allocation3 + $0xc] sm:$0xf] %vm3124, %v2939
  %3129 = vst.msk [vmem:[#allocation3 + $0x10] sm:$0xf] %vm3124, %v2941
  %3130 = vst.msk [vmem:[#allocation3 + $0x14] sm:$0xf] %vm3124, %v2943
  %3131 = vst.msk [vmem:[#allocation3 + $0x18] sm:$0xf] %vm3124, %v2945
  %3132 = vst.msk [vmem:[#allocation3 + $0x1c] sm:$0xf] %vm3124, %v2947
  %3133 = vst.msk [vmem:[#allocation3 + $0x20] sm:$0xf] %vm3124, %v2949
  %3134 = vst.msk [vmem:[#allocation3 + $0x24] sm:$0xf] %vm3124, %v2951
  %3135 = vst.msk [vmem:[#allocation3 + $0x28] sm:$0xf] %vm3124, %v2953
  %3136 = vst.msk [vmem:[#allocation3 + $0x2c] sm:$0xf] %vm3124, %v2955
  %3137 = vst.msk [vmem:[#allocation3 + $0x30] sm:$0xf] %vm3124, %v2957
  %3138 = vst.msk [vmem:[#allocation3 + $0x34] sm:$0xf] %vm3124, %v2959
  %3139 = vst.msk [vmem:[#allocation3 + $0x38] sm:$0xf] %vm3124, %v2961
  %3140 = vst.msk [vmem:[#allocation3 + $0x3c] sm:$0xf] %vm3124, %v2963
  %3141 = vst.msk [vmem:[#allocation3 + $0x40] sm:$0xf] %vm3124, %v2965
  %3142 = vst.msk [vmem:[#allocation3 + $0x44] sm:$0xf] %vm3124, %v2967
  %3143 = vst.msk [vmem:[#allocation3 + $0x48] sm:$0xf] %vm3124, %v2969
  %3144 = vst.msk [vmem:[#allocation3 + $0x4c] sm:$0xf] %vm3124, %v2971
  %3145 = vst.msk [vmem:[#allocation3 + $0x50] sm:$0xf] %vm3124, %v2973
  %3146 = vst.msk [vmem:[#allocation3 + $0x54] sm:$0xf] %vm3124, %v2975
  %3147 = vst.msk [vmem:[#allocation3 + $0x58] sm:$0xf] %vm3124, %v2977
  %3148 = vst.msk [vmem:[#allocation3 + $0x5c] sm:$0xf] %vm3124, %v2979
  %3149 = vst.msk [vmem:[#allocation3 + $0x60] sm:$0xf] %vm3124, %v2981
  %3150 = vst.msk [vmem:[#allocation3 + $0x64] sm:$0xf] %vm3124, %v2983
  %3151 = vst.msk [vmem:[#allocation3 + $0x68] sm:$0xf] %vm3124, %v2985
  %3152 = vst.msk [vmem:[#allocation3 + $0x6c] sm:$0xf] %vm3124, %v2987
  %3153 = vst.msk [vmem:[#allocation3 + $0x70] sm:$0xf] %vm3124, %v2989
  %3154 = vst.msk [vmem:[#allocation3 + $0x74] sm:$0xf] %vm3124, %v2991
  %3155 = vst.msk [vmem:[#allocation3 + $0x78] sm:$0xf] %vm3124, %v2993
  %3156 = vst.msk [vmem:[#allocation3 + $0x7c] sm:$0xf] %vm3124, %v2995
  %3157 = vst.msk [vmem:[#allocation3 + $0x80] sm:$0xf] %vm3124, %v2997
  %3158 = vst.msk [vmem:[#allocation3 + $0x84] sm:$0xf] %vm3124, %v2999
  %3159 = vst.msk [vmem:[#allocation3 + $0x88] sm:$0xf] %vm3124, %v3001
  %3160 = vst.msk [vmem:[#allocation3 + $0x8c] sm:$0xf] %vm3124, %v3003
  %3161 = vst.msk [vmem:[#allocation3 + $0x90] sm:$0xf] %vm3124, %v3005
  %3162 = vst.msk [vmem:[#allocation3 + $0x94] sm:$0xf] %vm3124, %v3007
  %3163 = vst.msk [vmem:[#allocation3 + $0x98] sm:$0xf] %vm3124, %v3009
  %3164 = vst.msk [vmem:[#allocation3 + $0x9c] sm:$0xf] %vm3124, %v3011
  %3165 = vst.msk [vmem:[#allocation3 + $0xa0] sm:$0xf] %vm3124, %v3013
  %3166 = vst.msk [vmem:[#allocation3 + $0xa4] sm:$0xf] %vm3124, %v3015
  %3167 = vst.msk [vmem:[#allocation3 + $0xa8] sm:$0xf] %vm3124, %v3017
  %3168 = vst.msk [vmem:[#allocation3 + $0xac] sm:$0xf] %vm3124, %v3019
  %3169 = vst.msk [vmem:[#allocation3 + $0xb0] sm:$0xf] %vm3124, %v3021
  %3170 = vst.msk [vmem:[#allocation3 + $0xb4] sm:$0xf] %vm3124, %v3023
  %3171 = vst.msk [vmem:[#allocation3 + $0xb8] sm:$0xf] %vm3124, %v3025
  %3172 = vst.msk [vmem:[#allocation3 + $0xbc] sm:$0xf] %vm3124, %v3027
  %3173 = vst.msk [vmem:[#allocation3 + $0xc0] sm:$0xf] %vm3124, %v3029
  %3174 = vst.msk [vmem:[#allocation3 + $0xc4] sm:$0xf] %vm3124, %v3031
  %3175 = vst.msk [vmem:[#allocation3 + $0xc8] sm:$0xf] %vm3124, %v3033
  %3176 = vst.msk [vmem:[#allocation3 + $0xcc] sm:$0xf] %vm3124, %v3035
  %3177 = vst.msk [vmem:[#allocation3 + $0xd0] sm:$0xf] %vm3124, %v3037
  %3178 = vst.msk [vmem:[#allocation3 + $0xd4] sm:$0xf] %vm3124, %v3039
  %3179 = vst.msk [vmem:[#allocation3 + $0xd8] sm:$0xf] %vm3124, %v3041
  %3180 = vst.msk [vmem:[#allocation3 + $0xdc] sm:$0xf] %vm3124, %v3043
  %3181 = vst.msk [vmem:[#allocation3 + $0xe0] sm:$0xf] %vm3124, %v3045
  %3182 = vst.msk [vmem:[#allocation3 + $0xe4] sm:$0xf] %vm3124, %v3047
  %3183 = vst.msk [vmem:[#allocation3 + $0xe8] sm:$0xf] %vm3124, %v3049
  %3184 = vst.msk [vmem:[#allocation3 + $0xec] sm:$0xf] %vm3124, %v3051
  %3185 = vst.msk [vmem:[#allocation3 + $0xf0] sm:$0xf] %vm3124, %v3053
  %3186 = vst.msk [vmem:[#allocation3 + $0xf4] sm:$0xf] %vm3124, %v3055
  %3187 = vst.msk [vmem:[#allocation3 + $0xf8] sm:$0xf] %vm3124, %v3057
  %3188 = vst.msk [vmem:[#allocation3 + $0xfc] sm:$0xf] %vm3124, %v3059
  %s3189 = scalar_lea.vmem [#allocation2], 48
  %v3190 = vld [vmem:[%s3189] sm:$0xff]
  %v3191 = vld [vmem:[%s3189 + $0x8] sm:$0xff]
  %v3192 = vld [vmem:[%s3189 + $0x18] sm:$0xff]
  %v3193 = vld [vmem:[%s3189 + $0x20] sm:$0xff]
  %v3194 = vld [vmem:[%s3189 + $0x30] sm:$0xff]
  %v3195 = vld [vmem:[%s3189 + $0x38] sm:$0xff]
  %v3196 = vld [vmem:[%s3189 + $0x48] sm:$0xff]
  %v3197 = vld [vmem:[%s3189 + $0x50] sm:$0xff]
  %v3198 = vld [vmem:[%s3189 + $0x60] sm:$0xff]
  %v3199 = vld [vmem:[%s3189 + $0x68] sm:$0xff]
  %v3200 = vld [vmem:[%s3189 + $0x78] sm:$0xff]
  %v3201 = vld [vmem:[%s3189 + $0x80] sm:$0xff]
  %v3202 = vld [vmem:[%s3189 + $0x90] sm:$0xff]
  %v3203 = vld [vmem:[%s3189 + $0x98] sm:$0xff]
  %v3204 = vld [vmem:[%s3189 + $0xa8] sm:$0xff]
  %v3205 = vld [vmem:[%s3189 + $0xb0] sm:$0xff]
  %v3206 = vld [vmem:[%s3189 + $0xc0] sm:$0xff]
  %v3207 = vld [vmem:[%s3189 + $0xc8] sm:$0xff]
  %v3208 = vld [vmem:[%s3189 + $0xd8] sm:$0xff]
  %v3209 = vld [vmem:[%s3189 + $0xe0] sm:$0xff]
  %v3210 = vld [vmem:[%s3189 + $0xf0] sm:$0xff]
  %v3211 = vld [vmem:[%s3189 + $0xf8] sm:$0xff]
  %v3212 = vld [vmem:[%s3189 + $0x108] sm:$0xff]
  %v3213 = vld [vmem:[%s3189 + $0x110] sm:$0xff]
  %v3214 = vld [vmem:[%s3189 + $0x120] sm:$0xff]
  %v3215 = vld [vmem:[%s3189 + $0x128] sm:$0xff]
  %v3216 = vld [vmem:[%s3189 + $0x138] sm:$0xff]
  %v3217 = vld [vmem:[%s3189 + $0x140] sm:$0xff]
  %v3218 = vld [vmem:[%s3189 + $0x150] sm:$0xff]
  %v3219 = vld [vmem:[%s3189 + $0x158] sm:$0xff]
  %v3220 = vld [vmem:[%s3189 + $0x168] sm:$0xff]
  %v3221 = vld [vmem:[%s3189 + $0x170] sm:$0xff]
  %v3222 = vld [vmem:[%s3189 + $0x1b0] sm:$0xff]
  %v3223 = vld [vmem:[%s3189 + $0x1b8] sm:$0xff]
  %v3224 = vld [vmem:[%s3189 + $0x1c8] sm:$0xff]
  %v3225 = vld [vmem:[%s3189 + $0x1d0] sm:$0xff]
  %v3226 = vld [vmem:[%s3189 + $0x1e0] sm:$0xff]
  %v3227 = vld [vmem:[%s3189 + $0x1e8] sm:$0xff]
  %v3228 = vld [vmem:[%s3189 + $0x1f8] sm:$0xff]
  %v3229 = vld [vmem:[%s3189 + $0x200] sm:$0xff]
  %v3230 = vld [vmem:[%s3189 + $0x210] sm:$0xff]
  %v3231 = vld [vmem:[%s3189 + $0x218] sm:$0xff]
  %v3232 = vld [vmem:[%s3189 + $0x228] sm:$0xff]
  %v3233 = vld [vmem:[%s3189 + $0x230] sm:$0xff]
  %v3234 = vld [vmem:[%s3189 + $0x240] sm:$0xff]
  %v3235 = vld [vmem:[%s3189 + $0x248] sm:$0xff]
  %v3236 = vld [vmem:[%s3189 + $0x258] sm:$0xff]
  %v3237 = vld [vmem:[%s3189 + $0x260] sm:$0xff]
  %v3238 = vld [vmem:[%s3189 + $0x270] sm:$0xff]
  %v3239 = vld [vmem:[%s3189 + $0x278] sm:$0xff]
  %v3240 = vld [vmem:[%s3189 + $0x288] sm:$0xff]
  %v3241 = vld [vmem:[%s3189 + $0x290] sm:$0xff]
  %v3242 = vld [vmem:[%s3189 + $0x2a0] sm:$0xff]
  %v3243 = vld [vmem:[%s3189 + $0x2a8] sm:$0xff]
  %v3244 = vld [vmem:[%s3189 + $0x2b8] sm:$0xff]
  %v3245 = vld [vmem:[%s3189 + $0x2c0] sm:$0xff]
  %v3246 = vld [vmem:[%s3189 + $0x2d0] sm:$0xff]
  %v3247 = vld [vmem:[%s3189 + $0x2d8] sm:$0xff]
  %v3248 = vld [vmem:[%s3189 + $0x2e8] sm:$0xff]
  %v3249 = vld [vmem:[%s3189 + $0x2f0] sm:$0xff]
  %v3250 = vld [vmem:[%s3189 + $0x300] sm:$0xff]
  %v3251 = vld [vmem:[%s3189 + $0x308] sm:$0xff]
  %v3252 = vld [vmem:[%s3189 + $0x318] sm:$0xff]
  %v3253 = vld [vmem:[%s3189 + $0x320] sm:$0xff]
  %v3254 = vpack.c.bf16 %v3191, %v3190
  %v3255 = vpack.c.bf16 %v3193, %v3192
  %v3256 = vpack.c.bf16 %v3195, %v3194
  %v3257 = vpack.c.bf16 %v3197, %v3196
  %v3258 = vpack.c.bf16 %v3199, %v3198
  %v3259 = vpack.c.bf16 %v3201, %v3200
  %v3260 = vpack.c.bf16 %v3203, %v3202
  %v3261 = vpack.c.bf16 %v3205, %v3204
  %v3262 = vpack.c.bf16 %v3207, %v3206
  %v3263 = vpack.c.bf16 %v3209, %v3208
  %v3264 = vpack.c.bf16 %v3211, %v3210
  %v3265 = vpack.c.bf16 %v3213, %v3212
  %v3266 = vpack.c.bf16 %v3215, %v3214
  %v3267 = vpack.c.bf16 %v3217, %v3216
  %v3268 = vpack.c.bf16 %v3219, %v3218
  %v3269 = vpack.c.bf16 %v3221, %v3220
  %v3270 = vpack.c.bf16 %v3223, %v3222
  %v3271 = vpack.c.bf16 %v3225, %v3224
  %v3272 = vpack.c.bf16 %v3227, %v3226
  %v3273 = vpack.c.bf16 %v3229, %v3228
  %v3274 = vpack.c.bf16 %v3231, %v3230
  %v3275 = vpack.c.bf16 %v3233, %v3232
  %v3276 = vpack.c.bf16 %v3235, %v3234
  %v3277 = vpack.c.bf16 %v3237, %v3236
  %v3278 = vpack.c.bf16 %v3239, %v3238
  %v3279 = vpack.c.bf16 %v3241, %v3240
  %v3280 = vpack.c.bf16 %v3243, %v3242
  %v3281 = vpack.c.bf16 %v3245, %v3244
  %v3282 = vpack.c.bf16 %v3247, %v3246
  %v3283 = vpack.c.bf16 %v3249, %v3248
  %v3284 = vpack.c.bf16 %v3251, %v3250
  %v3285 = vpack.c.bf16 %v3253, %v3252
  %v3318 = vunpack.c.l.b16 %v3254
  %v3319 = vunpack.c.h.b16 %v3254
  %v3320 = vunpack.c.l.b16 %v3255
  %v3321 = vunpack.c.h.b16 %v3255
  %v3322 = vunpack.c.l.b16 %v3256
  %v3323 = vunpack.c.h.b16 %v3256
  %v3324 = vunpack.c.l.b16 %v3257
  %v3325 = vunpack.c.h.b16 %v3257
  %v3326 = vunpack.c.l.b16 %v3258
  %v3327 = vunpack.c.h.b16 %v3258
  %v3328 = vunpack.c.l.b16 %v3259
  %v3329 = vunpack.c.h.b16 %v3259
  %v3330 = vunpack.c.l.b16 %v3260
  %v3331 = vunpack.c.h.b16 %v3260
  %v3332 = vunpack.c.l.b16 %v3261
  %v3333 = vunpack.c.h.b16 %v3261
  %v3334 = vunpack.c.l.b16 %v3262
  %v3335 = vunpack.c.h.b16 %v3262
  %v3336 = vunpack.c.l.b16 %v3263
  %v3337 = vunpack.c.h.b16 %v3263
  %v3338 = vunpack.c.l.b16 %v3264
  %v3339 = vunpack.c.h.b16 %v3264
  %v3340 = vunpack.c.l.b16 %v3265
  %v3341 = vunpack.c.h.b16 %v3265
  %v3342 = vunpack.c.l.b16 %v3266
  %v3343 = vunpack.c.h.b16 %v3266
  %v3344 = vunpack.c.l.b16 %v3267
  %v3345 = vunpack.c.h.b16 %v3267
  %v3346 = vunpack.c.l.b16 %v3268
  %v3347 = vunpack.c.h.b16 %v3268
  %v3348 = vunpack.c.l.b16 %v3269
  %v3349 = vunpack.c.h.b16 %v3269
  %v3350 = vunpack.c.l.b16 %v3270
  %v3351 = vunpack.c.h.b16 %v3270
  %v3352 = vunpack.c.l.b16 %v3271
  %v3353 = vunpack.c.h.b16 %v3271
  %v3354 = vunpack.c.l.b16 %v3272
  %v3355 = vunpack.c.h.b16 %v3272
  %v3356 = vunpack.c.l.b16 %v3273
  %v3357 = vunpack.c.h.b16 %v3273
  %v3358 = vunpack.c.l.b16 %v3274
  %v3359 = vunpack.c.h.b16 %v3274
  %v3360 = vunpack.c.l.b16 %v3275
  %v3361 = vunpack.c.h.b16 %v3275
  %v3362 = vunpack.c.l.b16 %v3276
  %v3363 = vunpack.c.h.b16 %v3276
  %v3364 = vunpack.c.l.b16 %v3277
  %v3365 = vunpack.c.h.b16 %v3277
  %v3366 = vunpack.c.l.b16 %v3278
  %v3367 = vunpack.c.h.b16 %v3278
  %v3368 = vunpack.c.l.b16 %v3279
  %v3369 = vunpack.c.h.b16 %v3279
  %v3370 = vunpack.c.l.b16 %v3280
  %v3371 = vunpack.c.h.b16 %v3280
  %v3372 = vunpack.c.l.b16 %v3281
  %v3373 = vunpack.c.h.b16 %v3281
  %v3374 = vunpack.c.l.b16 %v3282
  %v3375 = vunpack.c.h.b16 %v3282
  %v3376 = vunpack.c.l.b16 %v3283
  %v3377 = vunpack.c.h.b16 %v3283
  %v3378 = vunpack.c.l.b16 %v3284
  %v3379 = vunpack.c.h.b16 %v3284
  %v3380 = vunpack.c.l.b16 %v3285
  %v3381 = vunpack.c.h.b16 %v3285
  %v3382 = vpack.c.b16 %v3318, %v3318
  %v3383 = vpack.c.b16 %v3319, %v3319
  %v3384 = vpack.c.b16 %v3320, %v3320
  %v3385 = vpack.c.b16 %v3321, %v3321
  %v3386 = vpack.c.b16 %v3322, %v3322
  %v3387 = vpack.c.b16 %v3323, %v3323
  %v3388 = vpack.c.b16 %v3324, %v3324
  %v3389 = vpack.c.b16 %v3325, %v3325
  %v3390 = vpack.c.b16 %v3326, %v3326
  %v3391 = vpack.c.b16 %v3327, %v3327
  %v3392 = vpack.c.b16 %v3328, %v3328
  %v3393 = vpack.c.b16 %v3329, %v3329
  %v3394 = vpack.c.b16 %v3330, %v3330
  %v3395 = vpack.c.b16 %v3331, %v3331
  %v3396 = vpack.c.b16 %v3332, %v3332
  %v3397 = vpack.c.b16 %v3333, %v3333
  %v3398 = vpack.c.b16 %v3334, %v3334
  %v3399 = vpack.c.b16 %v3335, %v3335
  %v3400 = vpack.c.b16 %v3336, %v3336
  %v3401 = vpack.c.b16 %v3337, %v3337
  %v3402 = vpack.c.b16 %v3338, %v3338
  %v3403 = vpack.c.b16 %v3339, %v3339
  %v3404 = vpack.c.b16 %v3340, %v3340
  %v3405 = vpack.c.b16 %v3341, %v3341
  %v3406 = vpack.c.b16 %v3342, %v3342
  %v3407 = vpack.c.b16 %v3343, %v3343
  %v3408 = vpack.c.b16 %v3344, %v3344
  %v3409 = vpack.c.b16 %v3345, %v3345
  %v3410 = vpack.c.b16 %v3346, %v3346
  %v3411 = vpack.c.b16 %v3347, %v3347
  %v3412 = vpack.c.b16 %v3348, %v3348
  %v3413 = vpack.c.b16 %v3349, %v3349
  %v3414 = vpack.c.b16 %v3350, %v3350
  %v3415 = vpack.c.b16 %v3351, %v3351
  %v3416 = vpack.c.b16 %v3352, %v3352
  %v3417 = vpack.c.b16 %v3353, %v3353
  %v3418 = vpack.c.b16 %v3354, %v3354
  %v3419 = vpack.c.b16 %v3355, %v3355
  %v3420 = vpack.c.b16 %v3356, %v3356
  %v3421 = vpack.c.b16 %v3357, %v3357
  %v3422 = vpack.c.b16 %v3358, %v3358
  %v3423 = vpack.c.b16 %v3359, %v3359
  %v3424 = vpack.c.b16 %v3360, %v3360
  %v3425 = vpack.c.b16 %v3361, %v3361
  %v3426 = vpack.c.b16 %v3362, %v3362
  %v3427 = vpack.c.b16 %v3363, %v3363
  %v3428 = vpack.c.b16 %v3364, %v3364
  %v3429 = vpack.c.b16 %v3365, %v3365
  %v3430 = vpack.c.b16 %v3366, %v3366
  %v3431 = vpack.c.b16 %v3367, %v3367
  %v3432 = vpack.c.b16 %v3368, %v3368
  %v3433 = vpack.c.b16 %v3369, %v3369
  %v3434 = vpack.c.b16 %v3370, %v3370
  %v3435 = vpack.c.b16 %v3371, %v3371
  %v3436 = vpack.c.b16 %v3372, %v3372
  %v3437 = vpack.c.b16 %v3373, %v3373
  %v3438 = vpack.c.b16 %v3374, %v3374
  %v3439 = vpack.c.b16 %v3375, %v3375
  %v3440 = vpack.c.b16 %v3376, %v3376
  %v3441 = vpack.c.b16 %v3377, %v3377
  %v3442 = vpack.c.b16 %v3378, %v3378
  %v3443 = vpack.c.b16 %v3379, %v3379
  %v3444 = vpack.c.b16 %v3380, %v3380
  %v3445 = vpack.c.b16 %v3381, %v3381
  %3446 = vrot.lane.b32.xlu0 %v3382, 24
  %v3447 = vpop.permute.xlu0 %3446
  %3448 = vrot.lane.b32.xlu0 %v3383, 24
  %v3449 = vpop.permute.xlu0 %3448
  %3450 = vrot.lane.b32.xlu0 %v3384, 24
  %v3451 = vpop.permute.xlu0 %3450
  %3452 = vrot.lane.b32.xlu0 %v3385, 24
  %v3453 = vpop.permute.xlu0 %3452
  %3454 = vrot.lane.b32.xlu0 %v3386, 24
  %v3455 = vpop.permute.xlu0 %3454
  %3456 = vrot.lane.b32.xlu0 %v3387, 24
  %v3457 = vpop.permute.xlu0 %3456
  %3458 = vrot.lane.b32.xlu0 %v3388, 24
  %v3459 = vpop.permute.xlu0 %3458
  %3460 = vrot.lane.b32.xlu0 %v3389, 24
  %v3461 = vpop.permute.xlu0 %3460
  %3462 = vrot.lane.b32.xlu0 %v3390, 24
  %v3463 = vpop.permute.xlu0 %3462
  %3464 = vrot.lane.b32.xlu0 %v3391, 24
  %v3465 = vpop.permute.xlu0 %3464
  %3466 = vrot.lane.b32.xlu0 %v3392, 24
  %v3467 = vpop.permute.xlu0 %3466
  %3468 = vrot.lane.b32.xlu0 %v3393, 24
  %v3469 = vpop.permute.xlu0 %3468
  %3470 = vrot.lane.b32.xlu0 %v3394, 24
  %v3471 = vpop.permute.xlu0 %3470
  %3472 = vrot.lane.b32.xlu0 %v3395, 24
  %v3473 = vpop.permute.xlu0 %3472
  %3474 = vrot.lane.b32.xlu0 %v3396, 24
  %v3475 = vpop.permute.xlu0 %3474
  %3476 = vrot.lane.b32.xlu0 %v3397, 24
  %v3477 = vpop.permute.xlu0 %3476
  %3478 = vrot.lane.b32.xlu0 %v3398, 24
  %v3479 = vpop.permute.xlu0 %3478
  %3480 = vrot.lane.b32.xlu0 %v3399, 24
  %v3481 = vpop.permute.xlu0 %3480
  %3482 = vrot.lane.b32.xlu0 %v3400, 24
  %v3483 = vpop.permute.xlu0 %3482
  %3484 = vrot.lane.b32.xlu0 %v3401, 24
  %v3485 = vpop.permute.xlu0 %3484
  %3486 = vrot.lane.b32.xlu0 %v3402, 24
  %v3487 = vpop.permute.xlu0 %3486
  %3488 = vrot.lane.b32.xlu0 %v3403, 24
  %v3489 = vpop.permute.xlu0 %3488
  %3490 = vrot.lane.b32.xlu0 %v3404, 24
  %v3491 = vpop.permute.xlu0 %3490
  %3492 = vrot.lane.b32.xlu0 %v3405, 24
  %v3493 = vpop.permute.xlu0 %3492
  %3494 = vrot.lane.b32.xlu0 %v3406, 24
  %v3495 = vpop.permute.xlu0 %3494
  %3496 = vrot.lane.b32.xlu0 %v3407, 24
  %v3497 = vpop.permute.xlu0 %3496
  %3498 = vrot.lane.b32.xlu0 %v3408, 24
  %v3499 = vpop.permute.xlu0 %3498
  %3500 = vrot.lane.b32.xlu0 %v3409, 24
  %v3501 = vpop.permute.xlu0 %3500
  %3502 = vrot.lane.b32.xlu0 %v3410, 24
  %v3503 = vpop.permute.xlu0 %3502
  %3504 = vrot.lane.b32.xlu0 %v3411, 24
  %v3505 = vpop.permute.xlu0 %3504
  %3506 = vrot.lane.b32.xlu0 %v3412, 24
  %v3507 = vpop.permute.xlu0 %3506
  %3508 = vrot.lane.b32.xlu0 %v3413, 24
  %v3509 = vpop.permute.xlu0 %3508
  %3510 = vrot.lane.b32.xlu0 %v3414, 24
  %v3511 = vpop.permute.xlu0 %3510
  %3512 = vrot.lane.b32.xlu0 %v3415, 24
  %v3513 = vpop.permute.xlu0 %3512
  %3514 = vrot.lane.b32.xlu0 %v3416, 24
  %v3515 = vpop.permute.xlu0 %3514
  %3516 = vrot.lane.b32.xlu0 %v3417, 24
  %v3517 = vpop.permute.xlu0 %3516
  %3518 = vrot.lane.b32.xlu0 %v3418, 24
  %v3519 = vpop.permute.xlu0 %3518
  %3520 = vrot.lane.b32.xlu0 %v3419, 24
  %v3521 = vpop.permute.xlu0 %3520
  %3522 = vrot.lane.b32.xlu0 %v3420, 24
  %v3523 = vpop.permute.xlu0 %3522
  %3524 = vrot.lane.b32.xlu0 %v3421, 24
  %v3525 = vpop.permute.xlu0 %3524
  %3526 = vrot.lane.b32.xlu0 %v3422, 24
  %v3527 = vpop.permute.xlu0 %3526
  %3528 = vrot.lane.b32.xlu0 %v3423, 24
  %v3529 = vpop.permute.xlu0 %3528
  %3530 = vrot.lane.b32.xlu0 %v3424, 24
  %v3531 = vpop.permute.xlu0 %3530
  %3532 = vrot.lane.b32.xlu0 %v3425, 24
  %v3533 = vpop.permute.xlu0 %3532
  %3534 = vrot.lane.b32.xlu0 %v3426, 24
  %v3535 = vpop.permute.xlu0 %3534
  %3536 = vrot.lane.b32.xlu0 %v3427, 24
  %v3537 = vpop.permute.xlu0 %3536
  %3538 = vrot.lane.b32.xlu0 %v3428, 24
  %v3539 = vpop.permute.xlu0 %3538
  %3540 = vrot.lane.b32.xlu0 %v3429, 24
  %v3541 = vpop.permute.xlu0 %3540
  %3542 = vrot.lane.b32.xlu0 %v3430, 24
  %v3543 = vpop.permute.xlu0 %3542
  %3544 = vrot.lane.b32.xlu0 %v3431, 24
  %v3545 = vpop.permute.xlu0 %3544
  %3546 = vrot.lane.b32.xlu0 %v3432, 24
  %v3547 = vpop.permute.xlu0 %3546
  %3548 = vrot.lane.b32.xlu0 %v3433, 24
  %v3549 = vpop.permute.xlu0 %3548
  %3550 = vrot.lane.b32.xlu0 %v3434, 24
  %v3551 = vpop.permute.xlu0 %3550
  %3552 = vrot.lane.b32.xlu0 %v3435, 24
  %v3553 = vpop.permute.xlu0 %3552
  %3554 = vrot.lane.b32.xlu0 %v3436, 24
  %v3555 = vpop.permute.xlu0 %3554
  %3556 = vrot.lane.b32.xlu0 %v3437, 24
  %v3557 = vpop.permute.xlu0 %3556
  %3558 = vrot.lane.b32.xlu0 %v3438, 24
  %v3559 = vpop.permute.xlu0 %3558
  %3560 = vrot.lane.b32.xlu0 %v3439, 24
  %v3561 = vpop.permute.xlu0 %3560
  %3562 = vrot.lane.b32.xlu0 %v3440, 24
  %v3563 = vpop.permute.xlu0 %3562
  %3564 = vrot.lane.b32.xlu0 %v3441, 24
  %v3565 = vpop.permute.xlu0 %3564
  %3566 = vrot.lane.b32.xlu0 %v3442, 24
  %v3567 = vpop.permute.xlu0 %3566
  %3568 = vrot.lane.b32.xlu0 %v3443, 24
  %v3569 = vpop.permute.xlu0 %3568
  %3570 = vrot.lane.b32.xlu0 %v3444, 24
  %v3571 = vpop.permute.xlu0 %3570
  %3572 = vrot.lane.b32.xlu0 %v3445, 24
  %v3573 = vpop.permute.xlu0 %3572
  %vm3638 = vcmask 224448
  %3639 = vst.msk [vmem:[#allocation3] sm:$0xf] %vm3638, %v3447
  %3640 = vst.msk [vmem:[#allocation3 + $0x4] sm:$0xf] %vm3638, %v3449
  %3641 = vst.msk [vmem:[#allocation3 + $0x8] sm:$0xf] %vm3638, %v3451
  %3642 = vst.msk [vmem:[#allocation3 + $0xc] sm:$0xf] %vm3638, %v3453
  %3643 = vst.msk [vmem:[#allocation3 + $0x10] sm:$0xf] %vm3638, %v3455
  %3644 = vst.msk [vmem:[#allocation3 + $0x14] sm:$0xf] %vm3638, %v3457
  %3645 = vst.msk [vmem:[#allocation3 + $0x18] sm:$0xf] %vm3638, %v3459
  %3646 = vst.msk [vmem:[#allocation3 + $0x1c] sm:$0xf] %vm3638, %v3461
  %3647 = vst.msk [vmem:[#allocation3 + $0x20] sm:$0xf] %vm3638, %v3463
  %3648 = vst.msk [vmem:[#allocation3 + $0x24] sm:$0xf] %vm3638, %v3465
  %3649 = vst.msk [vmem:[#allocation3 + $0x28] sm:$0xf] %vm3638, %v3467
  %3650 = vst.msk [vmem:[#allocation3 + $0x2c] sm:$0xf] %vm3638, %v3469
  %3651 = vst.msk [vmem:[#allocation3 + $0x30] sm:$0xf] %vm3638, %v3471
  %3652 = vst.msk [vmem:[#allocation3 + $0x34] sm:$0xf] %vm3638, %v3473
  %3653 = vst.msk [vmem:[#allocation3 + $0x38] sm:$0xf] %vm3638, %v3475
  %3654 = vst.msk [vmem:[#allocation3 + $0x3c] sm:$0xf] %vm3638, %v3477
  %3655 = vst.msk [vmem:[#allocation3 + $0x40] sm:$0xf] %vm3638, %v3479
  %3656 = vst.msk [vmem:[#allocation3 + $0x44] sm:$0xf] %vm3638, %v3481
  %3657 = vst.msk [vmem:[#allocation3 + $0x48] sm:$0xf] %vm3638, %v3483
  %3658 = vst.msk [vmem:[#allocation3 + $0x4c] sm:$0xf] %vm3638, %v3485
  %3659 = vst.msk [vmem:[#allocation3 + $0x50] sm:$0xf] %vm3638, %v3487
  %3660 = vst.msk [vmem:[#allocation3 + $0x54] sm:$0xf] %vm3638, %v3489
  %3661 = vst.msk [vmem:[#allocation3 + $0x58] sm:$0xf] %vm3638, %v3491
  %3662 = vst.msk [vmem:[#allocation3 + $0x5c] sm:$0xf] %vm3638, %v3493
  %3663 = vst.msk [vmem:[#allocation3 + $0x60] sm:$0xf] %vm3638, %v3495
  %3664 = vst.msk [vmem:[#allocation3 + $0x64] sm:$0xf] %vm3638, %v3497
  %3665 = vst.msk [vmem:[#allocation3 + $0x68] sm:$0xf] %vm3638, %v3499
  %3666 = vst.msk [vmem:[#allocation3 + $0x6c] sm:$0xf] %vm3638, %v3501
  %3667 = vst.msk [vmem:[#allocation3 + $0x70] sm:$0xf] %vm3638, %v3503
  %3668 = vst.msk [vmem:[#allocation3 + $0x74] sm:$0xf] %vm3638, %v3505
  %3669 = vst.msk [vmem:[#allocation3 + $0x78] sm:$0xf] %vm3638, %v3507
  %3670 = vst.msk [vmem:[#allocation3 + $0x7c] sm:$0xf] %vm3638, %v3509
  %3671 = vst.msk [vmem:[#allocation3 + $0x80] sm:$0xf] %vm3638, %v3511
  %3672 = vst.msk [vmem:[#allocation3 + $0x84] sm:$0xf] %vm3638, %v3513
  %3673 = vst.msk [vmem:[#allocation3 + $0x88] sm:$0xf] %vm3638, %v3515
  %3674 = vst.msk [vmem:[#allocation3 + $0x8c] sm:$0xf] %vm3638, %v3517
  %3675 = vst.msk [vmem:[#allocation3 + $0x90] sm:$0xf] %vm3638, %v3519
  %3676 = vst.msk [vmem:[#allocation3 + $0x94] sm:$0xf] %vm3638, %v3521
  %3677 = vst.msk [vmem:[#allocation3 + $0x98] sm:$0xf] %vm3638, %v3523
  %3678 = vst.msk [vmem:[#allocation3 + $0x9c] sm:$0xf] %vm3638, %v3525
  %3679 = vst.msk [vmem:[#allocation3 + $0xa0] sm:$0xf] %vm3638, %v3527
  %3680 = vst.msk [vmem:[#allocation3 + $0xa4] sm:$0xf] %vm3638, %v3529
  %3681 = vst.msk [vmem:[#allocation3 + $0xa8] sm:$0xf] %vm3638, %v3531
  %3682 = vst.msk [vmem:[#allocation3 + $0xac] sm:$0xf] %vm3638, %v3533
  %3683 = vst.msk [vmem:[#allocation3 + $0xb0] sm:$0xf] %vm3638, %v3535
  %3684 = vst.msk [vmem:[#allocation3 + $0xb4] sm:$0xf] %vm3638, %v3537
  %3685 = vst.msk [vmem:[#allocation3 + $0xb8] sm:$0xf] %vm3638, %v3539
  %3686 = vst.msk [vmem:[#allocation3 + $0xbc] sm:$0xf] %vm3638, %v3541
  %3687 = vst.msk [vmem:[#allocation3 + $0xc0] sm:$0xf] %vm3638, %v3543
  %3688 = vst.msk [vmem:[#allocation3 + $0xc4] sm:$0xf] %vm3638, %v3545
  %3689 = vst.msk [vmem:[#allocation3 + $0xc8] sm:$0xf] %vm3638, %v3547
  %3690 = vst.msk [vmem:[#allocation3 + $0xcc] sm:$0xf] %vm3638, %v3549
  %3691 = vst.msk [vmem:[#allocation3 + $0xd0] sm:$0xf] %vm3638, %v3551
  %3692 = vst.msk [vmem:[#allocation3 + $0xd4] sm:$0xf] %vm3638, %v3553
  %3693 = vst.msk [vmem:[#allocation3 + $0xd8] sm:$0xf] %vm3638, %v3555
  %3694 = vst.msk [vmem:[#allocation3 + $0xdc] sm:$0xf] %vm3638, %v3557
  %3695 = vst.msk [vmem:[#allocation3 + $0xe0] sm:$0xf] %vm3638, %v3559
  %3696 = vst.msk [vmem:[#allocation3 + $0xe4] sm:$0xf] %vm3638, %v3561
  %3697 = vst.msk [vmem:[#allocation3 + $0xe8] sm:$0xf] %vm3638, %v3563
  %3698 = vst.msk [vmem:[#allocation3 + $0xec] sm:$0xf] %vm3638, %v3565
  %3699 = vst.msk [vmem:[#allocation3 + $0xf0] sm:$0xf] %vm3638, %v3567
  %3700 = vst.msk [vmem:[#allocation3 + $0xf4] sm:$0xf] %vm3638, %v3569
  %3701 = vst.msk [vmem:[#allocation3 + $0xf8] sm:$0xf] %vm3638, %v3571
  %3702 = vst.msk [vmem:[#allocation3 + $0xfc] sm:$0xf] %vm3638, %v3573
  %v3703 = vld [vmem:[%s3189 + $0x1] sm:$0xff]
  %v3704 = vld [vmem:[%s3189 + $0x9] sm:$0xff]
  %v3705 = vld [vmem:[%s3189 + $0x19] sm:$0xff]
  %v3706 = vld [vmem:[%s3189 + $0x21] sm:$0xff]
  %v3707 = vld [vmem:[%s3189 + $0x31] sm:$0xff]
  %v3708 = vld [vmem:[%s3189 + $0x39] sm:$0xff]
  %v3709 = vld [vmem:[%s3189 + $0x49] sm:$0xff]
  %v3710 = vld [vmem:[%s3189 + $0x51] sm:$0xff]
  %v3711 = vld [vmem:[%s3189 + $0x61] sm:$0xff]
  %v3712 = vld [vmem:[%s3189 + $0x69] sm:$0xff]
  %v3713 = vld [vmem:[%s3189 + $0x79] sm:$0xff]
  %v3714 = vld [vmem:[%s3189 + $0x81] sm:$0xff]
  %v3715 = vld [vmem:[%s3189 + $0x91] sm:$0xff]
  %v3716 = vld [vmem:[%s3189 + $0x99] sm:$0xff]
  %v3717 = vld [vmem:[%s3189 + $0xa9] sm:$0xff]
  %v3718 = vld [vmem:[%s3189 + $0xb1] sm:$0xff]
  %v3719 = vld [vmem:[%s3189 + $0xc1] sm:$0xff]
  %v3720 = vld [vmem:[%s3189 + $0xc9] sm:$0xff]
  %v3721 = vld [vmem:[%s3189 + $0xd9] sm:$0xff]
  %v3722 = vld [vmem:[%s3189 + $0xe1] sm:$0xff]
  %v3723 = vld [vmem:[%s3189 + $0xf1] sm:$0xff]
  %v3724 = vld [vmem:[%s3189 + $0xf9] sm:$0xff]
  %v3725 = vld [vmem:[%s3189 + $0x109] sm:$0xff]
  %v3726 = vld [vmem:[%s3189 + $0x111] sm:$0xff]
  %v3727 = vld [vmem:[%s3189 + $0x121] sm:$0xff]
  %v3728 = vld [vmem:[%s3189 + $0x129] sm:$0xff]
  %v3729 = vld [vmem:[%s3189 + $0x139] sm:$0xff]
  %v3730 = vld [vmem:[%s3189 + $0x141] sm:$0xff]
  %v3731 = vld [vmem:[%s3189 + $0x151] sm:$0xff]
  %v3732 = vld [vmem:[%s3189 + $0x159] sm:$0xff]
  %v3733 = vld [vmem:[%s3189 + $0x169] sm:$0xff]
  %v3734 = vld [vmem:[%s3189 + $0x171] sm:$0xff]
  %v3735 = vld [vmem:[%s3189 + $0x1b1] sm:$0xff]
  %v3736 = vld [vmem:[%s3189 + $0x1b9] sm:$0xff]
  %v3737 = vld [vmem:[%s3189 + $0x1c9] sm:$0xff]
  %v3738 = vld [vmem:[%s3189 + $0x1d1] sm:$0xff]
  %v3739 = vld [vmem:[%s3189 + $0x1e1] sm:$0xff]
  %v3740 = vld [vmem:[%s3189 + $0x1e9] sm:$0xff]
  %v3741 = vld [vmem:[%s3189 + $0x1f9] sm:$0xff]
  %v3742 = vld [vmem:[%s3189 + $0x201] sm:$0xff]
  %v3743 = vld [vmem:[%s3189 + $0x211] sm:$0xff]
  %v3744 = vld [vmem:[%s3189 + $0x219] sm:$0xff]
  %v3745 = vld [vmem:[%s3189 + $0x229] sm:$0xff]
  %v3746 = vld [vmem:[%s3189 + $0x231] sm:$0xff]
  %v3747 = vld [vmem:[%s3189 + $0x241] sm:$0xff]
  %v3748 = vld [vmem:[%s3189 + $0x249] sm:$0xff]
  %v3749 = vld [vmem:[%s3189 + $0x259] sm:$0xff]
  %v3750 = vld [vmem:[%s3189 + $0x261] sm:$0xff]
  %v3751 = vld [vmem:[%s3189 + $0x271] sm:$0xff]
  %v3752 = vld [vmem:[%s3189 + $0x279] sm:$0xff]
  %v3753 = vld [vmem:[%s3189 + $0x289] sm:$0xff]
  %v3754 = vld [vmem:[%s3189 + $0x291] sm:$0xff]
  %v3755 = vld [vmem:[%s3189 + $0x2a1] sm:$0xff]
  %v3756 = vld [vmem:[%s3189 + $0x2a9] sm:$0xff]
  %v3757 = vld [vmem:[%s3189 + $0x2b9] sm:$0xff]
  %v3758 = vld [vmem:[%s3189 + $0x2c1] sm:$0xff]
  %v3759 = vld [vmem:[%s3189 + $0x2d1] sm:$0xff]
  %v3760 = vld [vmem:[%s3189 + $0x2d9] sm:$0xff]
  %v3761 = vld [vmem:[%s3189 + $0x2e9] sm:$0xff]
  %v3762 = vld [vmem:[%s3189 + $0x2f1] sm:$0xff]
  %v3763 = vld [vmem:[%s3189 + $0x301] sm:$0xff]
  %v3764 = vld [vmem:[%s3189 + $0x309] sm:$0xff]
  %v3765 = vld [vmem:[%s3189 + $0x319] sm:$0xff]
  %v3766 = vld [vmem:[%s3189 + $0x321] sm:$0xff]
  %v3767 = vpack.c.bf16 %v3704, %v3703
  %v3768 = vpack.c.bf16 %v3706, %v3705
  %v3769 = vpack.c.bf16 %v3708, %v3707
  %v3770 = vpack.c.bf16 %v3710, %v3709
  %v3771 = vpack.c.bf16 %v3712, %v3711
  %v3772 = vpack.c.bf16 %v3714, %v3713
  %v3773 = vpack.c.bf16 %v3716, %v3715
  %v3774 = vpack.c.bf16 %v3718, %v3717
  %v3775 = vpack.c.bf16 %v3720, %v3719
  %v3776 = vpack.c.bf16 %v3722, %v3721
  %v3777 = vpack.c.bf16 %v3724, %v3723
  %v3778 = vpack.c.bf16 %v3726, %v3725
  %v3779 = vpack.c.bf16 %v3728, %v3727
  %v3780 = vpack.c.bf16 %v3730, %v3729
  %v3781 = vpack.c.bf16 %v3732, %v3731
  %v3782 = vpack.c.bf16 %v3734, %v3733
  %v3783 = vpack.c.bf16 %v3736, %v3735
  %v3784 = vpack.c.bf16 %v3738, %v3737
  %v3785 = vpack.c.bf16 %v3740, %v3739
  %v3786 = vpack.c.bf16 %v3742, %v3741
  %v3787 = vpack.c.bf16 %v3744, %v3743
  %v3788 = vpack.c.bf16 %v3746, %v3745
  %v3789 = vpack.c.bf16 %v3748, %v3747
  %v3790 = vpack.c.bf16 %v3750, %v3749
  %v3791 = vpack.c.bf16 %v3752, %v3751
  %v3792 = vpack.c.bf16 %v3754, %v3753
  %v3793 = vpack.c.bf16 %v3756, %v3755
  %v3794 = vpack.c.bf16 %v3758, %v3757
  %v3795 = vpack.c.bf16 %v3760, %v3759
  %v3796 = vpack.c.bf16 %v3762, %v3761
  %v3797 = vpack.c.bf16 %v3764, %v3763
  %v3798 = vpack.c.bf16 %v3766, %v3765
  %v3831 = vunpack.c.l.b16 %v3767
  %v3832 = vunpack.c.h.b16 %v3767
  %v3833 = vunpack.c.l.b16 %v3768
  %v3834 = vunpack.c.h.b16 %v3768
  %v3835 = vunpack.c.l.b16 %v3769
  %v3836 = vunpack.c.h.b16 %v3769
  %v3837 = vunpack.c.l.b16 %v3770
  %v3838 = vunpack.c.h.b16 %v3770
  %v3839 = vunpack.c.l.b16 %v3771
  %v3840 = vunpack.c.h.b16 %v3771
  %v3841 = vunpack.c.l.b16 %v3772
  %v3842 = vunpack.c.h.b16 %v3772
  %v3843 = vunpack.c.l.b16 %v3773
  %v3844 = vunpack.c.h.b16 %v3773
  %v3845 = vunpack.c.l.b16 %v3774
  %v3846 = vunpack.c.h.b16 %v3774
  %v3847 = vunpack.c.l.b16 %v3775
  %v3848 = vunpack.c.h.b16 %v3775
  %v3849 = vunpack.c.l.b16 %v3776
  %v3850 = vunpack.c.h.b16 %v3776
  %v3851 = vunpack.c.l.b16 %v3777
  %v3852 = vunpack.c.h.b16 %v3777
  %v3853 = vunpack.c.l.b16 %v3778
  %v3854 = vunpack.c.h.b16 %v3778
  %v3855 = vunpack.c.l.b16 %v3779
  %v3856 = vunpack.c.h.b16 %v3779
  %v3857 = vunpack.c.l.b16 %v3780
  %v3858 = vunpack.c.h.b16 %v3780
  %v3859 = vunpack.c.l.b16 %v3781
  %v3860 = vunpack.c.h.b16 %v3781
  %v3861 = vunpack.c.l.b16 %v3782
  %v3862 = vunpack.c.h.b16 %v3782
  %v3863 = vunpack.c.l.b16 %v3783
  %v3864 = vunpack.c.h.b16 %v3783
  %v3865 = vunpack.c.l.b16 %v3784
  %v3866 = vunpack.c.h.b16 %v3784
  %v3867 = vunpack.c.l.b16 %v3785
  %v3868 = vunpack.c.h.b16 %v3785
  %v3869 = vunpack.c.l.b16 %v3786
  %v3870 = vunpack.c.h.b16 %v3786
  %v3871 = vunpack.c.l.b16 %v3787
  %v3872 = vunpack.c.h.b16 %v3787
  %v3873 = vunpack.c.l.b16 %v3788
  %v3874 = vunpack.c.h.b16 %v3788
  %v3875 = vunpack.c.l.b16 %v3789
  %v3876 = vunpack.c.h.b16 %v3789
  %v3877 = vunpack.c.l.b16 %v3790
  %v3878 = vunpack.c.h.b16 %v3790
  %v3879 = vunpack.c.l.b16 %v3791
  %v3880 = vunpack.c.h.b16 %v3791
  %v3881 = vunpack.c.l.b16 %v3792
  %v3882 = vunpack.c.h.b16 %v3792
  %v3883 = vunpack.c.l.b16 %v3793
  %v3884 = vunpack.c.h.b16 %v3793
  %v3885 = vunpack.c.l.b16 %v3794
  %v3886 = vunpack.c.h.b16 %v3794
  %v3887 = vunpack.c.l.b16 %v3795
  %v3888 = vunpack.c.h.b16 %v3795
  %v3889 = vunpack.c.l.b16 %v3796
  %v3890 = vunpack.c.h.b16 %v3796
  %v3891 = vunpack.c.l.b16 %v3797
  %v3892 = vunpack.c.h.b16 %v3797
  %v3893 = vunpack.c.l.b16 %v3798
  %v3894 = vunpack.c.h.b16 %v3798
  %v3895 = vpack.c.b16 %v3831, %v3831
  %v3896 = vpack.c.b16 %v3832, %v3832
  %v3897 = vpack.c.b16 %v3833, %v3833
  %v3898 = vpack.c.b16 %v3834, %v3834
  %v3899 = vpack.c.b16 %v3835, %v3835
  %v3900 = vpack.c.b16 %v3836, %v3836
  %v3901 = vpack.c.b16 %v3837, %v3837
  %v3902 = vpack.c.b16 %v3838, %v3838
  %v3903 = vpack.c.b16 %v3839, %v3839
  %v3904 = vpack.c.b16 %v3840, %v3840
  %v3905 = vpack.c.b16 %v3841, %v3841
  %v3906 = vpack.c.b16 %v3842, %v3842
  %v3907 = vpack.c.b16 %v3843, %v3843
  %v3908 = vpack.c.b16 %v3844, %v3844
  %v3909 = vpack.c.b16 %v3845, %v3845
  %v3910 = vpack.c.b16 %v3846, %v3846
  %v3911 = vpack.c.b16 %v3847, %v3847
  %v3912 = vpack.c.b16 %v3848, %v3848
  %v3913 = vpack.c.b16 %v3849, %v3849
  %v3914 = vpack.c.b16 %v3850, %v3850
  %v3915 = vpack.c.b16 %v3851, %v3851
  %v3916 = vpack.c.b16 %v3852, %v3852
  %v3917 = vpack.c.b16 %v3853, %v3853
  %v3918 = vpack.c.b16 %v3854, %v3854
  %v3919 = vpack.c.b16 %v3855, %v3855
  %v3920 = vpack.c.b16 %v3856, %v3856
  %v3921 = vpack.c.b16 %v3857, %v3857
  %v3922 = vpack.c.b16 %v3858, %v3858
  %v3923 = vpack.c.b16 %v3859, %v3859
  %v3924 = vpack.c.b16 %v3860, %v3860
  %v3925 = vpack.c.b16 %v3861, %v3861
  %v3926 = vpack.c.b16 %v3862, %v3862
  %v3927 = vpack.c.b16 %v3863, %v3863
  %v3928 = vpack.c.b16 %v3864, %v3864
  %v3929 = vpack.c.b16 %v3865, %v3865
  %v3930 = vpack.c.b16 %v3866, %v3866
  %v3931 = vpack.c.b16 %v3867, %v3867
  %v3932 = vpack.c.b16 %v3868, %v3868
  %v3933 = vpack.c.b16 %v3869, %v3869
  %v3934 = vpack.c.b16 %v3870, %v3870
  %v3935 = vpack.c.b16 %v3871, %v3871
  %v3936 = vpack.c.b16 %v3872, %v3872
  %v3937 = vpack.c.b16 %v3873, %v3873
  %v3938 = vpack.c.b16 %v3874, %v3874
  %v3939 = vpack.c.b16 %v3875, %v3875
  %v3940 = vpack.c.b16 %v3876, %v3876
  %v3941 = vpack.c.b16 %v3877, %v3877
  %v3942 = vpack.c.b16 %v3878, %v3878
  %v3943 = vpack.c.b16 %v3879, %v3879
  %v3944 = vpack.c.b16 %v3880, %v3880
  %v3945 = vpack.c.b16 %v3881, %v3881
  %v3946 = vpack.c.b16 %v3882, %v3882
  %v3947 = vpack.c.b16 %v3883, %v3883
  %v3948 = vpack.c.b16 %v3884, %v3884
  %v3949 = vpack.c.b16 %v3885, %v3885
  %v3950 = vpack.c.b16 %v3886, %v3886
  %v3951 = vpack.c.b16 %v3887, %v3887
  %v3952 = vpack.c.b16 %v3888, %v3888
  %v3953 = vpack.c.b16 %v3889, %v3889
  %v3954 = vpack.c.b16 %v3890, %v3890
  %v3955 = vpack.c.b16 %v3891, %v3891
  %v3956 = vpack.c.b16 %v3892, %v3892
  %v3957 = vpack.c.b16 %v3893, %v3893
  %v3958 = vpack.c.b16 %v3894, %v3894
  %3959 = vrot.lane.b32.xlu0 %v3895, 28
  %v3960 = vpop.permute.xlu0 %3959
  %3961 = vrot.lane.b32.xlu0 %v3896, 28
  %v3962 = vpop.permute.xlu0 %3961
  %3963 = vrot.lane.b32.xlu0 %v3897, 28
  %v3964 = vpop.permute.xlu0 %3963
  %3965 = vrot.lane.b32.xlu0 %v3898, 28
  %v3966 = vpop.permute.xlu0 %3965
  %3967 = vrot.lane.b32.xlu0 %v3899, 28
  %v3968 = vpop.permute.xlu0 %3967
  %3969 = vrot.lane.b32.xlu0 %v3900, 28
  %v3970 = vpop.permute.xlu0 %3969
  %3971 = vrot.lane.b32.xlu0 %v3901, 28
  %v3972 = vpop.permute.xlu0 %3971
  %3973 = vrot.lane.b32.xlu0 %v3902, 28
  %v3974 = vpop.permute.xlu0 %3973
  %3975 = vrot.lane.b32.xlu0 %v3903, 28
  %v3976 = vpop.permute.xlu0 %3975
  %3977 = vrot.lane.b32.xlu0 %v3904, 28
  %v3978 = vpop.permute.xlu0 %3977
  %3979 = vrot.lane.b32.xlu0 %v3905, 28
  %v3980 = vpop.permute.xlu0 %3979
  %3981 = vrot.lane.b32.xlu0 %v3906, 28
  %v3982 = vpop.permute.xlu0 %3981
  %3983 = vrot.lane.b32.xlu0 %v3907, 28
  %v3984 = vpop.permute.xlu0 %3983
  %3985 = vrot.lane.b32.xlu0 %v3908, 28
  %v3986 = vpop.permute.xlu0 %3985
  %3987 = vrot.lane.b32.xlu0 %v3909, 28
  %v3988 = vpop.permute.xlu0 %3987
  %3989 = vrot.lane.b32.xlu0 %v3910, 28
  %v3990 = vpop.permute.xlu0 %3989
  %3991 = vrot.lane.b32.xlu0 %v3911, 28
  %v3992 = vpop.permute.xlu0 %3991
  %3993 = vrot.lane.b32.xlu0 %v3912, 28
  %v3994 = vpop.permute.xlu0 %3993
  %3995 = vrot.lane.b32.xlu0 %v3913, 28
  %v3996 = vpop.permute.xlu0 %3995
  %3997 = vrot.lane.b32.xlu0 %v3914, 28
  %v3998 = vpop.permute.xlu0 %3997
  %3999 = vrot.lane.b32.xlu0 %v3915, 28
  %v4000 = vpop.permute.xlu0 %3999
  %4001 = vrot.lane.b32.xlu0 %v3916, 28
  %v4002 = vpop.permute.xlu0 %4001
  %4003 = vrot.lane.b32.xlu0 %v3917, 28
  %v4004 = vpop.permute.xlu0 %4003
  %4005 = vrot.lane.b32.xlu0 %v3918, 28
  %v4006 = vpop.permute.xlu0 %4005
  %4007 = vrot.lane.b32.xlu0 %v3919, 28
  %v4008 = vpop.permute.xlu0 %4007
  %4009 = vrot.lane.b32.xlu0 %v3920, 28
  %v4010 = vpop.permute.xlu0 %4009
  %4011 = vrot.lane.b32.xlu0 %v3921, 28
  %v4012 = vpop.permute.xlu0 %4011
  %4013 = vrot.lane.b32.xlu0 %v3922, 28
  %v4014 = vpop.permute.xlu0 %4013
  %4015 = vrot.lane.b32.xlu0 %v3923, 28
  %v4016 = vpop.permute.xlu0 %4015
  %4017 = vrot.lane.b32.xlu0 %v3924, 28
  %v4018 = vpop.permute.xlu0 %4017
  %4019 = vrot.lane.b32.xlu0 %v3925, 28
  %v4020 = vpop.permute.xlu0 %4019
  %4021 = vrot.lane.b32.xlu0 %v3926, 28
  %v4022 = vpop.permute.xlu0 %4021
  %4023 = vrot.lane.b32.xlu0 %v3927, 28
  %v4024 = vpop.permute.xlu0 %4023
  %4025 = vrot.lane.b32.xlu0 %v3928, 28
  %v4026 = vpop.permute.xlu0 %4025
  %4027 = vrot.lane.b32.xlu0 %v3929, 28
  %v4028 = vpop.permute.xlu0 %4027
  %4029 = vrot.lane.b32.xlu0 %v3930, 28
  %v4030 = vpop.permute.xlu0 %4029
  %4031 = vrot.lane.b32.xlu0 %v3931, 28
  %v4032 = vpop.permute.xlu0 %4031
  %4033 = vrot.lane.b32.xlu0 %v3932, 28
  %v4034 = vpop.permute.xlu0 %4033
  %4035 = vrot.lane.b32.xlu0 %v3933, 28
  %v4036 = vpop.permute.xlu0 %4035
  %4037 = vrot.lane.b32.xlu0 %v3934, 28
  %v4038 = vpop.permute.xlu0 %4037
  %4039 = vrot.lane.b32.xlu0 %v3935, 28
  %v4040 = vpop.permute.xlu0 %4039
  %4041 = vrot.lane.b32.xlu0 %v3936, 28
  %v4042 = vpop.permute.xlu0 %4041
  %4043 = vrot.lane.b32.xlu0 %v3937, 28
  %v4044 = vpop.permute.xlu0 %4043
  %4045 = vrot.lane.b32.xlu0 %v3938, 28
  %v4046 = vpop.permute.xlu0 %4045
  %4047 = vrot.lane.b32.xlu0 %v3939, 28
  %v4048 = vpop.permute.xlu0 %4047
  %4049 = vrot.lane.b32.xlu0 %v3940, 28
  %v4050 = vpop.permute.xlu0 %4049
  %4051 = vrot.lane.b32.xlu0 %v3941, 28
  %v4052 = vpop.permute.xlu0 %4051
  %4053 = vrot.lane.b32.xlu0 %v3942, 28
  %v4054 = vpop.permute.xlu0 %4053
  %4055 = vrot.lane.b32.xlu0 %v3943, 28
  %v4056 = vpop.permute.xlu0 %4055
  %4057 = vrot.lane.b32.xlu0 %v3944, 28
  %v4058 = vpop.permute.xlu0 %4057
  %4059 = vrot.lane.b32.xlu0 %v3945, 28
  %v4060 = vpop.permute.xlu0 %4059
  %4061 = vrot.lane.b32.xlu0 %v3946, 28
  %v4062 = vpop.permute.xlu0 %4061
  %4063 = vrot.lane.b32.xlu0 %v3947, 28
  %v4064 = vpop.permute.xlu0 %4063
  %4065 = vrot.lane.b32.xlu0 %v3948, 28
  %v4066 = vpop.permute.xlu0 %4065
  %4067 = vrot.lane.b32.xlu0 %v3949, 28
  %v4068 = vpop.permute.xlu0 %4067
  %4069 = vrot.lane.b32.xlu0 %v3950, 28
  %v4070 = vpop.permute.xlu0 %4069
  %4071 = vrot.lane.b32.xlu0 %v3951, 28
  %v4072 = vpop.permute.xlu0 %4071
  %4073 = vrot.lane.b32.xlu0 %v3952, 28
  %v4074 = vpop.permute.xlu0 %4073
  %4075 = vrot.lane.b32.xlu0 %v3953, 28
  %v4076 = vpop.permute.xlu0 %4075
  %4077 = vrot.lane.b32.xlu0 %v3954, 28
  %v4078 = vpop.permute.xlu0 %4077
  %4079 = vrot.lane.b32.xlu0 %v3955, 28
  %v4080 = vpop.permute.xlu0 %4079
  %4081 = vrot.lane.b32.xlu0 %v3956, 28
  %v4082 = vpop.permute.xlu0 %4081
  %4083 = vrot.lane.b32.xlu0 %v3957, 28
  %v4084 = vpop.permute.xlu0 %4083
  %4085 = vrot.lane.b32.xlu0 %v3958, 28
  %v4086 = vpop.permute.xlu0 %4085
  %vm4151 = vcmask 257248
  %4152 = vst.msk [vmem:[#allocation3] sm:$0xf] %vm4151, %v3960
  %4153 = vst.msk [vmem:[#allocation3 + $0x4] sm:$0xf] %vm4151, %v3962
  %4154 = vst.msk [vmem:[#allocation3 + $0x8] sm:$0xf] %vm4151, %v3964
  %4155 = vst.msk [vmem:[#allocation3 + $0xc] sm:$0xf] %vm4151, %v3966
  %4156 = vst.msk [vmem:[#allocation3 + $0x10] sm:$0xf] %vm4151, %v3968
  %4157 = vst.msk [vmem:[#allocation3 + $0x14] sm:$0xf] %vm4151, %v3970
  %4158 = vst.msk [vmem:[#allocation3 + $0x18] sm:$0xf] %vm4151, %v3972
  %4159 = vst.msk [vmem:[#allocation3 + $0x1c] sm:$0xf] %vm4151, %v3974
  %4160 = vst.msk [vmem:[#allocation3 + $0x20] sm:$0xf] %vm4151, %v3976
  %4161 = vst.msk [vmem:[#allocation3 + $0x24] sm:$0xf] %vm4151, %v3978
  %4162 = vst.msk [vmem:[#allocation3 + $0x28] sm:$0xf] %vm4151, %v3980
  %4163 = vst.msk [vmem:[#allocation3 + $0x2c] sm:$0xf] %vm4151, %v3982
  %4164 = vst.msk [vmem:[#allocation3 + $0x30] sm:$0xf] %vm4151, %v3984
  %4165 = vst.msk [vmem:[#allocation3 + $0x34] sm:$0xf] %vm4151, %v3986
  %4166 = vst.msk [vmem:[#allocation3 + $0x38] sm:$0xf] %vm4151, %v3988
  %4167 = vst.msk [vmem:[#allocation3 + $0x3c] sm:$0xf] %vm4151, %v3990
  %4168 = vst.msk [vmem:[#allocation3 + $0x40] sm:$0xf] %vm4151, %v3992
  %4169 = vst.msk [vmem:[#allocation3 + $0x44] sm:$0xf] %vm4151, %v3994
  %4170 = vst.msk [vmem:[#allocation3 + $0x48] sm:$0xf] %vm4151, %v3996
  %4171 = vst.msk [vmem:[#allocation3 + $0x4c] sm:$0xf] %vm4151, %v3998
  %4172 = vst.msk [vmem:[#allocation3 + $0x50] sm:$0xf] %vm4151, %v4000
  %4173 = vst.msk [vmem:[#allocation3 + $0x54] sm:$0xf] %vm4151, %v4002
  %4174 = vst.msk [vmem:[#allocation3 + $0x58] sm:$0xf] %vm4151, %v4004
  %4175 = vst.msk [vmem:[#allocation3 + $0x5c] sm:$0xf] %vm4151, %v4006
  %4176 = vst.msk [vmem:[#allocation3 + $0x60] sm:$0xf] %vm4151, %v4008
  %4177 = vst.msk [vmem:[#allocation3 + $0x64] sm:$0xf] %vm4151, %v4010
  %4178 = vst.msk [vmem:[#allocation3 + $0x68] sm:$0xf] %vm4151, %v4012
  %4179 = vst.msk [vmem:[#allocation3 + $0x6c] sm:$0xf] %vm4151, %v4014
  %4180 = vst.msk [vmem:[#allocation3 + $0x70] sm:$0xf] %vm4151, %v4016
  %4181 = vst.msk [vmem:[#allocation3 + $0x74] sm:$0xf] %vm4151, %v4018
  %4182 = vst.msk [vmem:[#allocation3 + $0x78] sm:$0xf] %vm4151, %v4020
  %4183 = vst.msk [vmem:[#allocation3 + $0x7c] sm:$0xf] %vm4151, %v4022
  %4184 = vst.msk [vmem:[#allocation3 + $0x80] sm:$0xf] %vm4151, %v4024
  %4185 = vst.msk [vmem:[#allocation3 + $0x84] sm:$0xf] %vm4151, %v4026
  %4186 = vst.msk [vmem:[#allocation3 + $0x88] sm:$0xf] %vm4151, %v4028
  %4187 = vst.msk [vmem:[#allocation3 + $0x8c] sm:$0xf] %vm4151, %v4030
  %4188 = vst.msk [vmem:[#allocation3 + $0x90] sm:$0xf] %vm4151, %v4032
  %4189 = vst.msk [vmem:[#allocation3 + $0x94] sm:$0xf] %vm4151, %v4034
  %4190 = vst.msk [vmem:[#allocation3 + $0x98] sm:$0xf] %vm4151, %v4036
  %4191 = vst.msk [vmem:[#allocation3 + $0x9c] sm:$0xf] %vm4151, %v4038
  %4192 = vst.msk [vmem:[#allocation3 + $0xa0] sm:$0xf] %vm4151, %v4040
  %4193 = vst.msk [vmem:[#allocation3 + $0xa4] sm:$0xf] %vm4151, %v4042
  %4194 = vst.msk [vmem:[#allocation3 + $0xa8] sm:$0xf] %vm4151, %v4044
  %4195 = vst.msk [vmem:[#allocation3 + $0xac] sm:$0xf] %vm4151, %v4046
  %4196 = vst.msk [vmem:[#allocation3 + $0xb0] sm:$0xf] %vm4151, %v4048
  %4197 = vst.msk [vmem:[#allocation3 + $0xb4] sm:$0xf] %vm4151, %v4050
  %4198 = vst.msk [vmem:[#allocation3 + $0xb8] sm:$0xf] %vm4151, %v4052
  %4199 = vst.msk [vmem:[#allocation3 + $0xbc] sm:$0xf] %vm4151, %v4054
  %4200 = vst.msk [vmem:[#allocation3 + $0xc0] sm:$0xf] %vm4151, %v4056
  %4201 = vst.msk [vmem:[#allocation3 + $0xc4] sm:$0xf] %vm4151, %v4058
  %4202 = vst.msk [vmem:[#allocation3 + $0xc8] sm:$0xf] %vm4151, %v4060
  %4203 = vst.msk [vmem:[#allocation3 + $0xcc] sm:$0xf] %vm4151, %v4062
  %4204 = vst.msk [vmem:[#allocation3 + $0xd0] sm:$0xf] %vm4151, %v4064
  %4205 = vst.msk [vmem:[#allocation3 + $0xd4] sm:$0xf] %vm4151, %v4066
  %4206 = vst.msk [vmem:[#allocation3 + $0xd8] sm:$0xf] %vm4151, %v4068
  %4207 = vst.msk [vmem:[#allocation3 + $0xdc] sm:$0xf] %vm4151, %v4070
  %4208 = vst.msk [vmem:[#allocation3 + $0xe0] sm:$0xf] %vm4151, %v4072
  %4209 = vst.msk [vmem:[#allocation3 + $0xe4] sm:$0xf] %vm4151, %v4074
  %4210 = vst.msk [vmem:[#allocation3 + $0xe8] sm:$0xf] %vm4151, %v4076
  %4211 = vst.msk [vmem:[#allocation3 + $0xec] sm:$0xf] %vm4151, %v4078
  %4212 = vst.msk [vmem:[#allocation3 + $0xf0] sm:$0xf] %vm4151, %v4080
  %4213 = vst.msk [vmem:[#allocation3 + $0xf4] sm:$0xf] %vm4151, %v4082
  %4214 = vst.msk [vmem:[#allocation3 + $0xf8] sm:$0xf] %vm4151, %v4084
  %4215 = vst.msk [vmem:[#allocation3 + $0xfc] sm:$0xf] %vm4151, %v4086
  %v4216 = vld [vmem:[%s3189 + $0x2] sm:$0xff]
  %v4217 = vld [vmem:[%s3189 + $0xa] sm:$0xff]
  %v4218 = vld [vmem:[%s3189 + $0x1a] sm:$0xff]
  %v4219 = vld [vmem:[%s3189 + $0x22] sm:$0xff]
  %v4220 = vld [vmem:[%s3189 + $0x32] sm:$0xff]
  %v4221 = vld [vmem:[%s3189 + $0x3a] sm:$0xff]
  %v4222 = vld [vmem:[%s3189 + $0x4a] sm:$0xff]
  %v4223 = vld [vmem:[%s3189 + $0x52] sm:$0xff]
  %v4224 = vld [vmem:[%s3189 + $0x62] sm:$0xff]
  %v4225 = vld [vmem:[%s3189 + $0x6a] sm:$0xff]
  %v4226 = vld [vmem:[%s3189 + $0x7a] sm:$0xff]
  %v4227 = vld [vmem:[%s3189 + $0x82] sm:$0xff]
  %v4228 = vld [vmem:[%s3189 + $0x92] sm:$0xff]
  %v4229 = vld [vmem:[%s3189 + $0x9a] sm:$0xff]
  %v4230 = vld [vmem:[%s3189 + $0xaa] sm:$0xff]
  %v4231 = vld [vmem:[%s3189 + $0xb2] sm:$0xff]
  %v4232 = vld [vmem:[%s3189 + $0xc2] sm:$0xff]
  %v4233 = vld [vmem:[%s3189 + $0xca] sm:$0xff]
  %v4234 = vld [vmem:[%s3189 + $0xda] sm:$0xff]
  %v4235 = vld [vmem:[%s3189 + $0xe2] sm:$0xff]
  %v4236 = vld [vmem:[%s3189 + $0xf2] sm:$0xff]
  %v4237 = vld [vmem:[%s3189 + $0xfa] sm:$0xff]
  %v4238 = vld [vmem:[%s3189 + $0x10a] sm:$0xff]
  %v4239 = vld [vmem:[%s3189 + $0x112] sm:$0xff]
  %v4240 = vld [vmem:[%s3189 + $0x122] sm:$0xff]
  %v4241 = vld [vmem:[%s3189 + $0x12a] sm:$0xff]
  %v4242 = vld [vmem:[%s3189 + $0x13a] sm:$0xff]
  %v4243 = vld [vmem:[%s3189 + $0x142] sm:$0xff]
  %v4244 = vld [vmem:[%s3189 + $0x152] sm:$0xff]
  %v4245 = vld [vmem:[%s3189 + $0x15a] sm:$0xff]
  %v4246 = vld [vmem:[%s3189 + $0x16a] sm:$0xff]
  %v4247 = vld [vmem:[%s3189 + $0x172] sm:$0xff]
  %v4248 = vld [vmem:[%s3189 + $0x1b2] sm:$0xff]
  %v4249 = vld [vmem:[%s3189 + $0x1ba] sm:$0xff]
  %v4250 = vld [vmem:[%s3189 + $0x1ca] sm:$0xff]
  %v4251 = vld [vmem:[%s3189 + $0x1d2] sm:$0xff]
  %v4252 = vld [vmem:[%s3189 + $0x1e2] sm:$0xff]
  %v4253 = vld [vmem:[%s3189 + $0x1ea] sm:$0xff]
  %v4254 = vld [vmem:[%s3189 + $0x1fa] sm:$0xff]
  %v4255 = vld [vmem:[%s3189 + $0x202] sm:$0xff]
  %v4256 = vld [vmem:[%s3189 + $0x212] sm:$0xff]
  %v4257 = vld [vmem:[%s3189 + $0x21a] sm:$0xff]
  %v4258 = vld [vmem:[%s3189 + $0x22a] sm:$0xff]
  %v4259 = vld [vmem:[%s3189 + $0x232] sm:$0xff]
  %v4260 = vld [vmem:[%s3189 + $0x242] sm:$0xff]
  %v4261 = vld [vmem:[%s3189 + $0x24a] sm:$0xff]
  %v4262 = vld [vmem:[%s3189 + $0x25a] sm:$0xff]
  %v4263 = vld [vmem:[%s3189 + $0x262] sm:$0xff]
  %v4264 = vld [vmem:[%s3189 + $0x272] sm:$0xff]
  %v4265 = vld [vmem:[%s3189 + $0x27a] sm:$0xff]
  %v4266 = vld [vmem:[%s3189 + $0x28a] sm:$0xff]
  %v4267 = vld [vmem:[%s3189 + $0x292] sm:$0xff]
  %v4268 = vld [vmem:[%s3189 + $0x2a2] sm:$0xff]
  %v4269 = vld [vmem:[%s3189 + $0x2aa] sm:$0xff]
  %v4270 = vld [vmem:[%s3189 + $0x2ba] sm:$0xff]
  %v4271 = vld [vmem:[%s3189 + $0x2c2] sm:$0xff]
  %v4272 = vld [vmem:[%s3189 + $0x2d2] sm:$0xff]
  %v4273 = vld [vmem:[%s3189 + $0x2da] sm:$0xff]
  %v4274 = vld [vmem:[%s3189 + $0x2ea] sm:$0xff]
  %v4275 = vld [vmem:[%s3189 + $0x2f2] sm:$0xff]
  %v4276 = vld [vmem:[%s3189 + $0x302] sm:$0xff]
  %v4277 = vld [vmem:[%s3189 + $0x30a] sm:$0xff]
  %v4278 = vld [vmem:[%s3189 + $0x31a] sm:$0xff]
  %v4279 = vld [vmem:[%s3189 + $0x322] sm:$0xff]
  %v4280 = vpack.c.bf16 %v4217, %v4216
  %v4281 = vpack.c.bf16 %v4219, %v4218
  %v4282 = vpack.c.bf16 %v4221, %v4220
  %v4283 = vpack.c.bf16 %v4223, %v4222
  %v4284 = vpack.c.bf16 %v4225, %v4224
  %v4285 = vpack.c.bf16 %v4227, %v4226
  %v4286 = vpack.c.bf16 %v4229, %v4228
  %v4287 = vpack.c.bf16 %v4231, %v4230
  %v4288 = vpack.c.bf16 %v4233, %v4232
  %v4289 = vpack.c.bf16 %v4235, %v4234
  %v4290 = vpack.c.bf16 %v4237, %v4236
  %v4291 = vpack.c.bf16 %v4239, %v4238
  %v4292 = vpack.c.bf16 %v4241, %v4240
  %v4293 = vpack.c.bf16 %v4243, %v4242
  %v4294 = vpack.c.bf16 %v4245, %v4244
  %v4295 = vpack.c.bf16 %v4247, %v4246
  %v4296 = vpack.c.bf16 %v4249, %v4248
  %v4297 = vpack.c.bf16 %v4251, %v4250
  %v4298 = vpack.c.bf16 %v4253, %v4252
  %v4299 = vpack.c.bf16 %v4255, %v4254
  %v4300 = vpack.c.bf16 %v4257, %v4256
  %v4301 = vpack.c.bf16 %v4259, %v4258
  %v4302 = vpack.c.bf16 %v4261, %v4260
  %v4303 = vpack.c.bf16 %v4263, %v4262
  %v4304 = vpack.c.bf16 %v4265, %v4264
  %v4305 = vpack.c.bf16 %v4267, %v4266
  %v4306 = vpack.c.bf16 %v4269, %v4268
  %v4307 = vpack.c.bf16 %v4271, %v4270
  %v4308 = vpack.c.bf16 %v4273, %v4272
  %v4309 = vpack.c.bf16 %v4275, %v4274
  %v4310 = vpack.c.bf16 %v4277, %v4276
  %v4311 = vpack.c.bf16 %v4279, %v4278
  %v4344 = vunpack.c.l.b16 %v4280
  %v4345 = vunpack.c.h.b16 %v4280
  %v4346 = vunpack.c.l.b16 %v4281
  %v4347 = vunpack.c.h.b16 %v4281
  %v4348 = vunpack.c.l.b16 %v4282
  %v4349 = vunpack.c.h.b16 %v4282
  %v4350 = vunpack.c.l.b16 %v4283
  %v4351 = vunpack.c.h.b16 %v4283
  %v4352 = vunpack.c.l.b16 %v4284
  %v4353 = vunpack.c.h.b16 %v4284
  %v4354 = vunpack.c.l.b16 %v4285
  %v4355 = vunpack.c.h.b16 %v4285
  %v4356 = vunpack.c.l.b16 %v4286
  %v4357 = vunpack.c.h.b16 %v4286
  %v4358 = vunpack.c.l.b16 %v4287
  %v4359 = vunpack.c.h.b16 %v4287
  %v4360 = vunpack.c.l.b16 %v4288
  %v4361 = vunpack.c.h.b16 %v4288
  %v4362 = vunpack.c.l.b16 %v4289
  %v4363 = vunpack.c.h.b16 %v4289
  %v4364 = vunpack.c.l.b16 %v4290
  %v4365 = vunpack.c.h.b16 %v4290
  %v4366 = vunpack.c.l.b16 %v4291
  %v4367 = vunpack.c.h.b16 %v4291
  %v4368 = vunpack.c.l.b16 %v4292
  %v4369 = vunpack.c.h.b16 %v4292
  %v4370 = vunpack.c.l.b16 %v4293
  %v4371 = vunpack.c.h.b16 %v4293
  %v4372 = vunpack.c.l.b16 %v4294
  %v4373 = vunpack.c.h.b16 %v4294
  %v4374 = vunpack.c.l.b16 %v4295
  %v4375 = vunpack.c.h.b16 %v4295
  %v4376 = vunpack.c.l.b16 %v4296
  %v4377 = vunpack.c.h.b16 %v4296
  %v4378 = vunpack.c.l.b16 %v4297
  %v4379 = vunpack.c.h.b16 %v4297
  %v4380 = vunpack.c.l.b16 %v4298
  %v4381 = vunpack.c.h.b16 %v4298
  %v4382 = vunpack.c.l.b16 %v4299
  %v4383 = vunpack.c.h.b16 %v4299
  %v4384 = vunpack.c.l.b16 %v4300
  %v4385 = vunpack.c.h.b16 %v4300
  %v4386 = vunpack.c.l.b16 %v4301
  %v4387 = vunpack.c.h.b16 %v4301
  %v4388 = vunpack.c.l.b16 %v4302
  %v4389 = vunpack.c.h.b16 %v4302
  %v4390 = vunpack.c.l.b16 %v4303
  %v4391 = vunpack.c.h.b16 %v4303
  %v4392 = vunpack.c.l.b16 %v4304
  %v4393 = vunpack.c.h.b16 %v4304
  %v4394 = vunpack.c.l.b16 %v4305
  %v4395 = vunpack.c.h.b16 %v4305
  %v4396 = vunpack.c.l.b16 %v4306
  %v4397 = vunpack.c.h.b16 %v4306
  %v4398 = vunpack.c.l.b16 %v4307
  %v4399 = vunpack.c.h.b16 %v4307
  %v4400 = vunpack.c.l.b16 %v4308
  %v4401 = vunpack.c.h.b16 %v4308
  %v4402 = vunpack.c.l.b16 %v4309
  %v4403 = vunpack.c.h.b16 %v4309
  %v4404 = vunpack.c.l.b16 %v4310
  %v4405 = vunpack.c.h.b16 %v4310
  %v4406 = vunpack.c.l.b16 %v4311
  %v4407 = vunpack.c.h.b16 %v4311
  %v4408 = vpack.c.b16 %v4344, %v4344
  %v4409 = vpack.c.b16 %v4345, %v4345
  %v4410 = vpack.c.b16 %v4346, %v4346
  %v4411 = vpack.c.b16 %v4347, %v4347
  %v4412 = vpack.c.b16 %v4348, %v4348
  %v4413 = vpack.c.b16 %v4349, %v4349
  %v4414 = vpack.c.b16 %v4350, %v4350
  %v4415 = vpack.c.b16 %v4351, %v4351
  %v4416 = vpack.c.b16 %v4352, %v4352
  %v4417 = vpack.c.b16 %v4353, %v4353
  %v4418 = vpack.c.b16 %v4354, %v4354
  %v4419 = vpack.c.b16 %v4355, %v4355
  %v4420 = vpack.c.b16 %v4356, %v4356
  %v4421 = vpack.c.b16 %v4357, %v4357
  %v4422 = vpack.c.b16 %v4358, %v4358
  %v4423 = vpack.c.b16 %v4359, %v4359
  %v4424 = vpack.c.b16 %v4360, %v4360
  %v4425 = vpack.c.b16 %v4361, %v4361
  %v4426 = vpack.c.b16 %v4362, %v4362
  %v4427 = vpack.c.b16 %v4363, %v4363
  %v4428 = vpack.c.b16 %v4364, %v4364
  %v4429 = vpack.c.b16 %v4365, %v4365
  %v4430 = vpack.c.b16 %v4366, %v4366
  %v4431 = vpack.c.b16 %v4367, %v4367
  %v4432 = vpack.c.b16 %v4368, %v4368
  %v4433 = vpack.c.b16 %v4369, %v4369
  %v4434 = vpack.c.b16 %v4370, %v4370
  %v4435 = vpack.c.b16 %v4371, %v4371
  %v4436 = vpack.c.b16 %v4372, %v4372
  %v4437 = vpack.c.b16 %v4373, %v4373
  %v4438 = vpack.c.b16 %v4374, %v4374
  %v4439 = vpack.c.b16 %v4375, %v4375
  %v4440 = vpack.c.b16 %v4376, %v4376
  %v4441 = vpack.c.b16 %v4377, %v4377
  %v4442 = vpack.c.b16 %v4378, %v4378
  %v4443 = vpack.c.b16 %v4379, %v4379
  %v4444 = vpack.c.b16 %v4380, %v4380
  %v4445 = vpack.c.b16 %v4381, %v4381
  %v4446 = vpack.c.b16 %v4382, %v4382
  %v4447 = vpack.c.b16 %v4383, %v4383
  %v4448 = vpack.c.b16 %v4384, %v4384
  %v4449 = vpack.c.b16 %v4385, %v4385
  %v4450 = vpack.c.b16 %v4386, %v4386
  %v4451 = vpack.c.b16 %v4387, %v4387
  %v4452 = vpack.c.b16 %v4388, %v4388
  %v4453 = vpack.c.b16 %v4389, %v4389
  %v4454 = vpack.c.b16 %v4390, %v4390
  %v4455 = vpack.c.b16 %v4391, %v4391
  %v4456 = vpack.c.b16 %v4392, %v4392
  %v4457 = vpack.c.b16 %v4393, %v4393
  %v4458 = vpack.c.b16 %v4394, %v4394
  %v4459 = vpack.c.b16 %v4395, %v4395
  %v4460 = vpack.c.b16 %v4396, %v4396
  %v4461 = vpack.c.b16 %v4397, %v4397
  %v4462 = vpack.c.b16 %v4398, %v4398
  %v4463 = vpack.c.b16 %v4399, %v4399
  %v4464 = vpack.c.b16 %v4400, %v4400
  %v4465 = vpack.c.b16 %v4401, %v4401
  %v4466 = vpack.c.b16 %v4402, %v4402
  %v4467 = vpack.c.b16 %v4403, %v4403
  %v4468 = vpack.c.b16 %v4404, %v4404
  %v4469 = vpack.c.b16 %v4405, %v4405
  %v4470 = vpack.c.b16 %v4406, %v4406
  %v4471 = vpack.c.b16 %v4407, %v4407
  %4472 = vrot.lane.b32.xlu0 %v4408, 32
  %v4473 = vpop.permute.xlu0 %4472
  %4474 = vrot.lane.b32.xlu0 %v4409, 32
  %v4475 = vpop.permute.xlu0 %4474
  %4476 = vrot.lane.b32.xlu0 %v4410, 32
  %v4477 = vpop.permute.xlu0 %4476
  %4478 = vrot.lane.b32.xlu0 %v4411, 32
  %v4479 = vpop.permute.xlu0 %4478
  %4480 = vrot.lane.b32.xlu0 %v4412, 32
  %v4481 = vpop.permute.xlu0 %4480
  %4482 = vrot.lane.b32.xlu0 %v4413, 32
  %v4483 = vpop.permute.xlu0 %4482
  %4484 = vrot.lane.b32.xlu0 %v4414, 32
  %v4485 = vpop.permute.xlu0 %4484
  %4486 = vrot.lane.b32.xlu0 %v4415, 32
  %v4487 = vpop.permute.xlu0 %4486
  %4488 = vrot.lane.b32.xlu0 %v4416, 32
  %v4489 = vpop.permute.xlu0 %4488
  %4490 = vrot.lane.b32.xlu0 %v4417, 32
  %v4491 = vpop.permute.xlu0 %4490
  %4492 = vrot.lane.b32.xlu0 %v4418, 32
  %v4493 = vpop.permute.xlu0 %4492
  %4494 = vrot.lane.b32.xlu0 %v4419, 32
  %v4495 = vpop.permute.xlu0 %4494
  %4496 = vrot.lane.b32.xlu0 %v4420, 32
  %v4497 = vpop.permute.xlu0 %4496
  %4498 = vrot.lane.b32.xlu0 %v4421, 32
  %v4499 = vpop.permute.xlu0 %4498
  %4500 = vrot.lane.b32.xlu0 %v4422, 32
  %v4501 = vpop.permute.xlu0 %4500
  %4502 = vrot.lane.b32.xlu0 %v4423, 32
  %v4503 = vpop.permute.xlu0 %4502
  %4504 = vrot.lane.b32.xlu0 %v4424, 32
  %v4505 = vpop.permute.xlu0 %4504
  %4506 = vrot.lane.b32.xlu0 %v4425, 32
  %v4507 = vpop.permute.xlu0 %4506
  %4508 = vrot.lane.b32.xlu0 %v4426, 32
  %v4509 = vpop.permute.xlu0 %4508
  %4510 = vrot.lane.b32.xlu0 %v4427, 32
  %v4511 = vpop.permute.xlu0 %4510
  %4512 = vrot.lane.b32.xlu0 %v4428, 32
  %v4513 = vpop.permute.xlu0 %4512
  %4514 = vrot.lane.b32.xlu0 %v4429, 32
  %v4515 = vpop.permute.xlu0 %4514
  %4516 = vrot.lane.b32.xlu0 %v4430, 32
  %v4517 = vpop.permute.xlu0 %4516
  %4518 = vrot.lane.b32.xlu0 %v4431, 32
  %v4519 = vpop.permute.xlu0 %4518
  %4520 = vrot.lane.b32.xlu0 %v4432, 32
  %v4521 = vpop.permute.xlu0 %4520
  %4522 = vrot.lane.b32.xlu0 %v4433, 32
  %v4523 = vpop.permute.xlu0 %4522
  %4524 = vrot.lane.b32.xlu0 %v4434, 32
  %v4525 = vpop.permute.xlu0 %4524
  %4526 = vrot.lane.b32.xlu0 %v4435, 32
  %v4527 = vpop.permute.xlu0 %4526
  %4528 = vrot.lane.b32.xlu0 %v4436, 32
  %v4529 = vpop.permute.xlu0 %4528
  %4530 = vrot.lane.b32.xlu0 %v4437, 32
  %v4531 = vpop.permute.xlu0 %4530
  %4532 = vrot.lane.b32.xlu0 %v4438, 32
  %v4533 = vpop.permute.xlu0 %4532
  %4534 = vrot.lane.b32.xlu0 %v4439, 32
  %v4535 = vpop.permute.xlu0 %4534
  %4536 = vrot.lane.b32.xlu0 %v4440, 32
  %v4537 = vpop.permute.xlu0 %4536
  %4538 = vrot.lane.b32.xlu0 %v4441, 32
  %v4539 = vpop.permute.xlu0 %4538
  %4540 = vrot.lane.b32.xlu0 %v4442, 32
  %v4541 = vpop.permute.xlu0 %4540
  %4542 = vrot.lane.b32.xlu0 %v4443, 32
  %v4543 = vpop.permute.xlu0 %4542
  %4544 = vrot.lane.b32.xlu0 %v4444, 32
  %v4545 = vpop.permute.xlu0 %4544
  %4546 = vrot.lane.b32.xlu0 %v4445, 32
  %v4547 = vpop.permute.xlu0 %4546
  %4548 = vrot.lane.b32.xlu0 %v4446, 32
  %v4549 = vpop.permute.xlu0 %4548
  %4550 = vrot.lane.b32.xlu0 %v4447, 32
  %v4551 = vpop.permute.xlu0 %4550
  %4552 = vrot.lane.b32.xlu0 %v4448, 32
  %v4553 = vpop.permute.xlu0 %4552
  %4554 = vrot.lane.b32.xlu0 %v4449, 32
  %v4555 = vpop.permute.xlu0 %4554
  %4556 = vrot.lane.b32.xlu0 %v4450, 32
  %v4557 = vpop.permute.xlu0 %4556
  %4558 = vrot.lane.b32.xlu0 %v4451, 32
  %v4559 = vpop.permute.xlu0 %4558
  %4560 = vrot.lane.b32.xlu0 %v4452, 32
  %v4561 = vpop.permute.xlu0 %4560
  %4562 = vrot.lane.b32.xlu0 %v4453, 32
  %v4563 = vpop.permute.xlu0 %4562
  %4564 = vrot.lane.b32.xlu0 %v4454, 32
  %v4565 = vpop.permute.xlu0 %4564
  %4566 = vrot.lane.b32.xlu0 %v4455, 32
  %v4567 = vpop.permute.xlu0 %4566
  %4568 = vrot.lane.b32.xlu0 %v4456, 32
  %v4569 = vpop.permute.xlu0 %4568
  %4570 = vrot.lane.b32.xlu0 %v4457, 32
  %v4571 = vpop.permute.xlu0 %4570
  %4572 = vrot.lane.b32.xlu0 %v4458, 32
  %v4573 = vpop.permute.xlu0 %4572
  %4574 = vrot.lane.b32.xlu0 %v4459, 32
  %v4575 = vpop.permute.xlu0 %4574
  %4576 = vrot.lane.b32.xlu0 %v4460, 32
  %v4577 = vpop.permute.xlu0 %4576
  %4578 = vrot.lane.b32.xlu0 %v4461, 32
  %v4579 = vpop.permute.xlu0 %4578
  %4580 = vrot.lane.b32.xlu0 %v4462, 32
  %v4581 = vpop.permute.xlu0 %4580
  %4582 = vrot.lane.b32.xlu0 %v4463, 32
  %v4583 = vpop.permute.xlu0 %4582
  %4584 = vrot.lane.b32.xlu0 %v4464, 32
  %v4585 = vpop.permute.xlu0 %4584
  %4586 = vrot.lane.b32.xlu0 %v4465, 32
  %v4587 = vpop.permute.xlu0 %4586
  %4588 = vrot.lane.b32.xlu0 %v4466, 32
  %v4589 = vpop.permute.xlu0 %4588
  %4590 = vrot.lane.b32.xlu0 %v4467, 32
  %v4591 = vpop.permute.xlu0 %4590
  %4592 = vrot.lane.b32.xlu0 %v4468, 32
  %v4593 = vpop.permute.xlu0 %4592
  %4594 = vrot.lane.b32.xlu0 %v4469, 32
  %v4595 = vpop.permute.xlu0 %4594
  %4596 = vrot.lane.b32.xlu0 %v4470, 32
  %v4597 = vpop.permute.xlu0 %4596
  %4598 = vrot.lane.b32.xlu0 %v4471, 32
  %v4599 = vpop.permute.xlu0 %4598
  %vm4664 = vcmask 290048
  %4665 = vst.msk [vmem:[#allocation3] sm:$0xf] %vm4664, %v4473
  %4666 = vst.msk [vmem:[#allocation3 + $0x4] sm:$0xf] %vm4664, %v4475
  %4667 = vst.msk [vmem:[#allocation3 + $0x8] sm:$0xf] %vm4664, %v4477
  %4668 = vst.msk [vmem:[#allocation3 + $0xc] sm:$0xf] %vm4664, %v4479
  %4669 = vst.msk [vmem:[#allocation3 + $0x10] sm:$0xf] %vm4664, %v4481
  %4670 = vst.msk [vmem:[#allocation3 + $0x14] sm:$0xf] %vm4664, %v4483
  %4671 = vst.msk [vmem:[#allocation3 + $0x18] sm:$0xf] %vm4664, %v4485
  %4672 = vst.msk [vmem:[#allocation3 + $0x1c] sm:$0xf] %vm4664, %v4487
  %4673 = vst.msk [vmem:[#allocation3 + $0x20] sm:$0xf] %vm4664, %v4489
  %4674 = vst.msk [vmem:[#allocation3 + $0x24] sm:$0xf] %vm4664, %v4491
  %4675 = vst.msk [vmem:[#allocation3 + $0x28] sm:$0xf] %vm4664, %v4493
  %4676 = vst.msk [vmem:[#allocation3 + $0x2c] sm:$0xf] %vm4664, %v4495
  %4677 = vst.msk [vmem:[#allocation3 + $0x30] sm:$0xf] %vm4664, %v4497
  %4678 = vst.msk [vmem:[#allocation3 + $0x34] sm:$0xf] %vm4664, %v4499
  %4679 = vst.msk [vmem:[#allocation3 + $0x38] sm:$0xf] %vm4664, %v4501
  %4680 = vst.msk [vmem:[#allocation3 + $0x3c] sm:$0xf] %vm4664, %v4503
  %4681 = vst.msk [vmem:[#allocation3 + $0x40] sm:$0xf] %vm4664, %v4505
  %4682 = vst.msk [vmem:[#allocation3 + $0x44] sm:$0xf] %vm4664, %v4507
  %4683 = vst.msk [vmem:[#allocation3 + $0x48] sm:$0xf] %vm4664, %v4509
  %4684 = vst.msk [vmem:[#allocation3 + $0x4c] sm:$0xf] %vm4664, %v4511
  %4685 = vst.msk [vmem:[#allocation3 + $0x50] sm:$0xf] %vm4664, %v4513
  %4686 = vst.msk [vmem:[#allocation3 + $0x54] sm:$0xf] %vm4664, %v4515
  %4687 = vst.msk [vmem:[#allocation3 + $0x58] sm:$0xf] %vm4664, %v4517
  %4688 = vst.msk [vmem:[#allocation3 + $0x5c] sm:$0xf] %vm4664, %v4519
  %4689 = vst.msk [vmem:[#allocation3 + $0x60] sm:$0xf] %vm4664, %v4521
  %4690 = vst.msk [vmem:[#allocation3 + $0x64] sm:$0xf] %vm4664, %v4523
  %4691 = vst.msk [vmem:[#allocation3 + $0x68] sm:$0xf] %vm4664, %v4525
  %4692 = vst.msk [vmem:[#allocation3 + $0x6c] sm:$0xf] %vm4664, %v4527
  %4693 = vst.msk [vmem:[#allocation3 + $0x70] sm:$0xf] %vm4664, %v4529
  %4694 = vst.msk [vmem:[#allocation3 + $0x74] sm:$0xf] %vm4664, %v4531
  %4695 = vst.msk [vmem:[#allocation3 + $0x78] sm:$0xf] %vm4664, %v4533
  %4696 = vst.msk [vmem:[#allocation3 + $0x7c] sm:$0xf] %vm4664, %v4535
  %4697 = vst.msk [vmem:[#allocation3 + $0x80] sm:$0xf] %vm4664, %v4537
  %4698 = vst.msk [vmem:[#allocation3 + $0x84] sm:$0xf] %vm4664, %v4539
  %4699 = vst.msk [vmem:[#allocation3 + $0x88] sm:$0xf] %vm4664, %v4541
  %4700 = vst.msk [vmem:[#allocation3 + $0x8c] sm:$0xf] %vm4664, %v4543
  %4701 = vst.msk [vmem:[#allocation3 + $0x90] sm:$0xf] %vm4664, %v4545
  %4702 = vst.msk [vmem:[#allocation3 + $0x94] sm:$0xf] %vm4664, %v4547
  %4703 = vst.msk [vmem:[#allocation3 + $0x98] sm:$0xf] %vm4664, %v4549
  %4704 = vst.msk [vmem:[#allocation3 + $0x9c] sm:$0xf] %vm4664, %v4551
  %4705 = vst.msk [vmem:[#allocation3 + $0xa0] sm:$0xf] %vm4664, %v4553
  %4706 = vst.msk [vmem:[#allocation3 + $0xa4] sm:$0xf] %vm4664, %v4555
  %4707 = vst.msk [vmem:[#allocation3 + $0xa8] sm:$0xf] %vm4664, %v4557
  %4708 = vst.msk [vmem:[#allocation3 + $0xac] sm:$0xf] %vm4664, %v4559
  %4709 = vst.msk [vmem:[#allocation3 + $0xb0] sm:$0xf] %vm4664, %v4561
  %4710 = vst.msk [vmem:[#allocation3 + $0xb4] sm:$0xf] %vm4664, %v4563
  %4711 = vst.msk [vmem:[#allocation3 + $0xb8] sm:$0xf] %vm4664, %v4565
  %4712 = vst.msk [vmem:[#allocation3 + $0xbc] sm:$0xf] %vm4664, %v4567
  %4713 = vst.msk [vmem:[#allocation3 + $0xc0] sm:$0xf] %vm4664, %v4569
  %4714 = vst.msk [vmem:[#allocation3 + $0xc4] sm:$0xf] %vm4664, %v4571
  %4715 = vst.msk [vmem:[#allocation3 + $0xc8] sm:$0xf] %vm4664, %v4573
  %4716 = vst.msk [vmem:[#allocation3 + $0xcc] sm:$0xf] %vm4664, %v4575
  %4717 = vst.msk [vmem:[#allocation3 + $0xd0] sm:$0xf] %vm4664, %v4577
  %4718 = vst.msk [vmem:[#allocation3 + $0xd4] sm:$0xf] %vm4664, %v4579
  %4719 = vst.msk [vmem:[#allocation3 + $0xd8] sm:$0xf] %vm4664, %v4581
  %4720 = vst.msk [vmem:[#allocation3 + $0xdc] sm:$0xf] %vm4664, %v4583
  %4721 = vst.msk [vmem:[#allocation3 + $0xe0] sm:$0xf] %vm4664, %v4585
  %4722 = vst.msk [vmem:[#allocation3 + $0xe4] sm:$0xf] %vm4664, %v4587
  %4723 = vst.msk [vmem:[#allocation3 + $0xe8] sm:$0xf] %vm4664, %v4589
  %4724 = vst.msk [vmem:[#allocation3 + $0xec] sm:$0xf] %vm4664, %v4591
  %4725 = vst.msk [vmem:[#allocation3 + $0xf0] sm:$0xf] %vm4664, %v4593
  %4726 = vst.msk [vmem:[#allocation3 + $0xf4] sm:$0xf] %vm4664, %v4595
  %4727 = vst.msk [vmem:[#allocation3 + $0xf8] sm:$0xf] %vm4664, %v4597
  %4728 = vst.msk [vmem:[#allocation3 + $0xfc] sm:$0xf] %vm4664, %v4599
  %v4729 = vld [vmem:[#allocation3] sm:$0xf]
  %v4730 = vld [vmem:[#allocation3 + $0x4] sm:$0xf]
  %v4731 = vld [vmem:[#allocation3 + $0x8] sm:$0xf]
  %v4732 = vld [vmem:[#allocation3 + $0xc] sm:$0xf]
  %v4733 = vld [vmem:[#allocation3 + $0x10] sm:$0xf]
  %v4734 = vld [vmem:[#allocation3 + $0x14] sm:$0xf]
  %v4735 = vld [vmem:[#allocation3 + $0x18] sm:$0xf]
  %v4736 = vld [vmem:[#allocation3 + $0x1c] sm:$0xf]
  %v4737 = vld [vmem:[#allocation3 + $0x20] sm:$0xf]
  %v4738 = vld [vmem:[#allocation3 + $0x24] sm:$0xf]
  %v4739 = vld [vmem:[#allocation3 + $0x28] sm:$0xf]
  %v4740 = vld [vmem:[#allocation3 + $0x2c] sm:$0xf]
  %v4741 = vld [vmem:[#allocation3 + $0x30] sm:$0xf]
  %v4742 = vld [vmem:[#allocation3 + $0x34] sm:$0xf]
  %v4743 = vld [vmem:[#allocation3 + $0x38] sm:$0xf]
  %v4744 = vld [vmem:[#allocation3 + $0x3c] sm:$0xf]
  %v4745 = vld [vmem:[#allocation3 + $0x40] sm:$0xf]
  %v4746 = vld [vmem:[#allocation3 + $0x44] sm:$0xf]
  %v4747 = vld [vmem:[#allocation3 + $0x48] sm:$0xf]
  %v4748 = vld [vmem:[#allocation3 + $0x4c] sm:$0xf]
  %v4749 = vld [vmem:[#allocation3 + $0x50] sm:$0xf]
  %v4750 = vld [vmem:[#allocation3 + $0x54] sm:$0xf]
  %v4751 = vld [vmem:[#allocation3 + $0x58] sm:$0xf]
  %v4752 = vld [vmem:[#allocation3 + $0x5c] sm:$0xf]
  %v4753 = vld [vmem:[#allocation3 + $0x60] sm:$0xf]
  %v4754 = vld [vmem:[#allocation3 + $0x64] sm:$0xf]
  %v4755 = vld [vmem:[#allocation3 + $0x68] sm:$0xf]
  %v4756 = vld [vmem:[#allocation3 + $0x6c] sm:$0xf]
  %v4757 = vld [vmem:[#allocation3 + $0x70] sm:$0xf]
  %v4758 = vld [vmem:[#allocation3 + $0x74] sm:$0xf]
  %v4759 = vld [vmem:[#allocation3 + $0x78] sm:$0xf]
  %v4760 = vld [vmem:[#allocation3 + $0x7c] sm:$0xf]
  %v4761 = vld [vmem:[#allocation3 + $0x80] sm:$0xf]
  %v4762 = vld [vmem:[#allocation3 + $0x84] sm:$0xf]
  %v4763 = vld [vmem:[#allocation3 + $0x88] sm:$0xf]
  %v4764 = vld [vmem:[#allocation3 + $0x8c] sm:$0xf]
  %v4765 = vld [vmem:[#allocation3 + $0x90] sm:$0xf]
  %v4766 = vld [vmem:[#allocation3 + $0x94] sm:$0xf]
  %v4767 = vld [vmem:[#allocation3 + $0x98] sm:$0xf]
  %v4768 = vld [vmem:[#allocation3 + $0x9c] sm:$0xf]
  %v4769 = vld [vmem:[#allocation3 + $0xa0] sm:$0xf]
  %v4770 = vld [vmem:[#allocation3 + $0xa4] sm:$0xf]
  %v4771 = vld [vmem:[#allocation3 + $0xa8] sm:$0xf]
  %v4772 = vld [vmem:[#allocation3 + $0xac] sm:$0xf]
  %v4773 = vld [vmem:[#allocation3 + $0xb0] sm:$0xf]
  %v4774 = vld [vmem:[#allocation3 + $0xb4] sm:$0xf]
  %v4775 = vld [vmem:[#allocation3 + $0xb8] sm:$0xf]
  %v4776 = vld [vmem:[#allocation3 + $0xbc] sm:$0xf]
  %v4777 = vld [vmem:[#allocation3 + $0xc0] sm:$0xf]
  %v4778 = vld [vmem:[#allocation3 + $0xc4] sm:$0xf]
  %v4779 = vld [vmem:[#allocation3 + $0xc8] sm:$0xf]
  %v4780 = vld [vmem:[#allocation3 + $0xcc] sm:$0xf]
  %v4781 = vld [vmem:[#allocation3 + $0xd0] sm:$0xf]
  %v4782 = vld [vmem:[#allocation3 + $0xd4] sm:$0xf]
  %v4783 = vld [vmem:[#allocation3 + $0xd8] sm:$0xf]
  %v4784 = vld [vmem:[#allocation3 + $0xdc] sm:$0xf]
  %v4785 = vld [vmem:[#allocation3 + $0xe0] sm:$0xf]
  %v4786 = vld [vmem:[#allocation3 + $0xe4] sm:$0xf]
  %v4787 = vld [vmem:[#allocation3 + $0xe8] sm:$0xf]
  %v4788 = vld [vmem:[#allocation3 + $0xec] sm:$0xf]
  %v4789 = vld [vmem:[#allocation3 + $0xf0] sm:$0xf]
  %v4790 = vld [vmem:[#allocation3 + $0xf4] sm:$0xf]
  %v4791 = vld [vmem:[#allocation3 + $0xf8] sm:$0xf]
  %v4792 = vld [vmem:[#allocation3 + $0xfc] sm:$0xf]
  %v4793 = vld [vmem:[%s1] sm:$0xf]
  %v4794 = vld [vmem:[%s1 + $0x4] sm:$0xf]
  %v4795 = vld [vmem:[%s1 + $0x8] sm:$0xf]
  %v4796 = vld [vmem:[%s1 + $0xc] sm:$0xf]
  %v4797 = vld [vmem:[%s1 + $0x10] sm:$0x3]
  %v4862 = vunpack.c.l.b16 %v4729
  %v4863 = vunpack.c.l.b16 %v4730
  %v4864 = vunpack.c.l.b16 %v4731
  %v4865 = vunpack.c.l.b16 %v4732
  %v4866 = vunpack.c.l.b16 %v4733
  %v4867 = vunpack.c.l.b16 %v4734
  %v4868 = vunpack.c.l.b16 %v4735
  %v4869 = vunpack.c.l.b16 %v4736
  %v4870 = vunpack.c.l.b16 %v4737
  %v4871 = vunpack.c.l.b16 %v4738
  %v4872 = vunpack.c.l.b16 %v4739
  %v4873 = vunpack.c.l.b16 %v4740
  %v4874 = vunpack.c.l.b16 %v4741
  %v4875 = vunpack.c.l.b16 %v4742
  %v4876 = vunpack.c.l.b16 %v4743
  %v4877 = vunpack.c.l.b16 %v4744
  %v4878 = vunpack.c.l.b16 %v4745
  %v4879 = vunpack.c.l.b16 %v4746
  %v4880 = vunpack.c.l.b16 %v4747
  %v4881 = vunpack.c.l.b16 %v4748
  %v4882 = vunpack.c.l.b16 %v4749
  %v4883 = vunpack.c.l.b16 %v4750
  %v4884 = vunpack.c.l.b16 %v4751
  %v4885 = vunpack.c.l.b16 %v4752
  %v4886 = vunpack.c.l.b16 %v4753
  %v4887 = vunpack.c.l.b16 %v4754
  %v4888 = vunpack.c.l.b16 %v4755
  %v4889 = vunpack.c.l.b16 %v4756
  %v4890 = vunpack.c.l.b16 %v4757
  %v4891 = vunpack.c.l.b16 %v4758
  %v4892 = vunpack.c.l.b16 %v4759
  %v4893 = vunpack.c.l.b16 %v4760
  %v4894 = vunpack.c.l.b16 %v4761
  %v4895 = vunpack.c.l.b16 %v4762
  %v4896 = vunpack.c.l.b16 %v4763
  %v4897 = vunpack.c.l.b16 %v4764
  %v4898 = vunpack.c.l.b16 %v4765
  %v4899 = vunpack.c.l.b16 %v4766
  %v4900 = vunpack.c.l.b16 %v4767
  %v4901 = vunpack.c.l.b16 %v4768
  %v4902 = vunpack.c.l.b16 %v4769
  %v4903 = vunpack.c.l.b16 %v4770
  %v4904 = vunpack.c.l.b16 %v4771
  %v4905 = vunpack.c.l.b16 %v4772
  %v4906 = vunpack.c.l.b16 %v4773
  %v4907 = vunpack.c.l.b16 %v4774
  %v4908 = vunpack.c.l.b16 %v4775
  %v4909 = vunpack.c.l.b16 %v4776
  %v4910 = vunpack.c.l.b16 %v4777
  %v4911 = vunpack.c.l.b16 %v4778
  %v4912 = vunpack.c.l.b16 %v4779
  %v4913 = vunpack.c.l.b16 %v4780
  %v4914 = vunpack.c.l.b16 %v4781
  %v4915 = vunpack.c.l.b16 %v4782
  %v4916 = vunpack.c.l.b16 %v4783
  %v4917 = vunpack.c.l.b16 %v4784
  %v4918 = vunpack.c.l.b16 %v4785
  %v4919 = vunpack.c.l.b16 %v4786
  %v4920 = vunpack.c.l.b16 %v4787
  %v4921 = vunpack.c.l.b16 %v4788
  %v4922 = vunpack.c.l.b16 %v4789
  %v4923 = vunpack.c.l.b16 %v4790
  %v4924 = vunpack.c.l.b16 %v4791
  %v4925 = vunpack.c.l.b16 %v4792
  %v4926 = vpack.c.b16 %v4863, %v4862
  %v4927 = vpack.c.b16 %v4865, %v4864
  %v4928 = vpack.c.b16 %v4867, %v4866
  %v4929 = vpack.c.b16 %v4869, %v4868
  %v4930 = vpack.c.b16 %v4871, %v4870
  %v4931 = vpack.c.b16 %v4873, %v4872
  %v4932 = vpack.c.b16 %v4875, %v4874
  %v4933 = vpack.c.b16 %v4877, %v4876
  %v4934 = vpack.c.b16 %v4879, %v4878
  %v4935 = vpack.c.b16 %v4881, %v4880
  %v4936 = vpack.c.b16 %v4883, %v4882
  %v4937 = vpack.c.b16 %v4885, %v4884
  %v4938 = vpack.c.b16 %v4887, %v4886
  %v4939 = vpack.c.b16 %v4889, %v4888
  %v4940 = vpack.c.b16 %v4891, %v4890
  %v4941 = vpack.c.b16 %v4893, %v4892
  %v4942 = vpack.c.b16 %v4895, %v4894
  %v4943 = vpack.c.b16 %v4897, %v4896
  %v4944 = vpack.c.b16 %v4899, %v4898
  %v4945 = vpack.c.b16 %v4901, %v4900
  %v4946 = vpack.c.b16 %v4903, %v4902
  %v4947 = vpack.c.b16 %v4905, %v4904
  %v4948 = vpack.c.b16 %v4907, %v4906
  %v4949 = vpack.c.b16 %v4909, %v4908
  %v4950 = vpack.c.b16 %v4911, %v4910
  %v4951 = vpack.c.b16 %v4913, %v4912
  %v4952 = vpack.c.b16 %v4915, %v4914
  %v4953 = vpack.c.b16 %v4917, %v4916
  %v4954 = vpack.c.b16 %v4919, %v4918
  %v4955 = vpack.c.b16 %v4921, %v4920
  %v4956 = vpack.c.b16 %v4923, %v4922
  %v4957 = vpack.c.b16 %v4925, %v4924
  %v4963 = vunpack.c.l.b16 %v4793
  %v4964 = vunpack.c.l.b16 %v4794
  %v4965 = vunpack.c.l.b16 %v4795
  %v4966 = vunpack.c.l.b16 %v4796
  %v4967 = vunpack.c.l.b16 %v4797
  %v4968 = vpack.c.b16 %v4964, %v4963
  %v4969 = vpack.c.b16 %v4966, %v4965
  %v4970 = vpack.c.b16 %v4967, %v4967
  %vm4973 = vcmask 293888
  %v4975 = vsel %vm4973, %v4926, 0
  %v4978 = vsel %vm4973, %v4927, 0
  %v4981 = vsel %vm4973, %v4928, 0
  %v4984 = vsel %vm4973, %v4929, 0
  %v4987 = vsel %vm4973, %v4930, 0
  %v4990 = vsel %vm4973, %v4931, 0
  %v4993 = vsel %vm4973, %v4932, 0
  %v4996 = vsel %vm4973, %v4933, 0
  %v4999 = vsel %vm4973, %v4934, 0
  %v5002 = vsel %vm4973, %v4935, 0
  %v5005 = vsel %vm4973, %v4936, 0
  %v5008 = vsel %vm4973, %v4937, 0
  %v5011 = vsel %vm4973, %v4938, 0
  %v5014 = vsel %vm4973, %v4939, 0
  %v5017 = vsel %vm4973, %v4940, 0
  %v5020 = vsel %vm4973, %v4941, 0
  %v5023 = vsel %vm4973, %v4942, 0
  %v5026 = vsel %vm4973, %v4943, 0
  %v5029 = vsel %vm4973, %v4944, 0
  %v5032 = vsel %vm4973, %v4945, 0
  %v5035 = vsel %vm4973, %v4946, 0
  %v5038 = vsel %vm4973, %v4947, 0
  %v5041 = vsel %vm4973, %v4948, 0
  %v5044 = vsel %vm4973, %v4949, 0
  %v5047 = vsel %vm4973, %v4950, 0
  %v5050 = vsel %vm4973, %v4951, 0
  %v5053 = vsel %vm4973, %v4952, 0
  %v5056 = vsel %vm4973, %v4953, 0
  %v5059 = vsel %vm4973, %v4954, 0
  %v5062 = vsel %vm4973, %v4955, 0
  %v5065 = vsel %vm4973, %v4956, 0
  %v5068 = vsel %vm4973, %v4957, 0
  %vm5070 = vcmask 1041408
  %v5072 = vsel %vm5070, %v4970, 0
  %5074 = vmatprep.subr.bf16.mxu0 0
  %5075 = vmatpush1.bf16.msra.mxu0 0
  %5076 = vmatprep.subr.bf16.mxu0 0
  %5077 = vmatpush1.bf16.msra.mxu0 0
  %5078 = vmatprep.subr.bf16.mxu0 0
  %5079 = vmatpush1.bf16.msra.mxu0 0
  %5080 = vmatprep.subr.bf16.mxu0 0
  %5081 = vmatpush1.bf16.msra.mxu0 0
  %5082 = vmatprep.subr.bf16.mxu0 0
  %5083 = vmatpush1.bf16.msra.mxu0 0
  %5084 = vmatprep.subr.bf16.mxu0 0
  %5085 = vmatpush1.bf16.msra.mxu0 %v5072
  %5086 = vmatprep.subr.bf16.mxu0 0
  %5087 = vmatpush1.bf16.msra.mxu0 %v4969
  %5088 = vmatprep.subr.bf16.mxu0 0
  %5089 = vmatpush1.bf16.msra.mxu0 %v4968
  %5090 = vmatprep.subr.bf16.mxu0 0
  %5091 = vmatpush2.bf16.msra.mxu0 0
  %5092 = vmatprep.subr.bf16.mxu0 0
  %5093 = vmatpush2.bf16.msra.mxu0 0
  %5094 = vmatprep.subr.bf16.mxu0 0
  %5095 = vmatpush2.bf16.msra.mxu0 0
  %5096 = vmatprep.subr.bf16.mxu0 0
  %5097 = vmatpush2.bf16.msra.mxu0 0
  %5098 = vmatprep.subr.bf16.mxu0 0
  %5099 = vmatpush2.bf16.msra.mxu0 0
  %5100 = vmatprep.subr.bf16.mxu0 0
  %5101 = vmatpush2.bf16.msra.mxu0 0
  %5102 = vmatprep.subr.bf16.mxu0 0
  %5103 = vmatpush2.bf16.msra.mxu0 0
  %5104 = vmatprep.subr.bf16.mxu0 0
  %5105 = vmatpush2.bf16.msra.mxu0 0
  %5106 = vmatprep.mubr.bf16.mxu0 0
  %5107 = vmatmul.mubr.bf16.gmra.mxu0 %v4975
  %v5108 = vpop.f32.mrf.mxu0
  %v5109 = vadd.f32 0.0, %v5108
  %v5110 = vpop.f32.mrf.mxu0
  %v5111 = vpop.f32.mrf.mxu0
  %v5112 = vadd.f32 0.0, %v5111
  %v5113 = vpop.f32.mrf.mxu0
  %5114 = vmatprep.mubr.bf16.mxu0 0
  %5115 = vmatmul.mubr.bf16.gmra.mxu0 %v4978
  %v5116 = vpop.f32.mrf.mxu0
  %v5117 = vadd.f32 0.0, %v5116
  %v5118 = vpop.f32.mrf.mxu0
  %v5119 = vpop.f32.mrf.mxu0
  %v5120 = vadd.f32 0.0, %v5119
  %v5121 = vpop.f32.mrf.mxu0
  %5122 = vmatprep.mubr.bf16.mxu0 0
  %5123 = vmatmul.mubr.bf16.gmra.mxu0 %v4981
  %v5124 = vpop.f32.mrf.mxu0
  %v5125 = vadd.f32 0.0, %v5124
  %v5126 = vpop.f32.mrf.mxu0
  %v5127 = vpop.f32.mrf.mxu0
  %v5128 = vadd.f32 0.0, %v5127
  %v5129 = vpop.f32.mrf.mxu0
  %5130 = vmatprep.mubr.bf16.mxu0 0
  %5131 = vmatmul.mubr.bf16.gmra.mxu0 %v4984
  %v5132 = vpop.f32.mrf.mxu0
  %v5133 = vadd.f32 0.0, %v5132
  %v5134 = vpop.f32.mrf.mxu0
  %v5135 = vpop.f32.mrf.mxu0
  %v5136 = vadd.f32 0.0, %v5135
  %v5137 = vpop.f32.mrf.mxu0
  %5138 = vmatprep.mubr.bf16.mxu0 0
  %5139 = vmatmul.mubr.bf16.gmra.mxu0 %v4987
  %v5140 = vpop.f32.mrf.mxu0
  %v5141 = vadd.f32 0.0, %v5140
  %v5142 = vpop.f32.mrf.mxu0
  %v5143 = vpop.f32.mrf.mxu0
  %v5144 = vadd.f32 0.0, %v5143
  %v5145 = vpop.f32.mrf.mxu0
  %5146 = vmatprep.mubr.bf16.mxu0 0
  %5147 = vmatmul.mubr.bf16.gmra.mxu0 %v4990
  %v5148 = vpop.f32.mrf.mxu0
  %v5149 = vadd.f32 0.0, %v5148
  %v5150 = vpop.f32.mrf.mxu0
  %v5151 = vpop.f32.mrf.mxu0
  %v5152 = vadd.f32 0.0, %v5151
  %v5153 = vpop.f32.mrf.mxu0
  %5154 = vmatprep.mubr.bf16.mxu0 0
  %5155 = vmatmul.mubr.bf16.gmra.mxu0 %v4993
  %v5156 = vpop.f32.mrf.mxu0
  %v5157 = vadd.f32 0.0, %v5156
  %v5158 = vpop.f32.mrf.mxu0
  %v5159 = vpop.f32.mrf.mxu0
  %v5160 = vadd.f32 0.0, %v5159
  %v5161 = vpop.f32.mrf.mxu0
  %5162 = vmatprep.mubr.bf16.mxu0 0
  %5163 = vmatmul.mubr.bf16.gmra.mxu0 %v4996
  %v5164 = vpop.f32.mrf.mxu0
  %v5165 = vadd.f32 0.0, %v5164
  %v5166 = vpop.f32.mrf.mxu0
  %v5167 = vpop.f32.mrf.mxu0
  %v5168 = vadd.f32 0.0, %v5167
  %v5169 = vpop.f32.mrf.mxu0
  %5170 = vmatprep.mubr.bf16.mxu0 0
  %5171 = vmatmul.mubr.bf16.gmra.mxu0 %v4999
  %v5172 = vpop.f32.mrf.mxu0
  %v5173 = vadd.f32 0.0, %v5172
  %v5174 = vpop.f32.mrf.mxu0
  %v5175 = vpop.f32.mrf.mxu0
  %v5176 = vadd.f32 0.0, %v5175
  %v5177 = vpop.f32.mrf.mxu0
  %5178 = vmatprep.mubr.bf16.mxu0 0
  %5179 = vmatmul.mubr.bf16.gmra.mxu0 %v5002
  %v5180 = vpop.f32.mrf.mxu0
  %v5181 = vadd.f32 0.0, %v5180
  %v5182 = vpop.f32.mrf.mxu0
  %v5183 = vpop.f32.mrf.mxu0
  %v5184 = vadd.f32 0.0, %v5183
  %v5185 = vpop.f32.mrf.mxu0
  %5186 = vmatprep.mubr.bf16.mxu0 0
  %5187 = vmatmul.mubr.bf16.gmra.mxu0 %v5005
  %v5188 = vpop.f32.mrf.mxu0
  %v5189 = vadd.f32 0.0, %v5188
  %v5190 = vpop.f32.mrf.mxu0
  %v5191 = vpop.f32.mrf.mxu0
  %v5192 = vadd.f32 0.0, %v5191
  %v5193 = vpop.f32.mrf.mxu0
  %5194 = vmatprep.mubr.bf16.mxu0 0
  %5195 = vmatmul.mubr.bf16.gmra.mxu0 %v5008
  %v5196 = vpop.f32.mrf.mxu0
  %v5197 = vadd.f32 0.0, %v5196
  %v5198 = vpop.f32.mrf.mxu0
  %v5199 = vpop.f32.mrf.mxu0
  %v5200 = vadd.f32 0.0, %v5199
  %v5201 = vpop.f32.mrf.mxu0
  %5202 = vmatprep.mubr.bf16.mxu0 0
  %5203 = vmatmul.mubr.bf16.gmra.mxu0 %v5011
  %v5204 = vpop.f32.mrf.mxu0
  %v5205 = vadd.f32 0.0, %v5204
  %v5206 = vpop.f32.mrf.mxu0
  %v5207 = vpop.f32.mrf.mxu0
  %v5208 = vadd.f32 0.0, %v5207
  %v5209 = vpop.f32.mrf.mxu0
  %5210 = vmatprep.mubr.bf16.mxu0 0
  %5211 = vmatmul.mubr.bf16.gmra.mxu0 %v5014
  %v5212 = vpop.f32.mrf.mxu0
  %v5213 = vadd.f32 0.0, %v5212
  %v5214 = vpop.f32.mrf.mxu0
  %v5215 = vpop.f32.mrf.mxu0
  %v5216 = vadd.f32 0.0, %v5215
  %v5217 = vpop.f32.mrf.mxu0
  %5218 = vmatprep.mubr.bf16.mxu0 0
  %5219 = vmatmul.mubr.bf16.gmra.mxu0 %v5017
  %v5220 = vpop.f32.mrf.mxu0
  %v5221 = vadd.f32 0.0, %v5220
  %v5222 = vpop.f32.mrf.mxu0
  %v5223 = vpop.f32.mrf.mxu0
  %v5224 = vadd.f32 0.0, %v5223
  %v5225 = vpop.f32.mrf.mxu0
  %5226 = vmatprep.mubr.bf16.mxu0 0
  %5227 = vmatmul.mubr.bf16.gmra.mxu0 %v5020
  %v5228 = vpop.f32.mrf.mxu0
  %v5229 = vadd.f32 0.0, %v5228
  %v5230 = vpop.f32.mrf.mxu0
  %v5231 = vpop.f32.mrf.mxu0
  %v5232 = vadd.f32 0.0, %v5231
  %v5233 = vpop.f32.mrf.mxu0
  %5234 = vmatprep.mubr.bf16.mxu0 0
  %5235 = vmatmul.mubr.bf16.gmra.mxu0 %v5023
  %v5236 = vpop.f32.mrf.mxu0
  %v5237 = vadd.f32 0.0, %v5236
  %v5238 = vpop.f32.mrf.mxu0
  %v5239 = vpop.f32.mrf.mxu0
  %v5240 = vadd.f32 0.0, %v5239
  %v5241 = vpop.f32.mrf.mxu0
  %5242 = vmatprep.mubr.bf16.mxu0 0
  %5243 = vmatmul.mubr.bf16.gmra.mxu0 %v5026
  %v5244 = vpop.f32.mrf.mxu0
  %v5245 = vadd.f32 0.0, %v5244
  %v5246 = vpop.f32.mrf.mxu0
  %v5247 = vpop.f32.mrf.mxu0
  %v5248 = vadd.f32 0.0, %v5247
  %v5249 = vpop.f32.mrf.mxu0
  %5250 = vmatprep.mubr.bf16.mxu0 0
  %5251 = vmatmul.mubr.bf16.gmra.mxu0 %v5029
  %v5252 = vpop.f32.mrf.mxu0
  %v5253 = vadd.f32 0.0, %v5252
  %v5254 = vpop.f32.mrf.mxu0
  %v5255 = vpop.f32.mrf.mxu0
  %v5256 = vadd.f32 0.0, %v5255
  %v5257 = vpop.f32.mrf.mxu0
  %5258 = vmatprep.mubr.bf16.mxu0 0
  %5259 = vmatmul.mubr.bf16.gmra.mxu0 %v5032
  %v5260 = vpop.f32.mrf.mxu0
  %v5261 = vadd.f32 0.0, %v5260
  %v5262 = vpop.f32.mrf.mxu0
  %v5263 = vpop.f32.mrf.mxu0
  %v5264 = vadd.f32 0.0, %v5263
  %v5265 = vpop.f32.mrf.mxu0
  %5266 = vmatprep.mubr.bf16.mxu0 0
  %5267 = vmatmul.mubr.bf16.gmra.mxu0 %v5035
  %v5268 = vpop.f32.mrf.mxu0
  %v5269 = vadd.f32 0.0, %v5268
  %v5270 = vpop.f32.mrf.mxu0
  %v5271 = vpop.f32.mrf.mxu0
  %v5272 = vadd.f32 0.0, %v5271
  %v5273 = vpop.f32.mrf.mxu0
  %5274 = vmatprep.mubr.bf16.mxu0 0
  %5275 = vmatmul.mubr.bf16.gmra.mxu0 %v5038
  %v5276 = vpop.f32.mrf.mxu0
  %v5277 = vadd.f32 0.0, %v5276
  %v5278 = vpop.f32.mrf.mxu0
  %v5279 = vpop.f32.mrf.mxu0
  %v5280 = vadd.f32 0.0, %v5279
  %v5281 = vpop.f32.mrf.mxu0
  %5282 = vmatprep.mubr.bf16.mxu0 0
  %5283 = vmatmul.mubr.bf16.gmra.mxu0 %v5041
  %v5284 = vpop.f32.mrf.mxu0
  %v5285 = vadd.f32 0.0, %v5284
  %v5286 = vpop.f32.mrf.mxu0
  %v5287 = vpop.f32.mrf.mxu0
  %v5288 = vadd.f32 0.0, %v5287
  %v5289 = vpop.f32.mrf.mxu0
  %5290 = vmatprep.mubr.bf16.mxu0 0
  %5291 = vmatmul.mubr.bf16.gmra.mxu0 %v5044
  %v5292 = vpop.f32.mrf.mxu0
  %v5293 = vadd.f32 0.0, %v5292
  %v5294 = vpop.f32.mrf.mxu0
  %v5295 = vpop.f32.mrf.mxu0
  %v5296 = vadd.f32 0.0, %v5295
  %v5297 = vpop.f32.mrf.mxu0
  %5298 = vmatprep.mubr.bf16.mxu0 0
  %5299 = vmatmul.mubr.bf16.gmra.mxu0 %v5047
  %v5300 = vpop.f32.mrf.mxu0
  %v5301 = vadd.f32 0.0, %v5300
  %v5302 = vpop.f32.mrf.mxu0
  %v5303 = vpop.f32.mrf.mxu0
  %v5304 = vadd.f32 0.0, %v5303
  %v5305 = vpop.f32.mrf.mxu0
  %5306 = vmatprep.mubr.bf16.mxu0 0
  %5307 = vmatmul.mubr.bf16.gmra.mxu0 %v5050
  %v5308 = vpop.f32.mrf.mxu0
  %v5309 = vadd.f32 0.0, %v5308
  %v5310 = vpop.f32.mrf.mxu0
  %v5311 = vpop.f32.mrf.mxu0
  %v5312 = vadd.f32 0.0, %v5311
  %v5313 = vpop.f32.mrf.mxu0
  %5314 = vmatprep.mubr.bf16.mxu0 0
  %5315 = vmatmul.mubr.bf16.gmra.mxu0 %v5053
  %v5316 = vpop.f32.mrf.mxu0
  %v5317 = vadd.f32 0.0, %v5316
  %v5318 = vpop.f32.mrf.mxu0
  %v5319 = vpop.f32.mrf.mxu0
  %v5320 = vadd.f32 0.0, %v5319
  %v5321 = vpop.f32.mrf.mxu0
  %5322 = vmatprep.mubr.bf16.mxu0 0
  %5323 = vmatmul.mubr.bf16.gmra.mxu0 %v5056
  %v5324 = vpop.f32.mrf.mxu0
  %v5325 = vadd.f32 0.0, %v5324
  %v5326 = vpop.f32.mrf.mxu0
  %v5327 = vpop.f32.mrf.mxu0
  %v5328 = vadd.f32 0.0, %v5327
  %v5329 = vpop.f32.mrf.mxu0
  %5330 = vmatprep.mubr.bf16.mxu0 0
  %5331 = vmatmul.mubr.bf16.gmra.mxu0 %v5059
  %v5332 = vpop.f32.mrf.mxu0
  %v5333 = vadd.f32 0.0, %v5332
  %v5334 = vpop.f32.mrf.mxu0
  %v5335 = vpop.f32.mrf.mxu0
  %v5336 = vadd.f32 0.0, %v5335
  %v5337 = vpop.f32.mrf.mxu0
  %5338 = vmatprep.mubr.bf16.mxu0 0
  %5339 = vmatmul.mubr.bf16.gmra.mxu0 %v5062
  %v5340 = vpop.f32.mrf.mxu0
  %v5341 = vadd.f32 0.0, %v5340
  %v5342 = vpop.f32.mrf.mxu0
  %v5343 = vpop.f32.mrf.mxu0
  %v5344 = vadd.f32 0.0, %v5343
  %v5345 = vpop.f32.mrf.mxu0
  %5346 = vmatprep.mubr.bf16.mxu0 0
  %5347 = vmatmul.mubr.bf16.gmra.mxu0 %v5065
  %v5348 = vpop.f32.mrf.mxu0
  %v5349 = vadd.f32 0.0, %v5348
  %v5350 = vpop.f32.mrf.mxu0
  %v5351 = vpop.f32.mrf.mxu0
  %v5352 = vadd.f32 0.0, %v5351
  %v5353 = vpop.f32.mrf.mxu0
  %5354 = vmatprep.mubr.bf16.mxu0 0
  %5355 = vmatmul.mubr.bf16.gmra.mxu0 %v5068
  %v5356 = vpop.f32.mrf.mxu0
  %v5357 = vadd.f32 0.0, %v5356
  %v5358 = vpop.f32.mrf.mxu0
  %v5359 = vpop.f32.mrf.mxu0
  %v5360 = vadd.f32 0.0, %v5359
  %v5361 = vpop.f32.mrf.mxu0
  %5362 = vdwg.mxu0
  %v5363 = vsel %vm22, %v5109, 0.0
  %v5364 = vsel %vm22, %v5112, 0.0
  %v5365 = vadd.f32 %v5363, %v5364
  %v5366 = vsel %vm22, %v5117, 0.0
  %v5367 = vadd.f32 %v5365, %v5366
  %v5368 = vsel %vm22, %v5120, 0.0
  %v5369 = vadd.f32 %v5367, %v5368
  %v5370 = vsel %vm22, %v5125, 0.0
  %v5371 = vadd.f32 %v5369, %v5370
  %v5372 = vsel %vm22, %v5128, 0.0
  %v5373 = vadd.f32 %v5371, %v5372
  %v5374 = vsel %vm22, %v5133, 0.0
  %v5375 = vadd.f32 %v5373, %v5374
  %v5376 = vsel %vm22, %v5136, 0.0
  %v5377 = vadd.f32 %v5375, %v5376
  %v5378 = vsel %vm22, %v5141, 0.0
  %v5379 = vadd.f32 %v5377, %v5378
  %v5380 = vsel %vm22, %v5144, 0.0
  %v5381 = vadd.f32 %v5379, %v5380
  %v5382 = vsel %vm22, %v5149, 0.0
  %v5383 = vadd.f32 %v5381, %v5382
  %v5384 = vsel %vm22, %v5152, 0.0
  %v5385 = vadd.f32 %v5383, %v5384
  %v5386 = vsel %vm22, %v5157, 0.0
  %v5387 = vadd.f32 %v5385, %v5386
  %v5388 = vsel %vm22, %v5160, 0.0
  %v5389 = vadd.f32 %v5387, %v5388
  %v5390 = vsel %vm22, %v5165, 0.0
  %v5391 = vadd.f32 %v5389, %v5390
  %v5392 = vsel %vm22, %v5168, 0.0
  %v5393 = vadd.f32 %v5391, %v5392
  %v5394 = vsel %vm22, %v5173, 0.0
  %v5395 = vadd.f32 %v5393, %v5394
  %v5396 = vsel %vm22, %v5176, 0.0
  %v5397 = vadd.f32 %v5395, %v5396
  %v5398 = vsel %vm22, %v5181, 0.0
  %v5399 = vadd.f32 %v5397, %v5398
  %v5400 = vsel %vm22, %v5184, 0.0
  %v5401 = vadd.f32 %v5399, %v5400
  %v5402 = vsel %vm22, %v5189, 0.0
  %v5403 = vadd.f32 %v5401, %v5402
  %v5404 = vsel %vm22, %v5192, 0.0
  %v5405 = vadd.f32 %v5403, %v5404
  %v5406 = vsel %vm22, %v5197, 0.0
  %v5407 = vadd.f32 %v5405, %v5406
  %v5408 = vsel %vm22, %v5200, 0.0
  %v5409 = vadd.f32 %v5407, %v5408
  %v5410 = vsel %vm22, %v5205, 0.0
  %v5411 = vadd.f32 %v5409, %v5410
  %v5412 = vsel %vm22, %v5208, 0.0
  %v5413 = vadd.f32 %v5411, %v5412
  %v5414 = vsel %vm22, %v5213, 0.0
  %v5415 = vadd.f32 %v5413, %v5414
  %v5416 = vsel %vm22, %v5216, 0.0
  %v5417 = vadd.f32 %v5415, %v5416
  %v5418 = vsel %vm22, %v5221, 0.0
  %v5419 = vadd.f32 %v5417, %v5418
  %v5420 = vsel %vm22, %v5224, 0.0
  %v5421 = vadd.f32 %v5419, %v5420
  %v5422 = vsel %vm22, %v5229, 0.0
  %v5423 = vadd.f32 %v5421, %v5422
  %v5424 = vsel %vm22, %v5232, 0.0
  %v5425 = vadd.f32 %v5423, %v5424
  %v5426 = vsel %vm22, %v5237, 0.0
  %v5427 = vadd.f32 %v5425, %v5426
  %v5428 = vsel %vm22, %v5240, 0.0
  %v5429 = vadd.f32 %v5427, %v5428
  %v5430 = vsel %vm22, %v5245, 0.0
  %v5431 = vadd.f32 %v5429, %v5430
  %v5432 = vsel %vm22, %v5248, 0.0
  %v5433 = vadd.f32 %v5431, %v5432
  %v5434 = vsel %vm22, %v5253, 0.0
  %v5435 = vadd.f32 %v5433, %v5434
  %v5436 = vsel %vm22, %v5256, 0.0
  %v5437 = vadd.f32 %v5435, %v5436
  %v5438 = vsel %vm22, %v5261, 0.0
  %v5439 = vadd.f32 %v5437, %v5438
  %v5440 = vsel %vm22, %v5264, 0.0
  %v5441 = vadd.f32 %v5439, %v5440
  %v5442 = vsel %vm22, %v5269, 0.0
  %v5443 = vadd.f32 %v5441, %v5442
  %v5444 = vsel %vm22, %v5272, 0.0
  %v5445 = vadd.f32 %v5443, %v5444
  %v5446 = vsel %vm22, %v5277, 0.0
  %v5447 = vadd.f32 %v5445, %v5446
  %v5448 = vsel %vm22, %v5280, 0.0
  %v5449 = vadd.f32 %v5447, %v5448
  %v5450 = vsel %vm22, %v5285, 0.0
  %v5451 = vadd.f32 %v5449, %v5450
  %v5452 = vsel %vm22, %v5288, 0.0
  %v5453 = vadd.f32 %v5451, %v5452
  %v5454 = vsel %vm22, %v5293, 0.0
  %v5455 = vadd.f32 %v5453, %v5454
  %v5456 = vsel %vm22, %v5296, 0.0
  %v5457 = vadd.f32 %v5455, %v5456
  %v5458 = vsel %vm22, %v5301, 0.0
  %v5459 = vadd.f32 %v5457, %v5458
  %v5460 = vsel %vm22, %v5304, 0.0
  %v5461 = vadd.f32 %v5459, %v5460
  %v5462 = vsel %vm22, %v5309, 0.0
  %v5463 = vadd.f32 %v5461, %v5462
  %v5464 = vsel %vm22, %v5312, 0.0
  %v5465 = vadd.f32 %v5463, %v5464
  %v5466 = vsel %vm22, %v5317, 0.0
  %v5467 = vadd.f32 %v5465, %v5466
  %v5468 = vsel %vm22, %v5320, 0.0
  %v5469 = vadd.f32 %v5467, %v5468
  %v5470 = vsel %vm22, %v5325, 0.0
  %v5471 = vadd.f32 %v5469, %v5470
  %v5472 = vsel %vm22, %v5328, 0.0
  %v5473 = vadd.f32 %v5471, %v5472
  %v5474 = vsel %vm22, %v5333, 0.0
  %v5475 = vadd.f32 %v5473, %v5474
  %v5476 = vsel %vm22, %v5336, 0.0
  %v5477 = vadd.f32 %v5475, %v5476
  %v5478 = vsel %vm22, %v5341, 0.0
  %v5479 = vadd.f32 %v5477, %v5478
  %v5480 = vsel %vm22, %v5344, 0.0
  %v5481 = vadd.f32 %v5479, %v5480
  %v5482 = vsel %vm22, %v5349, 0.0
  %v5483 = vadd.f32 %v5481, %v5482
  %v5484 = vsel %vm22, %v5352, 0.0
  %v5485 = vadd.f32 %v5483, %v5484
  %v5486 = vsel %vm22, %v5357, 0.0
  %v5487 = vadd.f32 %v5485, %v5486
  %v5488 = vsel %vm22, %v5360, 0.0
  %v5489 = vadd.f32 %v5487, %v5488
  %v5490 = vrot.slane %v5489, 4
  %v5491 = vadd.f32 %v5489, %v5490
  %v5492 = vrot.slane %v5491, 2
  %v5493 = vadd.f32 %v5491, %v5492
  %v5494 = vrot.slane %v5493, 1
  %v5495 = vadd.f32 %v5493, %v5494
  %v5496 = vmul.f32 %v5495, 0.001953125
  %v5497 = vsub.f32 %v5109, %v5496
  %v5498 = vsub.f32 %v5112, %v5496
  %v5499 = vsub.f32 %v5117, %v5496
  %v5500 = vsub.f32 %v5120, %v5496
  %v5501 = vsub.f32 %v5125, %v5496
  %v5502 = vsub.f32 %v5128, %v5496
  %v5503 = vsub.f32 %v5133, %v5496
  %v5504 = vsub.f32 %v5136, %v5496
  %v5505 = vsub.f32 %v5141, %v5496
  %v5506 = vsub.f32 %v5144, %v5496
  %v5507 = vsub.f32 %v5149, %v5496
  %v5508 = vsub.f32 %v5152, %v5496
  %v5509 = vsub.f32 %v5157, %v5496
  %v5510 = vsub.f32 %v5160, %v5496
  %v5511 = vsub.f32 %v5165, %v5496
  %v5512 = vsub.f32 %v5168, %v5496
  %v5513 = vsub.f32 %v5173, %v5496
  %v5514 = vsub.f32 %v5176, %v5496
  %v5515 = vsub.f32 %v5181, %v5496
  %v5516 = vsub.f32 %v5184, %v5496
  %v5517 = vsub.f32 %v5189, %v5496
  %v5518 = vsub.f32 %v5192, %v5496
  %v5519 = vsub.f32 %v5197, %v5496
  %v5520 = vsub.f32 %v5200, %v5496
  %v5521 = vsub.f32 %v5205, %v5496
  %v5522 = vsub.f32 %v5208, %v5496
  %v5523 = vsub.f32 %v5213, %v5496
  %v5524 = vsub.f32 %v5216, %v5496
  %v5525 = vsub.f32 %v5221, %v5496
  %v5526 = vsub.f32 %v5224, %v5496
  %v5527 = vsub.f32 %v5229, %v5496
  %v5528 = vsub.f32 %v5232, %v5496
  %v5529 = vsub.f32 %v5237, %v5496
  %v5530 = vsub.f32 %v5240, %v5496
  %v5531 = vsub.f32 %v5245, %v5496
  %v5532 = vsub.f32 %v5248, %v5496
  %v5533 = vsub.f32 %v5253, %v5496
  %v5534 = vsub.f32 %v5256, %v5496
  %v5535 = vsub.f32 %v5261, %v5496
  %v5536 = vsub.f32 %v5264, %v5496
  %v5537 = vsub.f32 %v5269, %v5496
  %v5538 = vsub.f32 %v5272, %v5496
  %v5539 = vsub.f32 %v5277, %v5496
  %v5540 = vsub.f32 %v5280, %v5496
  %v5541 = vsub.f32 %v5285, %v5496
  %v5542 = vsub.f32 %v5288, %v5496
  %v5543 = vsub.f32 %v5293, %v5496
  %v5544 = vsub.f32 %v5296, %v5496
  %v5545 = vsub.f32 %v5301, %v5496
  %v5546 = vsub.f32 %v5304, %v5496
  %v5547 = vsub.f32 %v5309, %v5496
  %v5548 = vsub.f32 %v5312, %v5496
  %v5549 = vsub.f32 %v5317, %v5496
  %v5550 = vsub.f32 %v5320, %v5496
  %v5551 = vsub.f32 %v5325, %v5496
  %v5552 = vsub.f32 %v5328, %v5496
  %v5553 = vsub.f32 %v5333, %v5496
  %v5554 = vsub.f32 %v5336, %v5496
  %v5555 = vsub.f32 %v5341, %v5496
  %v5556 = vsub.f32 %v5344, %v5496
  %v5557 = vsub.f32 %v5349, %v5496
  %v5558 = vsub.f32 %v5352, %v5496
  %v5559 = vsub.f32 %v5357, %v5496
  %v5560 = vsub.f32 %v5360, %v5496
  %v5561 = vmul.f32 %v5497, %v5497
  %v5562 = vmul.f32 %v5498, %v5498
  %v5563 = vmul.f32 %v5499, %v5499
  %v5564 = vmul.f32 %v5500, %v5500
  %v5565 = vmul.f32 %v5501, %v5501
  %v5566 = vmul.f32 %v5502, %v5502
  %v5567 = vmul.f32 %v5503, %v5503
  %v5568 = vmul.f32 %v5504, %v5504
  %v5569 = vmul.f32 %v5505, %v5505
  %v5570 = vmul.f32 %v5506, %v5506
  %v5571 = vmul.f32 %v5507, %v5507
  %v5572 = vmul.f32 %v5508, %v5508
  %v5573 = vmul.f32 %v5509, %v5509
  %v5574 = vmul.f32 %v5510, %v5510
  %v5575 = vmul.f32 %v5511, %v5511
  %v5576 = vmul.f32 %v5512, %v5512
  %v5577 = vmul.f32 %v5513, %v5513
  %v5578 = vmul.f32 %v5514, %v5514
  %v5579 = vmul.f32 %v5515, %v5515
  %v5580 = vmul.f32 %v5516, %v5516
  %v5581 = vmul.f32 %v5517, %v5517
  %v5582 = vmul.f32 %v5518, %v5518
  %v5583 = vmul.f32 %v5519, %v5519
  %v5584 = vmul.f32 %v5520, %v5520
  %v5585 = vmul.f32 %v5521, %v5521
  %v5586 = vmul.f32 %v5522, %v5522
  %v5587 = vmul.f32 %v5523, %v5523
  %v5588 = vmul.f32 %v5524, %v5524
  %v5589 = vmul.f32 %v5525, %v5525
  %v5590 = vmul.f32 %v5526, %v5526
  %v5591 = vmul.f32 %v5527, %v5527
  %v5592 = vmul.f32 %v5528, %v5528
  %v5593 = vmul.f32 %v5529, %v5529
  %v5594 = vmul.f32 %v5530, %v5530
  %v5595 = vmul.f32 %v5531, %v5531
  %v5596 = vmul.f32 %v5532, %v5532
  %v5597 = vmul.f32 %v5533, %v5533
  %v5598 = vmul.f32 %v5534, %v5534
  %v5599 = vmul.f32 %v5535, %v5535
  %v5600 = vmul.f32 %v5536, %v5536
  %v5601 = vmul.f32 %v5537, %v5537
  %v5602 = vmul.f32 %v5538, %v5538
  %v5603 = vmul.f32 %v5539, %v5539
  %v5604 = vmul.f32 %v5540, %v5540
  %v5605 = vmul.f32 %v5541, %v5541
  %v5606 = vmul.f32 %v5542, %v5542
  %v5607 = vmul.f32 %v5543, %v5543
  %v5608 = vmul.f32 %v5544, %v5544
  %v5609 = vmul.f32 %v5545, %v5545
  %v5610 = vmul.f32 %v5546, %v5546
  %v5611 = vmul.f32 %v5547, %v5547
  %v5612 = vmul.f32 %v5548, %v5548
  %v5613 = vmul.f32 %v5549, %v5549
  %v5614 = vmul.f32 %v5550, %v5550
  %v5615 = vmul.f32 %v5551, %v5551
  %v5616 = vmul.f32 %v5552, %v5552
  %v5617 = vmul.f32 %v5553, %v5553
  %v5618 = vmul.f32 %v5554, %v5554
  %v5619 = vmul.f32 %v5555, %v5555
  %v5620 = vmul.f32 %v5556, %v5556
  %v5621 = vmul.f32 %v5557, %v5557
  %v5622 = vmul.f32 %v5558, %v5558
  %v5623 = vmul.f32 %v5559, %v5559
  %v5624 = vmul.f32 %v5560, %v5560
  %v5625 = vsel %vm22, %v5561, 0.0
  %v5626 = vsel %vm22, %v5562, 0.0
  %v5627 = vadd.f32 %v5625, %v5626
  %v5628 = vsel %vm22, %v5563, 0.0
  %v5629 = vadd.f32 %v5627, %v5628
  %v5630 = vsel %vm22, %v5564, 0.0
  %v5631 = vadd.f32 %v5629, %v5630
  %v5632 = vsel %vm22, %v5565, 0.0
  %v5633 = vadd.f32 %v5631, %v5632
  %v5634 = vsel %vm22, %v5566, 0.0
  %v5635 = vadd.f32 %v5633, %v5634
  %v5636 = vsel %vm22, %v5567, 0.0
  %v5637 = vadd.f32 %v5635, %v5636
  %v5638 = vsel %vm22, %v5568, 0.0
  %v5639 = vadd.f32 %v5637, %v5638
  %v5640 = vsel %vm22, %v5569, 0.0
  %v5641 = vadd.f32 %v5639, %v5640
  %v5642 = vsel %vm22, %v5570, 0.0
  %v5643 = vadd.f32 %v5641, %v5642
  %v5644 = vsel %vm22, %v5571, 0.0
  %v5645 = vadd.f32 %v5643, %v5644
  %v5646 = vsel %vm22, %v5572, 0.0
  %v5647 = vadd.f32 %v5645, %v5646
  %v5648 = vsel %vm22, %v5573, 0.0
  %v5649 = vadd.f32 %v5647, %v5648
  %v5650 = vsel %vm22, %v5574, 0.0
  %v5651 = vadd.f32 %v5649, %v5650
  %v5652 = vsel %vm22, %v5575, 0.0
  %v5653 = vadd.f32 %v5651, %v5652
  %v5654 = vsel %vm22, %v5576, 0.0
  %v5655 = vadd.f32 %v5653, %v5654
  %v5656 = vsel %vm22, %v5577, 0.0
  %v5657 = vadd.f32 %v5655, %v5656
  %v5658 = vsel %vm22, %v5578, 0.0
  %v5659 = vadd.f32 %v5657, %v5658
  %v5660 = vsel %vm22, %v5579, 0.0
  %v5661 = vadd.f32 %v5659, %v5660
  %v5662 = vsel %vm22, %v5580, 0.0
  %v5663 = vadd.f32 %v5661, %v5662
  %v5664 = vsel %vm22, %v5581, 0.0
  %v5665 = vadd.f32 %v5663, %v5664
  %v5666 = vsel %vm22, %v5582, 0.0
  %v5667 = vadd.f32 %v5665, %v5666
  %v5668 = vsel %vm22, %v5583, 0.0
  %v5669 = vadd.f32 %v5667, %v5668
  %v5670 = vsel %vm22, %v5584, 0.0
  %v5671 = vadd.f32 %v5669, %v5670
  %v5672 = vsel %vm22, %v5585, 0.0
  %v5673 = vadd.f32 %v5671, %v5672
  %v5674 = vsel %vm22, %v5586, 0.0
  %v5675 = vadd.f32 %v5673, %v5674
  %v5676 = vsel %vm22, %v5587, 0.0
  %v5677 = vadd.f32 %v5675, %v5676
  %v5678 = vsel %vm22, %v5588, 0.0
  %v5679 = vadd.f32 %v5677, %v5678
  %v5680 = vsel %vm22, %v5589, 0.0
  %v5681 = vadd.f32 %v5679, %v5680
  %v5682 = vsel %vm22, %v5590, 0.0
  %v5683 = vadd.f32 %v5681, %v5682
  %v5684 = vsel %vm22, %v5591, 0.0
  %v5685 = vadd.f32 %v5683, %v5684
  %v5686 = vsel %vm22, %v5592, 0.0
  %v5687 = vadd.f32 %v5685, %v5686
  %v5688 = vsel %vm22, %v5593, 0.0
  %v5689 = vadd.f32 %v5687, %v5688
  %v5690 = vsel %vm22, %v5594, 0.0
  %v5691 = vadd.f32 %v5689, %v5690
  %v5692 = vsel %vm22, %v5595, 0.0
  %v5693 = vadd.f32 %v5691, %v5692
  %v5694 = vsel %vm22, %v5596, 0.0
  %v5695 = vadd.f32 %v5693, %v5694
  %v5696 = vsel %vm22, %v5597, 0.0
  %v5697 = vadd.f32 %v5695, %v5696
  %v5698 = vsel %vm22, %v5598, 0.0
  %v5699 = vadd.f32 %v5697, %v5698
  %v5700 = vsel %vm22, %v5599, 0.0
  %v5701 = vadd.f32 %v5699, %v5700
  %v5702 = vsel %vm22, %v5600, 0.0
  %v5703 = vadd.f32 %v5701, %v5702
  %v5704 = vsel %vm22, %v5601, 0.0
  %v5705 = vadd.f32 %v5703, %v5704
  %v5706 = vsel %vm22, %v5602, 0.0
  %v5707 = vadd.f32 %v5705, %v5706
  %v5708 = vsel %vm22, %v5603, 0.0
  %v5709 = vadd.f32 %v5707, %v5708
  %v5710 = vsel %vm22, %v5604, 0.0
  %v5711 = vadd.f32 %v5709, %v5710
  %v5712 = vsel %vm22, %v5605, 0.0
  %v5713 = vadd.f32 %v5711, %v5712
  %v5714 = vsel %vm22, %v5606, 0.0
  %v5715 = vadd.f32 %v5713, %v5714
  %v5716 = vsel %vm22, %v5607, 0.0
  %v5717 = vadd.f32 %v5715, %v5716
  %v5718 = vsel %vm22, %v5608, 0.0
  %v5719 = vadd.f32 %v5717, %v5718
  %v5720 = vsel %vm22, %v5609, 0.0
  %v5721 = vadd.f32 %v5719, %v5720
  %v5722 = vsel %vm22, %v5610, 0.0
  %v5723 = vadd.f32 %v5721, %v5722
  %v5724 = vsel %vm22, %v5611, 0.0
  %v5725 = vadd.f32 %v5723, %v5724
  %v5726 = vsel %vm22, %v5612, 0.0
  %v5727 = vadd.f32 %v5725, %v5726
  %v5728 = vsel %vm22, %v5613, 0.0
  %v5729 = vadd.f32 %v5727, %v5728
  %v5730 = vsel %vm22, %v5614, 0.0
  %v5731 = vadd.f32 %v5729, %v5730
  %v5732 = vsel %vm22, %v5615, 0.0
  %v5733 = vadd.f32 %v5731, %v5732
  %v5734 = vsel %vm22, %v5616, 0.0
  %v5735 = vadd.f32 %v5733, %v5734
  %v5736 = vsel %vm22, %v5617, 0.0
  %v5737 = vadd.f32 %v5735, %v5736
  %v5738 = vsel %vm22, %v5618, 0.0
  %v5739 = vadd.f32 %v5737, %v5738
  %v5740 = vsel %vm22, %v5619, 0.0
  %v5741 = vadd.f32 %v5739, %v5740
  %v5742 = vsel %vm22, %v5620, 0.0
  %v5743 = vadd.f32 %v5741, %v5742
  %v5744 = vsel %vm22, %v5621, 0.0
  %v5745 = vadd.f32 %v5743, %v5744
  %v5746 = vsel %vm22, %v5622, 0.0
  %v5747 = vadd.f32 %v5745, %v5746
  %v5748 = vsel %vm22, %v5623, 0.0
  %v5749 = vadd.f32 %v5747, %v5748
  %v5750 = vsel %vm22, %v5624, 0.0
  %v5751 = vadd.f32 %v5749, %v5750
  %v5752 = vrot.slane %v5751, 4
  %v5753 = vadd.f32 %v5751, %v5752
  %v5754 = vrot.slane %v5753, 2
  %v5755 = vadd.f32 %v5753, %v5754
  %v5756 = vrot.slane %v5755, 1
  %v5757 = vadd.f32 %v5755, %v5756
  %v5758 = vmul.f32 %v5757, 0.001953125
  %v5759 = vadd.f32 %v5758, 1e-05
  %v5760 = vrsqrt.pop %v5759
  %v5761 = vmul.f32 %v18, %v5760
  %v5762 = vlaneseq
  %v5763 = vshrl.u32 %v5762, 7
  %v5764 = vsub.s32 0, %v5763
  %v5765 = vrot.slane %v5761, %v5764
  %v5766 = vmul.f32 %v5497, %v5765
  %v5767 = vmul.f32 %v5498, %v5765
  %v5768 = vmul.f32 %v5499, %v5765
  %v5769 = vmul.f32 %v5500, %v5765
  %v5770 = vmul.f32 %v5501, %v5765
  %v5771 = vmul.f32 %v5502, %v5765
  %v5772 = vmul.f32 %v5503, %v5765
  %v5773 = vmul.f32 %v5504, %v5765
  %v5774 = vmul.f32 %v5505, %v5765
  %v5775 = vmul.f32 %v5506, %v5765
  %v5776 = vmul.f32 %v5507, %v5765
  %v5777 = vmul.f32 %v5508, %v5765
  %v5778 = vmul.f32 %v5509, %v5765
  %v5779 = vmul.f32 %v5510, %v5765
  %v5780 = vmul.f32 %v5511, %v5765
  %v5781 = vmul.f32 %v5512, %v5765
  %v5782 = vmul.f32 %v5513, %v5765
  %v5783 = vmul.f32 %v5514, %v5765
  %v5784 = vmul.f32 %v5515, %v5765
  %v5785 = vmul.f32 %v5516, %v5765
  %v5786 = vmul.f32 %v5517, %v5765
  %v5787 = vmul.f32 %v5518, %v5765
  %v5788 = vmul.f32 %v5519, %v5765
  %v5789 = vmul.f32 %v5520, %v5765
  %v5790 = vmul.f32 %v5521, %v5765
  %v5791 = vmul.f32 %v5522, %v5765
  %v5792 = vmul.f32 %v5523, %v5765
  %v5793 = vmul.f32 %v5524, %v5765
  %v5794 = vmul.f32 %v5525, %v5765
  %v5795 = vmul.f32 %v5526, %v5765
  %v5796 = vmul.f32 %v5527, %v5765
  %v5797 = vmul.f32 %v5528, %v5765
  %v5798 = vmul.f32 %v5529, %v5765
  %v5799 = vmul.f32 %v5530, %v5765
  %v5800 = vmul.f32 %v5531, %v5765
  %v5801 = vmul.f32 %v5532, %v5765
  %v5802 = vmul.f32 %v5533, %v5765
  %v5803 = vmul.f32 %v5534, %v5765
  %v5804 = vmul.f32 %v5535, %v5765
  %v5805 = vmul.f32 %v5536, %v5765
  %v5806 = vmul.f32 %v5537, %v5765
  %v5807 = vmul.f32 %v5538, %v5765
  %v5808 = vmul.f32 %v5539, %v5765
  %v5809 = vmul.f32 %v5540, %v5765
  %v5810 = vmul.f32 %v5541, %v5765
  %v5811 = vmul.f32 %v5542, %v5765
  %v5812 = vmul.f32 %v5543, %v5765
  %v5813 = vmul.f32 %v5544, %v5765
  %v5814 = vmul.f32 %v5545, %v5765
  %v5815 = vmul.f32 %v5546, %v5765
  %v5816 = vmul.f32 %v5547, %v5765
  %v5817 = vmul.f32 %v5548, %v5765
  %v5818 = vmul.f32 %v5549, %v5765
  %v5819 = vmul.f32 %v5550, %v5765
  %v5820 = vmul.f32 %v5551, %v5765
  %v5821 = vmul.f32 %v5552, %v5765
  %v5822 = vmul.f32 %v5553, %v5765
  %v5823 = vmul.f32 %v5554, %v5765
  %v5824 = vmul.f32 %v5555, %v5765
  %v5825 = vmul.f32 %v5556, %v5765
  %v5826 = vmul.f32 %v5557, %v5765
  %v5827 = vmul.f32 %v5558, %v5765
  %v5828 = vmul.f32 %v5559, %v5765
  %v5829 = vmul.f32 %v5560, %v5765
  %v5830 = vlaneseq
  %v5831 = vshrl.u32 %v5830, 7
  %v5832 = vsub.s32 0, %v5831
  %v5833 = vrot.slane %v19, %v5832
  %v5834 = vadd.f32 %v5766, %v5833
  %v5835 = vadd.f32 %v5767, %v5833
  %v5836 = vadd.f32 %v5768, %v5833
  %v5837 = vadd.f32 %v5769, %v5833
  %v5838 = vadd.f32 %v5770, %v5833
  %v5839 = vadd.f32 %v5771, %v5833
  %v5840 = vadd.f32 %v5772, %v5833
  %v5841 = vadd.f32 %v5773, %v5833
  %v5842 = vadd.f32 %v5774, %v5833
  %v5843 = vadd.f32 %v5775, %v5833
  %v5844 = vadd.f32 %v5776, %v5833
  %v5845 = vadd.f32 %v5777, %v5833
  %v5846 = vadd.f32 %v5778, %v5833
  %v5847 = vadd.f32 %v5779, %v5833
  %v5848 = vadd.f32 %v5780, %v5833
  %v5849 = vadd.f32 %v5781, %v5833
  %v5850 = vadd.f32 %v5782, %v5833
  %v5851 = vadd.f32 %v5783, %v5833
  %v5852 = vadd.f32 %v5784, %v5833
  %v5853 = vadd.f32 %v5785, %v5833
  %v5854 = vadd.f32 %v5786, %v5833
  %v5855 = vadd.f32 %v5787, %v5833
  %v5856 = vadd.f32 %v5788, %v5833
  %v5857 = vadd.f32 %v5789, %v5833
  %v5858 = vadd.f32 %v5790, %v5833
  %v5859 = vadd.f32 %v5791, %v5833
  %v5860 = vadd.f32 %v5792, %v5833
  %v5861 = vadd.f32 %v5793, %v5833
  %v5862 = vadd.f32 %v5794, %v5833
  %v5863 = vadd.f32 %v5795, %v5833
  %v5864 = vadd.f32 %v5796, %v5833
  %v5865 = vadd.f32 %v5797, %v5833
  %v5866 = vadd.f32 %v5798, %v5833
  %v5867 = vadd.f32 %v5799, %v5833
  %v5868 = vadd.f32 %v5800, %v5833
  %v5869 = vadd.f32 %v5801, %v5833
  %v5870 = vadd.f32 %v5802, %v5833
  %v5871 = vadd.f32 %v5803, %v5833
  %v5872 = vadd.f32 %v5804, %v5833
  %v5873 = vadd.f32 %v5805, %v5833
  %v5874 = vadd.f32 %v5806, %v5833
  %v5875 = vadd.f32 %v5807, %v5833
  %v5876 = vadd.f32 %v5808, %v5833
  %v5877 = vadd.f32 %v5809, %v5833
  %v5878 = vadd.f32 %v5810, %v5833
  %v5879 = vadd.f32 %v5811, %v5833
  %v5880 = vadd.f32 %v5812, %v5833
  %v5881 = vadd.f32 %v5813, %v5833
  %v5882 = vadd.f32 %v5814, %v5833
  %v5883 = vadd.f32 %v5815, %v5833
  %v5884 = vadd.f32 %v5816, %v5833
  %v5885 = vadd.f32 %v5817, %v5833
  %v5886 = vadd.f32 %v5818, %v5833
  %v5887 = vadd.f32 %v5819, %v5833
  %v5888 = vadd.f32 %v5820, %v5833
  %v5889 = vadd.f32 %v5821, %v5833
  %v5890 = vadd.f32 %v5822, %v5833
  %v5891 = vadd.f32 %v5823, %v5833
  %v5892 = vadd.f32 %v5824, %v5833
  %v5893 = vadd.f32 %v5825, %v5833
  %v5894 = vadd.f32 %v5826, %v5833
  %v5895 = vadd.f32 %v5827, %v5833
  %v5896 = vadd.f32 %v5828, %v5833
  %v5897 = vadd.f32 %v5829, %v5833
  %v5898 = vmax.f32 %v5834, 0.0
  %v5899 = vmax.f32 %v5835, 0.0
  %v5900 = vmax.f32 %v5836, 0.0
  %v5901 = vmax.f32 %v5837, 0.0
  %v5902 = vmax.f32 %v5838, 0.0
  %v5903 = vmax.f32 %v5839, 0.0
  %v5904 = vmax.f32 %v5840, 0.0
  %v5905 = vmax.f32 %v5841, 0.0
  %v5906 = vmax.f32 %v5842, 0.0
  %v5907 = vmax.f32 %v5843, 0.0
  %v5908 = vmax.f32 %v5844, 0.0
  %v5909 = vmax.f32 %v5845, 0.0
  %v5910 = vmax.f32 %v5846, 0.0
  %v5911 = vmax.f32 %v5847, 0.0
  %v5912 = vmax.f32 %v5848, 0.0
  %v5913 = vmax.f32 %v5849, 0.0
  %v5914 = vmax.f32 %v5850, 0.0
  %v5915 = vmax.f32 %v5851, 0.0
  %v5916 = vmax.f32 %v5852, 0.0
  %v5917 = vmax.f32 %v5853, 0.0
  %v5918 = vmax.f32 %v5854, 0.0
  %v5919 = vmax.f32 %v5855, 0.0
  %v5920 = vmax.f32 %v5856, 0.0
  %v5921 = vmax.f32 %v5857, 0.0
  %v5922 = vmax.f32 %v5858, 0.0
  %v5923 = vmax.f32 %v5859, 0.0
  %v5924 = vmax.f32 %v5860, 0.0
  %v5925 = vmax.f32 %v5861, 0.0
  %v5926 = vmax.f32 %v5862, 0.0
  %v5927 = vmax.f32 %v5863, 0.0
  %v5928 = vmax.f32 %v5864, 0.0
  %v5929 = vmax.f32 %v5865, 0.0
  %v5930 = vmax.f32 %v5866, 0.0
  %v5931 = vmax.f32 %v5867, 0.0
  %v5932 = vmax.f32 %v5868, 0.0
  %v5933 = vmax.f32 %v5869, 0.0
  %v5934 = vmax.f32 %v5870, 0.0
  %v5935 = vmax.f32 %v5871, 0.0
  %v5936 = vmax.f32 %v5872, 0.0
  %v5937 = vmax.f32 %v5873, 0.0
  %v5938 = vmax.f32 %v5874, 0.0
  %v5939 = vmax.f32 %v5875, 0.0
  %v5940 = vmax.f32 %v5876, 0.0
  %v5941 = vmax.f32 %v5877, 0.0
  %v5942 = vmax.f32 %v5878, 0.0
  %v5943 = vmax.f32 %v5879, 0.0
  %v5944 = vmax.f32 %v5880, 0.0
  %v5945 = vmax.f32 %v5881, 0.0
  %v5946 = vmax.f32 %v5882, 0.0
  %v5947 = vmax.f32 %v5883, 0.0
  %v5948 = vmax.f32 %v5884, 0.0
  %v5949 = vmax.f32 %v5885, 0.0
  %v5950 = vmax.f32 %v5886, 0.0
  %v5951 = vmax.f32 %v5887, 0.0
  %v5952 = vmax.f32 %v5888, 0.0
  %v5953 = vmax.f32 %v5889, 0.0
  %v5954 = vmax.f32 %v5890, 0.0
  %v5955 = vmax.f32 %v5891, 0.0
  %v5956 = vmax.f32 %v5892, 0.0
  %v5957 = vmax.f32 %v5893, 0.0
  %v5958 = vmax.f32 %v5894, 0.0
  %v5959 = vmax.f32 %v5895, 0.0
  %v5960 = vmax.f32 %v5896, 0.0
  %v5961 = vmax.f32 %v5897, 0.0
  %5962 = vst.msk [vmem:[%s174 + $0x1] sm:$0xff] %vm22, %v5898
  %5963 = vst.msk [vmem:[%s174 + $0x9] sm:$0xff] %vm22, %v5899
  %5964 = vst.msk [vmem:[%s174 + $0x19] sm:$0xff] %vm22, %v5900
  %5965 = vst.msk [vmem:[%s174 + $0x21] sm:$0xff] %vm22, %v5901
  %5966 = vst.msk [vmem:[%s174 + $0x31] sm:$0xff] %vm22, %v5902
  %5967 = vst.msk [vmem:[%s174 + $0x39] sm:$0xff] %vm22, %v5903
  %5968 = vst.msk [vmem:[%s174 + $0x49] sm:$0xff] %vm22, %v5904
  %5969 = vst.msk [vmem:[%s174 + $0x51] sm:$0xff] %vm22, %v5905
  %5970 = vst.msk [vmem:[%s174 + $0x61] sm:$0xff] %vm22, %v5906
  %5971 = vst.msk [vmem:[%s174 + $0x69] sm:$0xff] %vm22, %v5907
  %5972 = vst.msk [vmem:[%s174 + $0x79] sm:$0xff] %vm22, %v5908
  %5973 = vst.msk [vmem:[%s174 + $0x81] sm:$0xff] %vm22, %v5909
  %5974 = vst.msk [vmem:[%s174 + $0x91] sm:$0xff] %vm22, %v5910
  %5975 = vst.msk [vmem:[%s174 + $0x99] sm:$0xff] %vm22, %v5911
  %5976 = vst.msk [vmem:[%s174 + $0xa9] sm:$0xff] %vm22, %v5912
  %5977 = vst.msk [vmem:[%s174 + $0xb1] sm:$0xff] %vm22, %v5913
  %5978 = vst.msk [vmem:[%s174 + $0xc1] sm:$0xff] %vm22, %v5914
  %5979 = vst.msk [vmem:[%s174 + $0xc9] sm:$0xff] %vm22, %v5915
  %5980 = vst.msk [vmem:[%s174 + $0xd9] sm:$0xff] %vm22, %v5916
  %5981 = vst.msk [vmem:[%s174 + $0xe1] sm:$0xff] %vm22, %v5917
  %5982 = vst.msk [vmem:[%s174 + $0xf1] sm:$0xff] %vm22, %v5918
  %5983 = vst.msk [vmem:[%s174 + $0xf9] sm:$0xff] %vm22, %v5919
  %5984 = vst.msk [vmem:[%s174 + $0x109] sm:$0xff] %vm22, %v5920
  %5985 = vst.msk [vmem:[%s174 + $0x111] sm:$0xff] %vm22, %v5921
  %5986 = vst.msk [vmem:[%s174 + $0x121] sm:$0xff] %vm22, %v5922
  %5987 = vst.msk [vmem:[%s174 + $0x129] sm:$0xff] %vm22, %v5923
  %5988 = vst.msk [vmem:[%s174 + $0x139] sm:$0xff] %vm22, %v5924
  %5989 = vst.msk [vmem:[%s174 + $0x141] sm:$0xff] %vm22, %v5925
  %5990 = vst.msk [vmem:[%s174 + $0x151] sm:$0xff] %vm22, %v5926
  %5991 = vst.msk [vmem:[%s174 + $0x159] sm:$0xff] %vm22, %v5927
  %5992 = vst.msk [vmem:[%s174 + $0x169] sm:$0xff] %vm22, %v5928
  %5993 = vst.msk [vmem:[%s174 + $0x171] sm:$0xff] %vm22, %v5929
  %5994 = vst.msk [vmem:[%s174 + $0x1b1] sm:$0xff] %vm22, %v5930
  %5995 = vst.msk [vmem:[%s174 + $0x1b9] sm:$0xff] %vm22, %v5931
  %5996 = vst.msk [vmem:[%s174 + $0x1c9] sm:$0xff] %vm22, %v5932
  %5997 = vst.msk [vmem:[%s174 + $0x1d1] sm:$0xff] %vm22, %v5933
  %5998 = vst.msk [vmem:[%s174 + $0x1e1] sm:$0xff] %vm22, %v5934
  %5999 = vst.msk [vmem:[%s174 + $0x1e9] sm:$0xff] %vm22, %v5935
  %6000 = vst.msk [vmem:[%s174 + $0x1f9] sm:$0xff] %vm22, %v5936
  %6001 = vst.msk [vmem:[%s174 + $0x201] sm:$0xff] %vm22, %v5937
  %6002 = vst.msk [vmem:[%s174 + $0x211] sm:$0xff] %vm22, %v5938
  %6003 = vst.msk [vmem:[%s174 + $0x219] sm:$0xff] %vm22, %v5939
  %6004 = vst.msk [vmem:[%s174 + $0x229] sm:$0xff] %vm22, %v5940
  %6005 = vst.msk [vmem:[%s174 + $0x231] sm:$0xff] %vm22, %v5941
  %6006 = vst.msk [vmem:[%s174 + $0x241] sm:$0xff] %vm22, %v5942
  %6007 = vst.msk [vmem:[%s174 + $0x249] sm:$0xff] %vm22, %v5943
  %6008 = vst.msk [vmem:[%s174 + $0x259] sm:$0xff] %vm22, %v5944
  %6009 = vst.msk [vmem:[%s174 + $0x261] sm:$0xff] %vm22, %v5945
  %6010 = vst.msk [vmem:[%s174 + $0x271] sm:$0xff] %vm22, %v5946
  %6011 = vst.msk [vmem:[%s174 + $0x279] sm:$0xff] %vm22, %v5947
  %6012 = vst.msk [vmem:[%s174 + $0x289] sm:$0xff] %vm22, %v5948
  %6013 = vst.msk [vmem:[%s174 + $0x291] sm:$0xff] %vm22, %v5949
  %6014 = vst.msk [vmem:[%s174 + $0x2a1] sm:$0xff] %vm22, %v5950
  %6015 = vst.msk [vmem:[%s174 + $0x2a9] sm:$0xff] %vm22, %v5951
  %6016 = vst.msk [vmem:[%s174 + $0x2b9] sm:$0xff] %vm22, %v5952
  %6017 = vst.msk [vmem:[%s174 + $0x2c1] sm:$0xff] %vm22, %v5953
  %6018 = vst.msk [vmem:[%s174 + $0x2d1] sm:$0xff] %vm22, %v5954
  %6019 = vst.msk [vmem:[%s174 + $0x2d9] sm:$0xff] %vm22, %v5955
  %6020 = vst.msk [vmem:[%s174 + $0x2e9] sm:$0xff] %vm22, %v5956
  %6021 = vst.msk [vmem:[%s174 + $0x2f1] sm:$0xff] %vm22, %v5957
  %6022 = vst.msk [vmem:[%s174 + $0x301] sm:$0xff] %vm22, %v5958
  %6023 = vst.msk [vmem:[%s174 + $0x309] sm:$0xff] %vm22, %v5959
  %6024 = vst.msk [vmem:[%s174 + $0x319] sm:$0xff] %vm22, %v5960
  %6025 = vst.msk [vmem:[%s174 + $0x321] sm:$0xff] %vm22, %v5961
  %v6026 = vld [vmem:[#allocation2] sm:$0xff]
  %v6027 = vld [vmem:[#allocation2 + $0x8] sm:$0xff]
  %v6028 = vld [vmem:[#allocation2 + $0x18] sm:$0xff]
  %v6029 = vld [vmem:[#allocation2 + $0x20] sm:$0xff]
  %v6030 = vld [vmem:[#allocation2 + $0x30] sm:$0xff]
  %v6031 = vld [vmem:[#allocation2 + $0x38] sm:$0xff]
  %v6032 = vld [vmem:[#allocation2 + $0x48] sm:$0xff]
  %v6033 = vld [vmem:[#allocation2 + $0x50] sm:$0xff]
  %v6034 = vld [vmem:[#allocation2 + $0x60] sm:$0xff]
  %v6035 = vld [vmem:[#allocation2 + $0x68] sm:$0xff]
  %v6036 = vld [vmem:[#allocation2 + $0x78] sm:$0xff]
  %v6037 = vld [vmem:[#allocation2 + $0x80] sm:$0xff]
  %v6038 = vld [vmem:[#allocation2 + $0x90] sm:$0xff]
  %v6039 = vld [vmem:[#allocation2 + $0x98] sm:$0xff]
  %v6040 = vld [vmem:[#allocation2 + $0xa8] sm:$0xff]
  %v6041 = vld [vmem:[#allocation2 + $0xb0] sm:$0xff]
  %v6042 = vld [vmem:[#allocation2 + $0xc0] sm:$0xff]
  %v6043 = vld [vmem:[#allocation2 + $0xc8] sm:$0xff]
  %v6044 = vld [vmem:[#allocation2 + $0xd8] sm:$0xff]
  %v6045 = vld [vmem:[#allocation2 + $0xe0] sm:$0xff]
  %v6046 = vld [vmem:[#allocation2 + $0xf0] sm:$0xff]
  %v6047 = vld [vmem:[#allocation2 + $0xf8] sm:$0xff]
  %v6048 = vld [vmem:[#allocation2 + $0x108] sm:$0xff]
  %v6049 = vld [vmem:[#allocation2 + $0x110] sm:$0xff]
  %v6050 = vld [vmem:[#allocation2 + $0x120] sm:$0xff]
  %v6051 = vld [vmem:[#allocation2 + $0x128] sm:$0xff]
  %v6052 = vld [vmem:[#allocation2 + $0x138] sm:$0xff]
  %v6053 = vld [vmem:[#allocation2 + $0x140] sm:$0xff]
  %v6054 = vld [vmem:[#allocation2 + $0x150] sm:$0xff]
  %v6055 = vld [vmem:[#allocation2 + $0x158] sm:$0xff]
  %v6056 = vld [vmem:[#allocation2 + $0x168] sm:$0xff]
  %v6057 = vld [vmem:[#allocation2 + $0x170] sm:$0xff]
  %v6058 = vld [vmem:[#allocation2 + $0x1b0] sm:$0xff]
  %v6059 = vld [vmem:[#allocation2 + $0x1b8] sm:$0xff]
  %v6060 = vld [vmem:[#allocation2 + $0x1c8] sm:$0xff]
  %v6061 = vld [vmem:[#allocation2 + $0x1d0] sm:$0xff]
  %v6062 = vld [vmem:[#allocation2 + $0x1e0] sm:$0xff]
  %v6063 = vld [vmem:[#allocation2 + $0x1e8] sm:$0xff]
  %v6064 = vld [vmem:[#allocation2 + $0x1f8] sm:$0xff]
  %v6065 = vld [vmem:[#allocation2 + $0x200] sm:$0xff]
  %v6066 = vld [vmem:[#allocation2 + $0x210] sm:$0xff]
  %v6067 = vld [vmem:[#allocation2 + $0x218] sm:$0xff]
  %v6068 = vld [vmem:[#allocation2 + $0x228] sm:$0xff]
  %v6069 = vld [vmem:[#allocation2 + $0x230] sm:$0xff]
  %v6070 = vld [vmem:[#allocation2 + $0x240] sm:$0xff]
  %v6071 = vld [vmem:[#allocation2 + $0x248] sm:$0xff]
  %v6072 = vld [vmem:[#allocation2 + $0x258] sm:$0xff]
  %v6073 = vld [vmem:[#allocation2 + $0x260] sm:$0xff]
  %v6074 = vld [vmem:[#allocation2 + $0x270] sm:$0xff]
  %v6075 = vld [vmem:[#allocation2 + $0x278] sm:$0xff]
  %v6076 = vld [vmem:[#allocation2 + $0x288] sm:$0xff]
  %v6077 = vld [vmem:[#allocation2 + $0x290] sm:$0xff]
  %v6078 = vld [vmem:[#allocation2 + $0x2a0] sm:$0xff]
  %v6079 = vld [vmem:[#allocation2 + $0x2a8] sm:$0xff]
  %v6080 = vld [vmem:[#allocation2 + $0x2b8] sm:$0xff]
  %v6081 = vld [vmem:[#allocation2 + $0x2c0] sm:$0xff]
  %v6082 = vld [vmem:[#allocation2 + $0x2d0] sm:$0xff]
  %v6083 = vld [vmem:[#allocation2 + $0x2d8] sm:$0xff]
  %v6084 = vld [vmem:[#allocation2 + $0x2e8] sm:$0xff]
  %v6085 = vld [vmem:[#allocation2 + $0x2f0] sm:$0xff]
  %v6086 = vld [vmem:[#allocation2 + $0x300] sm:$0xff]
  %v6087 = vld [vmem:[#allocation2 + $0x308] sm:$0xff]
  %v6088 = vld [vmem:[#allocation2 + $0x318] sm:$0xff]
  %v6089 = vld [vmem:[#allocation2 + $0x320] sm:$0xff]
  %v6090 = vpack.c.bf16 %v6027, %v6026
  %v6091 = vpack.c.bf16 %v6029, %v6028
  %v6092 = vpack.c.bf16 %v6031, %v6030
  %v6093 = vpack.c.bf16 %v6033, %v6032
  %v6094 = vpack.c.bf16 %v6035, %v6034
  %v6095 = vpack.c.bf16 %v6037, %v6036
  %v6096 = vpack.c.bf16 %v6039, %v6038
  %v6097 = vpack.c.bf16 %v6041, %v6040
  %v6098 = vpack.c.bf16 %v6043, %v6042
  %v6099 = vpack.c.bf16 %v6045, %v6044
  %v6100 = vpack.c.bf16 %v6047, %v6046
  %v6101 = vpack.c.bf16 %v6049, %v6048
  %v6102 = vpack.c.bf16 %v6051, %v6050
  %v6103 = vpack.c.bf16 %v6053, %v6052
  %v6104 = vpack.c.bf16 %v6055, %v6054
  %v6105 = vpack.c.bf16 %v6057, %v6056
  %v6106 = vpack.c.bf16 %v6059, %v6058
  %v6107 = vpack.c.bf16 %v6061, %v6060
  %v6108 = vpack.c.bf16 %v6063, %v6062
  %v6109 = vpack.c.bf16 %v6065, %v6064
  %v6110 = vpack.c.bf16 %v6067, %v6066
  %v6111 = vpack.c.bf16 %v6069, %v6068
  %v6112 = vpack.c.bf16 %v6071, %v6070
  %v6113 = vpack.c.bf16 %v6073, %v6072
  %v6114 = vpack.c.bf16 %v6075, %v6074
  %v6115 = vpack.c.bf16 %v6077, %v6076
  %v6116 = vpack.c.bf16 %v6079, %v6078
  %v6117 = vpack.c.bf16 %v6081, %v6080
  %v6118 = vpack.c.bf16 %v6083, %v6082
  %v6119 = vpack.c.bf16 %v6085, %v6084
  %v6120 = vpack.c.bf16 %v6087, %v6086
  %v6121 = vpack.c.bf16 %v6089, %v6088
  %v6154 = vunpack.c.l.b16 %v6090
  %v6155 = vunpack.c.h.b16 %v6090
  %v6156 = vunpack.c.l.b16 %v6091
  %v6157 = vunpack.c.h.b16 %v6091
  %v6158 = vunpack.c.l.b16 %v6092
  %v6159 = vunpack.c.h.b16 %v6092
  %v6160 = vunpack.c.l.b16 %v6093
  %v6161 = vunpack.c.h.b16 %v6093
  %v6162 = vunpack.c.l.b16 %v6094
  %v6163 = vunpack.c.h.b16 %v6094
  %v6164 = vunpack.c.l.b16 %v6095
  %v6165 = vunpack.c.h.b16 %v6095
  %v6166 = vunpack.c.l.b16 %v6096
  %v6167 = vunpack.c.h.b16 %v6096
  %v6168 = vunpack.c.l.b16 %v6097
  %v6169 = vunpack.c.h.b16 %v6097
  %v6170 = vunpack.c.l.b16 %v6098
  %v6171 = vunpack.c.h.b16 %v6098
  %v6172 = vunpack.c.l.b16 %v6099
  %v6173 = vunpack.c.h.b16 %v6099
  %v6174 = vunpack.c.l.b16 %v6100
  %v6175 = vunpack.c.h.b16 %v6100
  %v6176 = vunpack.c.l.b16 %v6101
  %v6177 = vunpack.c.h.b16 %v6101
  %v6178 = vunpack.c.l.b16 %v6102
  %v6179 = vunpack.c.h.b16 %v6102
  %v6180 = vunpack.c.l.b16 %v6103
  %v6181 = vunpack.c.h.b16 %v6103
  %v6182 = vunpack.c.l.b16 %v6104
  %v6183 = vunpack.c.h.b16 %v6104
  %v6184 = vunpack.c.l.b16 %v6105
  %v6185 = vunpack.c.h.b16 %v6105
  %v6186 = vunpack.c.l.b16 %v6106
  %v6187 = vunpack.c.h.b16 %v6106
  %v6188 = vunpack.c.l.b16 %v6107
  %v6189 = vunpack.c.h.b16 %v6107
  %v6190 = vunpack.c.l.b16 %v6108
  %v6191 = vunpack.c.h.b16 %v6108
  %v6192 = vunpack.c.l.b16 %v6109
  %v6193 = vunpack.c.h.b16 %v6109
  %v6194 = vunpack.c.l.b16 %v6110
  %v6195 = vunpack.c.h.b16 %v6110
  %v6196 = vunpack.c.l.b16 %v6111
  %v6197 = vunpack.c.h.b16 %v6111
  %v6198 = vunpack.c.l.b16 %v6112
  %v6199 = vunpack.c.h.b16 %v6112
  %v6200 = vunpack.c.l.b16 %v6113
  %v6201 = vunpack.c.h.b16 %v6113
  %v6202 = vunpack.c.l.b16 %v6114
  %v6203 = vunpack.c.h.b16 %v6114
  %v6204 = vunpack.c.l.b16 %v6115
  %v6205 = vunpack.c.h.b16 %v6115
  %v6206 = vunpack.c.l.b16 %v6116
  %v6207 = vunpack.c.h.b16 %v6116
  %v6208 = vunpack.c.l.b16 %v6117
  %v6209 = vunpack.c.h.b16 %v6117
  %v6210 = vunpack.c.l.b16 %v6118
  %v6211 = vunpack.c.h.b16 %v6118
  %v6212 = vunpack.c.l.b16 %v6119
  %v6213 = vunpack.c.h.b16 %v6119
  %v6214 = vunpack.c.l.b16 %v6120
  %v6215 = vunpack.c.h.b16 %v6120
  %v6216 = vunpack.c.l.b16 %v6121
  %v6217 = vunpack.c.h.b16 %v6121
  %v6218 = vpack.c.b16 %v6154, %v6154
  %v6219 = vpack.c.b16 %v6155, %v6155
  %v6220 = vpack.c.b16 %v6156, %v6156
  %v6221 = vpack.c.b16 %v6157, %v6157
  %v6222 = vpack.c.b16 %v6158, %v6158
  %v6223 = vpack.c.b16 %v6159, %v6159
  %v6224 = vpack.c.b16 %v6160, %v6160
  %v6225 = vpack.c.b16 %v6161, %v6161
  %v6226 = vpack.c.b16 %v6162, %v6162
  %v6227 = vpack.c.b16 %v6163, %v6163
  %v6228 = vpack.c.b16 %v6164, %v6164
  %v6229 = vpack.c.b16 %v6165, %v6165
  %v6230 = vpack.c.b16 %v6166, %v6166
  %v6231 = vpack.c.b16 %v6167, %v6167
  %v6232 = vpack.c.b16 %v6168, %v6168
  %v6233 = vpack.c.b16 %v6169, %v6169
  %v6234 = vpack.c.b16 %v6170, %v6170
  %v6235 = vpack.c.b16 %v6171, %v6171
  %v6236 = vpack.c.b16 %v6172, %v6172
  %v6237 = vpack.c.b16 %v6173, %v6173
  %v6238 = vpack.c.b16 %v6174, %v6174
  %v6239 = vpack.c.b16 %v6175, %v6175
  %v6240 = vpack.c.b16 %v6176, %v6176
  %v6241 = vpack.c.b16 %v6177, %v6177
  %v6242 = vpack.c.b16 %v6178, %v6178
  %v6243 = vpack.c.b16 %v6179, %v6179
  %v6244 = vpack.c.b16 %v6180, %v6180
  %v6245 = vpack.c.b16 %v6181, %v6181
  %v6246 = vpack.c.b16 %v6182, %v6182
  %v6247 = vpack.c.b16 %v6183, %v6183
  %v6248 = vpack.c.b16 %v6184, %v6184
  %v6249 = vpack.c.b16 %v6185, %v6185
  %v6250 = vpack.c.b16 %v6186, %v6186
  %v6251 = vpack.c.b16 %v6187, %v6187
  %v6252 = vpack.c.b16 %v6188, %v6188
  %v6253 = vpack.c.b16 %v6189, %v6189
  %v6254 = vpack.c.b16 %v6190, %v6190
  %v6255 = vpack.c.b16 %v6191, %v6191
  %v6256 = vpack.c.b16 %v6192, %v6192
  %v6257 = vpack.c.b16 %v6193, %v6193
  %v6258 = vpack.c.b16 %v6194, %v6194
  %v6259 = vpack.c.b16 %v6195, %v6195
  %v6260 = vpack.c.b16 %v6196, %v6196
  %v6261 = vpack.c.b16 %v6197, %v6197
  %v6262 = vpack.c.b16 %v6198, %v6198
  %v6263 = vpack.c.b16 %v6199, %v6199
  %v6264 = vpack.c.b16 %v6200, %v6200
  %v6265 = vpack.c.b16 %v6201, %v6201
  %v6266 = vpack.c.b16 %v6202, %v6202
  %v6267 = vpack.c.b16 %v6203, %v6203
  %v6268 = vpack.c.b16 %v6204, %v6204
  %v6269 = vpack.c.b16 %v6205, %v6205
  %v6270 = vpack.c.b16 %v6206, %v6206
  %v6271 = vpack.c.b16 %v6207, %v6207
  %v6272 = vpack.c.b16 %v6208, %v6208
  %v6273 = vpack.c.b16 %v6209, %v6209
  %v6274 = vpack.c.b16 %v6210, %v6210
  %v6275 = vpack.c.b16 %v6211, %v6211
  %v6276 = vpack.c.b16 %v6212, %v6212
  %v6277 = vpack.c.b16 %v6213, %v6213
  %v6278 = vpack.c.b16 %v6214, %v6214
  %v6279 = vpack.c.b16 %v6215, %v6215
  %v6280 = vpack.c.b16 %v6216, %v6216
  %v6281 = vpack.c.b16 %v6217, %v6217
  %6346 = vst.msk [vmem:[#allocation3] sm:$0xf] %vm559, %v6218
  %6347 = vst.msk [vmem:[#allocation3 + $0x4] sm:$0xf] %vm559, %v6219
  %6348 = vst.msk [vmem:[#allocation3 + $0x8] sm:$0xf] %vm559, %v6220
  %6349 = vst.msk [vmem:[#allocation3 + $0xc] sm:$0xf] %vm559, %v6221
  %6350 = vst.msk [vmem:[#allocation3 + $0x10] sm:$0xf] %vm559, %v6222
  %6351 = vst.msk [vmem:[#allocation3 + $0x14] sm:$0xf] %vm559, %v6223
  %6352 = vst.msk [vmem:[#allocation3 + $0x18] sm:$0xf] %vm559, %v6224
  %6353 = vst.msk [vmem:[#allocation3 + $0x1c] sm:$0xf] %vm559, %v6225
  %6354 = vst.msk [vmem:[#allocation3 + $0x20] sm:$0xf] %vm559, %v6226
  %6355 = vst.msk [vmem:[#allocation3 + $0x24] sm:$0xf] %vm559, %v6227
  %6356 = vst.msk [vmem:[#allocation3 + $0x28] sm:$0xf] %vm559, %v6228
  %6357 = vst.msk [vmem:[#allocation3 + $0x2c] sm:$0xf] %vm559, %v6229
  %6358 = vst.msk [vmem:[#allocation3 + $0x30] sm:$0xf] %vm559, %v6230
  %6359 = vst.msk [vmem:[#allocation3 + $0x34] sm:$0xf] %vm559, %v6231
  %6360 = vst.msk [vmem:[#allocation3 + $0x38] sm:$0xf] %vm559, %v6232
  %6361 = vst.msk [vmem:[#allocation3 + $0x3c] sm:$0xf] %vm559, %v6233
  %6362 = vst.msk [vmem:[#allocation3 + $0x40] sm:$0xf] %vm559, %v6234
  %6363 = vst.msk [vmem:[#allocation3 + $0x44] sm:$0xf] %vm559, %v6235
  %6364 = vst.msk [vmem:[#allocation3 + $0x48] sm:$0xf] %vm559, %v6236
  %6365 = vst.msk [vmem:[#allocation3 + $0x4c] sm:$0xf] %vm559, %v6237
  %6366 = vst.msk [vmem:[#allocation3 + $0x50] sm:$0xf] %vm559, %v6238
  %6367 = vst.msk [vmem:[#allocation3 + $0x54] sm:$0xf] %vm559, %v6239
  %6368 = vst.msk [vmem:[#allocation3 + $0x58] sm:$0xf] %vm559, %v6240
  %6369 = vst.msk [vmem:[#allocation3 + $0x5c] sm:$0xf] %vm559, %v6241
  %6370 = vst.msk [vmem:[#allocation3 + $0x60] sm:$0xf] %vm559, %v6242
  %6371 = vst.msk [vmem:[#allocation3 + $0x64] sm:$0xf] %vm559, %v6243
  %6372 = vst.msk [vmem:[#allocation3 + $0x68] sm:$0xf] %vm559, %v6244
  %6373 = vst.msk [vmem:[#allocation3 + $0x6c] sm:$0xf] %vm559, %v6245
  %6374 = vst.msk [vmem:[#allocation3 + $0x70] sm:$0xf] %vm559, %v6246
  %6375 = vst.msk [vmem:[#allocation3 + $0x74] sm:$0xf] %vm559, %v6247
  %6376 = vst.msk [vmem:[#allocation3 + $0x78] sm:$0xf] %vm559, %v6248
  %6377 = vst.msk [vmem:[#allocation3 + $0x7c] sm:$0xf] %vm559, %v6249
  %6378 = vst.msk [vmem:[#allocation3 + $0x80] sm:$0xf] %vm559, %v6250
  %6379 = vst.msk [vmem:[#allocation3 + $0x84] sm:$0xf] %vm559, %v6251
  %6380 = vst.msk [vmem:[#allocation3 + $0x88] sm:$0xf] %vm559, %v6252
  %6381 = vst.msk [vmem:[#allocation3 + $0x8c] sm:$0xf] %vm559, %v6253
  %6382 = vst.msk [vmem:[#allocation3 + $0x90] sm:$0xf] %vm559, %v6254
  %6383 = vst.msk [vmem:[#allocation3 + $0x94] sm:$0xf] %vm559, %v6255
  %6384 = vst.msk [vmem:[#allocation3 + $0x98] sm:$0xf] %vm559, %v6256
  %6385 = vst.msk [vmem:[#allocation3 + $0x9c] sm:$0xf] %vm559, %v6257
  %6386 = vst.msk [vmem:[#allocation3 + $0xa0] sm:$0xf] %vm559, %v6258
  %6387 = vst.msk [vmem:[#allocation3 + $0xa4] sm:$0xf] %vm559, %v6259
  %6388 = vst.msk [vmem:[#allocation3 + $0xa8] sm:$0xf] %vm559, %v6260
  %6389 = vst.msk [vmem:[#allocation3 + $0xac] sm:$0xf] %vm559, %v6261
  %6390 = vst.msk [vmem:[#allocation3 + $0xb0] sm:$0xf] %vm559, %v6262
  %6391 = vst.msk [vmem:[#allocation3 + $0xb4] sm:$0xf] %vm559, %v6263
  %6392 = vst.msk [vmem:[#allocation3 + $0xb8] sm:$0xf] %vm559, %v6264
  %6393 = vst.msk [vmem:[#allocation3 + $0xbc] sm:$0xf] %vm559, %v6265
  %6394 = vst.msk [vmem:[#allocation3 + $0xc0] sm:$0xf] %vm559, %v6266
  %6395 = vst.msk [vmem:[#allocation3 + $0xc4] sm:$0xf] %vm559, %v6267
  %6396 = vst.msk [vmem:[#allocation3 + $0xc8] sm:$0xf] %vm559, %v6268
  %6397 = vst.msk [vmem:[#allocation3 + $0xcc] sm:$0xf] %vm559, %v6269
  %6398 = vst.msk [vmem:[#allocation3 + $0xd0] sm:$0xf] %vm559, %v6270
  %6399 = vst.msk [vmem:[#allocation3 + $0xd4] sm:$0xf] %vm559, %v6271
  %6400 = vst.msk [vmem:[#allocation3 + $0xd8] sm:$0xf] %vm559, %v6272
  %6401 = vst.msk [vmem:[#allocation3 + $0xdc] sm:$0xf] %vm559, %v6273
  %6402 = vst.msk [vmem:[#allocation3 + $0xe0] sm:$0xf] %vm559, %v6274
  %6403 = vst.msk [vmem:[#allocation3 + $0xe4] sm:$0xf] %vm559, %v6275
  %6404 = vst.msk [vmem:[#allocation3 + $0xe8] sm:$0xf] %vm559, %v6276
  %6405 = vst.msk [vmem:[#allocation3 + $0xec] sm:$0xf] %vm559, %v6277
  %6406 = vst.msk [vmem:[#allocation3 + $0xf0] sm:$0xf] %vm559, %v6278
  %6407 = vst.msk [vmem:[#allocation3 + $0xf4] sm:$0xf] %vm559, %v6279
  %6408 = vst.msk [vmem:[#allocation3 + $0xf8] sm:$0xf] %vm559, %v6280
  %6409 = vst.msk [vmem:[#allocation3 + $0xfc] sm:$0xf] %vm559, %v6281
  %v6410 = vld [vmem:[#allocation2 + $0x1] sm:$0xff]
  %v6411 = vld [vmem:[#allocation2 + $0x9] sm:$0xff]
  %v6412 = vld [vmem:[#allocation2 + $0x19] sm:$0xff]
  %v6413 = vld [vmem:[#allocation2 + $0x21] sm:$0xff]
  %v6414 = vld [vmem:[#allocation2 + $0x31] sm:$0xff]
  %v6415 = vld [vmem:[#allocation2 + $0x39] sm:$0xff]
  %v6416 = vld [vmem:[#allocation2 + $0x49] sm:$0xff]
  %v6417 = vld [vmem:[#allocation2 + $0x51] sm:$0xff]
  %v6418 = vld [vmem:[#allocation2 + $0x61] sm:$0xff]
  %v6419 = vld [vmem:[#allocation2 + $0x69] sm:$0xff]
  %v6420 = vld [vmem:[#allocation2 + $0x79] sm:$0xff]
  %v6421 = vld [vmem:[#allocation2 + $0x81] sm:$0xff]
  %v6422 = vld [vmem:[#allocation2 + $0x91] sm:$0xff]
  %v6423 = vld [vmem:[#allocation2 + $0x99] sm:$0xff]
  %v6424 = vld [vmem:[#allocation2 + $0xa9] sm:$0xff]
  %v6425 = vld [vmem:[#allocation2 + $0xb1] sm:$0xff]
  %v6426 = vld [vmem:[#allocation2 + $0xc1] sm:$0xff]
  %v6427 = vld [vmem:[#allocation2 + $0xc9] sm:$0xff]
  %v6428 = vld [vmem:[#allocation2 + $0xd9] sm:$0xff]
  %v6429 = vld [vmem:[#allocation2 + $0xe1] sm:$0xff]
  %v6430 = vld [vmem:[#allocation2 + $0xf1] sm:$0xff]
  %v6431 = vld [vmem:[#allocation2 + $0xf9] sm:$0xff]
  %v6432 = vld [vmem:[#allocation2 + $0x109] sm:$0xff]
  %v6433 = vld [vmem:[#allocation2 + $0x111] sm:$0xff]
  %v6434 = vld [vmem:[#allocation2 + $0x121] sm:$0xff]
  %v6435 = vld [vmem:[#allocation2 + $0x129] sm:$0xff]
  %v6436 = vld [vmem:[#allocation2 + $0x139] sm:$0xff]
  %v6437 = vld [vmem:[#allocation2 + $0x141] sm:$0xff]
  %v6438 = vld [vmem:[#allocation2 + $0x151] sm:$0xff]
  %v6439 = vld [vmem:[#allocation2 + $0x159] sm:$0xff]
  %v6440 = vld [vmem:[#allocation2 + $0x169] sm:$0xff]
  %v6441 = vld [vmem:[#allocation2 + $0x171] sm:$0xff]
  %v6442 = vld [vmem:[#allocation2 + $0x1b1] sm:$0xff]
  %v6443 = vld [vmem:[#allocation2 + $0x1b9] sm:$0xff]
  %v6444 = vld [vmem:[#allocation2 + $0x1c9] sm:$0xff]
  %v6445 = vld [vmem:[#allocation2 + $0x1d1] sm:$0xff]
  %v6446 = vld [vmem:[#allocation2 + $0x1e1] sm:$0xff]
  %v6447 = vld [vmem:[#allocation2 + $0x1e9] sm:$0xff]
  %v6448 = vld [vmem:[#allocation2 + $0x1f9] sm:$0xff]
  %v6449 = vld [vmem:[#allocation2 + $0x201] sm:$0xff]
  %v6450 = vld [vmem:[#allocation2 + $0x211] sm:$0xff]
  %v6451 = vld [vmem:[#allocation2 + $0x219] sm:$0xff]
  %v6452 = vld [vmem:[#allocation2 + $0x229] sm:$0xff]
  %v6453 = vld [vmem:[#allocation2 + $0x231] sm:$0xff]
  %v6454 = vld [vmem:[#allocation2 + $0x241] sm:$0xff]
  %v6455 = vld [vmem:[#allocation2 + $0x249] sm:$0xff]
  %v6456 = vld [vmem:[#allocation2 + $0x259] sm:$0xff]
  %v6457 = vld [vmem:[#allocation2 + $0x261] sm:$0xff]
  %v6458 = vld [vmem:[#allocation2 + $0x271] sm:$0xff]
  %v6459 = vld [vmem:[#allocation2 + $0x279] sm:$0xff]
  %v6460 = vld [vmem:[#allocation2 + $0x289] sm:$0xff]
  %v6461 = vld [vmem:[#allocation2 + $0x291] sm:$0xff]
  %v6462 = vld [vmem:[#allocation2 + $0x2a1] sm:$0xff]
  %v6463 = vld [vmem:[#allocation2 + $0x2a9] sm:$0xff]
  %v6464 = vld [vmem:[#allocation2 + $0x2b9] sm:$0xff]
  %v6465 = vld [vmem:[#allocation2 + $0x2c1] sm:$0xff]
  %v6466 = vld [vmem:[#allocation2 + $0x2d1] sm:$0xff]
  %v6467 = vld [vmem:[#allocation2 + $0x2d9] sm:$0xff]
  %v6468 = vld [vmem:[#allocation2 + $0x2e9] sm:$0xff]
  %v6469 = vld [vmem:[#allocation2 + $0x2f1] sm:$0xff]
  %v6470 = vld [vmem:[#allocation2 + $0x301] sm:$0xff]
  %v6471 = vld [vmem:[#allocation2 + $0x309] sm:$0xff]
  %v6472 = vld [vmem:[#allocation2 + $0x319] sm:$0xff]
  %v6473 = vld [vmem:[#allocation2 + $0x321] sm:$0xff]
  %v6474 = vpack.c.bf16 %v6411, %v6410
  %v6475 = vpack.c.bf16 %v6413, %v6412
  %v6476 = vpack.c.bf16 %v6415, %v6414
  %v6477 = vpack.c.bf16 %v6417, %v6416
  %v6478 = vpack.c.bf16 %v6419, %v6418
  %v6479 = vpack.c.bf16 %v6421, %v6420
  %v6480 = vpack.c.bf16 %v6423, %v6422
  %v6481 = vpack.c.bf16 %v6425, %v6424
  %v6482 = vpack.c.bf16 %v6427, %v6426
  %v6483 = vpack.c.bf16 %v6429, %v6428
  %v6484 = vpack.c.bf16 %v6431, %v6430
  %v6485 = vpack.c.bf16 %v6433, %v6432
  %v6486 = vpack.c.bf16 %v6435, %v6434
  %v6487 = vpack.c.bf16 %v6437, %v6436
  %v6488 = vpack.c.bf16 %v6439, %v6438
  %v6489 = vpack.c.bf16 %v6441, %v6440
  %v6490 = vpack.c.bf16 %v6443, %v6442
  %v6491 = vpack.c.bf16 %v6445, %v6444
  %v6492 = vpack.c.bf16 %v6447, %v6446
  %v6493 = vpack.c.bf16 %v6449, %v6448
  %v6494 = vpack.c.bf16 %v6451, %v6450
  %v6495 = vpack.c.bf16 %v6453, %v6452
  %v6496 = vpack.c.bf16 %v6455, %v6454
  %v6497 = vpack.c.bf16 %v6457, %v6456
  %v6498 = vpack.c.bf16 %v6459, %v6458
  %v6499 = vpack.c.bf16 %v6461, %v6460
  %v6500 = vpack.c.bf16 %v6463, %v6462
  %v6501 = vpack.c.bf16 %v6465, %v6464
  %v6502 = vpack.c.bf16 %v6467, %v6466
  %v6503 = vpack.c.bf16 %v6469, %v6468
  %v6504 = vpack.c.bf16 %v6471, %v6470
  %v6505 = vpack.c.bf16 %v6473, %v6472
  %v6538 = vunpack.c.l.b16 %v6474
  %v6539 = vunpack.c.h.b16 %v6474
  %v6540 = vunpack.c.l.b16 %v6475
  %v6541 = vunpack.c.h.b16 %v6475
  %v6542 = vunpack.c.l.b16 %v6476
  %v6543 = vunpack.c.h.b16 %v6476
  %v6544 = vunpack.c.l.b16 %v6477
  %v6545 = vunpack.c.h.b16 %v6477
  %v6546 = vunpack.c.l.b16 %v6478
  %v6547 = vunpack.c.h.b16 %v6478
  %v6548 = vunpack.c.l.b16 %v6479
  %v6549 = vunpack.c.h.b16 %v6479
  %v6550 = vunpack.c.l.b16 %v6480
  %v6551 = vunpack.c.h.b16 %v6480
  %v6552 = vunpack.c.l.b16 %v6481
  %v6553 = vunpack.c.h.b16 %v6481
  %v6554 = vunpack.c.l.b16 %v6482
  %v6555 = vunpack.c.h.b16 %v6482
  %v6556 = vunpack.c.l.b16 %v6483
  %v6557 = vunpack.c.h.b16 %v6483
  %v6558 = vunpack.c.l.b16 %v6484
  %v6559 = vunpack.c.h.b16 %v6484
  %v6560 = vunpack.c.l.b16 %v6485
  %v6561 = vunpack.c.h.b16 %v6485
  %v6562 = vunpack.c.l.b16 %v6486
  %v6563 = vunpack.c.h.b16 %v6486
  %v6564 = vunpack.c.l.b16 %v6487
  %v6565 = vunpack.c.h.b16 %v6487
  %v6566 = vunpack.c.l.b16 %v6488
  %v6567 = vunpack.c.h.b16 %v6488
  %v6568 = vunpack.c.l.b16 %v6489
  %v6569 = vunpack.c.h.b16 %v6489
  %v6570 = vunpack.c.l.b16 %v6490
  %v6571 = vunpack.c.h.b16 %v6490
  %v6572 = vunpack.c.l.b16 %v6491
  %v6573 = vunpack.c.h.b16 %v6491
  %v6574 = vunpack.c.l.b16 %v6492
  %v6575 = vunpack.c.h.b16 %v6492
  %v6576 = vunpack.c.l.b16 %v6493
  %v6577 = vunpack.c.h.b16 %v6493
  %v6578 = vunpack.c.l.b16 %v6494
  %v6579 = vunpack.c.h.b16 %v6494
  %v6580 = vunpack.c.l.b16 %v6495
  %v6581 = vunpack.c.h.b16 %v6495
  %v6582 = vunpack.c.l.b16 %v6496
  %v6583 = vunpack.c.h.b16 %v6496
  %v6584 = vunpack.c.l.b16 %v6497
  %v6585 = vunpack.c.h.b16 %v6497
  %v6586 = vunpack.c.l.b16 %v6498
  %v6587 = vunpack.c.h.b16 %v6498
  %v6588 = vunpack.c.l.b16 %v6499
  %v6589 = vunpack.c.h.b16 %v6499
  %v6590 = vunpack.c.l.b16 %v6500
  %v6591 = vunpack.c.h.b16 %v6500
  %v6592 = vunpack.c.l.b16 %v6501
  %v6593 = vunpack.c.h.b16 %v6501
  %v6594 = vunpack.c.l.b16 %v6502
  %v6595 = vunpack.c.h.b16 %v6502
  %v6596 = vunpack.c.l.b16 %v6503
  %v6597 = vunpack.c.h.b16 %v6503
  %v6598 = vunpack.c.l.b16 %v6504
  %v6599 = vunpack.c.h.b16 %v6504
  %v6600 = vunpack.c.l.b16 %v6505
  %v6601 = vunpack.c.h.b16 %v6505
  %v6602 = vpack.c.b16 %v6538, %v6538
  %v6603 = vpack.c.b16 %v6539, %v6539
  %v6604 = vpack.c.b16 %v6540, %v6540
  %v6605 = vpack.c.b16 %v6541, %v6541
  %v6606 = vpack.c.b16 %v6542, %v6542
  %v6607 = vpack.c.b16 %v6543, %v6543
  %v6608 = vpack.c.b16 %v6544, %v6544
  %v6609 = vpack.c.b16 %v6545, %v6545
  %v6610 = vpack.c.b16 %v6546, %v6546
  %v6611 = vpack.c.b16 %v6547, %v6547
  %v6612 = vpack.c.b16 %v6548, %v6548
  %v6613 = vpack.c.b16 %v6549, %v6549
  %v6614 = vpack.c.b16 %v6550, %v6550
  %v6615 = vpack.c.b16 %v6551, %v6551
  %v6616 = vpack.c.b16 %v6552, %v6552
  %v6617 = vpack.c.b16 %v6553, %v6553
  %v6618 = vpack.c.b16 %v6554, %v6554
  %v6619 = vpack.c.b16 %v6555, %v6555
  %v6620 = vpack.c.b16 %v6556, %v6556
  %v6621 = vpack.c.b16 %v6557, %v6557
  %v6622 = vpack.c.b16 %v6558, %v6558
  %v6623 = vpack.c.b16 %v6559, %v6559
  %v6624 = vpack.c.b16 %v6560, %v6560
  %v6625 = vpack.c.b16 %v6561, %v6561
  %v6626 = vpack.c.b16 %v6562, %v6562
  %v6627 = vpack.c.b16 %v6563, %v6563
  %v6628 = vpack.c.b16 %v6564, %v6564
  %v6629 = vpack.c.b16 %v6565, %v6565
  %v6630 = vpack.c.b16 %v6566, %v6566
  %v6631 = vpack.c.b16 %v6567, %v6567
  %v6632 = vpack.c.b16 %v6568, %v6568
  %v6633 = vpack.c.b16 %v6569, %v6569
  %v6634 = vpack.c.b16 %v6570, %v6570
  %v6635 = vpack.c.b16 %v6571, %v6571
  %v6636 = vpack.c.b16 %v6572, %v6572
  %v6637 = vpack.c.b16 %v6573, %v6573
  %v6638 = vpack.c.b16 %v6574, %v6574
  %v6639 = vpack.c.b16 %v6575, %v6575
  %v6640 = vpack.c.b16 %v6576, %v6576
  %v6641 = vpack.c.b16 %v6577, %v6577
  %v6642 = vpack.c.b16 %v6578, %v6578
  %v6643 = vpack.c.b16 %v6579, %v6579
  %v6644 = vpack.c.b16 %v6580, %v6580
  %v6645 = vpack.c.b16 %v6581, %v6581
  %v6646 = vpack.c.b16 %v6582, %v6582
  %v6647 = vpack.c.b16 %v6583, %v6583
  %v6648 = vpack.c.b16 %v6584, %v6584
  %v6649 = vpack.c.b16 %v6585, %v6585
  %v6650 = vpack.c.b16 %v6586, %v6586
  %v6651 = vpack.c.b16 %v6587, %v6587
  %v6652 = vpack.c.b16 %v6588, %v6588
  %v6653 = vpack.c.b16 %v6589, %v6589
  %v6654 = vpack.c.b16 %v6590, %v6590
  %v6655 = vpack.c.b16 %v6591, %v6591
  %v6656 = vpack.c.b16 %v6592, %v6592
  %v6657 = vpack.c.b16 %v6593, %v6593
  %v6658 = vpack.c.b16 %v6594, %v6594
  %v6659 = vpack.c.b16 %v6595, %v6595
  %v6660 = vpack.c.b16 %v6596, %v6596
  %v6661 = vpack.c.b16 %v6597, %v6597
  %v6662 = vpack.c.b16 %v6598, %v6598
  %v6663 = vpack.c.b16 %v6599, %v6599
  %v6664 = vpack.c.b16 %v6600, %v6600
  %v6665 = vpack.c.b16 %v6601, %v6601
  %6666 = vrot.lane.b32.xlu0 %v6602, 4
  %v6667 = vpop.permute.xlu0 %6666
  %6668 = vrot.lane.b32.xlu0 %v6603, 4
  %v6669 = vpop.permute.xlu0 %6668
  %6670 = vrot.lane.b32.xlu0 %v6604, 4
  %v6671 = vpop.permute.xlu0 %6670
  %6672 = vrot.lane.b32.xlu0 %v6605, 4
  %v6673 = vpop.permute.xlu0 %6672
  %6674 = vrot.lane.b32.xlu0 %v6606, 4
  %v6675 = vpop.permute.xlu0 %6674
  %6676 = vrot.lane.b32.xlu0 %v6607, 4
  %v6677 = vpop.permute.xlu0 %6676
  %6678 = vrot.lane.b32.xlu0 %v6608, 4
  %v6679 = vpop.permute.xlu0 %6678
  %6680 = vrot.lane.b32.xlu0 %v6609, 4
  %v6681 = vpop.permute.xlu0 %6680
  %6682 = vrot.lane.b32.xlu0 %v6610, 4
  %v6683 = vpop.permute.xlu0 %6682
  %6684 = vrot.lane.b32.xlu0 %v6611, 4
  %v6685 = vpop.permute.xlu0 %6684
  %6686 = vrot.lane.b32.xlu0 %v6612, 4
  %v6687 = vpop.permute.xlu0 %6686
  %6688 = vrot.lane.b32.xlu0 %v6613, 4
  %v6689 = vpop.permute.xlu0 %6688
  %6690 = vrot.lane.b32.xlu0 %v6614, 4
  %v6691 = vpop.permute.xlu0 %6690
  %6692 = vrot.lane.b32.xlu0 %v6615, 4
  %v6693 = vpop.permute.xlu0 %6692
  %6694 = vrot.lane.b32.xlu0 %v6616, 4
  %v6695 = vpop.permute.xlu0 %6694
  %6696 = vrot.lane.b32.xlu0 %v6617, 4
  %v6697 = vpop.permute.xlu0 %6696
  %6698 = vrot.lane.b32.xlu0 %v6618, 4
  %v6699 = vpop.permute.xlu0 %6698
  %6700 = vrot.lane.b32.xlu0 %v6619, 4
  %v6701 = vpop.permute.xlu0 %6700
  %6702 = vrot.lane.b32.xlu0 %v6620, 4
  %v6703 = vpop.permute.xlu0 %6702
  %6704 = vrot.lane.b32.xlu0 %v6621, 4
  %v6705 = vpop.permute.xlu0 %6704
  %6706 = vrot.lane.b32.xlu0 %v6622, 4
  %v6707 = vpop.permute.xlu0 %6706
  %6708 = vrot.lane.b32.xlu0 %v6623, 4
  %v6709 = vpop.permute.xlu0 %6708
  %6710 = vrot.lane.b32.xlu0 %v6624, 4
  %v6711 = vpop.permute.xlu0 %6710
  %6712 = vrot.lane.b32.xlu0 %v6625, 4
  %v6713 = vpop.permute.xlu0 %6712
  %6714 = vrot.lane.b32.xlu0 %v6626, 4
  %v6715 = vpop.permute.xlu0 %6714
  %6716 = vrot.lane.b32.xlu0 %v6627, 4
  %v6717 = vpop.permute.xlu0 %6716
  %6718 = vrot.lane.b32.xlu0 %v6628, 4
  %v6719 = vpop.permute.xlu0 %6718
  %6720 = vrot.lane.b32.xlu0 %v6629, 4
  %v6721 = vpop.permute.xlu0 %6720
  %6722 = vrot.lane.b32.xlu0 %v6630, 4
  %v6723 = vpop.permute.xlu0 %6722
  %6724 = vrot.lane.b32.xlu0 %v6631, 4
  %v6725 = vpop.permute.xlu0 %6724
  %6726 = vrot.lane.b32.xlu0 %v6632, 4
  %v6727 = vpop.permute.xlu0 %6726
  %6728 = vrot.lane.b32.xlu0 %v6633, 4
  %v6729 = vpop.permute.xlu0 %6728
  %6730 = vrot.lane.b32.xlu0 %v6634, 4
  %v6731 = vpop.permute.xlu0 %6730
  %6732 = vrot.lane.b32.xlu0 %v6635, 4
  %v6733 = vpop.permute.xlu0 %6732
  %6734 = vrot.lane.b32.xlu0 %v6636, 4
  %v6735 = vpop.permute.xlu0 %6734
  %6736 = vrot.lane.b32.xlu0 %v6637, 4
  %v6737 = vpop.permute.xlu0 %6736
  %6738 = vrot.lane.b32.xlu0 %v6638, 4
  %v6739 = vpop.permute.xlu0 %6738
  %6740 = vrot.lane.b32.xlu0 %v6639, 4
  %v6741 = vpop.permute.xlu0 %6740
  %6742 = vrot.lane.b32.xlu0 %v6640, 4
  %v6743 = vpop.permute.xlu0 %6742
  %6744 = vrot.lane.b32.xlu0 %v6641, 4
  %v6745 = vpop.permute.xlu0 %6744
  %6746 = vrot.lane.b32.xlu0 %v6642, 4
  %v6747 = vpop.permute.xlu0 %6746
  %6748 = vrot.lane.b32.xlu0 %v6643, 4
  %v6749 = vpop.permute.xlu0 %6748
  %6750 = vrot.lane.b32.xlu0 %v6644, 4
  %v6751 = vpop.permute.xlu0 %6750
  %6752 = vrot.lane.b32.xlu0 %v6645, 4
  %v6753 = vpop.permute.xlu0 %6752
  %6754 = vrot.lane.b32.xlu0 %v6646, 4
  %v6755 = vpop.permute.xlu0 %6754
  %6756 = vrot.lane.b32.xlu0 %v6647, 4
  %v6757 = vpop.permute.xlu0 %6756
  %6758 = vrot.lane.b32.xlu0 %v6648, 4
  %v6759 = vpop.permute.xlu0 %6758
  %6760 = vrot.lane.b32.xlu0 %v6649, 4
  %v6761 = vpop.permute.xlu0 %6760
  %6762 = vrot.lane.b32.xlu0 %v6650, 4
  %v6763 = vpop.permute.xlu0 %6762
  %6764 = vrot.lane.b32.xlu0 %v6651, 4
  %v6765 = vpop.permute.xlu0 %6764
  %6766 = vrot.lane.b32.xlu0 %v6652, 4
  %v6767 = vpop.permute.xlu0 %6766
  %6768 = vrot.lane.b32.xlu0 %v6653, 4
  %v6769 = vpop.permute.xlu0 %6768
  %6770 = vrot.lane.b32.xlu0 %v6654, 4
  %v6771 = vpop.permute.xlu0 %6770
  %6772 = vrot.lane.b32.xlu0 %v6655, 4
  %v6773 = vpop.permute.xlu0 %6772
  %6774 = vrot.lane.b32.xlu0 %v6656, 4
  %v6775 = vpop.permute.xlu0 %6774
  %6776 = vrot.lane.b32.xlu0 %v6657, 4
  %v6777 = vpop.permute.xlu0 %6776
  %6778 = vrot.lane.b32.xlu0 %v6658, 4
  %v6779 = vpop.permute.xlu0 %6778
  %6780 = vrot.lane.b32.xlu0 %v6659, 4
  %v6781 = vpop.permute.xlu0 %6780
  %6782 = vrot.lane.b32.xlu0 %v6660, 4
  %v6783 = vpop.permute.xlu0 %6782
  %6784 = vrot.lane.b32.xlu0 %v6661, 4
  %v6785 = vpop.permute.xlu0 %6784
  %6786 = vrot.lane.b32.xlu0 %v6662, 4
  %v6787 = vpop.permute.xlu0 %6786
  %6788 = vrot.lane.b32.xlu0 %v6663, 4
  %v6789 = vpop.permute.xlu0 %6788
  %6790 = vrot.lane.b32.xlu0 %v6664, 4
  %v6791 = vpop.permute.xlu0 %6790
  %6792 = vrot.lane.b32.xlu0 %v6665, 4
  %v6793 = vpop.permute.xlu0 %6792
  %6858 = vst.msk [vmem:[#allocation3] sm:$0xf] %vm1072, %v6667
  %6859 = vst.msk [vmem:[#allocation3 + $0x4] sm:$0xf] %vm1072, %v6669
  %6860 = vst.msk [vmem:[#allocation3 + $0x8] sm:$0xf] %vm1072, %v6671
  %6861 = vst.msk [vmem:[#allocation3 + $0xc] sm:$0xf] %vm1072, %v6673
  %6862 = vst.msk [vmem:[#allocation3 + $0x10] sm:$0xf] %vm1072, %v6675
  %6863 = vst.msk [vmem:[#allocation3 + $0x14] sm:$0xf] %vm1072, %v6677
  %6864 = vst.msk [vmem:[#allocation3 + $0x18] sm:$0xf] %vm1072, %v6679
  %6865 = vst.msk [vmem:[#allocation3 + $0x1c] sm:$0xf] %vm1072, %v6681
  %6866 = vst.msk [vmem:[#allocation3 + $0x20] sm:$0xf] %vm1072, %v6683
  %6867 = vst.msk [vmem:[#allocation3 + $0x24] sm:$0xf] %vm1072, %v6685
  %6868 = vst.msk [vmem:[#allocation3 + $0x28] sm:$0xf] %vm1072, %v6687
  %6869 = vst.msk [vmem:[#allocation3 + $0x2c] sm:$0xf] %vm1072, %v6689
  %6870 = vst.msk [vmem:[#allocation3 + $0x30] sm:$0xf] %vm1072, %v6691
  %6871 = vst.msk [vmem:[#allocation3 + $0x34] sm:$0xf] %vm1072, %v6693
  %6872 = vst.msk [vmem:[#allocation3 + $0x38] sm:$0xf] %vm1072, %v6695
  %6873 = vst.msk [vmem:[#allocation3 + $0x3c] sm:$0xf] %vm1072, %v6697
  %6874 = vst.msk [vmem:[#allocation3 + $0x40] sm:$0xf] %vm1072, %v6699
  %6875 = vst.msk [vmem:[#allocation3 + $0x44] sm:$0xf] %vm1072, %v6701
  %6876 = vst.msk [vmem:[#allocation3 + $0x48] sm:$0xf] %vm1072, %v6703
  %6877 = vst.msk [vmem:[#allocation3 + $0x4c] sm:$0xf] %vm1072, %v6705
  %6878 = vst.msk [vmem:[#allocation3 + $0x50] sm:$0xf] %vm1072, %v6707
  %6879 = vst.msk [vmem:[#allocation3 + $0x54] sm:$0xf] %vm1072, %v6709
  %6880 = vst.msk [vmem:[#allocation3 + $0x58] sm:$0xf] %vm1072, %v6711
  %6881 = vst.msk [vmem:[#allocation3 + $0x5c] sm:$0xf] %vm1072, %v6713
  %6882 = vst.msk [vmem:[#allocation3 + $0x60] sm:$0xf] %vm1072, %v6715
  %6883 = vst.msk [vmem:[#allocation3 + $0x64] sm:$0xf] %vm1072, %v6717
  %6884 = vst.msk [vmem:[#allocation3 + $0x68] sm:$0xf] %vm1072, %v6719
  %6885 = vst.msk [vmem:[#allocation3 + $0x6c] sm:$0xf] %vm1072, %v6721
  %6886 = vst.msk [vmem:[#allocation3 + $0x70] sm:$0xf] %vm1072, %v6723
  %6887 = vst.msk [vmem:[#allocation3 + $0x74] sm:$0xf] %vm1072, %v6725
  %6888 = vst.msk [vmem:[#allocation3 + $0x78] sm:$0xf] %vm1072, %v6727
  %6889 = vst.msk [vmem:[#allocation3 + $0x7c] sm:$0xf] %vm1072, %v6729
  %6890 = vst.msk [vmem:[#allocation3 + $0x80] sm:$0xf] %vm1072, %v6731
  %6891 = vst.msk [vmem:[#allocation3 + $0x84] sm:$0xf] %vm1072, %v6733
  %6892 = vst.msk [vmem:[#allocation3 + $0x88] sm:$0xf] %vm1072, %v6735
  %6893 = vst.msk [vmem:[#allocation3 + $0x8c] sm:$0xf] %vm1072, %v6737
  %6894 = vst.msk [vmem:[#allocation3 + $0x90] sm:$0xf] %vm1072, %v6739
  %6895 = vst.msk [vmem:[#allocation3 + $0x94] sm:$0xf] %vm1072, %v6741
  %6896 = vst.msk [vmem:[#allocation3 + $0x98] sm:$0xf] %vm1072, %v6743
  %6897 = vst.msk [vmem:[#allocation3 + $0x9c] sm:$0xf] %vm1072, %v6745
  %6898 = vst.msk [vmem:[#allocation3 + $0xa0] sm:$0xf] %vm1072, %v6747
  %6899 = vst.msk [vmem:[#allocation3 + $0xa4] sm:$0xf] %vm1072, %v6749
  %6900 = vst.msk [vmem:[#allocation3 + $0xa8] sm:$0xf] %vm1072, %v6751
  %6901 = vst.msk [vmem:[#allocation3 + $0xac] sm:$0xf] %vm1072, %v6753
  %6902 = vst.msk [vmem:[#allocation3 + $0xb0] sm:$0xf] %vm1072, %v6755
  %6903 = vst.msk [vmem:[#allocation3 + $0xb4] sm:$0xf] %vm1072, %v6757
  %6904 = vst.msk [vmem:[#allocation3 + $0xb8] sm:$0xf] %vm1072, %v6759
  %6905 = vst.msk [vmem:[#allocation3 + $0xbc] sm:$0xf] %vm1072, %v6761
  %6906 = vst.msk [vmem:[#allocation3 + $0xc0] sm:$0xf] %vm1072, %v6763
  %6907 = vst.msk [vmem:[#allocation3 + $0xc4] sm:$0xf] %vm1072, %v6765
  %6908 = vst.msk [vmem:[#allocation3 + $0xc8] sm:$0xf] %vm1072, %v6767
  %6909 = vst.msk [vmem:[#allocation3 + $0xcc] sm:$0xf] %vm1072, %v6769
  %6910 = vst.msk [vmem:[#allocation3 + $0xd0] sm:$0xf] %vm1072, %v6771
  %6911 = vst.msk [vmem:[#allocation3 + $0xd4] sm:$0xf] %vm1072, %v6773
  %6912 = vst.msk [vmem:[#allocation3 + $0xd8] sm:$0xf] %vm1072, %v6775
  %6913 = vst.msk [vmem:[#allocation3 + $0xdc] sm:$0xf] %vm1072, %v6777
  %6914 = vst.msk [vmem:[#allocation3 + $0xe0] sm:$0xf] %vm1072, %v6779
  %6915 = vst.msk [vmem:[#allocation3 + $0xe4] sm:$0xf] %vm1072, %v6781
  %6916 = vst.msk [vmem:[#allocation3 + $0xe8] sm:$0xf] %vm1072, %v6783
  %6917 = vst.msk [vmem:[#allocation3 + $0xec] sm:$0xf] %vm1072, %v6785
  %6918 = vst.msk [vmem:[#allocation3 + $0xf0] sm:$0xf] %vm1072, %v6787
  %6919 = vst.msk [vmem:[#allocation3 + $0xf4] sm:$0xf] %vm1072, %v6789
  %6920 = vst.msk [vmem:[#allocation3 + $0xf8] sm:$0xf] %vm1072, %v6791
  %6921 = vst.msk [vmem:[#allocation3 + $0xfc] sm:$0xf] %vm1072, %v6793
  %v6922 = vld [vmem:[#allocation2 + $0x2] sm:$0xff]
  %v6923 = vld [vmem:[#allocation2 + $0xa] sm:$0xff]
  %v6924 = vld [vmem:[#allocation2 + $0x1a] sm:$0xff]
  %v6925 = vld [vmem:[#allocation2 + $0x22] sm:$0xff]
  %v6926 = vld [vmem:[#allocation2 + $0x32] sm:$0xff]
  %v6927 = vld [vmem:[#allocation2 + $0x3a] sm:$0xff]
  %v6928 = vld [vmem:[#allocation2 + $0x4a] sm:$0xff]
  %v6929 = vld [vmem:[#allocation2 + $0x52] sm:$0xff]
  %v6930 = vld [vmem:[#allocation2 + $0x62] sm:$0xff]
  %v6931 = vld [vmem:[#allocation2 + $0x6a] sm:$0xff]
  %v6932 = vld [vmem:[#allocation2 + $0x7a] sm:$0xff]
  %v6933 = vld [vmem:[#allocation2 + $0x82] sm:$0xff]
  %v6934 = vld [vmem:[#allocation2 + $0x92] sm:$0xff]
  %v6935 = vld [vmem:[#allocation2 + $0x9a] sm:$0xff]
  %v6936 = vld [vmem:[#allocation2 + $0xaa] sm:$0xff]
  %v6937 = vld [vmem:[#allocation2 + $0xb2] sm:$0xff]
  %v6938 = vld [vmem:[#allocation2 + $0xc2] sm:$0xff]
  %v6939 = vld [vmem:[#allocation2 + $0xca] sm:$0xff]
  %v6940 = vld [vmem:[#allocation2 + $0xda] sm:$0xff]
  %v6941 = vld [vmem:[#allocation2 + $0xe2] sm:$0xff]
  %v6942 = vld [vmem:[#allocation2 + $0xf2] sm:$0xff]
  %v6943 = vld [vmem:[#allocation2 + $0xfa] sm:$0xff]
  %v6944 = vld [vmem:[#allocation2 + $0x10a] sm:$0xff]
  %v6945 = vld [vmem:[#allocation2 + $0x112] sm:$0xff]
  %v6946 = vld [vmem:[#allocation2 + $0x122] sm:$0xff]
  %v6947 = vld [vmem:[#allocation2 + $0x12a] sm:$0xff]
  %v6948 = vld [vmem:[#allocation2 + $0x13a] sm:$0xff]
  %v6949 = vld [vmem:[#allocation2 + $0x142] sm:$0xff]
  %v6950 = vld [vmem:[#allocation2 + $0x152] sm:$0xff]
  %v6951 = vld [vmem:[#allocation2 + $0x15a] sm:$0xff]
  %v6952 = vld [vmem:[#allocation2 + $0x16a] sm:$0xff]
  %v6953 = vld [vmem:[#allocation2 + $0x172] sm:$0xff]
  %v6954 = vld [vmem:[#allocation2 + $0x1b2] sm:$0xff]
  %v6955 = vld [vmem:[#allocation2 + $0x1ba] sm:$0xff]
  %v6956 = vld [vmem:[#allocation2 + $0x1ca] sm:$0xff]
  %v6957 = vld [vmem:[#allocation2 + $0x1d2] sm:$0xff]
  %v6958 = vld [vmem:[#allocation2 + $0x1e2] sm:$0xff]
  %v6959 = vld [vmem:[#allocation2 + $0x1ea] sm:$0xff]
  %v6960 = vld [vmem:[#allocation2 + $0x1fa] sm:$0xff]
  %v6961 = vld [vmem:[#allocation2 + $0x202] sm:$0xff]
  %v6962 = vld [vmem:[#allocation2 + $0x212] sm:$0xff]
  %v6963 = vld [vmem:[#allocation2 + $0x21a] sm:$0xff]
  %v6964 = vld [vmem:[#allocation2 + $0x22a] sm:$0xff]
  %v6965 = vld [vmem:[#allocation2 + $0x232] sm:$0xff]
  %v6966 = vld [vmem:[#allocation2 + $0x242] sm:$0xff]
  %v6967 = vld [vmem:[#allocation2 + $0x24a] sm:$0xff]
  %v6968 = vld [vmem:[#allocation2 + $0x25a] sm:$0xff]
  %v6969 = vld [vmem:[#allocation2 + $0x262] sm:$0xff]
  %v6970 = vld [vmem:[#allocation2 + $0x272] sm:$0xff]
  %v6971 = vld [vmem:[#allocation2 + $0x27a] sm:$0xff]
  %v6972 = vld [vmem:[#allocation2 + $0x28a] sm:$0xff]
  %v6973 = vld [vmem:[#allocation2 + $0x292] sm:$0xff]
  %v6974 = vld [vmem:[#allocation2 + $0x2a2] sm:$0xff]
  %v6975 = vld [vmem:[#allocation2 + $0x2aa] sm:$0xff]
  %v6976 = vld [vmem:[#allocation2 + $0x2ba] sm:$0xff]
  %v6977 = vld [vmem:[#allocation2 + $0x2c2] sm:$0xff]
  %v6978 = vld [vmem:[#allocation2 + $0x2d2] sm:$0xff]
  %v6979 = vld [vmem:[#allocation2 + $0x2da] sm:$0xff]
  %v6980 = vld [vmem:[#allocation2 + $0x2ea] sm:$0xff]
  %v6981 = vld [vmem:[#allocation2 + $0x2f2] sm:$0xff]
  %v6982 = vld [vmem:[#allocation2 + $0x302] sm:$0xff]
  %v6983 = vld [vmem:[#allocation2 + $0x30a] sm:$0xff]
  %v6984 = vld [vmem:[#allocation2 + $0x31a] sm:$0xff]
  %v6985 = vld [vmem:[#allocation2 + $0x322] sm:$0xff]
  %v6986 = vpack.c.bf16 %v6923, %v6922
  %v6987 = vpack.c.bf16 %v6925, %v6924
  %v6988 = vpack.c.bf16 %v6927, %v6926
  %v6989 = vpack.c.bf16 %v6929, %v6928
  %v6990 = vpack.c.bf16 %v6931, %v6930
  %v6991 = vpack.c.bf16 %v6933, %v6932
  %v6992 = vpack.c.bf16 %v6935, %v6934
  %v6993 = vpack.c.bf16 %v6937, %v6936
  %v6994 = vpack.c.bf16 %v6939, %v6938
  %v6995 = vpack.c.bf16 %v6941, %v6940
  %v6996 = vpack.c.bf16 %v6943, %v6942
  %v6997 = vpack.c.bf16 %v6945, %v6944
  %v6998 = vpack.c.bf16 %v6947, %v6946
  %v6999 = vpack.c.bf16 %v6949, %v6948
  %v7000 = vpack.c.bf16 %v6951, %v6950
  %v7001 = vpack.c.bf16 %v6953, %v6952
  %v7002 = vpack.c.bf16 %v6955, %v6954
  %v7003 = vpack.c.bf16 %v6957, %v6956
  %v7004 = vpack.c.bf16 %v6959, %v6958
  %v7005 = vpack.c.bf16 %v6961, %v6960
  %v7006 = vpack.c.bf16 %v6963, %v6962
  %v7007 = vpack.c.bf16 %v6965, %v6964
  %v7008 = vpack.c.bf16 %v6967, %v6966
  %v7009 = vpack.c.bf16 %v6969, %v6968
  %v7010 = vpack.c.bf16 %v6971, %v6970
  %v7011 = vpack.c.bf16 %v6973, %v6972
  %v7012 = vpack.c.bf16 %v6975, %v6974
  %v7013 = vpack.c.bf16 %v6977, %v6976
  %v7014 = vpack.c.bf16 %v6979, %v6978
  %v7015 = vpack.c.bf16 %v6981, %v6980
  %v7016 = vpack.c.bf16 %v6983, %v6982
  %v7017 = vpack.c.bf16 %v6985, %v6984
  %v7050 = vunpack.c.l.b16 %v6986
  %v7051 = vunpack.c.h.b16 %v6986
  %v7052 = vunpack.c.l.b16 %v6987
  %v7053 = vunpack.c.h.b16 %v6987
  %v7054 = vunpack.c.l.b16 %v6988
  %v7055 = vunpack.c.h.b16 %v6988
  %v7056 = vunpack.c.l.b16 %v6989
  %v7057 = vunpack.c.h.b16 %v6989
  %v7058 = vunpack.c.l.b16 %v6990
  %v7059 = vunpack.c.h.b16 %v6990
  %v7060 = vunpack.c.l.b16 %v6991
  %v7061 = vunpack.c.h.b16 %v6991
  %v7062 = vunpack.c.l.b16 %v6992
  %v7063 = vunpack.c.h.b16 %v6992
  %v7064 = vunpack.c.l.b16 %v6993
  %v7065 = vunpack.c.h.b16 %v6993
  %v7066 = vunpack.c.l.b16 %v6994
  %v7067 = vunpack.c.h.b16 %v6994
  %v7068 = vunpack.c.l.b16 %v6995
  %v7069 = vunpack.c.h.b16 %v6995
  %v7070 = vunpack.c.l.b16 %v6996
  %v7071 = vunpack.c.h.b16 %v6996
  %v7072 = vunpack.c.l.b16 %v6997
  %v7073 = vunpack.c.h.b16 %v6997
  %v7074 = vunpack.c.l.b16 %v6998
  %v7075 = vunpack.c.h.b16 %v6998
  %v7076 = vunpack.c.l.b16 %v6999
  %v7077 = vunpack.c.h.b16 %v6999
  %v7078 = vunpack.c.l.b16 %v7000
  %v7079 = vunpack.c.h.b16 %v7000
  %v7080 = vunpack.c.l.b16 %v7001
  %v7081 = vunpack.c.h.b16 %v7001
  %v7082 = vunpack.c.l.b16 %v7002
  %v7083 = vunpack.c.h.b16 %v7002
  %v7084 = vunpack.c.l.b16 %v7003
  %v7085 = vunpack.c.h.b16 %v7003
  %v7086 = vunpack.c.l.b16 %v7004
  %v7087 = vunpack.c.h.b16 %v7004
  %v7088 = vunpack.c.l.b16 %v7005
  %v7089 = vunpack.c.h.b16 %v7005
  %v7090 = vunpack.c.l.b16 %v7006
  %v7091 = vunpack.c.h.b16 %v7006
  %v7092 = vunpack.c.l.b16 %v7007
  %v7093 = vunpack.c.h.b16 %v7007
  %v7094 = vunpack.c.l.b16 %v7008
  %v7095 = vunpack.c.h.b16 %v7008
  %v7096 = vunpack.c.l.b16 %v7009
  %v7097 = vunpack.c.h.b16 %v7009
  %v7098 = vunpack.c.l.b16 %v7010
  %v7099 = vunpack.c.h.b16 %v7010
  %v7100 = vunpack.c.l.b16 %v7011
  %v7101 = vunpack.c.h.b16 %v7011
  %v7102 = vunpack.c.l.b16 %v7012
  %v7103 = vunpack.c.h.b16 %v7012
  %v7104 = vunpack.c.l.b16 %v7013
  %v7105 = vunpack.c.h.b16 %v7013
  %v7106 = vunpack.c.l.b16 %v7014
  %v7107 = vunpack.c.h.b16 %v7014
  %v7108 = vunpack.c.l.b16 %v7015
  %v7109 = vunpack.c.h.b16 %v7015
  %v7110 = vunpack.c.l.b16 %v7016
  %v7111 = vunpack.c.h.b16 %v7016
  %v7112 = vunpack.c.l.b16 %v7017
  %v7113 = vunpack.c.h.b16 %v7017
  %v7114 = vpack.c.b16 %v7050, %v7050
  %v7115 = vpack.c.b16 %v7051, %v7051
  %v7116 = vpack.c.b16 %v7052, %v7052
  %v7117 = vpack.c.b16 %v7053, %v7053
  %v7118 = vpack.c.b16 %v7054, %v7054
  %v7119 = vpack.c.b16 %v7055, %v7055
  %v7120 = vpack.c.b16 %v7056, %v7056
  %v7121 = vpack.c.b16 %v7057, %v7057
  %v7122 = vpack.c.b16 %v7058, %v7058
  %v7123 = vpack.c.b16 %v7059, %v7059
  %v7124 = vpack.c.b16 %v7060, %v7060
  %v7125 = vpack.c.b16 %v7061, %v7061
  %v7126 = vpack.c.b16 %v7062, %v7062
  %v7127 = vpack.c.b16 %v7063, %v7063
  %v7128 = vpack.c.b16 %v7064, %v7064
  %v7129 = vpack.c.b16 %v7065, %v7065
  %v7130 = vpack.c.b16 %v7066, %v7066
  %v7131 = vpack.c.b16 %v7067, %v7067
  %v7132 = vpack.c.b16 %v7068, %v7068
  %v7133 = vpack.c.b16 %v7069, %v7069
  %v7134 = vpack.c.b16 %v7070, %v7070
  %v7135 = vpack.c.b16 %v7071, %v7071
  %v7136 = vpack.c.b16 %v7072, %v7072
  %v7137 = vpack.c.b16 %v7073, %v7073
  %v7138 = vpack.c.b16 %v7074, %v7074
  %v7139 = vpack.c.b16 %v7075, %v7075
  %v7140 = vpack.c.b16 %v7076, %v7076
  %v7141 = vpack.c.b16 %v7077, %v7077
  %v7142 = vpack.c.b16 %v7078, %v7078
  %v7143 = vpack.c.b16 %v7079, %v7079
  %v7144 = vpack.c.b16 %v7080, %v7080
  %v7145 = vpack.c.b16 %v7081, %v7081
  %v7146 = vpack.c.b16 %v7082, %v7082
  %v7147 = vpack.c.b16 %v7083, %v7083
  %v7148 = vpack.c.b16 %v7084, %v7084
  %v7149 = vpack.c.b16 %v7085, %v7085
  %v7150 = vpack.c.b16 %v7086, %v7086
  %v7151 = vpack.c.b16 %v7087, %v7087
  %v7152 = vpack.c.b16 %v7088, %v7088
  %v7153 = vpack.c.b16 %v7089, %v7089
  %v7154 = vpack.c.b16 %v7090, %v7090
  %v7155 = vpack.c.b16 %v7091, %v7091
  %v7156 = vpack.c.b16 %v7092, %v7092
  %v7157 = vpack.c.b16 %v7093, %v7093
  %v7158 = vpack.c.b16 %v7094, %v7094
  %v7159 = vpack.c.b16 %v7095, %v7095
  %v7160 = vpack.c.b16 %v7096, %v7096
  %v7161 = vpack.c.b16 %v7097, %v7097
  %v7162 = vpack.c.b16 %v7098, %v7098
  %v7163 = vpack.c.b16 %v7099, %v7099
  %v7164 = vpack.c.b16 %v7100, %v7100
  %v7165 = vpack.c.b16 %v7101, %v7101
  %v7166 = vpack.c.b16 %v7102, %v7102
  %v7167 = vpack.c.b16 %v7103, %v7103
  %v7168 = vpack.c.b16 %v7104, %v7104
  %v7169 = vpack.c.b16 %v7105, %v7105
  %v7170 = vpack.c.b16 %v7106, %v7106
  %v7171 = vpack.c.b16 %v7107, %v7107
  %v7172 = vpack.c.b16 %v7108, %v7108
  %v7173 = vpack.c.b16 %v7109, %v7109
  %v7174 = vpack.c.b16 %v7110, %v7110
  %v7175 = vpack.c.b16 %v7111, %v7111
  %v7176 = vpack.c.b16 %v7112, %v7112
  %v7177 = vpack.c.b16 %v7113, %v7113
  %7178 = vrot.lane.b32.xlu0 %v7114, 8
  %v7179 = vpop.permute.xlu0 %7178
  %7180 = vrot.lane.b32.xlu0 %v7115, 8
  %v7181 = vpop.permute.xlu0 %7180
  %7182 = vrot.lane.b32.xlu0 %v7116, 8
  %v7183 = vpop.permute.xlu0 %7182
  %7184 = vrot.lane.b32.xlu0 %v7117, 8
  %v7185 = vpop.permute.xlu0 %7184
  %7186 = vrot.lane.b32.xlu0 %v7118, 8
  %v7187 = vpop.permute.xlu0 %7186
  %7188 = vrot.lane.b32.xlu0 %v7119, 8
  %v7189 = vpop.permute.xlu0 %7188
  %7190 = vrot.lane.b32.xlu0 %v7120, 8
  %v7191 = vpop.permute.xlu0 %7190
  %7192 = vrot.lane.b32.xlu0 %v7121, 8
  %v7193 = vpop.permute.xlu0 %7192
  %7194 = vrot.lane.b32.xlu0 %v7122, 8
  %v7195 = vpop.permute.xlu0 %7194
  %7196 = vrot.lane.b32.xlu0 %v7123, 8
  %v7197 = vpop.permute.xlu0 %7196
  %7198 = vrot.lane.b32.xlu0 %v7124, 8
  %v7199 = vpop.permute.xlu0 %7198
  %7200 = vrot.lane.b32.xlu0 %v7125, 8
  %v7201 = vpop.permute.xlu0 %7200
  %7202 = vrot.lane.b32.xlu0 %v7126, 8
  %v7203 = vpop.permute.xlu0 %7202
  %7204 = vrot.lane.b32.xlu0 %v7127, 8
  %v7205 = vpop.permute.xlu0 %7204
  %7206 = vrot.lane.b32.xlu0 %v7128, 8
  %v7207 = vpop.permute.xlu0 %7206
  %7208 = vrot.lane.b32.xlu0 %v7129, 8
  %v7209 = vpop.permute.xlu0 %7208
  %7210 = vrot.lane.b32.xlu0 %v7130, 8
  %v7211 = vpop.permute.xlu0 %7210
  %7212 = vrot.lane.b32.xlu0 %v7131, 8
  %v7213 = vpop.permute.xlu0 %7212
  %7214 = vrot.lane.b32.xlu0 %v7132, 8
  %v7215 = vpop.permute.xlu0 %7214
  %7216 = vrot.lane.b32.xlu0 %v7133, 8
  %v7217 = vpop.permute.xlu0 %7216
  %7218 = vrot.lane.b32.xlu0 %v7134, 8
  %v7219 = vpop.permute.xlu0 %7218
  %7220 = vrot.lane.b32.xlu0 %v7135, 8
  %v7221 = vpop.permute.xlu0 %7220
  %7222 = vrot.lane.b32.xlu0 %v7136, 8
  %v7223 = vpop.permute.xlu0 %7222
  %7224 = vrot.lane.b32.xlu0 %v7137, 8
  %v7225 = vpop.permute.xlu0 %7224
  %7226 = vrot.lane.b32.xlu0 %v7138, 8
  %v7227 = vpop.permute.xlu0 %7226
  %7228 = vrot.lane.b32.xlu0 %v7139, 8
  %v7229 = vpop.permute.xlu0 %7228
  %7230 = vrot.lane.b32.xlu0 %v7140, 8
  %v7231 = vpop.permute.xlu0 %7230
  %7232 = vrot.lane.b32.xlu0 %v7141, 8
  %v7233 = vpop.permute.xlu0 %7232
  %7234 = vrot.lane.b32.xlu0 %v7142, 8
  %v7235 = vpop.permute.xlu0 %7234
  %7236 = vrot.lane.b32.xlu0 %v7143, 8
  %v7237 = vpop.permute.xlu0 %7236
  %7238 = vrot.lane.b32.xlu0 %v7144, 8
  %v7239 = vpop.permute.xlu0 %7238
  %7240 = vrot.lane.b32.xlu0 %v7145, 8
  %v7241 = vpop.permute.xlu0 %7240
  %7242 = vrot.lane.b32.xlu0 %v7146, 8
  %v7243 = vpop.permute.xlu0 %7242
  %7244 = vrot.lane.b32.xlu0 %v7147, 8
  %v7245 = vpop.permute.xlu0 %7244
  %7246 = vrot.lane.b32.xlu0 %v7148, 8
  %v7247 = vpop.permute.xlu0 %7246
  %7248 = vrot.lane.b32.xlu0 %v7149, 8
  %v7249 = vpop.permute.xlu0 %7248
  %7250 = vrot.lane.b32.xlu0 %v7150, 8
  %v7251 = vpop.permute.xlu0 %7250
  %7252 = vrot.lane.b32.xlu0 %v7151, 8
  %v7253 = vpop.permute.xlu0 %7252
  %7254 = vrot.lane.b32.xlu0 %v7152, 8
  %v7255 = vpop.permute.xlu0 %7254
  %7256 = vrot.lane.b32.xlu0 %v7153, 8
  %v7257 = vpop.permute.xlu0 %7256
  %7258 = vrot.lane.b32.xlu0 %v7154, 8
  %v7259 = vpop.permute.xlu0 %7258
  %7260 = vrot.lane.b32.xlu0 %v7155, 8
  %v7261 = vpop.permute.xlu0 %7260
  %7262 = vrot.lane.b32.xlu0 %v7156, 8
  %v7263 = vpop.permute.xlu0 %7262
  %7264 = vrot.lane.b32.xlu0 %v7157, 8
  %v7265 = vpop.permute.xlu0 %7264
  %7266 = vrot.lane.b32.xlu0 %v7158, 8
  %v7267 = vpop.permute.xlu0 %7266
  %7268 = vrot.lane.b32.xlu0 %v7159, 8
  %v7269 = vpop.permute.xlu0 %7268
  %7270 = vrot.lane.b32.xlu0 %v7160, 8
  %v7271 = vpop.permute.xlu0 %7270
  %7272 = vrot.lane.b32.xlu0 %v7161, 8
  %v7273 = vpop.permute.xlu0 %7272
  %7274 = vrot.lane.b32.xlu0 %v7162, 8
  %v7275 = vpop.permute.xlu0 %7274
  %7276 = vrot.lane.b32.xlu0 %v7163, 8
  %v7277 = vpop.permute.xlu0 %7276
  %7278 = vrot.lane.b32.xlu0 %v7164, 8
  %v7279 = vpop.permute.xlu0 %7278
  %7280 = vrot.lane.b32.xlu0 %v7165, 8
  %v7281 = vpop.permute.xlu0 %7280
  %7282 = vrot.lane.b32.xlu0 %v7166, 8
  %v7283 = vpop.permute.xlu0 %7282
  %7284 = vrot.lane.b32.xlu0 %v7167, 8
  %v7285 = vpop.permute.xlu0 %7284
  %7286 = vrot.lane.b32.xlu0 %v7168, 8
  %v7287 = vpop.permute.xlu0 %7286
  %7288 = vrot.lane.b32.xlu0 %v7169, 8
  %v7289 = vpop.permute.xlu0 %7288
  %7290 = vrot.lane.b32.xlu0 %v7170, 8
  %v7291 = vpop.permute.xlu0 %7290
  %7292 = vrot.lane.b32.xlu0 %v7171, 8
  %v7293 = vpop.permute.xlu0 %7292
  %7294 = vrot.lane.b32.xlu0 %v7172, 8
  %v7295 = vpop.permute.xlu0 %7294
  %7296 = vrot.lane.b32.xlu0 %v7173, 8
  %v7297 = vpop.permute.xlu0 %7296
  %7298 = vrot.lane.b32.xlu0 %v7174, 8
  %v7299 = vpop.permute.xlu0 %7298
  %7300 = vrot.lane.b32.xlu0 %v7175, 8
  %v7301 = vpop.permute.xlu0 %7300
  %7302 = vrot.lane.b32.xlu0 %v7176, 8
  %v7303 = vpop.permute.xlu0 %7302
  %7304 = vrot.lane.b32.xlu0 %v7177, 8
  %v7305 = vpop.permute.xlu0 %7304
  %7370 = vst.msk [vmem:[#allocation3] sm:$0xf] %vm1585, %v7179
  %7371 = vst.msk [vmem:[#allocation3 + $0x4] sm:$0xf] %vm1585, %v7181
  %7372 = vst.msk [vmem:[#allocation3 + $0x8] sm:$0xf] %vm1585, %v7183
  %7373 = vst.msk [vmem:[#allocation3 + $0xc] sm:$0xf] %vm1585, %v7185
  %7374 = vst.msk [vmem:[#allocation3 + $0x10] sm:$0xf] %vm1585, %v7187
  %7375 = vst.msk [vmem:[#allocation3 + $0x14] sm:$0xf] %vm1585, %v7189
  %7376 = vst.msk [vmem:[#allocation3 + $0x18] sm:$0xf] %vm1585, %v7191
  %7377 = vst.msk [vmem:[#allocation3 + $0x1c] sm:$0xf] %vm1585, %v7193
  %7378 = vst.msk [vmem:[#allocation3 + $0x20] sm:$0xf] %vm1585, %v7195
  %7379 = vst.msk [vmem:[#allocation3 + $0x24] sm:$0xf] %vm1585, %v7197
  %7380 = vst.msk [vmem:[#allocation3 + $0x28] sm:$0xf] %vm1585, %v7199
  %7381 = vst.msk [vmem:[#allocation3 + $0x2c] sm:$0xf] %vm1585, %v7201
  %7382 = vst.msk [vmem:[#allocation3 + $0x30] sm:$0xf] %vm1585, %v7203
  %7383 = vst.msk [vmem:[#allocation3 + $0x34] sm:$0xf] %vm1585, %v7205
  %7384 = vst.msk [vmem:[#allocation3 + $0x38] sm:$0xf] %vm1585, %v7207
  %7385 = vst.msk [vmem:[#allocation3 + $0x3c] sm:$0xf] %vm1585, %v7209
  %7386 = vst.msk [vmem:[#allocation3 + $0x40] sm:$0xf] %vm1585, %v7211
  %7387 = vst.msk [vmem:[#allocation3 + $0x44] sm:$0xf] %vm1585, %v7213
  %7388 = vst.msk [vmem:[#allocation3 + $0x48] sm:$0xf] %vm1585, %v7215
  %7389 = vst.msk [vmem:[#allocation3 + $0x4c] sm:$0xf] %vm1585, %v7217
  %7390 = vst.msk [vmem:[#allocation3 + $0x50] sm:$0xf] %vm1585, %v7219
  %7391 = vst.msk [vmem:[#allocation3 + $0x54] sm:$0xf] %vm1585, %v7221
  %7392 = vst.msk [vmem:[#allocation3 + $0x58] sm:$0xf] %vm1585, %v7223
  %7393 = vst.msk [vmem:[#allocation3 + $0x5c] sm:$0xf] %vm1585, %v7225
  %7394 = vst.msk [vmem:[#allocation3 + $0x60] sm:$0xf] %vm1585, %v7227
  %7395 = vst.msk [vmem:[#allocation3 + $0x64] sm:$0xf] %vm1585, %v7229
  %7396 = vst.msk [vmem:[#allocation3 + $0x68] sm:$0xf] %vm1585, %v7231
  %7397 = vst.msk [vmem:[#allocation3 + $0x6c] sm:$0xf] %vm1585, %v7233
  %7398 = vst.msk [vmem:[#allocation3 + $0x70] sm:$0xf] %vm1585, %v7235
  %7399 = vst.msk [vmem:[#allocation3 + $0x74] sm:$0xf] %vm1585, %v7237
  %7400 = vst.msk [vmem:[#allocation3 + $0x78] sm:$0xf] %vm1585, %v7239
  %7401 = vst.msk [vmem:[#allocation3 + $0x7c] sm:$0xf] %vm1585, %v7241
  %7402 = vst.msk [vmem:[#allocation3 + $0x80] sm:$0xf] %vm1585, %v7243
  %7403 = vst.msk [vmem:[#allocation3 + $0x84] sm:$0xf] %vm1585, %v7245
  %7404 = vst.msk [vmem:[#allocation3 + $0x88] sm:$0xf] %vm1585, %v7247
  %7405 = vst.msk [vmem:[#allocation3 + $0x8c] sm:$0xf] %vm1585, %v7249
  %7406 = vst.msk [vmem:[#allocation3 + $0x90] sm:$0xf] %vm1585, %v7251
  %7407 = vst.msk [vmem:[#allocation3 + $0x94] sm:$0xf] %vm1585, %v7253
  %7408 = vst.msk [vmem:[#allocation3 + $0x98] sm:$0xf] %vm1585, %v7255
  %7409 = vst.msk [vmem:[#allocation3 + $0x9c] sm:$0xf] %vm1585, %v7257
  %7410 = vst.msk [vmem:[#allocation3 + $0xa0] sm:$0xf] %vm1585, %v7259
  %7411 = vst.msk [vmem:[#allocation3 + $0xa4] sm:$0xf] %vm1585, %v7261
  %7412 = vst.msk [vmem:[#allocation3 + $0xa8] sm:$0xf] %vm1585, %v7263
  %7413 = vst.msk [vmem:[#allocation3 + $0xac] sm:$0xf] %vm1585, %v7265
  %7414 = vst.msk [vmem:[#allocation3 + $0xb0] sm:$0xf] %vm1585, %v7267
  %7415 = vst.msk [vmem:[#allocation3 + $0xb4] sm:$0xf] %vm1585, %v7269
  %7416 = vst.msk [vmem:[#allocation3 + $0xb8] sm:$0xf] %vm1585, %v7271
  %7417 = vst.msk [vmem:[#allocation3 + $0xbc] sm:$0xf] %vm1585, %v7273
  %7418 = vst.msk [vmem:[#allocation3 + $0xc0] sm:$0xf] %vm1585, %v7275
  %7419 = vst.msk [vmem:[#allocation3 + $0xc4] sm:$0xf] %vm1585, %v7277
  %7420 = vst.msk [vmem:[#allocation3 + $0xc8] sm:$0xf] %vm1585, %v7279
  %7421 = vst.msk [vmem:[#allocation3 + $0xcc] sm:$0xf] %vm1585, %v7281
  %7422 = vst.msk [vmem:[#allocation3 + $0xd0] sm:$0xf] %vm1585, %v7283
  %7423 = vst.msk [vmem:[#allocation3 + $0xd4] sm:$0xf] %vm1585, %v7285
  %7424 = vst.msk [vmem:[#allocation3 + $0xd8] sm:$0xf] %vm1585, %v7287
  %7425 = vst.msk [vmem:[#allocation3 + $0xdc] sm:$0xf] %vm1585, %v7289
  %7426 = vst.msk [vmem:[#allocation3 + $0xe0] sm:$0xf] %vm1585, %v7291
  %7427 = vst.msk [vmem:[#allocation3 + $0xe4] sm:$0xf] %vm1585, %v7293
  %7428 = vst.msk [vmem:[#allocation3 + $0xe8] sm:$0xf] %vm1585, %v7295
  %7429 = vst.msk [vmem:[#allocation3 + $0xec] sm:$0xf] %vm1585, %v7297
  %7430 = vst.msk [vmem:[#allocation3 + $0xf0] sm:$0xf] %vm1585, %v7299
  %7431 = vst.msk [vmem:[#allocation3 + $0xf4] sm:$0xf] %vm1585, %v7301
  %7432 = vst.msk [vmem:[#allocation3 + $0xf8] sm:$0xf] %vm1585, %v7303
  %7433 = vst.msk [vmem:[#allocation3 + $0xfc] sm:$0xf] %vm1585, %v7305
  %v7434 = vld [vmem:[%s174] sm:$0xff]
  %v7435 = vld [vmem:[%s174 + $0x8] sm:$0xff]
  %v7436 = vld [vmem:[%s174 + $0x18] sm:$0xff]
  %v7437 = vld [vmem:[%s174 + $0x20] sm:$0xff]
  %v7438 = vld [vmem:[%s174 + $0x30] sm:$0xff]
  %v7439 = vld [vmem:[%s174 + $0x38] sm:$0xff]
  %v7440 = vld [vmem:[%s174 + $0x48] sm:$0xff]
  %v7441 = vld [vmem:[%s174 + $0x50] sm:$0xff]
  %v7442 = vld [vmem:[%s174 + $0x60] sm:$0xff]
  %v7443 = vld [vmem:[%s174 + $0x68] sm:$0xff]
  %v7444 = vld [vmem:[%s174 + $0x78] sm:$0xff]
  %v7445 = vld [vmem:[%s174 + $0x80] sm:$0xff]
  %v7446 = vld [vmem:[%s174 + $0x90] sm:$0xff]
  %v7447 = vld [vmem:[%s174 + $0x98] sm:$0xff]
  %v7448 = vld [vmem:[%s174 + $0xa8] sm:$0xff]
  %v7449 = vld [vmem:[%s174 + $0xb0] sm:$0xff]
  %v7450 = vld [vmem:[%s174 + $0xc0] sm:$0xff]
  %v7451 = vld [vmem:[%s174 + $0xc8] sm:$0xff]
  %v7452 = vld [vmem:[%s174 + $0xd8] sm:$0xff]
  %v7453 = vld [vmem:[%s174 + $0xe0] sm:$0xff]
  %v7454 = vld [vmem:[%s174 + $0xf0] sm:$0xff]
  %v7455 = vld [vmem:[%s174 + $0xf8] sm:$0xff]
  %v7456 = vld [vmem:[%s174 + $0x108] sm:$0xff]
  %v7457 = vld [vmem:[%s174 + $0x110] sm:$0xff]
  %v7458 = vld [vmem:[%s174 + $0x120] sm:$0xff]
  %v7459 = vld [vmem:[%s174 + $0x128] sm:$0xff]
  %v7460 = vld [vmem:[%s174 + $0x138] sm:$0xff]
  %v7461 = vld [vmem:[%s174 + $0x140] sm:$0xff]
  %v7462 = vld [vmem:[%s174 + $0x150] sm:$0xff]
  %v7463 = vld [vmem:[%s174 + $0x158] sm:$0xff]
  %v7464 = vld [vmem:[%s174 + $0x168] sm:$0xff]
  %v7465 = vld [vmem:[%s174 + $0x170] sm:$0xff]
  %v7466 = vld [vmem:[%s174 + $0x1b0] sm:$0xff]
  %v7467 = vld [vmem:[%s174 + $0x1b8] sm:$0xff]
  %v7468 = vld [vmem:[%s174 + $0x1c8] sm:$0xff]
  %v7469 = vld [vmem:[%s174 + $0x1d0] sm:$0xff]
  %v7470 = vld [vmem:[%s174 + $0x1e0] sm:$0xff]
  %v7471 = vld [vmem:[%s174 + $0x1e8] sm:$0xff]
  %v7472 = vld [vmem:[%s174 + $0x1f8] sm:$0xff]
  %v7473 = vld [vmem:[%s174 + $0x200] sm:$0xff]
  %v7474 = vld [vmem:[%s174 + $0x210] sm:$0xff]
  %v7475 = vld [vmem:[%s174 + $0x218] sm:$0xff]
  %v7476 = vld [vmem:[%s174 + $0x228] sm:$0xff]
  %v7477 = vld [vmem:[%s174 + $0x230] sm:$0xff]
  %v7478 = vld [vmem:[%s174 + $0x240] sm:$0xff]
  %v7479 = vld [vmem:[%s174 + $0x248] sm:$0xff]
  %v7480 = vld [vmem:[%s174 + $0x258] sm:$0xff]
  %v7481 = vld [vmem:[%s174 + $0x260] sm:$0xff]
  %v7482 = vld [vmem:[%s174 + $0x270] sm:$0xff]
  %v7483 = vld [vmem:[%s174 + $0x278] sm:$0xff]
  %v7484 = vld [vmem:[%s174 + $0x288] sm:$0xff]
  %v7485 = vld [vmem:[%s174 + $0x290] sm:$0xff]
  %v7486 = vld [vmem:[%s174 + $0x2a0] sm:$0xff]
  %v7487 = vld [vmem:[%s174 + $0x2a8] sm:$0xff]
  %v7488 = vld [vmem:[%s174 + $0x2b8] sm:$0xff]
  %v7489 = vld [vmem:[%s174 + $0x2c0] sm:$0xff]
  %v7490 = vld [vmem:[%s174 + $0x2d0] sm:$0xff]
  %v7491 = vld [vmem:[%s174 + $0x2d8] sm:$0xff]
  %v7492 = vld [vmem:[%s174 + $0x2e8] sm:$0xff]
  %v7493 = vld [vmem:[%s174 + $0x2f0] sm:$0xff]
  %v7494 = vld [vmem:[%s174 + $0x300] sm:$0xff]
  %v7495 = vld [vmem:[%s174 + $0x308] sm:$0xff]
  %v7496 = vld [vmem:[%s174 + $0x318] sm:$0xff]
  %v7497 = vld [vmem:[%s174 + $0x320] sm:$0xff]
  %v7498 = vpack.c.bf16 %v7435, %v7434
  %v7499 = vpack.c.bf16 %v7437, %v7436
  %v7500 = vpack.c.bf16 %v7439, %v7438
  %v7501 = vpack.c.bf16 %v7441, %v7440
  %v7502 = vpack.c.bf16 %v7443, %v7442
  %v7503 = vpack.c.bf16 %v7445, %v7444
  %v7504 = vpack.c.bf16 %v7447, %v7446
  %v7505 = vpack.c.bf16 %v7449, %v7448
  %v7506 = vpack.c.bf16 %v7451, %v7450
  %v7507 = vpack.c.bf16 %v7453, %v7452
  %v7508 = vpack.c.bf16 %v7455, %v7454
  %v7509 = vpack.c.bf16 %v7457, %v7456
  %v7510 = vpack.c.bf16 %v7459, %v7458
  %v7511 = vpack.c.bf16 %v7461, %v7460
  %v7512 = vpack.c.bf16 %v7463, %v7462
  %v7513 = vpack.c.bf16 %v7465, %v7464
  %v7514 = vpack.c.bf16 %v7467, %v7466
  %v7515 = vpack.c.bf16 %v7469, %v7468
  %v7516 = vpack.c.bf16 %v7471, %v7470
  %v7517 = vpack.c.bf16 %v7473, %v7472
  %v7518 = vpack.c.bf16 %v7475, %v7474
  %v7519 = vpack.c.bf16 %v7477, %v7476
  %v7520 = vpack.c.bf16 %v7479, %v7478
  %v7521 = vpack.c.bf16 %v7481, %v7480
  %v7522 = vpack.c.bf16 %v7483, %v7482
  %v7523 = vpack.c.bf16 %v7485, %v7484
  %v7524 = vpack.c.bf16 %v7487, %v7486
  %v7525 = vpack.c.bf16 %v7489, %v7488
  %v7526 = vpack.c.bf16 %v7491, %v7490
  %v7527 = vpack.c.bf16 %v7493, %v7492
  %v7528 = vpack.c.bf16 %v7495, %v7494
  %v7529 = vpack.c.bf16 %v7497, %v7496
  %v7562 = vunpack.c.l.b16 %v7498
  %v7563 = vunpack.c.h.b16 %v7498
  %v7564 = vunpack.c.l.b16 %v7499
  %v7565 = vunpack.c.h.b16 %v7499
  %v7566 = vunpack.c.l.b16 %v7500
  %v7567 = vunpack.c.h.b16 %v7500
  %v7568 = vunpack.c.l.b16 %v7501
  %v7569 = vunpack.c.h.b16 %v7501
  %v7570 = vunpack.c.l.b16 %v7502
  %v7571 = vunpack.c.h.b16 %v7502
  %v7572 = vunpack.c.l.b16 %v7503
  %v7573 = vunpack.c.h.b16 %v7503
  %v7574 = vunpack.c.l.b16 %v7504
  %v7575 = vunpack.c.h.b16 %v7504
  %v7576 = vunpack.c.l.b16 %v7505
  %v7577 = vunpack.c.h.b16 %v7505
  %v7578 = vunpack.c.l.b16 %v7506
  %v7579 = vunpack.c.h.b16 %v7506
  %v7580 = vunpack.c.l.b16 %v7507
  %v7581 = vunpack.c.h.b16 %v7507
  %v7582 = vunpack.c.l.b16 %v7508
  %v7583 = vunpack.c.h.b16 %v7508
  %v7584 = vunpack.c.l.b16 %v7509
  %v7585 = vunpack.c.h.b16 %v7509
  %v7586 = vunpack.c.l.b16 %v7510
  %v7587 = vunpack.c.h.b16 %v7510
  %v7588 = vunpack.c.l.b16 %v7511
  %v7589 = vunpack.c.h.b16 %v7511
  %v7590 = vunpack.c.l.b16 %v7512
  %v7591 = vunpack.c.h.b16 %v7512
  %v7592 = vunpack.c.l.b16 %v7513
  %v7593 = vunpack.c.h.b16 %v7513
  %v7594 = vunpack.c.l.b16 %v7514
  %v7595 = vunpack.c.h.b16 %v7514
  %v7596 = vunpack.c.l.b16 %v7515
  %v7597 = vunpack.c.h.b16 %v7515
  %v7598 = vunpack.c.l.b16 %v7516
  %v7599 = vunpack.c.h.b16 %v7516
  %v7600 = vunpack.c.l.b16 %v7517
  %v7601 = vunpack.c.h.b16 %v7517
  %v7602 = vunpack.c.l.b16 %v7518
  %v7603 = vunpack.c.h.b16 %v7518
  %v7604 = vunpack.c.l.b16 %v7519
  %v7605 = vunpack.c.h.b16 %v7519
  %v7606 = vunpack.c.l.b16 %v7520
  %v7607 = vunpack.c.h.b16 %v7520
  %v7608 = vunpack.c.l.b16 %v7521
  %v7609 = vunpack.c.h.b16 %v7521
  %v7610 = vunpack.c.l.b16 %v7522
  %v7611 = vunpack.c.h.b16 %v7522
  %v7612 = vunpack.c.l.b16 %v7523
  %v7613 = vunpack.c.h.b16 %v7523
  %v7614 = vunpack.c.l.b16 %v7524
  %v7615 = vunpack.c.h.b16 %v7524
  %v7616 = vunpack.c.l.b16 %v7525
  %v7617 = vunpack.c.h.b16 %v7525
  %v7618 = vunpack.c.l.b16 %v7526
  %v7619 = vunpack.c.h.b16 %v7526
  %v7620 = vunpack.c.l.b16 %v7527
  %v7621 = vunpack.c.h.b16 %v7527
  %v7622 = vunpack.c.l.b16 %v7528
  %v7623 = vunpack.c.h.b16 %v7528
  %v7624 = vunpack.c.l.b16 %v7529
  %v7625 = vunpack.c.h.b16 %v7529
  %v7626 = vpack.c.b16 %v7562, %v7562
  %v7627 = vpack.c.b16 %v7563, %v7563
  %v7628 = vpack.c.b16 %v7564, %v7564
  %v7629 = vpack.c.b16 %v7565, %v7565
  %v7630 = vpack.c.b16 %v7566, %v7566
  %v7631 = vpack.c.b16 %v7567, %v7567
  %v7632 = vpack.c.b16 %v7568, %v7568
  %v7633 = vpack.c.b16 %v7569, %v7569
  %v7634 = vpack.c.b16 %v7570, %v7570
  %v7635 = vpack.c.b16 %v7571, %v7571
  %v7636 = vpack.c.b16 %v7572, %v7572
  %v7637 = vpack.c.b16 %v7573, %v7573
  %v7638 = vpack.c.b16 %v7574, %v7574
  %v7639 = vpack.c.b16 %v7575, %v7575
  %v7640 = vpack.c.b16 %v7576, %v7576
  %v7641 = vpack.c.b16 %v7577, %v7577
  %v7642 = vpack.c.b16 %v7578, %v7578
  %v7643 = vpack.c.b16 %v7579, %v7579
  %v7644 = vpack.c.b16 %v7580, %v7580
  %v7645 = vpack.c.b16 %v7581, %v7581
  %v7646 = vpack.c.b16 %v7582, %v7582
  %v7647 = vpack.c.b16 %v7583, %v7583
  %v7648 = vpack.c.b16 %v7584, %v7584
  %v7649 = vpack.c.b16 %v7585, %v7585
  %v7650 = vpack.c.b16 %v7586, %v7586
  %v7651 = vpack.c.b16 %v7587, %v7587
  %v7652 = vpack.c.b16 %v7588, %v7588
  %v7653 = vpack.c.b16 %v7589, %v7589
  %v7654 = vpack.c.b16 %v7590, %v7590
  %v7655 = vpack.c.b16 %v7591, %v7591
  %v7656 = vpack.c.b16 %v7592, %v7592
  %v7657 = vpack.c.b16 %v7593, %v7593
  %v7658 = vpack.c.b16 %v7594, %v7594
  %v7659 = vpack.c.b16 %v7595, %v7595
  %v7660 = vpack.c.b16 %v7596, %v7596
  %v7661 = vpack.c.b16 %v7597, %v7597
  %v7662 = vpack.c.b16 %v7598, %v7598
  %v7663 = vpack.c.b16 %v7599, %v7599
  %v7664 = vpack.c.b16 %v7600, %v7600
  %v7665 = vpack.c.b16 %v7601, %v7601
  %v7666 = vpack.c.b16 %v7602, %v7602
  %v7667 = vpack.c.b16 %v7603, %v7603
  %v7668 = vpack.c.b16 %v7604, %v7604
  %v7669 = vpack.c.b16 %v7605, %v7605
  %v7670 = vpack.c.b16 %v7606, %v7606
  %v7671 = vpack.c.b16 %v7607, %v7607
  %v7672 = vpack.c.b16 %v7608, %v7608
  %v7673 = vpack.c.b16 %v7609, %v7609
  %v7674 = vpack.c.b16 %v7610, %v7610
  %v7675 = vpack.c.b16 %v7611, %v7611
  %v7676 = vpack.c.b16 %v7612, %v7612
  %v7677 = vpack.c.b16 %v7613, %v7613
  %v7678 = vpack.c.b16 %v7614, %v7614
  %v7679 = vpack.c.b16 %v7615, %v7615
  %v7680 = vpack.c.b16 %v7616, %v7616
  %v7681 = vpack.c.b16 %v7617, %v7617
  %v7682 = vpack.c.b16 %v7618, %v7618
  %v7683 = vpack.c.b16 %v7619, %v7619
  %v7684 = vpack.c.b16 %v7620, %v7620
  %v7685 = vpack.c.b16 %v7621, %v7621
  %v7686 = vpack.c.b16 %v7622, %v7622
  %v7687 = vpack.c.b16 %v7623, %v7623
  %v7688 = vpack.c.b16 %v7624, %v7624
  %v7689 = vpack.c.b16 %v7625, %v7625
  %7690 = vrot.lane.b32.xlu0 %v7626, 12
  %v7691 = vpop.permute.xlu0 %7690
  %7692 = vrot.lane.b32.xlu0 %v7627, 12
  %v7693 = vpop.permute.xlu0 %7692
  %7694 = vrot.lane.b32.xlu0 %v7628, 12
  %v7695 = vpop.permute.xlu0 %7694
  %7696 = vrot.lane.b32.xlu0 %v7629, 12
  %v7697 = vpop.permute.xlu0 %7696
  %7698 = vrot.lane.b32.xlu0 %v7630, 12
  %v7699 = vpop.permute.xlu0 %7698
  %7700 = vrot.lane.b32.xlu0 %v7631, 12
  %v7701 = vpop.permute.xlu0 %7700
  %7702 = vrot.lane.b32.xlu0 %v7632, 12
  %v7703 = vpop.permute.xlu0 %7702
  %7704 = vrot.lane.b32.xlu0 %v7633, 12
  %v7705 = vpop.permute.xlu0 %7704
  %7706 = vrot.lane.b32.xlu0 %v7634, 12
  %v7707 = vpop.permute.xlu0 %7706
  %7708 = vrot.lane.b32.xlu0 %v7635, 12
  %v7709 = vpop.permute.xlu0 %7708
  %7710 = vrot.lane.b32.xlu0 %v7636, 12
  %v7711 = vpop.permute.xlu0 %7710
  %7712 = vrot.lane.b32.xlu0 %v7637, 12
  %v7713 = vpop.permute.xlu0 %7712
  %7714 = vrot.lane.b32.xlu0 %v7638, 12
  %v7715 = vpop.permute.xlu0 %7714
  %7716 = vrot.lane.b32.xlu0 %v7639, 12
  %v7717 = vpop.permute.xlu0 %7716
  %7718 = vrot.lane.b32.xlu0 %v7640, 12
  %v7719 = vpop.permute.xlu0 %7718
  %7720 = vrot.lane.b32.xlu0 %v7641, 12
  %v7721 = vpop.permute.xlu0 %7720
  %7722 = vrot.lane.b32.xlu0 %v7642, 12
  %v7723 = vpop.permute.xlu0 %7722
  %7724 = vrot.lane.b32.xlu0 %v7643, 12
  %v7725 = vpop.permute.xlu0 %7724
  %7726 = vrot.lane.b32.xlu0 %v7644, 12
  %v7727 = vpop.permute.xlu0 %7726
  %7728 = vrot.lane.b32.xlu0 %v7645, 12
  %v7729 = vpop.permute.xlu0 %7728
  %7730 = vrot.lane.b32.xlu0 %v7646, 12
  %v7731 = vpop.permute.xlu0 %7730
  %7732 = vrot.lane.b32.xlu0 %v7647, 12
  %v7733 = vpop.permute.xlu0 %7732
  %7734 = vrot.lane.b32.xlu0 %v7648, 12
  %v7735 = vpop.permute.xlu0 %7734
  %7736 = vrot.lane.b32.xlu0 %v7649, 12
  %v7737 = vpop.permute.xlu0 %7736
  %7738 = vrot.lane.b32.xlu0 %v7650, 12
  %v7739 = vpop.permute.xlu0 %7738
  %7740 = vrot.lane.b32.xlu0 %v7651, 12
  %v7741 = vpop.permute.xlu0 %7740
  %7742 = vrot.lane.b32.xlu0 %v7652, 12
  %v7743 = vpop.permute.xlu0 %7742
  %7744 = vrot.lane.b32.xlu0 %v7653, 12
  %v7745 = vpop.permute.xlu0 %7744
  %7746 = vrot.lane.b32.xlu0 %v7654, 12
  %v7747 = vpop.permute.xlu0 %7746
  %7748 = vrot.lane.b32.xlu0 %v7655, 12
  %v7749 = vpop.permute.xlu0 %7748
  %7750 = vrot.lane.b32.xlu0 %v7656, 12
  %v7751 = vpop.permute.xlu0 %7750
  %7752 = vrot.lane.b32.xlu0 %v7657, 12
  %v7753 = vpop.permute.xlu0 %7752
  %7754 = vrot.lane.b32.xlu0 %v7658, 12
  %v7755 = vpop.permute.xlu0 %7754
  %7756 = vrot.lane.b32.xlu0 %v7659, 12
  %v7757 = vpop.permute.xlu0 %7756
  %7758 = vrot.lane.b32.xlu0 %v7660, 12
  %v7759 = vpop.permute.xlu0 %7758
  %7760 = vrot.lane.b32.xlu0 %v7661, 12
  %v7761 = vpop.permute.xlu0 %7760
  %7762 = vrot.lane.b32.xlu0 %v7662, 12
  %v7763 = vpop.permute.xlu0 %7762
  %7764 = vrot.lane.b32.xlu0 %v7663, 12
  %v7765 = vpop.permute.xlu0 %7764
  %7766 = vrot.lane.b32.xlu0 %v7664, 12
  %v7767 = vpop.permute.xlu0 %7766
  %7768 = vrot.lane.b32.xlu0 %v7665, 12
  %v7769 = vpop.permute.xlu0 %7768
  %7770 = vrot.lane.b32.xlu0 %v7666, 12
  %v7771 = vpop.permute.xlu0 %7770
  %7772 = vrot.lane.b32.xlu0 %v7667, 12
  %v7773 = vpop.permute.xlu0 %7772
  %7774 = vrot.lane.b32.xlu0 %v7668, 12
  %v7775 = vpop.permute.xlu0 %7774
  %7776 = vrot.lane.b32.xlu0 %v7669, 12
  %v7777 = vpop.permute.xlu0 %7776
  %7778 = vrot.lane.b32.xlu0 %v7670, 12
  %v7779 = vpop.permute.xlu0 %7778
  %7780 = vrot.lane.b32.xlu0 %v7671, 12
  %v7781 = vpop.permute.xlu0 %7780
  %7782 = vrot.lane.b32.xlu0 %v7672, 12
  %v7783 = vpop.permute.xlu0 %7782
  %7784 = vrot.lane.b32.xlu0 %v7673, 12
  %v7785 = vpop.permute.xlu0 %7784
  %7786 = vrot.lane.b32.xlu0 %v7674, 12
  %v7787 = vpop.permute.xlu0 %7786
  %7788 = vrot.lane.b32.xlu0 %v7675, 12
  %v7789 = vpop.permute.xlu0 %7788
  %7790 = vrot.lane.b32.xlu0 %v7676, 12
  %v7791 = vpop.permute.xlu0 %7790
  %7792 = vrot.lane.b32.xlu0 %v7677, 12
  %v7793 = vpop.permute.xlu0 %7792
  %7794 = vrot.lane.b32.xlu0 %v7678, 12
  %v7795 = vpop.permute.xlu0 %7794
  %7796 = vrot.lane.b32.xlu0 %v7679, 12
  %v7797 = vpop.permute.xlu0 %7796
  %7798 = vrot.lane.b32.xlu0 %v7680, 12
  %v7799 = vpop.permute.xlu0 %7798
  %7800 = vrot.lane.b32.xlu0 %v7681, 12
  %v7801 = vpop.permute.xlu0 %7800
  %7802 = vrot.lane.b32.xlu0 %v7682, 12
  %v7803 = vpop.permute.xlu0 %7802
  %7804 = vrot.lane.b32.xlu0 %v7683, 12
  %v7805 = vpop.permute.xlu0 %7804
  %7806 = vrot.lane.b32.xlu0 %v7684, 12
  %v7807 = vpop.permute.xlu0 %7806
  %7808 = vrot.lane.b32.xlu0 %v7685, 12
  %v7809 = vpop.permute.xlu0 %7808
  %7810 = vrot.lane.b32.xlu0 %v7686, 12
  %v7811 = vpop.permute.xlu0 %7810
  %7812 = vrot.lane.b32.xlu0 %v7687, 12
  %v7813 = vpop.permute.xlu0 %7812
  %7814 = vrot.lane.b32.xlu0 %v7688, 12
  %v7815 = vpop.permute.xlu0 %7814
  %7816 = vrot.lane.b32.xlu0 %v7689, 12
  %v7817 = vpop.permute.xlu0 %7816
  %7882 = vst.msk [vmem:[#allocation3] sm:$0xf] %vm2098, %v7691
  %7883 = vst.msk [vmem:[#allocation3 + $0x4] sm:$0xf] %vm2098, %v7693
  %7884 = vst.msk [vmem:[#allocation3 + $0x8] sm:$0xf] %vm2098, %v7695
  %7885 = vst.msk [vmem:[#allocation3 + $0xc] sm:$0xf] %vm2098, %v7697
  %7886 = vst.msk [vmem:[#allocation3 + $0x10] sm:$0xf] %vm2098, %v7699
  %7887 = vst.msk [vmem:[#allocation3 + $0x14] sm:$0xf] %vm2098, %v7701
  %7888 = vst.msk [vmem:[#allocation3 + $0x18] sm:$0xf] %vm2098, %v7703
  %7889 = vst.msk [vmem:[#allocation3 + $0x1c] sm:$0xf] %vm2098, %v7705
  %7890 = vst.msk [vmem:[#allocation3 + $0x20] sm:$0xf] %vm2098, %v7707
  %7891 = vst.msk [vmem:[#allocation3 + $0x24] sm:$0xf] %vm2098, %v7709
  %7892 = vst.msk [vmem:[#allocation3 + $0x28] sm:$0xf] %vm2098, %v7711
  %7893 = vst.msk [vmem:[#allocation3 + $0x2c] sm:$0xf] %vm2098, %v7713
  %7894 = vst.msk [vmem:[#allocation3 + $0x30] sm:$0xf] %vm2098, %v7715
  %7895 = vst.msk [vmem:[#allocation3 + $0x34] sm:$0xf] %vm2098, %v7717
  %7896 = vst.msk [vmem:[#allocation3 + $0x38] sm:$0xf] %vm2098, %v7719
  %7897 = vst.msk [vmem:[#allocation3 + $0x3c] sm:$0xf] %vm2098, %v7721
  %7898 = vst.msk [vmem:[#allocation3 + $0x40] sm:$0xf] %vm2098, %v7723
  %7899 = vst.msk [vmem:[#allocation3 + $0x44] sm:$0xf] %vm2098, %v7725
  %7900 = vst.msk [vmem:[#allocation3 + $0x48] sm:$0xf] %vm2098, %v7727
  %7901 = vst.msk [vmem:[#allocation3 + $0x4c] sm:$0xf] %vm2098, %v7729
  %7902 = vst.msk [vmem:[#allocation3 + $0x50] sm:$0xf] %vm2098, %v7731
  %7903 = vst.msk [vmem:[#allocation3 + $0x54] sm:$0xf] %vm2098, %v7733
  %7904 = vst.msk [vmem:[#allocation3 + $0x58] sm:$0xf] %vm2098, %v7735
  %7905 = vst.msk [vmem:[#allocation3 + $0x5c] sm:$0xf] %vm2098, %v7737
  %7906 = vst.msk [vmem:[#allocation3 + $0x60] sm:$0xf] %vm2098, %v7739
  %7907 = vst.msk [vmem:[#allocation3 + $0x64] sm:$0xf] %vm2098, %v7741
  %7908 = vst.msk [vmem:[#allocation3 + $0x68] sm:$0xf] %vm2098, %v7743
  %7909 = vst.msk [vmem:[#allocation3 + $0x6c] sm:$0xf] %vm2098, %v7745
  %7910 = vst.msk [vmem:[#allocation3 + $0x70] sm:$0xf] %vm2098, %v7747
  %7911 = vst.msk [vmem:[#allocation3 + $0x74] sm:$0xf] %vm2098, %v7749
  %7912 = vst.msk [vmem:[#allocation3 + $0x78] sm:$0xf] %vm2098, %v7751
  %7913 = vst.msk [vmem:[#allocation3 + $0x7c] sm:$0xf] %vm2098, %v7753
  %7914 = vst.msk [vmem:[#allocation3 + $0x80] sm:$0xf] %vm2098, %v7755
  %7915 = vst.msk [vmem:[#allocation3 + $0x84] sm:$0xf] %vm2098, %v7757
  %7916 = vst.msk [vmem:[#allocation3 + $0x88] sm:$0xf] %vm2098, %v7759
  %7917 = vst.msk [vmem:[#allocation3 + $0x8c] sm:$0xf] %vm2098, %v7761
  %7918 = vst.msk [vmem:[#allocation3 + $0x90] sm:$0xf] %vm2098, %v7763
  %7919 = vst.msk [vmem:[#allocation3 + $0x94] sm:$0xf] %vm2098, %v7765
  %7920 = vst.msk [vmem:[#allocation3 + $0x98] sm:$0xf] %vm2098, %v7767
  %7921 = vst.msk [vmem:[#allocation3 + $0x9c] sm:$0xf] %vm2098, %v7769
  %7922 = vst.msk [vmem:[#allocation3 + $0xa0] sm:$0xf] %vm2098, %v7771
  %7923 = vst.msk [vmem:[#allocation3 + $0xa4] sm:$0xf] %vm2098, %v7773
  %7924 = vst.msk [vmem:[#allocation3 + $0xa8] sm:$0xf] %vm2098, %v7775
  %7925 = vst.msk [vmem:[#allocation3 + $0xac] sm:$0xf] %vm2098, %v7777
  %7926 = vst.msk [vmem:[#allocation3 + $0xb0] sm:$0xf] %vm2098, %v7779
  %7927 = vst.msk [vmem:[#allocation3 + $0xb4] sm:$0xf] %vm2098, %v7781
  %7928 = vst.msk [vmem:[#allocation3 + $0xb8] sm:$0xf] %vm2098, %v7783
  %7929 = vst.msk [vmem:[#allocation3 + $0xbc] sm:$0xf] %vm2098, %v7785
  %7930 = vst.msk [vmem:[#allocation3 + $0xc0] sm:$0xf] %vm2098, %v7787
  %7931 = vst.msk [vmem:[#allocation3 + $0xc4] sm:$0xf] %vm2098, %v7789
  %7932 = vst.msk [vmem:[#allocation3 + $0xc8] sm:$0xf] %vm2098, %v7791
  %7933 = vst.msk [vmem:[#allocation3 + $0xcc] sm:$0xf] %vm2098, %v7793
  %7934 = vst.msk [vmem:[#allocation3 + $0xd0] sm:$0xf] %vm2098, %v7795
  %7935 = vst.msk [vmem:[#allocation3 + $0xd4] sm:$0xf] %vm2098, %v7797
  %7936 = vst.msk [vmem:[#allocation3 + $0xd8] sm:$0xf] %vm2098, %v7799
  %7937 = vst.msk [vmem:[#allocation3 + $0xdc] sm:$0xf] %vm2098, %v7801
  %7938 = vst.msk [vmem:[#allocation3 + $0xe0] sm:$0xf] %vm2098, %v7803
  %7939 = vst.msk [vmem:[#allocation3 + $0xe4] sm:$0xf] %vm2098, %v7805
  %7940 = vst.msk [vmem:[#allocation3 + $0xe8] sm:$0xf] %vm2098, %v7807
  %7941 = vst.msk [vmem:[#allocation3 + $0xec] sm:$0xf] %vm2098, %v7809
  %7942 = vst.msk [vmem:[#allocation3 + $0xf0] sm:$0xf] %vm2098, %v7811
  %7943 = vst.msk [vmem:[#allocation3 + $0xf4] sm:$0xf] %vm2098, %v7813
  %7944 = vst.msk [vmem:[#allocation3 + $0xf8] sm:$0xf] %vm2098, %v7815
  %7945 = vst.msk [vmem:[#allocation3 + $0xfc] sm:$0xf] %vm2098, %v7817
  %v7946 = vld [vmem:[%s174 + $0x1] sm:$0xff]
  %v7947 = vld [vmem:[%s174 + $0x9] sm:$0xff]
  %v7948 = vld [vmem:[%s174 + $0x19] sm:$0xff]
  %v7949 = vld [vmem:[%s174 + $0x21] sm:$0xff]
  %v7950 = vld [vmem:[%s174 + $0x31] sm:$0xff]
  %v7951 = vld [vmem:[%s174 + $0x39] sm:$0xff]
  %v7952 = vld [vmem:[%s174 + $0x49] sm:$0xff]
  %v7953 = vld [vmem:[%s174 + $0x51] sm:$0xff]
  %v7954 = vld [vmem:[%s174 + $0x61] sm:$0xff]
  %v7955 = vld [vmem:[%s174 + $0x69] sm:$0xff]
  %v7956 = vld [vmem:[%s174 + $0x79] sm:$0xff]
  %v7957 = vld [vmem:[%s174 + $0x81] sm:$0xff]
  %v7958 = vld [vmem:[%s174 + $0x91] sm:$0xff]
  %v7959 = vld [vmem:[%s174 + $0x99] sm:$0xff]
  %v7960 = vld [vmem:[%s174 + $0xa9] sm:$0xff]
  %v7961 = vld [vmem:[%s174 + $0xb1] sm:$0xff]
  %v7962 = vld [vmem:[%s174 + $0xc1] sm:$0xff]
  %v7963 = vld [vmem:[%s174 + $0xc9] sm:$0xff]
  %v7964 = vld [vmem:[%s174 + $0xd9] sm:$0xff]
  %v7965 = vld [vmem:[%s174 + $0xe1] sm:$0xff]
  %v7966 = vld [vmem:[%s174 + $0xf1] sm:$0xff]
  %v7967 = vld [vmem:[%s174 + $0xf9] sm:$0xff]
  %v7968 = vld [vmem:[%s174 + $0x109] sm:$0xff]
  %v7969 = vld [vmem:[%s174 + $0x111] sm:$0xff]
  %v7970 = vld [vmem:[%s174 + $0x121] sm:$0xff]
  %v7971 = vld [vmem:[%s174 + $0x129] sm:$0xff]
  %v7972 = vld [vmem:[%s174 + $0x139] sm:$0xff]
  %v7973 = vld [vmem:[%s174 + $0x141] sm:$0xff]
  %v7974 = vld [vmem:[%s174 + $0x151] sm:$0xff]
  %v7975 = vld [vmem:[%s174 + $0x159] sm:$0xff]
  %v7976 = vld [vmem:[%s174 + $0x169] sm:$0xff]
  %v7977 = vld [vmem:[%s174 + $0x171] sm:$0xff]
  %v7978 = vld [vmem:[%s174 + $0x1b1] sm:$0xff]
  %v7979 = vld [vmem:[%s174 + $0x1b9] sm:$0xff]
  %v7980 = vld [vmem:[%s174 + $0x1c9] sm:$0xff]
  %v7981 = vld [vmem:[%s174 + $0x1d1] sm:$0xff]
  %v7982 = vld [vmem:[%s174 + $0x1e1] sm:$0xff]
  %v7983 = vld [vmem:[%s174 + $0x1e9] sm:$0xff]
  %v7984 = vld [vmem:[%s174 + $0x1f9] sm:$0xff]
  %v7985 = vld [vmem:[%s174 + $0x201] sm:$0xff]
  %v7986 = vld [vmem:[%s174 + $0x211] sm:$0xff]
  %v7987 = vld [vmem:[%s174 + $0x219] sm:$0xff]
  %v7988 = vld [vmem:[%s174 + $0x229] sm:$0xff]
  %v7989 = vld [vmem:[%s174 + $0x231] sm:$0xff]
  %v7990 = vld [vmem:[%s174 + $0x241] sm:$0xff]
  %v7991 = vld [vmem:[%s174 + $0x249] sm:$0xff]
  %v7992 = vld [vmem:[%s174 + $0x259] sm:$0xff]
  %v7993 = vld [vmem:[%s174 + $0x261] sm:$0xff]
  %v7994 = vld [vmem:[%s174 + $0x271] sm:$0xff]
  %v7995 = vld [vmem:[%s174 + $0x279] sm:$0xff]
  %v7996 = vld [vmem:[%s174 + $0x289] sm:$0xff]
  %v7997 = vld [vmem:[%s174 + $0x291] sm:$0xff]
  %v7998 = vld [vmem:[%s174 + $0x2a1] sm:$0xff]
  %v7999 = vld [vmem:[%s174 + $0x2a9] sm:$0xff]
  %v8000 = vld [vmem:[%s174 + $0x2b9] sm:$0xff]
  %v8001 = vld [vmem:[%s174 + $0x2c1] sm:$0xff]
  %v8002 = vld [vmem:[%s174 + $0x2d1] sm:$0xff]
  %v8003 = vld [vmem:[%s174 + $0x2d9] sm:$0xff]
  %v8004 = vld [vmem:[%s174 + $0x2e9] sm:$0xff]
  %v8005 = vld [vmem:[%s174 + $0x2f1] sm:$0xff]
  %v8006 = vld [vmem:[%s174 + $0x301] sm:$0xff]
  %v8007 = vld [vmem:[%s174 + $0x309] sm:$0xff]
  %v8008 = vld [vmem:[%s174 + $0x319] sm:$0xff]
  %v8009 = vld [vmem:[%s174 + $0x321] sm:$0xff]
  %v8010 = vpack.c.bf16 %v7947, %v7946
  %v8011 = vpack.c.bf16 %v7949, %v7948
  %v8012 = vpack.c.bf16 %v7951, %v7950
  %v8013 = vpack.c.bf16 %v7953, %v7952
  %v8014 = vpack.c.bf16 %v7955, %v7954
  %v8015 = vpack.c.bf16 %v7957, %v7956
  %v8016 = vpack.c.bf16 %v7959, %v7958
  %v8017 = vpack.c.bf16 %v7961, %v7960
  %v8018 = vpack.c.bf16 %v7963, %v7962
  %v8019 = vpack.c.bf16 %v7965, %v7964
  %v8020 = vpack.c.bf16 %v7967, %v7966
  %v8021 = vpack.c.bf16 %v7969, %v7968
  %v8022 = vpack.c.bf16 %v7971, %v7970
  %v8023 = vpack.c.bf16 %v7973, %v7972
  %v8024 = vpack.c.bf16 %v7975, %v7974
  %v8025 = vpack.c.bf16 %v7977, %v7976
  %v8026 = vpack.c.bf16 %v7979, %v7978
  %v8027 = vpack.c.bf16 %v7981, %v7980
  %v8028 = vpack.c.bf16 %v7983, %v7982
  %v8029 = vpack.c.bf16 %v7985, %v7984
  %v8030 = vpack.c.bf16 %v7987, %v7986
  %v8031 = vpack.c.bf16 %v7989, %v7988
  %v8032 = vpack.c.bf16 %v7991, %v7990
  %v8033 = vpack.c.bf16 %v7993, %v7992
  %v8034 = vpack.c.bf16 %v7995, %v7994
  %v8035 = vpack.c.bf16 %v7997, %v7996
  %v8036 = vpack.c.bf16 %v7999, %v7998
  %v8037 = vpack.c.bf16 %v8001, %v8000
  %v8038 = vpack.c.bf16 %v8003, %v8002
  %v8039 = vpack.c.bf16 %v8005, %v8004
  %v8040 = vpack.c.bf16 %v8007, %v8006
  %v8041 = vpack.c.bf16 %v8009, %v8008
  %v8074 = vunpack.c.l.b16 %v8010
  %v8075 = vunpack.c.h.b16 %v8010
  %v8076 = vunpack.c.l.b16 %v8011
  %v8077 = vunpack.c.h.b16 %v8011
  %v8078 = vunpack.c.l.b16 %v8012
  %v8079 = vunpack.c.h.b16 %v8012
  %v8080 = vunpack.c.l.b16 %v8013
  %v8081 = vunpack.c.h.b16 %v8013
  %v8082 = vunpack.c.l.b16 %v8014
  %v8083 = vunpack.c.h.b16 %v8014
  %v8084 = vunpack.c.l.b16 %v8015
  %v8085 = vunpack.c.h.b16 %v8015
  %v8086 = vunpack.c.l.b16 %v8016
  %v8087 = vunpack.c.h.b16 %v8016
  %v8088 = vunpack.c.l.b16 %v8017
  %v8089 = vunpack.c.h.b16 %v8017
  %v8090 = vunpack.c.l.b16 %v8018
  %v8091 = vunpack.c.h.b16 %v8018
  %v8092 = vunpack.c.l.b16 %v8019
  %v8093 = vunpack.c.h.b16 %v8019
  %v8094 = vunpack.c.l.b16 %v8020
  %v8095 = vunpack.c.h.b16 %v8020
  %v8096 = vunpack.c.l.b16 %v8021
  %v8097 = vunpack.c.h.b16 %v8021
  %v8098 = vunpack.c.l.b16 %v8022
  %v8099 = vunpack.c.h.b16 %v8022
  %v8100 = vunpack.c.l.b16 %v8023
  %v8101 = vunpack.c.h.b16 %v8023
  %v8102 = vunpack.c.l.b16 %v8024
  %v8103 = vunpack.c.h.b16 %v8024
  %v8104 = vunpack.c.l.b16 %v8025
  %v8105 = vunpack.c.h.b16 %v8025
  %v8106 = vunpack.c.l.b16 %v8026
  %v8107 = vunpack.c.h.b16 %v8026
  %v8108 = vunpack.c.l.b16 %v8027
  %v8109 = vunpack.c.h.b16 %v8027
  %v8110 = vunpack.c.l.b16 %v8028
  %v8111 = vunpack.c.h.b16 %v8028
  %v8112 = vunpack.c.l.b16 %v8029
  %v8113 = vunpack.c.h.b16 %v8029
  %v8114 = vunpack.c.l.b16 %v8030
  %v8115 = vunpack.c.h.b16 %v8030
  %v8116 = vunpack.c.l.b16 %v8031
  %v8117 = vunpack.c.h.b16 %v8031
  %v8118 = vunpack.c.l.b16 %v8032
  %v8119 = vunpack.c.h.b16 %v8032
  %v8120 = vunpack.c.l.b16 %v8033
  %v8121 = vunpack.c.h.b16 %v8033
  %v8122 = vunpack.c.l.b16 %v8034
  %v8123 = vunpack.c.h.b16 %v8034
  %v8124 = vunpack.c.l.b16 %v8035
  %v8125 = vunpack.c.h.b16 %v8035
  %v8126 = vunpack.c.l.b16 %v8036
  %v8127 = vunpack.c.h.b16 %v8036
  %v8128 = vunpack.c.l.b16 %v8037
  %v8129 = vunpack.c.h.b16 %v8037
  %v8130 = vunpack.c.l.b16 %v8038
  %v8131 = vunpack.c.h.b16 %v8038
  %v8132 = vunpack.c.l.b16 %v8039
  %v8133 = vunpack.c.h.b16 %v8039
  %v8134 = vunpack.c.l.b16 %v8040
  %v8135 = vunpack.c.h.b16 %v8040
  %v8136 = vunpack.c.l.b16 %v8041
  %v8137 = vunpack.c.h.b16 %v8041
  %v8138 = vpack.c.b16 %v8074, %v8074
  %v8139 = vpack.c.b16 %v8075, %v8075
  %v8140 = vpack.c.b16 %v8076, %v8076
  %v8141 = vpack.c.b16 %v8077, %v8077
  %v8142 = vpack.c.b16 %v8078, %v8078
  %v8143 = vpack.c.b16 %v8079, %v8079
  %v8144 = vpack.c.b16 %v8080, %v8080
  %v8145 = vpack.c.b16 %v8081, %v8081
  %v8146 = vpack.c.b16 %v8082, %v8082
  %v8147 = vpack.c.b16 %v8083, %v8083
  %v8148 = vpack.c.b16 %v8084, %v8084
  %v8149 = vpack.c.b16 %v8085, %v8085
  %v8150 = vpack.c.b16 %v8086, %v8086
  %v8151 = vpack.c.b16 %v8087, %v8087
  %v8152 = vpack.c.b16 %v8088, %v8088
  %v8153 = vpack.c.b16 %v8089, %v8089
  %v8154 = vpack.c.b16 %v8090, %v8090
  %v8155 = vpack.c.b16 %v8091, %v8091
  %v8156 = vpack.c.b16 %v8092, %v8092
  %v8157 = vpack.c.b16 %v8093, %v8093
  %v8158 = vpack.c.b16 %v8094, %v8094
  %v8159 = vpack.c.b16 %v8095, %v8095
  %v8160 = vpack.c.b16 %v8096, %v8096
  %v8161 = vpack.c.b16 %v8097, %v8097
  %v8162 = vpack.c.b16 %v8098, %v8098
  %v8163 = vpack.c.b16 %v8099, %v8099
  %v8164 = vpack.c.b16 %v8100, %v8100
  %v8165 = vpack.c.b16 %v8101, %v8101
  %v8166 = vpack.c.b16 %v8102, %v8102
  %v8167 = vpack.c.b16 %v8103, %v8103
  %v8168 = vpack.c.b16 %v8104, %v8104
  %v8169 = vpack.c.b16 %v8105, %v8105
  %v8170 = vpack.c.b16 %v8106, %v8106
  %v8171 = vpack.c.b16 %v8107, %v8107
  %v8172 = vpack.c.b16 %v8108, %v8108
  %v8173 = vpack.c.b16 %v8109, %v8109
  %v8174 = vpack.c.b16 %v8110, %v8110
  %v8175 = vpack.c.b16 %v8111, %v8111
  %v8176 = vpack.c.b16 %v8112, %v8112
  %v8177 = vpack.c.b16 %v8113, %v8113
  %v8178 = vpack.c.b16 %v8114, %v8114
  %v8179 = vpack.c.b16 %v8115, %v8115
  %v8180 = vpack.c.b16 %v8116, %v8116
  %v8181 = vpack.c.b16 %v8117, %v8117
  %v8182 = vpack.c.b16 %v8118, %v8118
  %v8183 = vpack.c.b16 %v8119, %v8119
  %v8184 = vpack.c.b16 %v8120, %v8120
  %v8185 = vpack.c.b16 %v8121, %v8121
  %v8186 = vpack.c.b16 %v8122, %v8122
  %v8187 = vpack.c.b16 %v8123, %v8123
  %v8188 = vpack.c.b16 %v8124, %v8124
  %v8189 = vpack.c.b16 %v8125, %v8125
  %v8190 = vpack.c.b16 %v8126, %v8126
  %v8191 = vpack.c.b16 %v8127, %v8127
  %v8192 = vpack.c.b16 %v8128, %v8128
  %v8193 = vpack.c.b16 %v8129, %v8129
  %v8194 = vpack.c.b16 %v8130, %v8130
  %v8195 = vpack.c.b16 %v8131, %v8131
  %v8196 = vpack.c.b16 %v8132, %v8132
  %v8197 = vpack.c.b16 %v8133, %v8133
  %v8198 = vpack.c.b16 %v8134, %v8134
  %v8199 = vpack.c.b16 %v8135, %v8135
  %v8200 = vpack.c.b16 %v8136, %v8136
  %v8201 = vpack.c.b16 %v8137, %v8137
  %8202 = vrot.lane.b32.xlu0 %v8138, 16
  %v8203 = vpop.permute.xlu0 %8202
  %8204 = vrot.lane.b32.xlu0 %v8139, 16
  %v8205 = vpop.permute.xlu0 %8204
  %8206 = vrot.lane.b32.xlu0 %v8140, 16
  %v8207 = vpop.permute.xlu0 %8206
  %8208 = vrot.lane.b32.xlu0 %v8141, 16
  %v8209 = vpop.permute.xlu0 %8208
  %8210 = vrot.lane.b32.xlu0 %v8142, 16
  %v8211 = vpop.permute.xlu0 %8210
  %8212 = vrot.lane.b32.xlu0 %v8143, 16
  %v8213 = vpop.permute.xlu0 %8212
  %8214 = vrot.lane.b32.xlu0 %v8144, 16
  %v8215 = vpop.permute.xlu0 %8214
  %8216 = vrot.lane.b32.xlu0 %v8145, 16
  %v8217 = vpop.permute.xlu0 %8216
  %8218 = vrot.lane.b32.xlu0 %v8146, 16
  %v8219 = vpop.permute.xlu0 %8218
  %8220 = vrot.lane.b32.xlu0 %v8147, 16
  %v8221 = vpop.permute.xlu0 %8220
  %8222 = vrot.lane.b32.xlu0 %v8148, 16
  %v8223 = vpop.permute.xlu0 %8222
  %8224 = vrot.lane.b32.xlu0 %v8149, 16
  %v8225 = vpop.permute.xlu0 %8224
  %8226 = vrot.lane.b32.xlu0 %v8150, 16
  %v8227 = vpop.permute.xlu0 %8226
  %8228 = vrot.lane.b32.xlu0 %v8151, 16
  %v8229 = vpop.permute.xlu0 %8228
  %8230 = vrot.lane.b32.xlu0 %v8152, 16
  %v8231 = vpop.permute.xlu0 %8230
  %8232 = vrot.lane.b32.xlu0 %v8153, 16
  %v8233 = vpop.permute.xlu0 %8232
  %8234 = vrot.lane.b32.xlu0 %v8154, 16
  %v8235 = vpop.permute.xlu0 %8234
  %8236 = vrot.lane.b32.xlu0 %v8155, 16
  %v8237 = vpop.permute.xlu0 %8236
  %8238 = vrot.lane.b32.xlu0 %v8156, 16
  %v8239 = vpop.permute.xlu0 %8238
  %8240 = vrot.lane.b32.xlu0 %v8157, 16
  %v8241 = vpop.permute.xlu0 %8240
  %8242 = vrot.lane.b32.xlu0 %v8158, 16
  %v8243 = vpop.permute.xlu0 %8242
  %8244 = vrot.lane.b32.xlu0 %v8159, 16
  %v8245 = vpop.permute.xlu0 %8244
  %8246 = vrot.lane.b32.xlu0 %v8160, 16
  %v8247 = vpop.permute.xlu0 %8246
  %8248 = vrot.lane.b32.xlu0 %v8161, 16
  %v8249 = vpop.permute.xlu0 %8248
  %8250 = vrot.lane.b32.xlu0 %v8162, 16
  %v8251 = vpop.permute.xlu0 %8250
  %8252 = vrot.lane.b32.xlu0 %v8163, 16
  %v8253 = vpop.permute.xlu0 %8252
  %8254 = vrot.lane.b32.xlu0 %v8164, 16
  %v8255 = vpop.permute.xlu0 %8254
  %8256 = vrot.lane.b32.xlu0 %v8165, 16
  %v8257 = vpop.permute.xlu0 %8256
  %8258 = vrot.lane.b32.xlu0 %v8166, 16
  %v8259 = vpop.permute.xlu0 %8258
  %8260 = vrot.lane.b32.xlu0 %v8167, 16
  %v8261 = vpop.permute.xlu0 %8260
  %8262 = vrot.lane.b32.xlu0 %v8168, 16
  %v8263 = vpop.permute.xlu0 %8262
  %8264 = vrot.lane.b32.xlu0 %v8169, 16
  %v8265 = vpop.permute.xlu0 %8264
  %8266 = vrot.lane.b32.xlu0 %v8170, 16
  %v8267 = vpop.permute.xlu0 %8266
  %8268 = vrot.lane.b32.xlu0 %v8171, 16
  %v8269 = vpop.permute.xlu0 %8268
  %8270 = vrot.lane.b32.xlu0 %v8172, 16
  %v8271 = vpop.permute.xlu0 %8270
  %8272 = vrot.lane.b32.xlu0 %v8173, 16
  %v8273 = vpop.permute.xlu0 %8272
  %8274 = vrot.lane.b32.xlu0 %v8174, 16
  %v8275 = vpop.permute.xlu0 %8274
  %8276 = vrot.lane.b32.xlu0 %v8175, 16
  %v8277 = vpop.permute.xlu0 %8276
  %8278 = vrot.lane.b32.xlu0 %v8176, 16
  %v8279 = vpop.permute.xlu0 %8278
  %8280 = vrot.lane.b32.xlu0 %v8177, 16
  %v8281 = vpop.permute.xlu0 %8280
  %8282 = vrot.lane.b32.xlu0 %v8178, 16
  %v8283 = vpop.permute.xlu0 %8282
  %8284 = vrot.lane.b32.xlu0 %v8179, 16
  %v8285 = vpop.permute.xlu0 %8284
  %8286 = vrot.lane.b32.xlu0 %v8180, 16
  %v8287 = vpop.permute.xlu0 %8286
  %8288 = vrot.lane.b32.xlu0 %v8181, 16
  %v8289 = vpop.permute.xlu0 %8288
  %8290 = vrot.lane.b32.xlu0 %v8182, 16
  %v8291 = vpop.permute.xlu0 %8290
  %8292 = vrot.lane.b32.xlu0 %v8183, 16
  %v8293 = vpop.permute.xlu0 %8292
  %8294 = vrot.lane.b32.xlu0 %v8184, 16
  %v8295 = vpop.permute.xlu0 %8294
  %8296 = vrot.lane.b32.xlu0 %v8185, 16
  %v8297 = vpop.permute.xlu0 %8296
  %8298 = vrot.lane.b32.xlu0 %v8186, 16
  %v8299 = vpop.permute.xlu0 %8298
  %8300 = vrot.lane.b32.xlu0 %v8187, 16
  %v8301 = vpop.permute.xlu0 %8300
  %8302 = vrot.lane.b32.xlu0 %v8188, 16
  %v8303 = vpop.permute.xlu0 %8302
  %8304 = vrot.lane.b32.xlu0 %v8189, 16
  %v8305 = vpop.permute.xlu0 %8304
  %8306 = vrot.lane.b32.xlu0 %v8190, 16
  %v8307 = vpop.permute.xlu0 %8306
  %8308 = vrot.lane.b32.xlu0 %v8191, 16
  %v8309 = vpop.permute.xlu0 %8308
  %8310 = vrot.lane.b32.xlu0 %v8192, 16
  %v8311 = vpop.permute.xlu0 %8310
  %8312 = vrot.lane.b32.xlu0 %v8193, 16
  %v8313 = vpop.permute.xlu0 %8312
  %8314 = vrot.lane.b32.xlu0 %v8194, 16
  %v8315 = vpop.permute.xlu0 %8314
  %8316 = vrot.lane.b32.xlu0 %v8195, 16
  %v8317 = vpop.permute.xlu0 %8316
  %8318 = vrot.lane.b32.xlu0 %v8196, 16
  %v8319 = vpop.permute.xlu0 %8318
  %8320 = vrot.lane.b32.xlu0 %v8197, 16
  %v8321 = vpop.permute.xlu0 %8320
  %8322 = vrot.lane.b32.xlu0 %v8198, 16
  %v8323 = vpop.permute.xlu0 %8322
  %8324 = vrot.lane.b32.xlu0 %v8199, 16
  %v8325 = vpop.permute.xlu0 %8324
  %8326 = vrot.lane.b32.xlu0 %v8200, 16
  %v8327 = vpop.permute.xlu0 %8326
  %8328 = vrot.lane.b32.xlu0 %v8201, 16
  %v8329 = vpop.permute.xlu0 %8328
  %8394 = vst.msk [vmem:[#allocation3] sm:$0xf] %vm2611, %v8203
  %8395 = vst.msk [vmem:[#allocation3 + $0x4] sm:$0xf] %vm2611, %v8205
  %8396 = vst.msk [vmem:[#allocation3 + $0x8] sm:$0xf] %vm2611, %v8207
  %8397 = vst.msk [vmem:[#allocation3 + $0xc] sm:$0xf] %vm2611, %v8209
  %8398 = vst.msk [vmem:[#allocation3 + $0x10] sm:$0xf] %vm2611, %v8211
  %8399 = vst.msk [vmem:[#allocation3 + $0x14] sm:$0xf] %vm2611, %v8213
  %8400 = vst.msk [vmem:[#allocation3 + $0x18] sm:$0xf] %vm2611, %v8215
  %8401 = vst.msk [vmem:[#allocation3 + $0x1c] sm:$0xf] %vm2611, %v8217
  %8402 = vst.msk [vmem:[#allocation3 + $0x20] sm:$0xf] %vm2611, %v8219
  %8403 = vst.msk [vmem:[#allocation3 + $0x24] sm:$0xf] %vm2611, %v8221
  %8404 = vst.msk [vmem:[#allocation3 + $0x28] sm:$0xf] %vm2611, %v8223
  %8405 = vst.msk [vmem:[#allocation3 + $0x2c] sm:$0xf] %vm2611, %v8225
  %8406 = vst.msk [vmem:[#allocation3 + $0x30] sm:$0xf] %vm2611, %v8227
  %8407 = vst.msk [vmem:[#allocation3 + $0x34] sm:$0xf] %vm2611, %v8229
  %8408 = vst.msk [vmem:[#allocation3 + $0x38] sm:$0xf] %vm2611, %v8231
  %8409 = vst.msk [vmem:[#allocation3 + $0x3c] sm:$0xf] %vm2611, %v8233
  %8410 = vst.msk [vmem:[#allocation3 + $0x40] sm:$0xf] %vm2611, %v8235
  %8411 = vst.msk [vmem:[#allocation3 + $0x44] sm:$0xf] %vm2611, %v8237
  %8412 = vst.msk [vmem:[#allocation3 + $0x48] sm:$0xf] %vm2611, %v8239
  %8413 = vst.msk [vmem:[#allocation3 + $0x4c] sm:$0xf] %vm2611, %v8241
  %8414 = vst.msk [vmem:[#allocation3 + $0x50] sm:$0xf] %vm2611, %v8243
  %8415 = vst.msk [vmem:[#allocation3 + $0x54] sm:$0xf] %vm2611, %v8245
  %8416 = vst.msk [vmem:[#allocation3 + $0x58] sm:$0xf] %vm2611, %v8247
  %8417 = vst.msk [vmem:[#allocation3 + $0x5c] sm:$0xf] %vm2611, %v8249
  %8418 = vst.msk [vmem:[#allocation3 + $0x60] sm:$0xf] %vm2611, %v8251
  %8419 = vst.msk [vmem:[#allocation3 + $0x64] sm:$0xf] %vm2611, %v8253
  %8420 = vst.msk [vmem:[#allocation3 + $0x68] sm:$0xf] %vm2611, %v8255
  %8421 = vst.msk [vmem:[#allocation3 + $0x6c] sm:$0xf] %vm2611, %v8257
  %8422 = vst.msk [vmem:[#allocation3 + $0x70] sm:$0xf] %vm2611, %v8259
  %8423 = vst.msk [vmem:[#allocation3 + $0x74] sm:$0xf] %vm2611, %v8261
  %8424 = vst.msk [vmem:[#allocation3 + $0x78] sm:$0xf] %vm2611, %v8263
  %8425 = vst.msk [vmem:[#allocation3 + $0x7c] sm:$0xf] %vm2611, %v8265
  %8426 = vst.msk [vmem:[#allocation3 + $0x80] sm:$0xf] %vm2611, %v8267
  %8427 = vst.msk [vmem:[#allocation3 + $0x84] sm:$0xf] %vm2611, %v8269
  %8428 = vst.msk [vmem:[#allocation3 + $0x88] sm:$0xf] %vm2611, %v8271
  %8429 = vst.msk [vmem:[#allocation3 + $0x8c] sm:$0xf] %vm2611, %v8273
  %8430 = vst.msk [vmem:[#allocation3 + $0x90] sm:$0xf] %vm2611, %v8275
  %8431 = vst.msk [vmem:[#allocation3 + $0x94] sm:$0xf] %vm2611, %v8277
  %8432 = vst.msk [vmem:[#allocation3 + $0x98] sm:$0xf] %vm2611, %v8279
  %8433 = vst.msk [vmem:[#allocation3 + $0x9c] sm:$0xf] %vm2611, %v8281
  %8434 = vst.msk [vmem:[#allocation3 + $0xa0] sm:$0xf] %vm2611, %v8283
  %8435 = vst.msk [vmem:[#allocation3 + $0xa4] sm:$0xf] %vm2611, %v8285
  %8436 = vst.msk [vmem:[#allocation3 + $0xa8] sm:$0xf] %vm2611, %v8287
  %8437 = vst.msk [vmem:[#allocation3 + $0xac] sm:$0xf] %vm2611, %v8289
  %8438 = vst.msk [vmem:[#allocation3 + $0xb0] sm:$0xf] %vm2611, %v8291
  %8439 = vst.msk [vmem:[#allocation3 + $0xb4] sm:$0xf] %vm2611, %v8293
  %8440 = vst.msk [vmem:[#allocation3 + $0xb8] sm:$0xf] %vm2611, %v8295
  %8441 = vst.msk [vmem:[#allocation3 + $0xbc] sm:$0xf] %vm2611, %v8297
  %8442 = vst.msk [vmem:[#allocation3 + $0xc0] sm:$0xf] %vm2611, %v8299
  %8443 = vst.msk [vmem:[#allocation3 + $0xc4] sm:$0xf] %vm2611, %v8301
  %8444 = vst.msk [vmem:[#allocation3 + $0xc8] sm:$0xf] %vm2611, %v8303
  %8445 = vst.msk [vmem:[#allocation3 + $0xcc] sm:$0xf] %vm2611, %v8305
  %8446 = vst.msk [vmem:[#allocation3 + $0xd0] sm:$0xf] %vm2611, %v8307
  %8447 = vst.msk [vmem:[#allocation3 + $0xd4] sm:$0xf] %vm2611, %v8309
  %8448 = vst.msk [vmem:[#allocation3 + $0xd8] sm:$0xf] %vm2611, %v8311
  %8449 = vst.msk [vmem:[#allocation3 + $0xdc] sm:$0xf] %vm2611, %v8313
  %8450 = vst.msk [vmem:[#allocation3 + $0xe0] sm:$0xf] %vm2611, %v8315
  %8451 = vst.msk [vmem:[#allocation3 + $0xe4] sm:$0xf] %vm2611, %v8317
  %8452 = vst.msk [vmem:[#allocation3 + $0xe8] sm:$0xf] %vm2611, %v8319
  %8453 = vst.msk [vmem:[#allocation3 + $0xec] sm:$0xf] %vm2611, %v8321
  %8454 = vst.msk [vmem:[#allocation3 + $0xf0] sm:$0xf] %vm2611, %v8323
  %8455 = vst.msk [vmem:[#allocation3 + $0xf4] sm:$0xf] %vm2611, %v8325
  %8456 = vst.msk [vmem:[#allocation3 + $0xf8] sm:$0xf] %vm2611, %v8327
  %8457 = vst.msk [vmem:[#allocation3 + $0xfc] sm:$0xf] %vm2611, %v8329
  %v8458 = vld [vmem:[%s174 + $0x2] sm:$0xff]
  %v8459 = vld [vmem:[%s174 + $0xa] sm:$0xff]
  %v8460 = vld [vmem:[%s174 + $0x1a] sm:$0xff]
  %v8461 = vld [vmem:[%s174 + $0x22] sm:$0xff]
  %v8462 = vld [vmem:[%s174 + $0x32] sm:$0xff]
  %v8463 = vld [vmem:[%s174 + $0x3a] sm:$0xff]
  %v8464 = vld [vmem:[%s174 + $0x4a] sm:$0xff]
  %v8465 = vld [vmem:[%s174 + $0x52] sm:$0xff]
  %v8466 = vld [vmem:[%s174 + $0x62] sm:$0xff]
  %v8467 = vld [vmem:[%s174 + $0x6a] sm:$0xff]
  %v8468 = vld [vmem:[%s174 + $0x7a] sm:$0xff]
  %v8469 = vld [vmem:[%s174 + $0x82] sm:$0xff]
  %v8470 = vld [vmem:[%s174 + $0x92] sm:$0xff]
  %v8471 = vld [vmem:[%s174 + $0x9a] sm:$0xff]
  %v8472 = vld [vmem:[%s174 + $0xaa] sm:$0xff]
  %v8473 = vld [vmem:[%s174 + $0xb2] sm:$0xff]
  %v8474 = vld [vmem:[%s174 + $0xc2] sm:$0xff]
  %v8475 = vld [vmem:[%s174 + $0xca] sm:$0xff]
  %v8476 = vld [vmem:[%s174 + $0xda] sm:$0xff]
  %v8477 = vld [vmem:[%s174 + $0xe2] sm:$0xff]
  %v8478 = vld [vmem:[%s174 + $0xf2] sm:$0xff]
  %v8479 = vld [vmem:[%s174 + $0xfa] sm:$0xff]
  %v8480 = vld [vmem:[%s174 + $0x10a] sm:$0xff]
  %v8481 = vld [vmem:[%s174 + $0x112] sm:$0xff]
  %v8482 = vld [vmem:[%s174 + $0x122] sm:$0xff]
  %v8483 = vld [vmem:[%s174 + $0x12a] sm:$0xff]
  %v8484 = vld [vmem:[%s174 + $0x13a] sm:$0xff]
  %v8485 = vld [vmem:[%s174 + $0x142] sm:$0xff]
  %v8486 = vld [vmem:[%s174 + $0x152] sm:$0xff]
  %v8487 = vld [vmem:[%s174 + $0x15a] sm:$0xff]
  %v8488 = vld [vmem:[%s174 + $0x16a] sm:$0xff]
  %v8489 = vld [vmem:[%s174 + $0x172] sm:$0xff]
  %v8490 = vld [vmem:[%s174 + $0x1b2] sm:$0xff]
  %v8491 = vld [vmem:[%s174 + $0x1ba] sm:$0xff]
  %v8492 = vld [vmem:[%s174 + $0x1ca] sm:$0xff]
  %v8493 = vld [vmem:[%s174 + $0x1d2] sm:$0xff]
  %v8494 = vld [vmem:[%s174 + $0x1e2] sm:$0xff]
  %v8495 = vld [vmem:[%s174 + $0x1ea] sm:$0xff]
  %v8496 = vld [vmem:[%s174 + $0x1fa] sm:$0xff]
  %v8497 = vld [vmem:[%s174 + $0x202] sm:$0xff]
  %v8498 = vld [vmem:[%s174 + $0x212] sm:$0xff]
  %v8499 = vld [vmem:[%s174 + $0x21a] sm:$0xff]
  %v8500 = vld [vmem:[%s174 + $0x22a] sm:$0xff]
  %v8501 = vld [vmem:[%s174 + $0x232] sm:$0xff]
  %v8502 = vld [vmem:[%s174 + $0x242] sm:$0xff]
  %v8503 = vld [vmem:[%s174 + $0x24a] sm:$0xff]
  %v8504 = vld [vmem:[%s174 + $0x25a] sm:$0xff]
  %v8505 = vld [vmem:[%s174 + $0x262] sm:$0xff]
  %v8506 = vld [vmem:[%s174 + $0x272] sm:$0xff]
  %v8507 = vld [vmem:[%s174 + $0x27a] sm:$0xff]
  %v8508 = vld [vmem:[%s174 + $0x28a] sm:$0xff]
  %v8509 = vld [vmem:[%s174 + $0x292] sm:$0xff]
  %v8510 = vld [vmem:[%s174 + $0x2a2] sm:$0xff]
  %v8511 = vld [vmem:[%s174 + $0x2aa] sm:$0xff]
  %v8512 = vld [vmem:[%s174 + $0x2ba] sm:$0xff]
  %v8513 = vld [vmem:[%s174 + $0x2c2] sm:$0xff]
  %v8514 = vld [vmem:[%s174 + $0x2d2] sm:$0xff]
  %v8515 = vld [vmem:[%s174 + $0x2da] sm:$0xff]
  %v8516 = vld [vmem:[%s174 + $0x2ea] sm:$0xff]
  %v8517 = vld [vmem:[%s174 + $0x2f2] sm:$0xff]
  %v8518 = vld [vmem:[%s174 + $0x302] sm:$0xff]
  %v8519 = vld [vmem:[%s174 + $0x30a] sm:$0xff]
  %v8520 = vld [vmem:[%s174 + $0x31a] sm:$0xff]
  %v8521 = vld [vmem:[%s174 + $0x322] sm:$0xff]
  %v8522 = vpack.c.bf16 %v8459, %v8458
  %v8523 = vpack.c.bf16 %v8461, %v8460
  %v8524 = vpack.c.bf16 %v8463, %v8462
  %v8525 = vpack.c.bf16 %v8465, %v8464
  %v8526 = vpack.c.bf16 %v8467, %v8466
  %v8527 = vpack.c.bf16 %v8469, %v8468
  %v8528 = vpack.c.bf16 %v8471, %v8470
  %v8529 = vpack.c.bf16 %v8473, %v8472
  %v8530 = vpack.c.bf16 %v8475, %v8474
  %v8531 = vpack.c.bf16 %v8477, %v8476
  %v8532 = vpack.c.bf16 %v8479, %v8478
  %v8533 = vpack.c.bf16 %v8481, %v8480
  %v8534 = vpack.c.bf16 %v8483, %v8482
  %v8535 = vpack.c.bf16 %v8485, %v8484
  %v8536 = vpack.c.bf16 %v8487, %v8486
  %v8537 = vpack.c.bf16 %v8489, %v8488
  %v8538 = vpack.c.bf16 %v8491, %v8490
  %v8539 = vpack.c.bf16 %v8493, %v8492
  %v8540 = vpack.c.bf16 %v8495, %v8494
  %v8541 = vpack.c.bf16 %v8497, %v8496
  %v8542 = vpack.c.bf16 %v8499, %v8498
  %v8543 = vpack.c.bf16 %v8501, %v8500
  %v8544 = vpack.c.bf16 %v8503, %v8502
  %v8545 = vpack.c.bf16 %v8505, %v8504
  %v8546 = vpack.c.bf16 %v8507, %v8506
  %v8547 = vpack.c.bf16 %v8509, %v8508
  %v8548 = vpack.c.bf16 %v8511, %v8510
  %v8549 = vpack.c.bf16 %v8513, %v8512
  %v8550 = vpack.c.bf16 %v8515, %v8514
  %v8551 = vpack.c.bf16 %v8517, %v8516
  %v8552 = vpack.c.bf16 %v8519, %v8518
  %v8553 = vpack.c.bf16 %v8521, %v8520
  %v8586 = vunpack.c.l.b16 %v8522
  %v8587 = vunpack.c.h.b16 %v8522
  %v8588 = vunpack.c.l.b16 %v8523
  %v8589 = vunpack.c.h.b16 %v8523
  %v8590 = vunpack.c.l.b16 %v8524
  %v8591 = vunpack.c.h.b16 %v8524
  %v8592 = vunpack.c.l.b16 %v8525
  %v8593 = vunpack.c.h.b16 %v8525
  %v8594 = vunpack.c.l.b16 %v8526
  %v8595 = vunpack.c.h.b16 %v8526
  %v8596 = vunpack.c.l.b16 %v8527
  %v8597 = vunpack.c.h.b16 %v8527
  %v8598 = vunpack.c.l.b16 %v8528
  %v8599 = vunpack.c.h.b16 %v8528
  %v8600 = vunpack.c.l.b16 %v8529
  %v8601 = vunpack.c.h.b16 %v8529
  %v8602 = vunpack.c.l.b16 %v8530
  %v8603 = vunpack.c.h.b16 %v8530
  %v8604 = vunpack.c.l.b16 %v8531
  %v8605 = vunpack.c.h.b16 %v8531
  %v8606 = vunpack.c.l.b16 %v8532
  %v8607 = vunpack.c.h.b16 %v8532
  %v8608 = vunpack.c.l.b16 %v8533
  %v8609 = vunpack.c.h.b16 %v8533
  %v8610 = vunpack.c.l.b16 %v8534
  %v8611 = vunpack.c.h.b16 %v8534
  %v8612 = vunpack.c.l.b16 %v8535
  %v8613 = vunpack.c.h.b16 %v8535
  %v8614 = vunpack.c.l.b16 %v8536
  %v8615 = vunpack.c.h.b16 %v8536
  %v8616 = vunpack.c.l.b16 %v8537
  %v8617 = vunpack.c.h.b16 %v8537
  %v8618 = vunpack.c.l.b16 %v8538
  %v8619 = vunpack.c.h.b16 %v8538
  %v8620 = vunpack.c.l.b16 %v8539
  %v8621 = vunpack.c.h.b16 %v8539
  %v8622 = vunpack.c.l.b16 %v8540
  %v8623 = vunpack.c.h.b16 %v8540
  %v8624 = vunpack.c.l.b16 %v8541
  %v8625 = vunpack.c.h.b16 %v8541
  %v8626 = vunpack.c.l.b16 %v8542
  %v8627 = vunpack.c.h.b16 %v8542
  %v8628 = vunpack.c.l.b16 %v8543
  %v8629 = vunpack.c.h.b16 %v8543
  %v8630 = vunpack.c.l.b16 %v8544
  %v8631 = vunpack.c.h.b16 %v8544
  %v8632 = vunpack.c.l.b16 %v8545
  %v8633 = vunpack.c.h.b16 %v8545
  %v8634 = vunpack.c.l.b16 %v8546
  %v8635 = vunpack.c.h.b16 %v8546
  %v8636 = vunpack.c.l.b16 %v8547
  %v8637 = vunpack.c.h.b16 %v8547
  %v8638 = vunpack.c.l.b16 %v8548
  %v8639 = vunpack.c.h.b16 %v8548
  %v8640 = vunpack.c.l.b16 %v8549
  %v8641 = vunpack.c.h.b16 %v8549
  %v8642 = vunpack.c.l.b16 %v8550
  %v8643 = vunpack.c.h.b16 %v8550
  %v8644 = vunpack.c.l.b16 %v8551
  %v8645 = vunpack.c.h.b16 %v8551
  %v8646 = vunpack.c.l.b16 %v8552
  %v8647 = vunpack.c.h.b16 %v8552
  %v8648 = vunpack.c.l.b16 %v8553
  %v8649 = vunpack.c.h.b16 %v8553
  %v8650 = vpack.c.b16 %v8586, %v8586
  %v8651 = vpack.c.b16 %v8587, %v8587
  %v8652 = vpack.c.b16 %v8588, %v8588
  %v8653 = vpack.c.b16 %v8589, %v8589
  %v8654 = vpack.c.b16 %v8590, %v8590
  %v8655 = vpack.c.b16 %v8591, %v8591
  %v8656 = vpack.c.b16 %v8592, %v8592
  %v8657 = vpack.c.b16 %v8593, %v8593
  %v8658 = vpack.c.b16 %v8594, %v8594
  %v8659 = vpack.c.b16 %v8595, %v8595
  %v8660 = vpack.c.b16 %v8596, %v8596
  %v8661 = vpack.c.b16 %v8597, %v8597
  %v8662 = vpack.c.b16 %v8598, %v8598
  %v8663 = vpack.c.b16 %v8599, %v8599
  %v8664 = vpack.c.b16 %v8600, %v8600
  %v8665 = vpack.c.b16 %v8601, %v8601
  %v8666 = vpack.c.b16 %v8602, %v8602
  %v8667 = vpack.c.b16 %v8603, %v8603
  %v8668 = vpack.c.b16 %v8604, %v8604
  %v8669 = vpack.c.b16 %v8605, %v8605
  %v8670 = vpack.c.b16 %v8606, %v8606
  %v8671 = vpack.c.b16 %v8607, %v8607
  %v8672 = vpack.c.b16 %v8608, %v8608
  %v8673 = vpack.c.b16 %v8609, %v8609
  %v8674 = vpack.c.b16 %v8610, %v8610
  %v8675 = vpack.c.b16 %v8611, %v8611
  %v8676 = vpack.c.b16 %v8612, %v8612
  %v8677 = vpack.c.b16 %v8613, %v8613
  %v8678 = vpack.c.b16 %v8614, %v8614
  %v8679 = vpack.c.b16 %v8615, %v8615
  %v8680 = vpack.c.b16 %v8616, %v8616
  %v8681 = vpack.c.b16 %v8617, %v8617
  %v8682 = vpack.c.b16 %v8618, %v8618
  %v8683 = vpack.c.b16 %v8619, %v8619
  %v8684 = vpack.c.b16 %v8620, %v8620
  %v8685 = vpack.c.b16 %v8621, %v8621
  %v8686 = vpack.c.b16 %v8622, %v8622
  %v8687 = vpack.c.b16 %v8623, %v8623
  %v8688 = vpack.c.b16 %v8624, %v8624
  %v8689 = vpack.c.b16 %v8625, %v8625
  %v8690 = vpack.c.b16 %v8626, %v8626
  %v8691 = vpack.c.b16 %v8627, %v8627
  %v8692 = vpack.c.b16 %v8628, %v8628
  %v8693 = vpack.c.b16 %v8629, %v8629
  %v8694 = vpack.c.b16 %v8630, %v8630
  %v8695 = vpack.c.b16 %v8631, %v8631
  %v8696 = vpack.c.b16 %v8632, %v8632
  %v8697 = vpack.c.b16 %v8633, %v8633
  %v8698 = vpack.c.b16 %v8634, %v8634
  %v8699 = vpack.c.b16 %v8635, %v8635
  %v8700 = vpack.c.b16 %v8636, %v8636
  %v8701 = vpack.c.b16 %v8637, %v8637
  %v8702 = vpack.c.b16 %v8638, %v8638
  %v8703 = vpack.c.b16 %v8639, %v8639
  %v8704 = vpack.c.b16 %v8640, %v8640
  %v8705 = vpack.c.b16 %v8641, %v8641
  %v8706 = vpack.c.b16 %v8642, %v8642
  %v8707 = vpack.c.b16 %v8643, %v8643
  %v8708 = vpack.c.b16 %v8644, %v8644
  %v8709 = vpack.c.b16 %v8645, %v8645
  %v8710 = vpack.c.b16 %v8646, %v8646
  %v8711 = vpack.c.b16 %v8647, %v8647
  %v8712 = vpack.c.b16 %v8648, %v8648
  %v8713 = vpack.c.b16 %v8649, %v8649
  %8714 = vrot.lane.b32.xlu0 %v8650, 20
  %v8715 = vpop.permute.xlu0 %8714
  %8716 = vrot.lane.b32.xlu0 %v8651, 20
  %v8717 = vpop.permute.xlu0 %8716
  %8718 = vrot.lane.b32.xlu0 %v8652, 20
  %v8719 = vpop.permute.xlu0 %8718
  %8720 = vrot.lane.b32.xlu0 %v8653, 20
  %v8721 = vpop.permute.xlu0 %8720
  %8722 = vrot.lane.b32.xlu0 %v8654, 20
  %v8723 = vpop.permute.xlu0 %8722
  %8724 = vrot.lane.b32.xlu0 %v8655, 20
  %v8725 = vpop.permute.xlu0 %8724
  %8726 = vrot.lane.b32.xlu0 %v8656, 20
  %v8727 = vpop.permute.xlu0 %8726
  %8728 = vrot.lane.b32.xlu0 %v8657, 20
  %v8729 = vpop.permute.xlu0 %8728
  %8730 = vrot.lane.b32.xlu0 %v8658, 20
  %v8731 = vpop.permute.xlu0 %8730
  %8732 = vrot.lane.b32.xlu0 %v8659, 20
  %v8733 = vpop.permute.xlu0 %8732
  %8734 = vrot.lane.b32.xlu0 %v8660, 20
  %v8735 = vpop.permute.xlu0 %8734
  %8736 = vrot.lane.b32.xlu0 %v8661, 20
  %v8737 = vpop.permute.xlu0 %8736
  %8738 = vrot.lane.b32.xlu0 %v8662, 20
  %v8739 = vpop.permute.xlu0 %8738
  %8740 = vrot.lane.b32.xlu0 %v8663, 20
  %v8741 = vpop.permute.xlu0 %8740
  %8742 = vrot.lane.b32.xlu0 %v8664, 20
  %v8743 = vpop.permute.xlu0 %8742
  %8744 = vrot.lane.b32.xlu0 %v8665, 20
  %v8745 = vpop.permute.xlu0 %8744
  %8746 = vrot.lane.b32.xlu0 %v8666, 20
  %v8747 = vpop.permute.xlu0 %8746
  %8748 = vrot.lane.b32.xlu0 %v8667, 20
  %v8749 = vpop.permute.xlu0 %8748
  %8750 = vrot.lane.b32.xlu0 %v8668, 20
  %v8751 = vpop.permute.xlu0 %8750
  %8752 = vrot.lane.b32.xlu0 %v8669, 20
  %v8753 = vpop.permute.xlu0 %8752
  %8754 = vrot.lane.b32.xlu0 %v8670, 20
  %v8755 = vpop.permute.xlu0 %8754
  %8756 = vrot.lane.b32.xlu0 %v8671, 20
  %v8757 = vpop.permute.xlu0 %8756
  %8758 = vrot.lane.b32.xlu0 %v8672, 20
  %v8759 = vpop.permute.xlu0 %8758
  %8760 = vrot.lane.b32.xlu0 %v8673, 20
  %v8761 = vpop.permute.xlu0 %8760
  %8762 = vrot.lane.b32.xlu0 %v8674, 20
  %v8763 = vpop.permute.xlu0 %8762
  %8764 = vrot.lane.b32.xlu0 %v8675, 20
  %v8765 = vpop.permute.xlu0 %8764
  %8766 = vrot.lane.b32.xlu0 %v8676, 20
  %v8767 = vpop.permute.xlu0 %8766
  %8768 = vrot.lane.b32.xlu0 %v8677, 20
  %v8769 = vpop.permute.xlu0 %8768
  %8770 = vrot.lane.b32.xlu0 %v8678, 20
  %v8771 = vpop.permute.xlu0 %8770
  %8772 = vrot.lane.b32.xlu0 %v8679, 20
  %v8773 = vpop.permute.xlu0 %8772
  %8774 = vrot.lane.b32.xlu0 %v8680, 20
  %v8775 = vpop.permute.xlu0 %8774
  %8776 = vrot.lane.b32.xlu0 %v8681, 20
  %v8777 = vpop.permute.xlu0 %8776
  %8778 = vrot.lane.b32.xlu0 %v8682, 20
  %v8779 = vpop.permute.xlu0 %8778
  %8780 = vrot.lane.b32.xlu0 %v8683, 20
  %v8781 = vpop.permute.xlu0 %8780
  %8782 = vrot.lane.b32.xlu0 %v8684, 20
  %v8783 = vpop.permute.xlu0 %8782
  %8784 = vrot.lane.b32.xlu0 %v8685, 20
  %v8785 = vpop.permute.xlu0 %8784
  %8786 = vrot.lane.b32.xlu0 %v8686, 20
  %v8787 = vpop.permute.xlu0 %8786
  %8788 = vrot.lane.b32.xlu0 %v8687, 20
  %v8789 = vpop.permute.xlu0 %8788
  %8790 = vrot.lane.b32.xlu0 %v8688, 20
  %v8791 = vpop.permute.xlu0 %8790
  %8792 = vrot.lane.b32.xlu0 %v8689, 20
  %v8793 = vpop.permute.xlu0 %8792
  %8794 = vrot.lane.b32.xlu0 %v8690, 20
  %v8795 = vpop.permute.xlu0 %8794
  %8796 = vrot.lane.b32.xlu0 %v8691, 20
  %v8797 = vpop.permute.xlu0 %8796
  %8798 = vrot.lane.b32.xlu0 %v8692, 20
  %v8799 = vpop.permute.xlu0 %8798
  %8800 = vrot.lane.b32.xlu0 %v8693, 20
  %v8801 = vpop.permute.xlu0 %8800
  %8802 = vrot.lane.b32.xlu0 %v8694, 20
  %v8803 = vpop.permute.xlu0 %8802
  %8804 = vrot.lane.b32.xlu0 %v8695, 20
  %v8805 = vpop.permute.xlu0 %8804
  %8806 = vrot.lane.b32.xlu0 %v8696, 20
  %v8807 = vpop.permute.xlu0 %8806
  %8808 = vrot.lane.b32.xlu0 %v8697, 20
  %v8809 = vpop.permute.xlu0 %8808
  %8810 = vrot.lane.b32.xlu0 %v8698, 20
  %v8811 = vpop.permute.xlu0 %8810
  %8812 = vrot.lane.b32.xlu0 %v8699, 20
  %v8813 = vpop.permute.xlu0 %8812
  %8814 = vrot.lane.b32.xlu0 %v8700, 20
  %v8815 = vpop.permute.xlu0 %8814
  %8816 = vrot.lane.b32.xlu0 %v8701, 20
  %v8817 = vpop.permute.xlu0 %8816
  %8818 = vrot.lane.b32.xlu0 %v8702, 20
  %v8819 = vpop.permute.xlu0 %8818
  %8820 = vrot.lane.b32.xlu0 %v8703, 20
  %v8821 = vpop.permute.xlu0 %8820
  %8822 = vrot.lane.b32.xlu0 %v8704, 20
  %v8823 = vpop.permute.xlu0 %8822
  %8824 = vrot.lane.b32.xlu0 %v8705, 20
  %v8825 = vpop.permute.xlu0 %8824
  %8826 = vrot.lane.b32.xlu0 %v8706, 20
  %v8827 = vpop.permute.xlu0 %8826
  %8828 = vrot.lane.b32.xlu0 %v8707, 20
  %v8829 = vpop.permute.xlu0 %8828
  %8830 = vrot.lane.b32.xlu0 %v8708, 20
  %v8831 = vpop.permute.xlu0 %8830
  %8832 = vrot.lane.b32.xlu0 %v8709, 20
  %v8833 = vpop.permute.xlu0 %8832
  %8834 = vrot.lane.b32.xlu0 %v8710, 20
  %v8835 = vpop.permute.xlu0 %8834
  %8836 = vrot.lane.b32.xlu0 %v8711, 20
  %v8837 = vpop.permute.xlu0 %8836
  %8838 = vrot.lane.b32.xlu0 %v8712, 20
  %v8839 = vpop.permute.xlu0 %8838
  %8840 = vrot.lane.b32.xlu0 %v8713, 20
  %v8841 = vpop.permute.xlu0 %8840
  %8906 = vst.msk [vmem:[#allocation3] sm:$0xf] %vm3124, %v8715
  %8907 = vst.msk [vmem:[#allocation3 + $0x4] sm:$0xf] %vm3124, %v8717
  %8908 = vst.msk [vmem:[#allocation3 + $0x8] sm:$0xf] %vm3124, %v8719
  %8909 = vst.msk [vmem:[#allocation3 + $0xc] sm:$0xf] %vm3124, %v8721
  %8910 = vst.msk [vmem:[#allocation3 + $0x10] sm:$0xf] %vm3124, %v8723
  %8911 = vst.msk [vmem:[#allocation3 + $0x14] sm:$0xf] %vm3124, %v8725
  %8912 = vst.msk [vmem:[#allocation3 + $0x18] sm:$0xf] %vm3124, %v8727
  %8913 = vst.msk [vmem:[#allocation3 + $0x1c] sm:$0xf] %vm3124, %v8729
  %8914 = vst.msk [vmem:[#allocation3 + $0x20] sm:$0xf] %vm3124, %v8731
  %8915 = vst.msk [vmem:[#allocation3 + $0x24] sm:$0xf] %vm3124, %v8733
  %8916 = vst.msk [vmem:[#allocation3 + $0x28] sm:$0xf] %vm3124, %v8735
  %8917 = vst.msk [vmem:[#allocation3 + $0x2c] sm:$0xf] %vm3124, %v8737
  %8918 = vst.msk [vmem:[#allocation3 + $0x30] sm:$0xf] %vm3124, %v8739
  %8919 = vst.msk [vmem:[#allocation3 + $0x34] sm:$0xf] %vm3124, %v8741
  %8920 = vst.msk [vmem:[#allocation3 + $0x38] sm:$0xf] %vm3124, %v8743
  %8921 = vst.msk [vmem:[#allocation3 + $0x3c] sm:$0xf] %vm3124, %v8745
  %8922 = vst.msk [vmem:[#allocation3 + $0x40] sm:$0xf] %vm3124, %v8747
  %8923 = vst.msk [vmem:[#allocation3 + $0x44] sm:$0xf] %vm3124, %v8749
  %8924 = vst.msk [vmem:[#allocation3 + $0x48] sm:$0xf] %vm3124, %v8751
  %8925 = vst.msk [vmem:[#allocation3 + $0x4c] sm:$0xf] %vm3124, %v8753
  %8926 = vst.msk [vmem:[#allocation3 + $0x50] sm:$0xf] %vm3124, %v8755
  %8927 = vst.msk [vmem:[#allocation3 + $0x54] sm:$0xf] %vm3124, %v8757
  %8928 = vst.msk [vmem:[#allocation3 + $0x58] sm:$0xf] %vm3124, %v8759
  %8929 = vst.msk [vmem:[#allocation3 + $0x5c] sm:$0xf] %vm3124, %v8761
  %8930 = vst.msk [vmem:[#allocation3 + $0x60] sm:$0xf] %vm3124, %v8763
  %8931 = vst.msk [vmem:[#allocation3 + $0x64] sm:$0xf] %vm3124, %v8765
  %8932 = vst.msk [vmem:[#allocation3 + $0x68] sm:$0xf] %vm3124, %v8767
  %8933 = vst.msk [vmem:[#allocation3 + $0x6c] sm:$0xf] %vm3124, %v8769
  %8934 = vst.msk [vmem:[#allocation3 + $0x70] sm:$0xf] %vm3124, %v8771
  %8935 = vst.msk [vmem:[#allocation3 + $0x74] sm:$0xf] %vm3124, %v8773
  %8936 = vst.msk [vmem:[#allocation3 + $0x78] sm:$0xf] %vm3124, %v8775
  %8937 = vst.msk [vmem:[#allocation3 + $0x7c] sm:$0xf] %vm3124, %v8777
  %8938 = vst.msk [vmem:[#allocation3 + $0x80] sm:$0xf] %vm3124, %v8779
  %8939 = vst.msk [vmem:[#allocation3 + $0x84] sm:$0xf] %vm3124, %v8781
  %8940 = vst.msk [vmem:[#allocation3 + $0x88] sm:$0xf] %vm3124, %v8783
  %8941 = vst.msk [vmem:[#allocation3 + $0x8c] sm:$0xf] %vm3124, %v8785
  %8942 = vst.msk [vmem:[#allocation3 + $0x90] sm:$0xf] %vm3124, %v8787
  %8943 = vst.msk [vmem:[#allocation3 + $0x94] sm:$0xf] %vm3124, %v8789
  %8944 = vst.msk [vmem:[#allocation3 + $0x98] sm:$0xf] %vm3124, %v8791
  %8945 = vst.msk [vmem:[#allocation3 + $0x9c] sm:$0xf] %vm3124, %v8793
  %8946 = vst.msk [vmem:[#allocation3 + $0xa0] sm:$0xf] %vm3124, %v8795
  %8947 = vst.msk [vmem:[#allocation3 + $0xa4] sm:$0xf] %vm3124, %v8797
  %8948 = vst.msk [vmem:[#allocation3 + $0xa8] sm:$0xf] %vm3124, %v8799
  %8949 = vst.msk [vmem:[#allocation3 + $0xac] sm:$0xf] %vm3124, %v8801
  %8950 = vst.msk [vmem:[#allocation3 + $0xb0] sm:$0xf] %vm3124, %v8803
  %8951 = vst.msk [vmem:[#allocation3 + $0xb4] sm:$0xf] %vm3124, %v8805
  %8952 = vst.msk [vmem:[#allocation3 + $0xb8] sm:$0xf] %vm3124, %v8807
  %8953 = vst.msk [vmem:[#allocation3 + $0xbc] sm:$0xf] %vm3124, %v8809
  %8954 = vst.msk [vmem:[#allocation3 + $0xc0] sm:$0xf] %vm3124, %v8811
  %8955 = vst.msk [vmem:[#allocation3 + $0xc4] sm:$0xf] %vm3124, %v8813
  %8956 = vst.msk [vmem:[#allocation3 + $0xc8] sm:$0xf] %vm3124, %v8815
  %8957 = vst.msk [vmem:[#allocation3 + $0xcc] sm:$0xf] %vm3124, %v8817
  %8958 = vst.msk [vmem:[#allocation3 + $0xd0] sm:$0xf] %vm3124, %v8819
  %8959 = vst.msk [vmem:[#allocation3 + $0xd4] sm:$0xf] %vm3124, %v8821
  %8960 = vst.msk [vmem:[#allocation3 + $0xd8] sm:$0xf] %vm3124, %v8823
  %8961 = vst.msk [vmem:[#allocation3 + $0xdc] sm:$0xf] %vm3124, %v8825
  %8962 = vst.msk [vmem:[#allocation3 + $0xe0] sm:$0xf] %vm3124, %v8827
  %8963 = vst.msk [vmem:[#allocation3 + $0xe4] sm:$0xf] %vm3124, %v8829
  %8964 = vst.msk [vmem:[#allocation3 + $0xe8] sm:$0xf] %vm3124, %v8831
  %8965 = vst.msk [vmem:[#allocation3 + $0xec] sm:$0xf] %vm3124, %v8833
  %8966 = vst.msk [vmem:[#allocation3 + $0xf0] sm:$0xf] %vm3124, %v8835
  %8967 = vst.msk [vmem:[#allocation3 + $0xf4] sm:$0xf] %vm3124, %v8837
  %8968 = vst.msk [vmem:[#allocation3 + $0xf8] sm:$0xf] %vm3124, %v8839
  %8969 = vst.msk [vmem:[#allocation3 + $0xfc] sm:$0xf] %vm3124, %v8841
  %v8970 = vld [vmem:[%s3189] sm:$0xff]
  %v8971 = vld [vmem:[%s3189 + $0x8] sm:$0xff]
  %v8972 = vld [vmem:[%s3189 + $0x18] sm:$0xff]
  %v8973 = vld [vmem:[%s3189 + $0x20] sm:$0xff]
  %v8974 = vld [vmem:[%s3189 + $0x30] sm:$0xff]
  %v8975 = vld [vmem:[%s3189 + $0x38] sm:$0xff]
  %v8976 = vld [vmem:[%s3189 + $0x48] sm:$0xff]
  %v8977 = vld [vmem:[%s3189 + $0x50] sm:$0xff]
  %v8978 = vld [vmem:[%s3189 + $0x60] sm:$0xff]
  %v8979 = vld [vmem:[%s3189 + $0x68] sm:$0xff]
  %v8980 = vld [vmem:[%s3189 + $0x78] sm:$0xff]
  %v8981 = vld [vmem:[%s3189 + $0x80] sm:$0xff]
  %v8982 = vld [vmem:[%s3189 + $0x90] sm:$0xff]
  %v8983 = vld [vmem:[%s3189 + $0x98] sm:$0xff]
  %v8984 = vld [vmem:[%s3189 + $0xa8] sm:$0xff]
  %v8985 = vld [vmem:[%s3189 + $0xb0] sm:$0xff]
  %v8986 = vld [vmem:[%s3189 + $0xc0] sm:$0xff]
  %v8987 = vld [vmem:[%s3189 + $0xc8] sm:$0xff]
  %v8988 = vld [vmem:[%s3189 + $0xd8] sm:$0xff]
  %v8989 = vld [vmem:[%s3189 + $0xe0] sm:$0xff]
  %v8990 = vld [vmem:[%s3189 + $0xf0] sm:$0xff]
  %v8991 = vld [vmem:[%s3189 + $0xf8] sm:$0xff]
  %v8992 = vld [vmem:[%s3189 + $0x108] sm:$0xff]
  %v8993 = vld [vmem:[%s3189 + $0x110] sm:$0xff]
  %v8994 = vld [vmem:[%s3189 + $0x120] sm:$0xff]
  %v8995 = vld [vmem:[%s3189 + $0x128] sm:$0xff]
  %v8996 = vld [vmem:[%s3189 + $0x138] sm:$0xff]
  %v8997 = vld [vmem:[%s3189 + $0x140] sm:$0xff]
  %v8998 = vld [vmem:[%s3189 + $0x150] sm:$0xff]
  %v8999 = vld [vmem:[%s3189 + $0x158] sm:$0xff]
  %v9000 = vld [vmem:[%s3189 + $0x168] sm:$0xff]
  %v9001 = vld [vmem:[%s3189 + $0x170] sm:$0xff]
  %v9002 = vld [vmem:[%s3189 + $0x1b0] sm:$0xff]
  %v9003 = vld [vmem:[%s3189 + $0x1b8] sm:$0xff]
  %v9004 = vld [vmem:[%s3189 + $0x1c8] sm:$0xff]
  %v9005 = vld [vmem:[%s3189 + $0x1d0] sm:$0xff]
  %v9006 = vld [vmem:[%s3189 + $0x1e0] sm:$0xff]
  %v9007 = vld [vmem:[%s3189 + $0x1e8] sm:$0xff]
  %v9008 = vld [vmem:[%s3189 + $0x1f8] sm:$0xff]
  %v9009 = vld [vmem:[%s3189 + $0x200] sm:$0xff]
  %v9010 = vld [vmem:[%s3189 + $0x210] sm:$0xff]
  %v9011 = vld [vmem:[%s3189 + $0x218] sm:$0xff]
  %v9012 = vld [vmem:[%s3189 + $0x228] sm:$0xff]
  %v9013 = vld [vmem:[%s3189 + $0x230] sm:$0xff]
  %v9014 = vld [vmem:[%s3189 + $0x240] sm:$0xff]
  %v9015 = vld [vmem:[%s3189 + $0x248] sm:$0xff]
  %v9016 = vld [vmem:[%s3189 + $0x258] sm:$0xff]
  %v9017 = vld [vmem:[%s3189 + $0x260] sm:$0xff]
  %v9018 = vld [vmem:[%s3189 + $0x270] sm:$0xff]
  %v9019 = vld [vmem:[%s3189 + $0x278] sm:$0xff]
  %v9020 = vld [vmem:[%s3189 + $0x288] sm:$0xff]
  %v9021 = vld [vmem:[%s3189 + $0x290] sm:$0xff]
  %v9022 = vld [vmem:[%s3189 + $0x2a0] sm:$0xff]
  %v9023 = vld [vmem:[%s3189 + $0x2a8] sm:$0xff]
  %v9024 = vld [vmem:[%s3189 + $0x2b8] sm:$0xff]
  %v9025 = vld [vmem:[%s3189 + $0x2c0] sm:$0xff]
  %v9026 = vld [vmem:[%s3189 + $0x2d0] sm:$0xff]
  %v9027 = vld [vmem:[%s3189 + $0x2d8] sm:$0xff]
  %v9028 = vld [vmem:[%s3189 + $0x2e8] sm:$0xff]
  %v9029 = vld [vmem:[%s3189 + $0x2f0] sm:$0xff]
  %v9030 = vld [vmem:[%s3189 + $0x300] sm:$0xff]
  %v9031 = vld [vmem:[%s3189 + $0x308] sm:$0xff]
  %v9032 = vld [vmem:[%s3189 + $0x318] sm:$0xff]
  %v9033 = vld [vmem:[%s3189 + $0x320] sm:$0xff]
  %v9034 = vpack.c.bf16 %v8971, %v8970
  %v9035 = vpack.c.bf16 %v8973, %v8972
  %v9036 = vpack.c.bf16 %v8975, %v8974
  %v9037 = vpack.c.bf16 %v8977, %v8976
  %v9038 = vpack.c.bf16 %v8979, %v8978
  %v9039 = vpack.c.bf16 %v8981, %v8980
  %v9040 = vpack.c.bf16 %v8983, %v8982
  %v9041 = vpack.c.bf16 %v8985, %v8984
  %v9042 = vpack.c.bf16 %v8987, %v8986
  %v9043 = vpack.c.bf16 %v8989, %v8988
  %v9044 = vpack.c.bf16 %v8991, %v8990
  %v9045 = vpack.c.bf16 %v8993, %v8992
  %v9046 = vpack.c.bf16 %v8995, %v8994
  %v9047 = vpack.c.bf16 %v8997, %v8996
  %v9048 = vpack.c.bf16 %v8999, %v8998
  %v9049 = vpack.c.bf16 %v9001, %v9000
  %v9050 = vpack.c.bf16 %v9003, %v9002
  %v9051 = vpack.c.bf16 %v9005, %v9004
  %v9052 = vpack.c.bf16 %v9007, %v9006
  %v9053 = vpack.c.bf16 %v9009, %v9008
  %v9054 = vpack.c.bf16 %v9011, %v9010
  %v9055 = vpack.c.bf16 %v9013, %v9012
  %v9056 = vpack.c.bf16 %v9015, %v9014
  %v9057 = vpack.c.bf16 %v9017, %v9016
  %v9058 = vpack.c.bf16 %v9019, %v9018
  %v9059 = vpack.c.bf16 %v9021, %v9020
  %v9060 = vpack.c.bf16 %v9023, %v9022
  %v9061 = vpack.c.bf16 %v9025, %v9024
  %v9062 = vpack.c.bf16 %v9027, %v9026
  %v9063 = vpack.c.bf16 %v9029, %v9028
  %v9064 = vpack.c.bf16 %v9031, %v9030
  %v9065 = vpack.c.bf16 %v9033, %v9032
  %v9098 = vunpack.c.l.b16 %v9034
  %v9099 = vunpack.c.h.b16 %v9034
  %v9100 = vunpack.c.l.b16 %v9035
  %v9101 = vunpack.c.h.b16 %v9035
  %v9102 = vunpack.c.l.b16 %v9036
  %v9103 = vunpack.c.h.b16 %v9036
  %v9104 = vunpack.c.l.b16 %v9037
  %v9105 = vunpack.c.h.b16 %v9037
  %v9106 = vunpack.c.l.b16 %v9038
  %v9107 = vunpack.c.h.b16 %v9038
  %v9108 = vunpack.c.l.b16 %v9039
  %v9109 = vunpack.c.h.b16 %v9039
  %v9110 = vunpack.c.l.b16 %v9040
  %v9111 = vunpack.c.h.b16 %v9040
  %v9112 = vunpack.c.l.b16 %v9041
  %v9113 = vunpack.c.h.b16 %v9041
  %v9114 = vunpack.c.l.b16 %v9042
  %v9115 = vunpack.c.h.b16 %v9042
  %v9116 = vunpack.c.l.b16 %v9043
  %v9117 = vunpack.c.h.b16 %v9043
  %v9118 = vunpack.c.l.b16 %v9044
  %v9119 = vunpack.c.h.b16 %v9044
  %v9120 = vunpack.c.l.b16 %v9045
  %v9121 = vunpack.c.h.b16 %v9045
  %v9122 = vunpack.c.l.b16 %v9046
  %v9123 = vunpack.c.h.b16 %v9046
  %v9124 = vunpack.c.l.b16 %v9047
  %v9125 = vunpack.c.h.b16 %v9047
  %v9126 = vunpack.c.l.b16 %v9048
  %v9127 = vunpack.c.h.b16 %v9048
  %v9128 = vunpack.c.l.b16 %v9049
  %v9129 = vunpack.c.h.b16 %v9049
  %v9130 = vunpack.c.l.b16 %v9050
  %v9131 = vunpack.c.h.b16 %v9050
  %v9132 = vunpack.c.l.b16 %v9051
  %v9133 = vunpack.c.h.b16 %v9051
  %v9134 = vunpack.c.l.b16 %v9052
  %v9135 = vunpack.c.h.b16 %v9052
  %v9136 = vunpack.c.l.b16 %v9053
  %v9137 = vunpack.c.h.b16 %v9053
  %v9138 = vunpack.c.l.b16 %v9054
  %v9139 = vunpack.c.h.b16 %v9054
  %v9140 = vunpack.c.l.b16 %v9055
  %v9141 = vunpack.c.h.b16 %v9055
  %v9142 = vunpack.c.l.b16 %v9056
  %v9143 = vunpack.c.h.b16 %v9056
  %v9144 = vunpack.c.l.b16 %v9057
  %v9145 = vunpack.c.h.b16 %v9057
  %v9146 = vunpack.c.l.b16 %v9058
  %v9147 = vunpack.c.h.b16 %v9058
  %v9148 = vunpack.c.l.b16 %v9059
  %v9149 = vunpack.c.h.b16 %v9059
  %v9150 = vunpack.c.l.b16 %v9060
  %v9151 = vunpack.c.h.b16 %v9060
  %v9152 = vunpack.c.l.b16 %v9061
  %v9153 = vunpack.c.h.b16 %v9061
  %v9154 = vunpack.c.l.b16 %v9062
  %v9155 = vunpack.c.h.b16 %v9062
  %v9156 = vunpack.c.l.b16 %v9063
  %v9157 = vunpack.c.h.b16 %v9063
  %v9158 = vunpack.c.l.b16 %v9064
  %v9159 = vunpack.c.h.b16 %v9064
  %v9160 = vunpack.c.l.b16 %v9065
  %v9161 = vunpack.c.h.b16 %v9065
  %v9162 = vpack.c.b16 %v9098, %v9098
  %v9163 = vpack.c.b16 %v9099, %v9099
  %v9164 = vpack.c.b16 %v9100, %v9100
  %v9165 = vpack.c.b16 %v9101, %v9101
  %v9166 = vpack.c.b16 %v9102, %v9102
  %v9167 = vpack.c.b16 %v9103, %v9103
  %v9168 = vpack.c.b16 %v9104, %v9104
  %v9169 = vpack.c.b16 %v9105, %v9105
  %v9170 = vpack.c.b16 %v9106, %v9106
  %v9171 = vpack.c.b16 %v9107, %v9107
  %v9172 = vpack.c.b16 %v9108, %v9108
  %v9173 = vpack.c.b16 %v9109, %v9109
  %v9174 = vpack.c.b16 %v9110, %v9110
  %v9175 = vpack.c.b16 %v9111, %v9111
  %v9176 = vpack.c.b16 %v9112, %v9112
  %v9177 = vpack.c.b16 %v9113, %v9113
  %v9178 = vpack.c.b16 %v9114, %v9114
  %v9179 = vpack.c.b16 %v9115, %v9115
  %v9180 = vpack.c.b16 %v9116, %v9116
  %v9181 = vpack.c.b16 %v9117, %v9117
  %v9182 = vpack.c.b16 %v9118, %v9118
  %v9183 = vpack.c.b16 %v9119, %v9119
  %v9184 = vpack.c.b16 %v9120, %v9120
  %v9185 = vpack.c.b16 %v9121, %v9121
  %v9186 = vpack.c.b16 %v9122, %v9122
  %v9187 = vpack.c.b16 %v9123, %v9123
  %v9188 = vpack.c.b16 %v9124, %v9124
  %v9189 = vpack.c.b16 %v9125, %v9125
  %v9190 = vpack.c.b16 %v9126, %v9126
  %v9191 = vpack.c.b16 %v9127, %v9127
  %v9192 = vpack.c.b16 %v9128, %v9128
  %v9193 = vpack.c.b16 %v9129, %v9129
  %v9194 = vpack.c.b16 %v9130, %v9130
  %v9195 = vpack.c.b16 %v9131, %v9131
  %v9196 = vpack.c.b16 %v9132, %v9132
  %v9197 = vpack.c.b16 %v9133, %v9133
  %v9198 = vpack.c.b16 %v9134, %v9134
  %v9199 = vpack.c.b16 %v9135, %v9135
  %v9200 = vpack.c.b16 %v9136, %v9136
  %v9201 = vpack.c.b16 %v9137, %v9137
  %v9202 = vpack.c.b16 %v9138, %v9138
  %v9203 = vpack.c.b16 %v9139, %v9139
  %v9204 = vpack.c.b16 %v9140, %v9140
  %v9205 = vpack.c.b16 %v9141, %v9141
  %v9206 = vpack.c.b16 %v9142, %v9142
  %v9207 = vpack.c.b16 %v9143, %v9143
  %v9208 = vpack.c.b16 %v9144, %v9144
  %v9209 = vpack.c.b16 %v9145, %v9145
  %v9210 = vpack.c.b16 %v9146, %v9146
  %v9211 = vpack.c.b16 %v9147, %v9147
  %v9212 = vpack.c.b16 %v9148, %v9148
  %v9213 = vpack.c.b16 %v9149, %v9149
  %v9214 = vpack.c.b16 %v9150, %v9150
  %v9215 = vpack.c.b16 %v9151, %v9151
  %v9216 = vpack.c.b16 %v9152, %v9152
  %v9217 = vpack.c.b16 %v9153, %v9153
  %v9218 = vpack.c.b16 %v9154, %v9154
  %v9219 = vpack.c.b16 %v9155, %v9155
  %v9220 = vpack.c.b16 %v9156, %v9156
  %v9221 = vpack.c.b16 %v9157, %v9157
  %v9222 = vpack.c.b16 %v9158, %v9158
  %v9223 = vpack.c.b16 %v9159, %v9159
  %v9224 = vpack.c.b16 %v9160, %v9160
  %v9225 = vpack.c.b16 %v9161, %v9161
  %9226 = vrot.lane.b32.xlu0 %v9162, 24
  %v9227 = vpop.permute.xlu0 %9226
  %9228 = vrot.lane.b32.xlu0 %v9163, 24
  %v9229 = vpop.permute.xlu0 %9228
  %9230 = vrot.lane.b32.xlu0 %v9164, 24
  %v9231 = vpop.permute.xlu0 %9230
  %9232 = vrot.lane.b32.xlu0 %v9165, 24
  %v9233 = vpop.permute.xlu0 %9232
  %9234 = vrot.lane.b32.xlu0 %v9166, 24
  %v9235 = vpop.permute.xlu0 %9234
  %9236 = vrot.lane.b32.xlu0 %v9167, 24
  %v9237 = vpop.permute.xlu0 %9236
  %9238 = vrot.lane.b32.xlu0 %v9168, 24
  %v9239 = vpop.permute.xlu0 %9238
  %9240 = vrot.lane.b32.xlu0 %v9169, 24
  %v9241 = vpop.permute.xlu0 %9240
  %9242 = vrot.lane.b32.xlu0 %v9170, 24
  %v9243 = vpop.permute.xlu0 %9242
  %9244 = vrot.lane.b32.xlu0 %v9171, 24
  %v9245 = vpop.permute.xlu0 %9244
  %9246 = vrot.lane.b32.xlu0 %v9172, 24
  %v9247 = vpop.permute.xlu0 %9246
  %9248 = vrot.lane.b32.xlu0 %v9173, 24
  %v9249 = vpop.permute.xlu0 %9248
  %9250 = vrot.lane.b32.xlu0 %v9174, 24
  %v9251 = vpop.permute.xlu0 %9250
  %9252 = vrot.lane.b32.xlu0 %v9175, 24
  %v9253 = vpop.permute.xlu0 %9252
  %9254 = vrot.lane.b32.xlu0 %v9176, 24
  %v9255 = vpop.permute.xlu0 %9254
  %9256 = vrot.lane.b32.xlu0 %v9177, 24
  %v9257 = vpop.permute.xlu0 %9256
  %9258 = vrot.lane.b32.xlu0 %v9178, 24
  %v9259 = vpop.permute.xlu0 %9258
  %9260 = vrot.lane.b32.xlu0 %v9179, 24
  %v9261 = vpop.permute.xlu0 %9260
  %9262 = vrot.lane.b32.xlu0 %v9180, 24
  %v9263 = vpop.permute.xlu0 %9262
  %9264 = vrot.lane.b32.xlu0 %v9181, 24
  %v9265 = vpop.permute.xlu0 %9264
  %9266 = vrot.lane.b32.xlu0 %v9182, 24
  %v9267 = vpop.permute.xlu0 %9266
  %9268 = vrot.lane.b32.xlu0 %v9183, 24
  %v9269 = vpop.permute.xlu0 %9268
  %9270 = vrot.lane.b32.xlu0 %v9184, 24
  %v9271 = vpop.permute.xlu0 %9270
  %9272 = vrot.lane.b32.xlu0 %v9185, 24
  %v9273 = vpop.permute.xlu0 %9272
  %9274 = vrot.lane.b32.xlu0 %v9186, 24
  %v9275 = vpop.permute.xlu0 %9274
  %9276 = vrot.lane.b32.xlu0 %v9187, 24
  %v9277 = vpop.permute.xlu0 %9276
  %9278 = vrot.lane.b32.xlu0 %v9188, 24
  %v9279 = vpop.permute.xlu0 %9278
  %9280 = vrot.lane.b32.xlu0 %v9189, 24
  %v9281 = vpop.permute.xlu0 %9280
  %9282 = vrot.lane.b32.xlu0 %v9190, 24
  %v9283 = vpop.permute.xlu0 %9282
  %9284 = vrot.lane.b32.xlu0 %v9191, 24
  %v9285 = vpop.permute.xlu0 %9284
  %9286 = vrot.lane.b32.xlu0 %v9192, 24
  %v9287 = vpop.permute.xlu0 %9286
  %9288 = vrot.lane.b32.xlu0 %v9193, 24
  %v9289 = vpop.permute.xlu0 %9288
  %9290 = vrot.lane.b32.xlu0 %v9194, 24
  %v9291 = vpop.permute.xlu0 %9290
  %9292 = vrot.lane.b32.xlu0 %v9195, 24
  %v9293 = vpop.permute.xlu0 %9292
  %9294 = vrot.lane.b32.xlu0 %v9196, 24
  %v9295 = vpop.permute.xlu0 %9294
  %9296 = vrot.lane.b32.xlu0 %v9197, 24
  %v9297 = vpop.permute.xlu0 %9296
  %9298 = vrot.lane.b32.xlu0 %v9198, 24
  %v9299 = vpop.permute.xlu0 %9298
  %9300 = vrot.lane.b32.xlu0 %v9199, 24
  %v9301 = vpop.permute.xlu0 %9300
  %9302 = vrot.lane.b32.xlu0 %v9200, 24
  %v9303 = vpop.permute.xlu0 %9302
  %9304 = vrot.lane.b32.xlu0 %v9201, 24
  %v9305 = vpop.permute.xlu0 %9304
  %9306 = vrot.lane.b32.xlu0 %v9202, 24
  %v9307 = vpop.permute.xlu0 %9306
  %9308 = vrot.lane.b32.xlu0 %v9203, 24
  %v9309 = vpop.permute.xlu0 %9308
  %9310 = vrot.lane.b32.xlu0 %v9204, 24
  %v9311 = vpop.permute.xlu0 %9310
  %9312 = vrot.lane.b32.xlu0 %v9205, 24
  %v9313 = vpop.permute.xlu0 %9312
  %9314 = vrot.lane.b32.xlu0 %v9206, 24
  %v9315 = vpop.permute.xlu0 %9314
  %9316 = vrot.lane.b32.xlu0 %v9207, 24
  %v9317 = vpop.permute.xlu0 %9316
  %9318 = vrot.lane.b32.xlu0 %v9208, 24
  %v9319 = vpop.permute.xlu0 %9318
  %9320 = vrot.lane.b32.xlu0 %v9209, 24
  %v9321 = vpop.permute.xlu0 %9320
  %9322 = vrot.lane.b32.xlu0 %v9210, 24
  %v9323 = vpop.permute.xlu0 %9322
  %9324 = vrot.lane.b32.xlu0 %v9211, 24
  %v9325 = vpop.permute.xlu0 %9324
  %9326 = vrot.lane.b32.xlu0 %v9212, 24
  %v9327 = vpop.permute.xlu0 %9326
  %9328 = vrot.lane.b32.xlu0 %v9213, 24
  %v9329 = vpop.permute.xlu0 %9328
  %9330 = vrot.lane.b32.xlu0 %v9214, 24
  %v9331 = vpop.permute.xlu0 %9330
  %9332 = vrot.lane.b32.xlu0 %v9215, 24
  %v9333 = vpop.permute.xlu0 %9332
  %9334 = vrot.lane.b32.xlu0 %v9216, 24
  %v9335 = vpop.permute.xlu0 %9334
  %9336 = vrot.lane.b32.xlu0 %v9217, 24
  %v9337 = vpop.permute.xlu0 %9336
  %9338 = vrot.lane.b32.xlu0 %v9218, 24
  %v9339 = vpop.permute.xlu0 %9338
  %9340 = vrot.lane.b32.xlu0 %v9219, 24
  %v9341 = vpop.permute.xlu0 %9340
  %9342 = vrot.lane.b32.xlu0 %v9220, 24
  %v9343 = vpop.permute.xlu0 %9342
  %9344 = vrot.lane.b32.xlu0 %v9221, 24
  %v9345 = vpop.permute.xlu0 %9344
  %9346 = vrot.lane.b32.xlu0 %v9222, 24
  %v9347 = vpop.permute.xlu0 %9346
  %9348 = vrot.lane.b32.xlu0 %v9223, 24
  %v9349 = vpop.permute.xlu0 %9348
  %9350 = vrot.lane.b32.xlu0 %v9224, 24
  %v9351 = vpop.permute.xlu0 %9350
  %9352 = vrot.lane.b32.xlu0 %v9225, 24
  %v9353 = vpop.permute.xlu0 %9352
  %9418 = vst.msk [vmem:[#allocation3] sm:$0xf] %vm3638, %v9227
  %9419 = vst.msk [vmem:[#allocation3 + $0x4] sm:$0xf] %vm3638, %v9229
  %9420 = vst.msk [vmem:[#allocation3 + $0x8] sm:$0xf] %vm3638, %v9231
  %9421 = vst.msk [vmem:[#allocation3 + $0xc] sm:$0xf] %vm3638, %v9233
  %9422 = vst.msk [vmem:[#allocation3 + $0x10] sm:$0xf] %vm3638, %v9235
  %9423 = vst.msk [vmem:[#allocation3 + $0x14] sm:$0xf] %vm3638, %v9237
  %9424 = vst.msk [vmem:[#allocation3 + $0x18] sm:$0xf] %vm3638, %v9239
  %9425 = vst.msk [vmem:[#allocation3 + $0x1c] sm:$0xf] %vm3638, %v9241
  %9426 = vst.msk [vmem:[#allocation3 + $0x20] sm:$0xf] %vm3638, %v9243
  %9427 = vst.msk [vmem:[#allocation3 + $0x24] sm:$0xf] %vm3638, %v9245
  %9428 = vst.msk [vmem:[#allocation3 + $0x28] sm:$0xf] %vm3638, %v9247
  %9429 = vst.msk [vmem:[#allocation3 + $0x2c] sm:$0xf] %vm3638, %v9249
  %9430 = vst.msk [vmem:[#allocation3 + $0x30] sm:$0xf] %vm3638, %v9251
  %9431 = vst.msk [vmem:[#allocation3 + $0x34] sm:$0xf] %vm3638, %v9253
  %9432 = vst.msk [vmem:[#allocation3 + $0x38] sm:$0xf] %vm3638, %v9255
  %9433 = vst.msk [vmem:[#allocation3 + $0x3c] sm:$0xf] %vm3638, %v9257
  %9434 = vst.msk [vmem:[#allocation3 + $0x40] sm:$0xf] %vm3638, %v9259
  %9435 = vst.msk [vmem:[#allocation3 + $0x44] sm:$0xf] %vm3638, %v9261
  %9436 = vst.msk [vmem:[#allocation3 + $0x48] sm:$0xf] %vm3638, %v9263
  %9437 = vst.msk [vmem:[#allocation3 + $0x4c] sm:$0xf] %vm3638, %v9265
  %9438 = vst.msk [vmem:[#allocation3 + $0x50] sm:$0xf] %vm3638, %v9267
  %9439 = vst.msk [vmem:[#allocation3 + $0x54] sm:$0xf] %vm3638, %v9269
  %9440 = vst.msk [vmem:[#allocation3 + $0x58] sm:$0xf] %vm3638, %v9271
  %9441 = vst.msk [vmem:[#allocation3 + $0x5c] sm:$0xf] %vm3638, %v9273
  %9442 = vst.msk [vmem:[#allocation3 + $0x60] sm:$0xf] %vm3638, %v9275
  %9443 = vst.msk [vmem:[#allocation3 + $0x64] sm:$0xf] %vm3638, %v9277
  %9444 = vst.msk [vmem:[#allocation3 + $0x68] sm:$0xf] %vm3638, %v9279
  %9445 = vst.msk [vmem:[#allocation3 + $0x6c] sm:$0xf] %vm3638, %v9281
  %9446 = vst.msk [vmem:[#allocation3 + $0x70] sm:$0xf] %vm3638, %v9283
  %9447 = vst.msk [vmem:[#allocation3 + $0x74] sm:$0xf] %vm3638, %v9285
  %9448 = vst.msk [vmem:[#allocation3 + $0x78] sm:$0xf] %vm3638, %v9287
  %9449 = vst.msk [vmem:[#allocation3 + $0x7c] sm:$0xf] %vm3638, %v9289
  %9450 = vst.msk [vmem:[#allocation3 + $0x80] sm:$0xf] %vm3638, %v9291
  %9451 = vst.msk [vmem:[#allocation3 + $0x84] sm:$0xf] %vm3638, %v9293
  %9452 = vst.msk [vmem:[#allocation3 + $0x88] sm:$0xf] %vm3638, %v9295
  %9453 = vst.msk [vmem:[#allocation3 + $0x8c] sm:$0xf] %vm3638, %v9297
  %9454 = vst.msk [vmem:[#allocation3 + $0x90] sm:$0xf] %vm3638, %v9299
  %9455 = vst.msk [vmem:[#allocation3 + $0x94] sm:$0xf] %vm3638, %v9301
  %9456 = vst.msk [vmem:[#allocation3 + $0x98] sm:$0xf] %vm3638, %v9303
  %9457 = vst.msk [vmem:[#allocation3 + $0x9c] sm:$0xf] %vm3638, %v9305
  %9458 = vst.msk [vmem:[#allocation3 + $0xa0] sm:$0xf] %vm3638, %v9307
  %9459 = vst.msk [vmem:[#allocation3 + $0xa4] sm:$0xf] %vm3638, %v9309
  %9460 = vst.msk [vmem:[#allocation3 + $0xa8] sm:$0xf] %vm3638, %v9311
  %9461 = vst.msk [vmem:[#allocation3 + $0xac] sm:$0xf] %vm3638, %v9313
  %9462 = vst.msk [vmem:[#allocation3 + $0xb0] sm:$0xf] %vm3638, %v9315
  %9463 = vst.msk [vmem:[#allocation3 + $0xb4] sm:$0xf] %vm3638, %v9317
  %9464 = vst.msk [vmem:[#allocation3 + $0xb8] sm:$0xf] %vm3638, %v9319
  %9465 = vst.msk [vmem:[#allocation3 + $0xbc] sm:$0xf] %vm3638, %v9321
  %9466 = vst.msk [vmem:[#allocation3 + $0xc0] sm:$0xf] %vm3638, %v9323
  %9467 = vst.msk [vmem:[#allocation3 + $0xc4] sm:$0xf] %vm3638, %v9325
  %9468 = vst.msk [vmem:[#allocation3 + $0xc8] sm:$0xf] %vm3638, %v9327
  %9469 = vst.msk [vmem:[#allocation3 + $0xcc] sm:$0xf] %vm3638, %v9329
  %9470 = vst.msk [vmem:[#allocation3 + $0xd0] sm:$0xf] %vm3638, %v9331
  %9471 = vst.msk [vmem:[#allocation3 + $0xd4] sm:$0xf] %vm3638, %v9333
  %9472 = vst.msk [vmem:[#allocation3 + $0xd8] sm:$0xf] %vm3638, %v9335
  %9473 = vst.msk [vmem:[#allocation3 + $0xdc] sm:$0xf] %vm3638, %v9337
  %9474 = vst.msk [vmem:[#allocation3 + $0xe0] sm:$0xf] %vm3638, %v9339
  %9475 = vst.msk [vmem:[#allocation3 + $0xe4] sm:$0xf] %vm3638, %v9341
  %9476 = vst.msk [vmem:[#allocation3 + $0xe8] sm:$0xf] %vm3638, %v9343
  %9477 = vst.msk [vmem:[#allocation3 + $0xec] sm:$0xf] %vm3638, %v9345
  %9478 = vst.msk [vmem:[#allocation3 + $0xf0] sm:$0xf] %vm3638, %v9347
  %9479 = vst.msk [vmem:[#allocation3 + $0xf4] sm:$0xf] %vm3638, %v9349
  %9480 = vst.msk [vmem:[#allocation3 + $0xf8] sm:$0xf] %vm3638, %v9351
  %9481 = vst.msk [vmem:[#allocation3 + $0xfc] sm:$0xf] %vm3638, %v9353
  %v9482 = vld [vmem:[%s3189 + $0x1] sm:$0xff]
  %v9483 = vld [vmem:[%s3189 + $0x9] sm:$0xff]
  %v9484 = vld [vmem:[%s3189 + $0x19] sm:$0xff]
  %v9485 = vld [vmem:[%s3189 + $0x21] sm:$0xff]
  %v9486 = vld [vmem:[%s3189 + $0x31] sm:$0xff]
  %v9487 = vld [vmem:[%s3189 + $0x39] sm:$0xff]
  %v9488 = vld [vmem:[%s3189 + $0x49] sm:$0xff]
  %v9489 = vld [vmem:[%s3189 + $0x51] sm:$0xff]
  %v9490 = vld [vmem:[%s3189 + $0x61] sm:$0xff]
  %v9491 = vld [vmem:[%s3189 + $0x69] sm:$0xff]
  %v9492 = vld [vmem:[%s3189 + $0x79] sm:$0xff]
  %v9493 = vld [vmem:[%s3189 + $0x81] sm:$0xff]
  %v9494 = vld [vmem:[%s3189 + $0x91] sm:$0xff]
  %v9495 = vld [vmem:[%s3189 + $0x99] sm:$0xff]
  %v9496 = vld [vmem:[%s3189 + $0xa9] sm:$0xff]
  %v9497 = vld [vmem:[%s3189 + $0xb1] sm:$0xff]
  %v9498 = vld [vmem:[%s3189 + $0xc1] sm:$0xff]
  %v9499 = vld [vmem:[%s3189 + $0xc9] sm:$0xff]
  %v9500 = vld [vmem:[%s3189 + $0xd9] sm:$0xff]
  %v9501 = vld [vmem:[%s3189 + $0xe1] sm:$0xff]
  %v9502 = vld [vmem:[%s3189 + $0xf1] sm:$0xff]
  %v9503 = vld [vmem:[%s3189 + $0xf9] sm:$0xff]
  %v9504 = vld [vmem:[%s3189 + $0x109] sm:$0xff]
  %v9505 = vld [vmem:[%s3189 + $0x111] sm:$0xff]
  %v9506 = vld [vmem:[%s3189 + $0x121] sm:$0xff]
  %v9507 = vld [vmem:[%s3189 + $0x129] sm:$0xff]
  %v9508 = vld [vmem:[%s3189 + $0x139] sm:$0xff]
  %v9509 = vld [vmem:[%s3189 + $0x141] sm:$0xff]
  %v9510 = vld [vmem:[%s3189 + $0x151] sm:$0xff]
  %v9511 = vld [vmem:[%s3189 + $0x159] sm:$0xff]
  %v9512 = vld [vmem:[%s3189 + $0x169] sm:$0xff]
  %v9513 = vld [vmem:[%s3189 + $0x171] sm:$0xff]
  %v9514 = vld [vmem:[%s3189 + $0x1b1] sm:$0xff]
  %v9515 = vld [vmem:[%s3189 + $0x1b9] sm:$0xff]
  %v9516 = vld [vmem:[%s3189 + $0x1c9] sm:$0xff]
  %v9517 = vld [vmem:[%s3189 + $0x1d1] sm:$0xff]
  %v9518 = vld [vmem:[%s3189 + $0x1e1] sm:$0xff]
  %v9519 = vld [vmem:[%s3189 + $0x1e9] sm:$0xff]
  %v9520 = vld [vmem:[%s3189 + $0x1f9] sm:$0xff]
  %v9521 = vld [vmem:[%s3189 + $0x201] sm:$0xff]
  %v9522 = vld [vmem:[%s3189 + $0x211] sm:$0xff]
  %v9523 = vld [vmem:[%s3189 + $0x219] sm:$0xff]
  %v9524 = vld [vmem:[%s3189 + $0x229] sm:$0xff]
  %v9525 = vld [vmem:[%s3189 + $0x231] sm:$0xff]
  %v9526 = vld [vmem:[%s3189 + $0x241] sm:$0xff]
  %v9527 = vld [vmem:[%s3189 + $0x249] sm:$0xff]
  %v9528 = vld [vmem:[%s3189 + $0x259] sm:$0xff]
  %v9529 = vld [vmem:[%s3189 + $0x261] sm:$0xff]
  %v9530 = vld [vmem:[%s3189 + $0x271] sm:$0xff]
  %v9531 = vld [vmem:[%s3189 + $0x279] sm:$0xff]
  %v9532 = vld [vmem:[%s3189 + $0x289] sm:$0xff]
  %v9533 = vld [vmem:[%s3189 + $0x291] sm:$0xff]
  %v9534 = vld [vmem:[%s3189 + $0x2a1] sm:$0xff]
  %v9535 = vld [vmem:[%s3189 + $0x2a9] sm:$0xff]
  %v9536 = vld [vmem:[%s3189 + $0x2b9] sm:$0xff]
  %v9537 = vld [vmem:[%s3189 + $0x2c1] sm:$0xff]
  %v9538 = vld [vmem:[%s3189 + $0x2d1] sm:$0xff]
  %v9539 = vld [vmem:[%s3189 + $0x2d9] sm:$0xff]
  %v9540 = vld [vmem:[%s3189 + $0x2e9] sm:$0xff]
  %v9541 = vld [vmem:[%s3189 + $0x2f1] sm:$0xff]
  %v9542 = vld [vmem:[%s3189 + $0x301] sm:$0xff]
  %v9543 = vld [vmem:[%s3189 + $0x309] sm:$0xff]
  %v9544 = vld [vmem:[%s3189 + $0x319] sm:$0xff]
  %v9545 = vld [vmem:[%s3189 + $0x321] sm:$0xff]
  %v9546 = vpack.c.bf16 %v9483, %v9482
  %v9547 = vpack.c.bf16 %v9485, %v9484
  %v9548 = vpack.c.bf16 %v9487, %v9486
  %v9549 = vpack.c.bf16 %v9489, %v9488
  %v9550 = vpack.c.bf16 %v9491, %v9490
  %v9551 = vpack.c.bf16 %v9493, %v9492
  %v9552 = vpack.c.bf16 %v9495, %v9494
  %v9553 = vpack.c.bf16 %v9497, %v9496
  %v9554 = vpack.c.bf16 %v9499, %v9498
  %v9555 = vpack.c.bf16 %v9501, %v9500
  %v9556 = vpack.c.bf16 %v9503, %v9502
  %v9557 = vpack.c.bf16 %v9505, %v9504
  %v9558 = vpack.c.bf16 %v9507, %v9506
  %v9559 = vpack.c.bf16 %v9509, %v9508
  %v9560 = vpack.c.bf16 %v9511, %v9510
  %v9561 = vpack.c.bf16 %v9513, %v9512
  %v9562 = vpack.c.bf16 %v9515, %v9514
  %v9563 = vpack.c.bf16 %v9517, %v9516
  %v9564 = vpack.c.bf16 %v9519, %v9518
  %v9565 = vpack.c.bf16 %v9521, %v9520
  %v9566 = vpack.c.bf16 %v9523, %v9522
  %v9567 = vpack.c.bf16 %v9525, %v9524
  %v9568 = vpack.c.bf16 %v9527, %v9526
  %v9569 = vpack.c.bf16 %v9529, %v9528
  %v9570 = vpack.c.bf16 %v9531, %v9530
  %v9571 = vpack.c.bf16 %v9533, %v9532
  %v9572 = vpack.c.bf16 %v9535, %v9534
  %v9573 = vpack.c.bf16 %v9537, %v9536
  %v9574 = vpack.c.bf16 %v9539, %v9538
  %v9575 = vpack.c.bf16 %v9541, %v9540
  %v9576 = vpack.c.bf16 %v9543, %v9542
  %v9577 = vpack.c.bf16 %v9545, %v9544
  %v9610 = vunpack.c.l.b16 %v9546
  %v9611 = vunpack.c.h.b16 %v9546
  %v9612 = vunpack.c.l.b16 %v9547
  %v9613 = vunpack.c.h.b16 %v9547
  %v9614 = vunpack.c.l.b16 %v9548
  %v9615 = vunpack.c.h.b16 %v9548
  %v9616 = vunpack.c.l.b16 %v9549
  %v9617 = vunpack.c.h.b16 %v9549
  %v9618 = vunpack.c.l.b16 %v9550
  %v9619 = vunpack.c.h.b16 %v9550
  %v9620 = vunpack.c.l.b16 %v9551
  %v9621 = vunpack.c.h.b16 %v9551
  %v9622 = vunpack.c.l.b16 %v9552
  %v9623 = vunpack.c.h.b16 %v9552
  %v9624 = vunpack.c.l.b16 %v9553
  %v9625 = vunpack.c.h.b16 %v9553
  %v9626 = vunpack.c.l.b16 %v9554
  %v9627 = vunpack.c.h.b16 %v9554
  %v9628 = vunpack.c.l.b16 %v9555
  %v9629 = vunpack.c.h.b16 %v9555
  %v9630 = vunpack.c.l.b16 %v9556
  %v9631 = vunpack.c.h.b16 %v9556
  %v9632 = vunpack.c.l.b16 %v9557
  %v9633 = vunpack.c.h.b16 %v9557
  %v9634 = vunpack.c.l.b16 %v9558
  %v9635 = vunpack.c.h.b16 %v9558
  %v9636 = vunpack.c.l.b16 %v9559
  %v9637 = vunpack.c.h.b16 %v9559
  %v9638 = vunpack.c.l.b16 %v9560
  %v9639 = vunpack.c.h.b16 %v9560
  %v9640 = vunpack.c.l.b16 %v9561
  %v9641 = vunpack.c.h.b16 %v9561
  %v9642 = vunpack.c.l.b16 %v9562
  %v9643 = vunpack.c.h.b16 %v9562
  %v9644 = vunpack.c.l.b16 %v9563
  %v9645 = vunpack.c.h.b16 %v9563
  %v9646 = vunpack.c.l.b16 %v9564
  %v9647 = vunpack.c.h.b16 %v9564
  %v9648 = vunpack.c.l.b16 %v9565
  %v9649 = vunpack.c.h.b16 %v9565
  %v9650 = vunpack.c.l.b16 %v9566
  %v9651 = vunpack.c.h.b16 %v9566
  %v9652 = vunpack.c.l.b16 %v9567
  %v9653 = vunpack.c.h.b16 %v9567
  %v9654 = vunpack.c.l.b16 %v9568
  %v9655 = vunpack.c.h.b16 %v9568
  %v9656 = vunpack.c.l.b16 %v9569
  %v9657 = vunpack.c.h.b16 %v9569
  %v9658 = vunpack.c.l.b16 %v9570
  %v9659 = vunpack.c.h.b16 %v9570
  %v9660 = vunpack.c.l.b16 %v9571
  %v9661 = vunpack.c.h.b16 %v9571
  %v9662 = vunpack.c.l.b16 %v9572
  %v9663 = vunpack.c.h.b16 %v9572
  %v9664 = vunpack.c.l.b16 %v9573
  %v9665 = vunpack.c.h.b16 %v9573
  %v9666 = vunpack.c.l.b16 %v9574
  %v9667 = vunpack.c.h.b16 %v9574
  %v9668 = vunpack.c.l.b16 %v9575
  %v9669 = vunpack.c.h.b16 %v9575
  %v9670 = vunpack.c.l.b16 %v9576
  %v9671 = vunpack.c.h.b16 %v9576
  %v9672 = vunpack.c.l.b16 %v9577
  %v9673 = vunpack.c.h.b16 %v9577
  %v9674 = vpack.c.b16 %v9610, %v9610
  %v9675 = vpack.c.b16 %v9611, %v9611
  %v9676 = vpack.c.b16 %v9612, %v9612
  %v9677 = vpack.c.b16 %v9613, %v9613
  %v9678 = vpack.c.b16 %v9614, %v9614
  %v9679 = vpack.c.b16 %v9615, %v9615
  %v9680 = vpack.c.b16 %v9616, %v9616
  %v9681 = vpack.c.b16 %v9617, %v9617
  %v9682 = vpack.c.b16 %v9618, %v9618
  %v9683 = vpack.c.b16 %v9619, %v9619
  %v9684 = vpack.c.b16 %v9620, %v9620
  %v9685 = vpack.c.b16 %v9621, %v9621
  %v9686 = vpack.c.b16 %v9622, %v9622
  %v9687 = vpack.c.b16 %v9623, %v9623
  %v9688 = vpack.c.b16 %v9624, %v9624
  %v9689 = vpack.c.b16 %v9625, %v9625
  %v9690 = vpack.c.b16 %v9626, %v9626
  %v9691 = vpack.c.b16 %v9627, %v9627
  %v9692 = vpack.c.b16 %v9628, %v9628
  %v9693 = vpack.c.b16 %v9629, %v9629
  %v9694 = vpack.c.b16 %v9630, %v9630
  %v9695 = vpack.c.b16 %v9631, %v9631
  %v9696 = vpack.c.b16 %v9632, %v9632
  %v9697 = vpack.c.b16 %v9633, %v9633
  %v9698 = vpack.c.b16 %v9634, %v9634
  %v9699 = vpack.c.b16 %v9635, %v9635
  %v9700 = vpack.c.b16 %v9636, %v9636
  %v9701 = vpack.c.b16 %v9637, %v9637
  %v9702 = vpack.c.b16 %v9638, %v9638
  %v9703 = vpack.c.b16 %v9639, %v9639
  %v9704 = vpack.c.b16 %v9640, %v9640
  %v9705 = vpack.c.b16 %v9641, %v9641
  %v9706 = vpack.c.b16 %v9642, %v9642
  %v9707 = vpack.c.b16 %v9643, %v9643
  %v9708 = vpack.c.b16 %v9644, %v9644
  %v9709 = vpack.c.b16 %v9645, %v9645
  %v9710 = vpack.c.b16 %v9646, %v9646
  %v9711 = vpack.c.b16 %v9647, %v9647
  %v9712 = vpack.c.b16 %v9648, %v9648
  %v9713 = vpack.c.b16 %v9649, %v9649
  %v9714 = vpack.c.b16 %v9650, %v9650
  %v9715 = vpack.c.b16 %v9651, %v9651
  %v9716 = vpack.c.b16 %v9652, %v9652
  %v9717 = vpack.c.b16 %v9653, %v9653
  %v9718 = vpack.c.b16 %v9654, %v9654
  %v9719 = vpack.c.b16 %v9655, %v9655
  %v9720 = vpack.c.b16 %v9656, %v9656
  %v9721 = vpack.c.b16 %v9657, %v9657
  %v9722 = vpack.c.b16 %v9658, %v9658
  %v9723 = vpack.c.b16 %v9659, %v9659
  %v9724 = vpack.c.b16 %v9660, %v9660
  %v9725 = vpack.c.b16 %v9661, %v9661
  %v9726 = vpack.c.b16 %v9662, %v9662
  %v9727 = vpack.c.b16 %v9663, %v9663
  %v9728 = vpack.c.b16 %v9664, %v9664
  %v9729 = vpack.c.b16 %v9665, %v9665
  %v9730 = vpack.c.b16 %v9666, %v9666
  %v9731 = vpack.c.b16 %v9667, %v9667
  %v9732 = vpack.c.b16 %v9668, %v9668
  %v9733 = vpack.c.b16 %v9669, %v9669
  %v9734 = vpack.c.b16 %v9670, %v9670
  %v9735 = vpack.c.b16 %v9671, %v9671
  %v9736 = vpack.c.b16 %v9672, %v9672
  %v9737 = vpack.c.b16 %v9673, %v9673
  %9738 = vrot.lane.b32.xlu0 %v9674, 28
  %v9739 = vpop.permute.xlu0 %9738
  %9740 = vrot.lane.b32.xlu0 %v9675, 28
  %v9741 = vpop.permute.xlu0 %9740
  %9742 = vrot.lane.b32.xlu0 %v9676, 28
  %v9743 = vpop.permute.xlu0 %9742
  %9744 = vrot.lane.b32.xlu0 %v9677, 28
  %v9745 = vpop.permute.xlu0 %9744
  %9746 = vrot.lane.b32.xlu0 %v9678, 28
  %v9747 = vpop.permute.xlu0 %9746
  %9748 = vrot.lane.b32.xlu0 %v9679, 28
  %v9749 = vpop.permute.xlu0 %9748
  %9750 = vrot.lane.b32.xlu0 %v9680, 28
  %v9751 = vpop.permute.xlu0 %9750
  %9752 = vrot.lane.b32.xlu0 %v9681, 28
  %v9753 = vpop.permute.xlu0 %9752
  %9754 = vrot.lane.b32.xlu0 %v9682, 28
  %v9755 = vpop.permute.xlu0 %9754
  %9756 = vrot.lane.b32.xlu0 %v9683, 28
  %v9757 = vpop.permute.xlu0 %9756
  %9758 = vrot.lane.b32.xlu0 %v9684, 28
  %v9759 = vpop.permute.xlu0 %9758
  %9760 = vrot.lane.b32.xlu0 %v9685, 28
  %v9761 = vpop.permute.xlu0 %9760
  %9762 = vrot.lane.b32.xlu0 %v9686, 28
  %v9763 = vpop.permute.xlu0 %9762
  %9764 = vrot.lane.b32.xlu0 %v9687, 28
  %v9765 = vpop.permute.xlu0 %9764
  %9766 = vrot.lane.b32.xlu0 %v9688, 28
  %v9767 = vpop.permute.xlu0 %9766
  %9768 = vrot.lane.b32.xlu0 %v9689, 28
  %v9769 = vpop.permute.xlu0 %9768
  %9770 = vrot.lane.b32.xlu0 %v9690, 28
  %v9771 = vpop.permute.xlu0 %9770
  %9772 = vrot.lane.b32.xlu0 %v9691, 28
  %v9773 = vpop.permute.xlu0 %9772
  %9774 = vrot.lane.b32.xlu0 %v9692, 28
  %v9775 = vpop.permute.xlu0 %9774
  %9776 = vrot.lane.b32.xlu0 %v9693, 28
  %v9777 = vpop.permute.xlu0 %9776
  %9778 = vrot.lane.b32.xlu0 %v9694, 28
  %v9779 = vpop.permute.xlu0 %9778
  %9780 = vrot.lane.b32.xlu0 %v9695, 28
  %v9781 = vpop.permute.xlu0 %9780
  %9782 = vrot.lane.b32.xlu0 %v9696, 28
  %v9783 = vpop.permute.xlu0 %9782
  %9784 = vrot.lane.b32.xlu0 %v9697, 28
  %v9785 = vpop.permute.xlu0 %9784
  %9786 = vrot.lane.b32.xlu0 %v9698, 28
  %v9787 = vpop.permute.xlu0 %9786
  %9788 = vrot.lane.b32.xlu0 %v9699, 28
  %v9789 = vpop.permute.xlu0 %9788
  %9790 = vrot.lane.b32.xlu0 %v9700, 28
  %v9791 = vpop.permute.xlu0 %9790
  %9792 = vrot.lane.b32.xlu0 %v9701, 28
  %v9793 = vpop.permute.xlu0 %9792
  %9794 = vrot.lane.b32.xlu0 %v9702, 28
  %v9795 = vpop.permute.xlu0 %9794
  %9796 = vrot.lane.b32.xlu0 %v9703, 28
  %v9797 = vpop.permute.xlu0 %9796
  %9798 = vrot.lane.b32.xlu0 %v9704, 28
  %v9799 = vpop.permute.xlu0 %9798
  %9800 = vrot.lane.b32.xlu0 %v9705, 28
  %v9801 = vpop.permute.xlu0 %9800
  %9802 = vrot.lane.b32.xlu0 %v9706, 28
  %v9803 = vpop.permute.xlu0 %9802
  %9804 = vrot.lane.b32.xlu0 %v9707, 28
  %v9805 = vpop.permute.xlu0 %9804
  %9806 = vrot.lane.b32.xlu0 %v9708, 28
  %v9807 = vpop.permute.xlu0 %9806
  %9808 = vrot.lane.b32.xlu0 %v9709, 28
  %v9809 = vpop.permute.xlu0 %9808
  %9810 = vrot.lane.b32.xlu0 %v9710, 28
  %v9811 = vpop.permute.xlu0 %9810
  %9812 = vrot.lane.b32.xlu0 %v9711, 28
  %v9813 = vpop.permute.xlu0 %9812
  %9814 = vrot.lane.b32.xlu0 %v9712, 28
  %v9815 = vpop.permute.xlu0 %9814
  %9816 = vrot.lane.b32.xlu0 %v9713, 28
  %v9817 = vpop.permute.xlu0 %9816
  %9818 = vrot.lane.b32.xlu0 %v9714, 28
  %v9819 = vpop.permute.xlu0 %9818
  %9820 = vrot.lane.b32.xlu0 %v9715, 28
  %v9821 = vpop.permute.xlu0 %9820
  %9822 = vrot.lane.b32.xlu0 %v9716, 28
  %v9823 = vpop.permute.xlu0 %9822
  %9824 = vrot.lane.b32.xlu0 %v9717, 28
  %v9825 = vpop.permute.xlu0 %9824
  %9826 = vrot.lane.b32.xlu0 %v9718, 28
  %v9827 = vpop.permute.xlu0 %9826
  %9828 = vrot.lane.b32.xlu0 %v9719, 28
  %v9829 = vpop.permute.xlu0 %9828
  %9830 = vrot.lane.b32.xlu0 %v9720, 28
  %v9831 = vpop.permute.xlu0 %9830
  %9832 = vrot.lane.b32.xlu0 %v9721, 28
  %v9833 = vpop.permute.xlu0 %9832
  %9834 = vrot.lane.b32.xlu0 %v9722, 28
  %v9835 = vpop.permute.xlu0 %9834
  %9836 = vrot.lane.b32.xlu0 %v9723, 28
  %v9837 = vpop.permute.xlu0 %9836
  %9838 = vrot.lane.b32.xlu0 %v9724, 28
  %v9839 = vpop.permute.xlu0 %9838
  %9840 = vrot.lane.b32.xlu0 %v9725, 28
  %v9841 = vpop.permute.xlu0 %9840
  %9842 = vrot.lane.b32.xlu0 %v9726, 28
  %v9843 = vpop.permute.xlu0 %9842
  %9844 = vrot.lane.b32.xlu0 %v9727, 28
  %v9845 = vpop.permute.xlu0 %9844
  %9846 = vrot.lane.b32.xlu0 %v9728, 28
  %v9847 = vpop.permute.xlu0 %9846
  %9848 = vrot.lane.b32.xlu0 %v9729, 28
  %v9849 = vpop.permute.xlu0 %9848
  %9850 = vrot.lane.b32.xlu0 %v9730, 28
  %v9851 = vpop.permute.xlu0 %9850
  %9852 = vrot.lane.b32.xlu0 %v9731, 28
  %v9853 = vpop.permute.xlu0 %9852
  %9854 = vrot.lane.b32.xlu0 %v9732, 28
  %v9855 = vpop.permute.xlu0 %9854
  %9856 = vrot.lane.b32.xlu0 %v9733, 28
  %v9857 = vpop.permute.xlu0 %9856
  %9858 = vrot.lane.b32.xlu0 %v9734, 28
  %v9859 = vpop.permute.xlu0 %9858
  %9860 = vrot.lane.b32.xlu0 %v9735, 28
  %v9861 = vpop.permute.xlu0 %9860
  %9862 = vrot.lane.b32.xlu0 %v9736, 28
  %v9863 = vpop.permute.xlu0 %9862
  %9864 = vrot.lane.b32.xlu0 %v9737, 28
  %v9865 = vpop.permute.xlu0 %9864
  %9930 = vst.msk [vmem:[#allocation3] sm:$0xf] %vm4151, %v9739
  %9931 = vst.msk [vmem:[#allocation3 + $0x4] sm:$0xf] %vm4151, %v9741
  %9932 = vst.msk [vmem:[#allocation3 + $0x8] sm:$0xf] %vm4151, %v9743
  %9933 = vst.msk [vmem:[#allocation3 + $0xc] sm:$0xf] %vm4151, %v9745
  %9934 = vst.msk [vmem:[#allocation3 + $0x10] sm:$0xf] %vm4151, %v9747
  %9935 = vst.msk [vmem:[#allocation3 + $0x14] sm:$0xf] %vm4151, %v9749
  %9936 = vst.msk [vmem:[#allocation3 + $0x18] sm:$0xf] %vm4151, %v9751
  %9937 = vst.msk [vmem:[#allocation3 + $0x1c] sm:$0xf] %vm4151, %v9753
  %9938 = vst.msk [vmem:[#allocation3 + $0x20] sm:$0xf] %vm4151, %v9755
  %9939 = vst.msk [vmem:[#allocation3 + $0x24] sm:$0xf] %vm4151, %v9757
  %9940 = vst.msk [vmem:[#allocation3 + $0x28] sm:$0xf] %vm4151, %v9759
  %9941 = vst.msk [vmem:[#allocation3 + $0x2c] sm:$0xf] %vm4151, %v9761
  %9942 = vst.msk [vmem:[#allocation3 + $0x30] sm:$0xf] %vm4151, %v9763
  %9943 = vst.msk [vmem:[#allocation3 + $0x34] sm:$0xf] %vm4151, %v9765
  %9944 = vst.msk [vmem:[#allocation3 + $0x38] sm:$0xf] %vm4151, %v9767
  %9945 = vst.msk [vmem:[#allocation3 + $0x3c] sm:$0xf] %vm4151, %v9769
  %9946 = vst.msk [vmem:[#allocation3 + $0x40] sm:$0xf] %vm4151, %v9771
  %9947 = vst.msk [vmem:[#allocation3 + $0x44] sm:$0xf] %vm4151, %v9773
  %9948 = vst.msk [vmem:[#allocation3 + $0x48] sm:$0xf] %vm4151, %v9775
  %9949 = vst.msk [vmem:[#allocation3 + $0x4c] sm:$0xf] %vm4151, %v9777
  %9950 = vst.msk [vmem:[#allocation3 + $0x50] sm:$0xf] %vm4151, %v9779
  %9951 = vst.msk [vmem:[#allocation3 + $0x54] sm:$0xf] %vm4151, %v9781
  %9952 = vst.msk [vmem:[#allocation3 + $0x58] sm:$0xf] %vm4151, %v9783
  %9953 = vst.msk [vmem:[#allocation3 + $0x5c] sm:$0xf] %vm4151, %v9785
  %9954 = vst.msk [vmem:[#allocation3 + $0x60] sm:$0xf] %vm4151, %v9787
  %9955 = vst.msk [vmem:[#allocation3 + $0x64] sm:$0xf] %vm4151, %v9789
  %9956 = vst.msk [vmem:[#allocation3 + $0x68] sm:$0xf] %vm4151, %v9791
  %9957 = vst.msk [vmem:[#allocation3 + $0x6c] sm:$0xf] %vm4151, %v9793
  %9958 = vst.msk [vmem:[#allocation3 + $0x70] sm:$0xf] %vm4151, %v9795
  %9959 = vst.msk [vmem:[#allocation3 + $0x74] sm:$0xf] %vm4151, %v9797
  %9960 = vst.msk [vmem:[#allocation3 + $0x78] sm:$0xf] %vm4151, %v9799
  %9961 = vst.msk [vmem:[#allocation3 + $0x7c] sm:$0xf] %vm4151, %v9801
  %9962 = vst.msk [vmem:[#allocation3 + $0x80] sm:$0xf] %vm4151, %v9803
  %9963 = vst.msk [vmem:[#allocation3 + $0x84] sm:$0xf] %vm4151, %v9805
  %9964 = vst.msk [vmem:[#allocation3 + $0x88] sm:$0xf] %vm4151, %v9807
  %9965 = vst.msk [vmem:[#allocation3 + $0x8c] sm:$0xf] %vm4151, %v9809
  %9966 = vst.msk [vmem:[#allocation3 + $0x90] sm:$0xf] %vm4151, %v9811
  %9967 = vst.msk [vmem:[#allocation3 + $0x94] sm:$0xf] %vm4151, %v9813
  %9968 = vst.msk [vmem:[#allocation3 + $0x98] sm:$0xf] %vm4151, %v9815
  %9969 = vst.msk [vmem:[#allocation3 + $0x9c] sm:$0xf] %vm4151, %v9817
  %9970 = vst.msk [vmem:[#allocation3 + $0xa0] sm:$0xf] %vm4151, %v9819
  %9971 = vst.msk [vmem:[#allocation3 + $0xa4] sm:$0xf] %vm4151, %v9821
  %9972 = vst.msk [vmem:[#allocation3 + $0xa8] sm:$0xf] %vm4151, %v9823
  %9973 = vst.msk [vmem:[#allocation3 + $0xac] sm:$0xf] %vm4151, %v9825
  %9974 = vst.msk [vmem:[#allocation3 + $0xb0] sm:$0xf] %vm4151, %v9827
  %9975 = vst.msk [vmem:[#allocation3 + $0xb4] sm:$0xf] %vm4151, %v9829
  %9976 = vst.msk [vmem:[#allocation3 + $0xb8] sm:$0xf] %vm4151, %v9831
  %9977 = vst.msk [vmem:[#allocation3 + $0xbc] sm:$0xf] %vm4151, %v9833
  %9978 = vst.msk [vmem:[#allocation3 + $0xc0] sm:$0xf] %vm4151, %v9835
  %9979 = vst.msk [vmem:[#allocation3 + $0xc4] sm:$0xf] %vm4151, %v9837
  %9980 = vst.msk [vmem:[#allocation3 + $0xc8] sm:$0xf] %vm4151, %v9839
  %9981 = vst.msk [vmem:[#allocation3 + $0xcc] sm:$0xf] %vm4151, %v9841
  %9982 = vst.msk [vmem:[#allocation3 + $0xd0] sm:$0xf] %vm4151, %v9843
  %9983 = vst.msk [vmem:[#allocation3 + $0xd4] sm:$0xf] %vm4151, %v9845
  %9984 = vst.msk [vmem:[#allocation3 + $0xd8] sm:$0xf] %vm4151, %v9847
  %9985 = vst.msk [vmem:[#allocation3 + $0xdc] sm:$0xf] %vm4151, %v9849
  %9986 = vst.msk [vmem:[#allocation3 + $0xe0] sm:$0xf] %vm4151, %v9851
  %9987 = vst.msk [vmem:[#allocation3 + $0xe4] sm:$0xf] %vm4151, %v9853
  %9988 = vst.msk [vmem:[#allocation3 + $0xe8] sm:$0xf] %vm4151, %v9855
  %9989 = vst.msk [vmem:[#allocation3 + $0xec] sm:$0xf] %vm4151, %v9857
  %9990 = vst.msk [vmem:[#allocation3 + $0xf0] sm:$0xf] %vm4151, %v9859
  %9991 = vst.msk [vmem:[#allocation3 + $0xf4] sm:$0xf] %vm4151, %v9861
  %9992 = vst.msk [vmem:[#allocation3 + $0xf8] sm:$0xf] %vm4151, %v9863
  %9993 = vst.msk [vmem:[#allocation3 + $0xfc] sm:$0xf] %vm4151, %v9865
  %v9994 = vld [vmem:[%s3189 + $0x2] sm:$0xff]
  %v9995 = vld [vmem:[%s3189 + $0xa] sm:$0xff]
  %v9996 = vld [vmem:[%s3189 + $0x1a] sm:$0xff]
  %v9997 = vld [vmem:[%s3189 + $0x22] sm:$0xff]
  %v9998 = vld [vmem:[%s3189 + $0x32] sm:$0xff]
  %v9999 = vld [vmem:[%s3189 + $0x3a] sm:$0xff]
  %v10000 = vld [vmem:[%s3189 + $0x4a] sm:$0xff]
  %v10001 = vld [vmem:[%s3189 + $0x52] sm:$0xff]
  %v10002 = vld [vmem:[%s3189 + $0x62] sm:$0xff]
  %v10003 = vld [vmem:[%s3189 + $0x6a] sm:$0xff]
  %v10004 = vld [vmem:[%s3189 + $0x7a] sm:$0xff]
  %v10005 = vld [vmem:[%s3189 + $0x82] sm:$0xff]
  %v10006 = vld [vmem:[%s3189 + $0x92] sm:$0xff]
  %v10007 = vld [vmem:[%s3189 + $0x9a] sm:$0xff]
  %v10008 = vld [vmem:[%s3189 + $0xaa] sm:$0xff]
  %v10009 = vld [vmem:[%s3189 + $0xb2] sm:$0xff]
  %v10010 = vld [vmem:[%s3189 + $0xc2] sm:$0xff]
  %v10011 = vld [vmem:[%s3189 + $0xca] sm:$0xff]
  %v10012 = vld [vmem:[%s3189 + $0xda] sm:$0xff]
  %v10013 = vld [vmem:[%s3189 + $0xe2] sm:$0xff]
  %v10014 = vld [vmem:[%s3189 + $0xf2] sm:$0xff]
  %v10015 = vld [vmem:[%s3189 + $0xfa] sm:$0xff]
  %v10016 = vld [vmem:[%s3189 + $0x10a] sm:$0xff]
  %v10017 = vld [vmem:[%s3189 + $0x112] sm:$0xff]
  %v10018 = vld [vmem:[%s3189 + $0x122] sm:$0xff]
  %v10019 = vld [vmem:[%s3189 + $0x12a] sm:$0xff]
  %v10020 = vld [vmem:[%s3189 + $0x13a] sm:$0xff]
  %v10021 = vld [vmem:[%s3189 + $0x142] sm:$0xff]
  %v10022 = vld [vmem:[%s3189 + $0x152] sm:$0xff]
  %v10023 = vld [vmem:[%s3189 + $0x15a] sm:$0xff]
  %v10024 = vld [vmem:[%s3189 + $0x16a] sm:$0xff]
  %v10025 = vld [vmem:[%s3189 + $0x172] sm:$0xff]
  %v10026 = vld [vmem:[%s3189 + $0x1b2] sm:$0xff]
  %v10027 = vld [vmem:[%s3189 + $0x1ba] sm:$0xff]
  %v10028 = vld [vmem:[%s3189 + $0x1ca] sm:$0xff]
  %v10029 = vld [vmem:[%s3189 + $0x1d2] sm:$0xff]
  %v10030 = vld [vmem:[%s3189 + $0x1e2] sm:$0xff]
  %v10031 = vld [vmem:[%s3189 + $0x1ea] sm:$0xff]
  %v10032 = vld [vmem:[%s3189 + $0x1fa] sm:$0xff]
  %v10033 = vld [vmem:[%s3189 + $0x202] sm:$0xff]
  %v10034 = vld [vmem:[%s3189 + $0x212] sm:$0xff]
  %v10035 = vld [vmem:[%s3189 + $0x21a] sm:$0xff]
  %v10036 = vld [vmem:[%s3189 + $0x22a] sm:$0xff]
  %v10037 = vld [vmem:[%s3189 + $0x232] sm:$0xff]
  %v10038 = vld [vmem:[%s3189 + $0x242] sm:$0xff]
  %v10039 = vld [vmem:[%s3189 + $0x24a] sm:$0xff]
  %v10040 = vld [vmem:[%s3189 + $0x25a] sm:$0xff]
  %v10041 = vld [vmem:[%s3189 + $0x262] sm:$0xff]
  %v10042 = vld [vmem:[%s3189 + $0x272] sm:$0xff]
  %v10043 = vld [vmem:[%s3189 + $0x27a] sm:$0xff]
  %v10044 = vld [vmem:[%s3189 + $0x28a] sm:$0xff]
  %v10045 = vld [vmem:[%s3189 + $0x292] sm:$0xff]
  %v10046 = vld [vmem:[%s3189 + $0x2a2] sm:$0xff]
  %v10047 = vld [vmem:[%s3189 + $0x2aa] sm:$0xff]
  %v10048 = vld [vmem:[%s3189 + $0x2ba] sm:$0xff]
  %v10049 = vld [vmem:[%s3189 + $0x2c2] sm:$0xff]
  %v10050 = vld [vmem:[%s3189 + $0x2d2] sm:$0xff]
  %v10051 = vld [vmem:[%s3189 + $0x2da] sm:$0xff]
  %v10052 = vld [vmem:[%s3189 + $0x2ea] sm:$0xff]
  %v10053 = vld [vmem:[%s3189 + $0x2f2] sm:$0xff]
  %v10054 = vld [vmem:[%s3189 + $0x302] sm:$0xff]
  %v10055 = vld [vmem:[%s3189 + $0x30a] sm:$0xff]
  %v10056 = vld [vmem:[%s3189 + $0x31a] sm:$0xff]
  %v10057 = vld [vmem:[%s3189 + $0x322] sm:$0xff]
  %v10058 = vpack.c.bf16 %v9995, %v9994
  %v10059 = vpack.c.bf16 %v9997, %v9996
  %v10060 = vpack.c.bf16 %v9999, %v9998
  %v10061 = vpack.c.bf16 %v10001, %v10000
  %v10062 = vpack.c.bf16 %v10003, %v10002
  %v10063 = vpack.c.bf16 %v10005, %v10004
  %v10064 = vpack.c.bf16 %v10007, %v10006
  %v10065 = vpack.c.bf16 %v10009, %v10008
  %v10066 = vpack.c.bf16 %v10011, %v10010
  %v10067 = vpack.c.bf16 %v10013, %v10012
  %v10068 = vpack.c.bf16 %v10015, %v10014
  %v10069 = vpack.c.bf16 %v10017, %v10016
  %v10070 = vpack.c.bf16 %v10019, %v10018
  %v10071 = vpack.c.bf16 %v10021, %v10020
  %v10072 = vpack.c.bf16 %v10023, %v10022
  %v10073 = vpack.c.bf16 %v10025, %v10024
  %v10074 = vpack.c.bf16 %v10027, %v10026
  %v10075 = vpack.c.bf16 %v10029, %v10028
  %v10076 = vpack.c.bf16 %v10031, %v10030
  %v10077 = vpack.c.bf16 %v10033, %v10032
  %v10078 = vpack.c.bf16 %v10035, %v10034
  %v10079 = vpack.c.bf16 %v10037, %v10036
  %v10080 = vpack.c.bf16 %v10039, %v10038
  %v10081 = vpack.c.bf16 %v10041, %v10040
  %v10082 = vpack.c.bf16 %v10043, %v10042
  %v10083 = vpack.c.bf16 %v10045, %v10044
  %v10084 = vpack.c.bf16 %v10047, %v10046
  %v10085 = vpack.c.bf16 %v10049, %v10048
  %v10086 = vpack.c.bf16 %v10051, %v10050
  %v10087 = vpack.c.bf16 %v10053, %v10052
  %v10088 = vpack.c.bf16 %v10055, %v10054
  %v10089 = vpack.c.bf16 %v10057, %v10056
  %v10122 = vunpack.c.l.b16 %v10058
  %v10123 = vunpack.c.h.b16 %v10058
  %v10124 = vunpack.c.l.b16 %v10059
  %v10125 = vunpack.c.h.b16 %v10059
  %v10126 = vunpack.c.l.b16 %v10060
  %v10127 = vunpack.c.h.b16 %v10060
  %v10128 = vunpack.c.l.b16 %v10061
  %v10129 = vunpack.c.h.b16 %v10061
  %v10130 = vunpack.c.l.b16 %v10062
  %v10131 = vunpack.c.h.b16 %v10062
  %v10132 = vunpack.c.l.b16 %v10063
  %v10133 = vunpack.c.h.b16 %v10063
  %v10134 = vunpack.c.l.b16 %v10064
  %v10135 = vunpack.c.h.b16 %v10064
  %v10136 = vunpack.c.l.b16 %v10065
  %v10137 = vunpack.c.h.b16 %v10065
  %v10138 = vunpack.c.l.b16 %v10066
  %v10139 = vunpack.c.h.b16 %v10066
  %v10140 = vunpack.c.l.b16 %v10067
  %v10141 = vunpack.c.h.b16 %v10067
  %v10142 = vunpack.c.l.b16 %v10068
  %v10143 = vunpack.c.h.b16 %v10068
  %v10144 = vunpack.c.l.b16 %v10069
  %v10145 = vunpack.c.h.b16 %v10069
  %v10146 = vunpack.c.l.b16 %v10070
  %v10147 = vunpack.c.h.b16 %v10070
  %v10148 = vunpack.c.l.b16 %v10071
  %v10149 = vunpack.c.h.b16 %v10071
  %v10150 = vunpack.c.l.b16 %v10072
  %v10151 = vunpack.c.h.b16 %v10072
  %v10152 = vunpack.c.l.b16 %v10073
  %v10153 = vunpack.c.h.b16 %v10073
  %v10154 = vunpack.c.l.b16 %v10074
  %v10155 = vunpack.c.h.b16 %v10074
  %v10156 = vunpack.c.l.b16 %v10075
  %v10157 = vunpack.c.h.b16 %v10075
  %v10158 = vunpack.c.l.b16 %v10076
  %v10159 = vunpack.c.h.b16 %v10076
  %v10160 = vunpack.c.l.b16 %v10077
  %v10161 = vunpack.c.h.b16 %v10077
  %v10162 = vunpack.c.l.b16 %v10078
  %v10163 = vunpack.c.h.b16 %v10078
  %v10164 = vunpack.c.l.b16 %v10079
  %v10165 = vunpack.c.h.b16 %v10079
  %v10166 = vunpack.c.l.b16 %v10080
  %v10167 = vunpack.c.h.b16 %v10080
  %v10168 = vunpack.c.l.b16 %v10081
  %v10169 = vunpack.c.h.b16 %v10081
  %v10170 = vunpack.c.l.b16 %v10082
  %v10171 = vunpack.c.h.b16 %v10082
  %v10172 = vunpack.c.l.b16 %v10083
  %v10173 = vunpack.c.h.b16 %v10083
  %v10174 = vunpack.c.l.b16 %v10084
  %v10175 = vunpack.c.h.b16 %v10084
  %v10176 = vunpack.c.l.b16 %v10085
  %v10177 = vunpack.c.h.b16 %v10085
  %v10178 = vunpack.c.l.b16 %v10086
  %v10179 = vunpack.c.h.b16 %v10086
  %v10180 = vunpack.c.l.b16 %v10087
  %v10181 = vunpack.c.h.b16 %v10087
  %v10182 = vunpack.c.l.b16 %v10088
  %v10183 = vunpack.c.h.b16 %v10088
  %v10184 = vunpack.c.l.b16 %v10089
  %v10185 = vunpack.c.h.b16 %v10089
  %v10186 = vpack.c.b16 %v10122, %v10122
  %v10187 = vpack.c.b16 %v10123, %v10123
  %v10188 = vpack.c.b16 %v10124, %v10124
  %v10189 = vpack.c.b16 %v10125, %v10125
  %v10190 = vpack.c.b16 %v10126, %v10126
  %v10191 = vpack.c.b16 %v10127, %v10127
  %v10192 = vpack.c.b16 %v10128, %v10128
  %v10193 = vpack.c.b16 %v10129, %v10129
  %v10194 = vpack.c.b16 %v10130, %v10130
  %v10195 = vpack.c.b16 %v10131, %v10131
  %v10196 = vpack.c.b16 %v10132, %v10132
  %v10197 = vpack.c.b16 %v10133, %v10133
  %v10198 = vpack.c.b16 %v10134, %v10134
  %v10199 = vpack.c.b16 %v10135, %v10135
  %v10200 = vpack.c.b16 %v10136, %v10136
  %v10201 = vpack.c.b16 %v10137, %v10137
  %v10202 = vpack.c.b16 %v10138, %v10138
  %v10203 = vpack.c.b16 %v10139, %v10139
  %v10204 = vpack.c.b16 %v10140, %v10140
  %v10205 = vpack.c.b16 %v10141, %v10141
  %v10206 = vpack.c.b16 %v10142, %v10142
  %v10207 = vpack.c.b16 %v10143, %v10143
  %v10208 = vpack.c.b16 %v10144, %v10144
  %v10209 = vpack.c.b16 %v10145, %v10145
  %v10210 = vpack.c.b16 %v10146, %v10146
  %v10211 = vpack.c.b16 %v10147, %v10147
  %v10212 = vpack.c.b16 %v10148, %v10148
  %v10213 = vpack.c.b16 %v10149, %v10149
  %v10214 = vpack.c.b16 %v10150, %v10150
  %v10215 = vpack.c.b16 %v10151, %v10151
  %v10216 = vpack.c.b16 %v10152, %v10152
  %v10217 = vpack.c.b16 %v10153, %v10153
  %v10218 = vpack.c.b16 %v10154, %v10154
  %v10219 = vpack.c.b16 %v10155, %v10155
  %v10220 = vpack.c.b16 %v10156, %v10156
  %v10221 = vpack.c.b16 %v10157, %v10157
  %v10222 = vpack.c.b16 %v10158, %v10158
  %v10223 = vpack.c.b16 %v10159, %v10159
  %v10224 = vpack.c.b16 %v10160, %v10160
  %v10225 = vpack.c.b16 %v10161, %v10161
  %v10226 = vpack.c.b16 %v10162, %v10162
  %v10227 = vpack.c.b16 %v10163, %v10163
  %v10228 = vpack.c.b16 %v10164, %v10164
  %v10229 = vpack.c.b16 %v10165, %v10165
  %v10230 = vpack.c.b16 %v10166, %v10166
  %v10231 = vpack.c.b16 %v10167, %v10167
  %v10232 = vpack.c.b16 %v10168, %v10168
  %v10233 = vpack.c.b16 %v10169, %v10169
  %v10234 = vpack.c.b16 %v10170, %v10170
  %v10235 = vpack.c.b16 %v10171, %v10171
  %v10236 = vpack.c.b16 %v10172, %v10172
  %v10237 = vpack.c.b16 %v10173, %v10173
  %v10238 = vpack.c.b16 %v10174, %v10174
  %v10239 = vpack.c.b16 %v10175, %v10175
  %v10240 = vpack.c.b16 %v10176, %v10176
  %v10241 = vpack.c.b16 %v10177, %v10177
  %v10242 = vpack.c.b16 %v10178, %v10178
  %v10243 = vpack.c.b16 %v10179, %v10179
  %v10244 = vpack.c.b16 %v10180, %v10180
  %v10245 = vpack.c.b16 %v10181, %v10181
  %v10246 = vpack.c.b16 %v10182, %v10182
  %v10247 = vpack.c.b16 %v10183, %v10183
  %v10248 = vpack.c.b16 %v10184, %v10184
  %v10249 = vpack.c.b16 %v10185, %v10185
  %10250 = vrot.lane.b32.xlu0 %v10186, 32
  %v10251 = vpop.permute.xlu0 %10250
  %10252 = vrot.lane.b32.xlu0 %v10187, 32
  %v10253 = vpop.permute.xlu0 %10252
  %10254 = vrot.lane.b32.xlu0 %v10188, 32
  %v10255 = vpop.permute.xlu0 %10254
  %10256 = vrot.lane.b32.xlu0 %v10189, 32
  %v10257 = vpop.permute.xlu0 %10256
  %10258 = vrot.lane.b32.xlu0 %v10190, 32
  %v10259 = vpop.permute.xlu0 %10258
  %10260 = vrot.lane.b32.xlu0 %v10191, 32
  %v10261 = vpop.permute.xlu0 %10260
  %10262 = vrot.lane.b32.xlu0 %v10192, 32
  %v10263 = vpop.permute.xlu0 %10262
  %10264 = vrot.lane.b32.xlu0 %v10193, 32
  %v10265 = vpop.permute.xlu0 %10264
  %10266 = vrot.lane.b32.xlu0 %v10194, 32
  %v10267 = vpop.permute.xlu0 %10266
  %10268 = vrot.lane.b32.xlu0 %v10195, 32
  %v10269 = vpop.permute.xlu0 %10268
  %10270 = vrot.lane.b32.xlu0 %v10196, 32
  %v10271 = vpop.permute.xlu0 %10270
  %10272 = vrot.lane.b32.xlu0 %v10197, 32
  %v10273 = vpop.permute.xlu0 %10272
  %10274 = vrot.lane.b32.xlu0 %v10198, 32
  %v10275 = vpop.permute.xlu0 %10274
  %10276 = vrot.lane.b32.xlu0 %v10199, 32
  %v10277 = vpop.permute.xlu0 %10276
  %10278 = vrot.lane.b32.xlu0 %v10200, 32
  %v10279 = vpop.permute.xlu0 %10278
  %10280 = vrot.lane.b32.xlu0 %v10201, 32
  %v10281 = vpop.permute.xlu0 %10280
  %10282 = vrot.lane.b32.xlu0 %v10202, 32
  %v10283 = vpop.permute.xlu0 %10282
  %10284 = vrot.lane.b32.xlu0 %v10203, 32
  %v10285 = vpop.permute.xlu0 %10284
  %10286 = vrot.lane.b32.xlu0 %v10204, 32
  %v10287 = vpop.permute.xlu0 %10286
  %10288 = vrot.lane.b32.xlu0 %v10205, 32
  %v10289 = vpop.permute.xlu0 %10288
  %10290 = vrot.lane.b32.xlu0 %v10206, 32
  %v10291 = vpop.permute.xlu0 %10290
  %10292 = vrot.lane.b32.xlu0 %v10207, 32
  %v10293 = vpop.permute.xlu0 %10292
  %10294 = vrot.lane.b32.xlu0 %v10208, 32
  %v10295 = vpop.permute.xlu0 %10294
  %10296 = vrot.lane.b32.xlu0 %v10209, 32
  %v10297 = vpop.permute.xlu0 %10296
  %10298 = vrot.lane.b32.xlu0 %v10210, 32
  %v10299 = vpop.permute.xlu0 %10298
  %10300 = vrot.lane.b32.xlu0 %v10211, 32
  %v10301 = vpop.permute.xlu0 %10300
  %10302 = vrot.lane.b32.xlu0 %v10212, 32
  %v10303 = vpop.permute.xlu0 %10302
  %10304 = vrot.lane.b32.xlu0 %v10213, 32
  %v10305 = vpop.permute.xlu0 %10304
  %10306 = vrot.lane.b32.xlu0 %v10214, 32
  %v10307 = vpop.permute.xlu0 %10306
  %10308 = vrot.lane.b32.xlu0 %v10215, 32
  %v10309 = vpop.permute.xlu0 %10308
  %10310 = vrot.lane.b32.xlu0 %v10216, 32
  %v10311 = vpop.permute.xlu0 %10310
  %10312 = vrot.lane.b32.xlu0 %v10217, 32
  %v10313 = vpop.permute.xlu0 %10312
  %10314 = vrot.lane.b32.xlu0 %v10218, 32
  %v10315 = vpop.permute.xlu0 %10314
  %10316 = vrot.lane.b32.xlu0 %v10219, 32
  %v10317 = vpop.permute.xlu0 %10316
  %10318 = vrot.lane.b32.xlu0 %v10220, 32
  %v10319 = vpop.permute.xlu0 %10318
  %10320 = vrot.lane.b32.xlu0 %v10221, 32
  %v10321 = vpop.permute.xlu0 %10320
  %10322 = vrot.lane.b32.xlu0 %v10222, 32
  %v10323 = vpop.permute.xlu0 %10322
  %10324 = vrot.lane.b32.xlu0 %v10223, 32
  %v10325 = vpop.permute.xlu0 %10324
  %10326 = vrot.lane.b32.xlu0 %v10224, 32
  %v10327 = vpop.permute.xlu0 %10326
  %10328 = vrot.lane.b32.xlu0 %v10225, 32
  %v10329 = vpop.permute.xlu0 %10328
  %10330 = vrot.lane.b32.xlu0 %v10226, 32
  %v10331 = vpop.permute.xlu0 %10330
  %10332 = vrot.lane.b32.xlu0 %v10227, 32
  %v10333 = vpop.permute.xlu0 %10332
  %10334 = vrot.lane.b32.xlu0 %v10228, 32
  %v10335 = vpop.permute.xlu0 %10334
  %10336 = vrot.lane.b32.xlu0 %v10229, 32
  %v10337 = vpop.permute.xlu0 %10336
  %10338 = vrot.lane.b32.xlu0 %v10230, 32
  %v10339 = vpop.permute.xlu0 %10338
  %10340 = vrot.lane.b32.xlu0 %v10231, 32
  %v10341 = vpop.permute.xlu0 %10340
  %10342 = vrot.lane.b32.xlu0 %v10232, 32
  %v10343 = vpop.permute.xlu0 %10342
  %10344 = vrot.lane.b32.xlu0 %v10233, 32
  %v10345 = vpop.permute.xlu0 %10344
  %10346 = vrot.lane.b32.xlu0 %v10234, 32
  %v10347 = vpop.permute.xlu0 %10346
  %10348 = vrot.lane.b32.xlu0 %v10235, 32
  %v10349 = vpop.permute.xlu0 %10348
  %10350 = vrot.lane.b32.xlu0 %v10236, 32
  %v10351 = vpop.permute.xlu0 %10350
  %10352 = vrot.lane.b32.xlu0 %v10237, 32
  %v10353 = vpop.permute.xlu0 %10352
  %10354 = vrot.lane.b32.xlu0 %v10238, 32
  %v10355 = vpop.permute.xlu0 %10354
  %10356 = vrot.lane.b32.xlu0 %v10239, 32
  %v10357 = vpop.permute.xlu0 %10356
  %10358 = vrot.lane.b32.xlu0 %v10240, 32
  %v10359 = vpop.permute.xlu0 %10358
  %10360 = vrot.lane.b32.xlu0 %v10241, 32
  %v10361 = vpop.permute.xlu0 %10360
  %10362 = vrot.lane.b32.xlu0 %v10242, 32
  %v10363 = vpop.permute.xlu0 %10362
  %10364 = vrot.lane.b32.xlu0 %v10243, 32
  %v10365 = vpop.permute.xlu0 %10364
  %10366 = vrot.lane.b32.xlu0 %v10244, 32
  %v10367 = vpop.permute.xlu0 %10366
  %10368 = vrot.lane.b32.xlu0 %v10245, 32
  %v10369 = vpop.permute.xlu0 %10368
  %10370 = vrot.lane.b32.xlu0 %v10246, 32
  %v10371 = vpop.permute.xlu0 %10370
  %10372 = vrot.lane.b32.xlu0 %v10247, 32
  %v10373 = vpop.permute.xlu0 %10372
  %10374 = vrot.lane.b32.xlu0 %v10248, 32
  %v10375 = vpop.permute.xlu0 %10374
  %10376 = vrot.lane.b32.xlu0 %v10249, 32
  %v10377 = vpop.permute.xlu0 %10376
  %10442 = vst.msk [vmem:[#allocation3] sm:$0xf] %vm4664, %v10251
  %10443 = vst.msk [vmem:[#allocation3 + $0x4] sm:$0xf] %vm4664, %v10253
  %10444 = vst.msk [vmem:[#allocation3 + $0x8] sm:$0xf] %vm4664, %v10255
  %10445 = vst.msk [vmem:[#allocation3 + $0xc] sm:$0xf] %vm4664, %v10257
  %10446 = vst.msk [vmem:[#allocation3 + $0x10] sm:$0xf] %vm4664, %v10259
  %10447 = vst.msk [vmem:[#allocation3 + $0x14] sm:$0xf] %vm4664, %v10261
  %10448 = vst.msk [vmem:[#allocation3 + $0x18] sm:$0xf] %vm4664, %v10263
  %10449 = vst.msk [vmem:[#allocation3 + $0x1c] sm:$0xf] %vm4664, %v10265
  %10450 = vst.msk [vmem:[#allocation3 + $0x20] sm:$0xf] %vm4664, %v10267
  %10451 = vst.msk [vmem:[#allocation3 + $0x24] sm:$0xf] %vm4664, %v10269
  %10452 = vst.msk [vmem:[#allocation3 + $0x28] sm:$0xf] %vm4664, %v10271
  %10453 = vst.msk [vmem:[#allocation3 + $0x2c] sm:$0xf] %vm4664, %v10273
  %10454 = vst.msk [vmem:[#allocation3 + $0x30] sm:$0xf] %vm4664, %v10275
  %10455 = vst.msk [vmem:[#allocation3 + $0x34] sm:$0xf] %vm4664, %v10277
  %10456 = vst.msk [vmem:[#allocation3 + $0x38] sm:$0xf] %vm4664, %v10279
  %10457 = vst.msk [vmem:[#allocation3 + $0x3c] sm:$0xf] %vm4664, %v10281
  %10458 = vst.msk [vmem:[#allocation3 + $0x40] sm:$0xf] %vm4664, %v10283
  %10459 = vst.msk [vmem:[#allocation3 + $0x44] sm:$0xf] %vm4664, %v10285
  %10460 = vst.msk [vmem:[#allocation3 + $0x48] sm:$0xf] %vm4664, %v10287
  %10461 = vst.msk [vmem:[#allocation3 + $0x4c] sm:$0xf] %vm4664, %v10289
  %10462 = vst.msk [vmem:[#allocation3 + $0x50] sm:$0xf] %vm4664, %v10291
  %10463 = vst.msk [vmem:[#allocation3 + $0x54] sm:$0xf] %vm4664, %v10293
  %10464 = vst.msk [vmem:[#allocation3 + $0x58] sm:$0xf] %vm4664, %v10295
  %10465 = vst.msk [vmem:[#allocation3 + $0x5c] sm:$0xf] %vm4664, %v10297
  %10466 = vst.msk [vmem:[#allocation3 + $0x60] sm:$0xf] %vm4664, %v10299
  %10467 = vst.msk [vmem:[#allocation3 + $0x64] sm:$0xf] %vm4664, %v10301
  %10468 = vst.msk [vmem:[#allocation3 + $0x68] sm:$0xf] %vm4664, %v10303
  %10469 = vst.msk [vmem:[#allocation3 + $0x6c] sm:$0xf] %vm4664, %v10305
  %10470 = vst.msk [vmem:[#allocation3 + $0x70] sm:$0xf] %vm4664, %v10307
  %10471 = vst.msk [vmem:[#allocation3 + $0x74] sm:$0xf] %vm4664, %v10309
  %10472 = vst.msk [vmem:[#allocation3 + $0x78] sm:$0xf] %vm4664, %v10311
  %10473 = vst.msk [vmem:[#allocation3 + $0x7c] sm:$0xf] %vm4664, %v10313
  %10474 = vst.msk [vmem:[#allocation3 + $0x80] sm:$0xf] %vm4664, %v10315
  %10475 = vst.msk [vmem:[#allocation3 + $0x84] sm:$0xf] %vm4664, %v10317
  %10476 = vst.msk [vmem:[#allocation3 + $0x88] sm:$0xf] %vm4664, %v10319
  %10477 = vst.msk [vmem:[#allocation3 + $0x8c] sm:$0xf] %vm4664, %v10321
  %10478 = vst.msk [vmem:[#allocation3 + $0x90] sm:$0xf] %vm4664, %v10323
  %10479 = vst.msk [vmem:[#allocation3 + $0x94] sm:$0xf] %vm4664, %v10325
  %10480 = vst.msk [vmem:[#allocation3 + $0x98] sm:$0xf] %vm4664, %v10327
  %10481 = vst.msk [vmem:[#allocation3 + $0x9c] sm:$0xf] %vm4664, %v10329
  %10482 = vst.msk [vmem:[#allocation3 + $0xa0] sm:$0xf] %vm4664, %v10331
  %10483 = vst.msk [vmem:[#allocation3 + $0xa4] sm:$0xf] %vm4664, %v10333
  %10484 = vst.msk [vmem:[#allocation3 + $0xa8] sm:$0xf] %vm4664, %v10335
  %10485 = vst.msk [vmem:[#allocation3 + $0xac] sm:$0xf] %vm4664, %v10337
  %10486 = vst.msk [vmem:[#allocation3 + $0xb0] sm:$0xf] %vm4664, %v10339
  %10487 = vst.msk [vmem:[#allocation3 + $0xb4] sm:$0xf] %vm4664, %v10341
  %10488 = vst.msk [vmem:[#allocation3 + $0xb8] sm:$0xf] %vm4664, %v10343
  %10489 = vst.msk [vmem:[#allocation3 + $0xbc] sm:$0xf] %vm4664, %v10345
  %10490 = vst.msk [vmem:[#allocation3 + $0xc0] sm:$0xf] %vm4664, %v10347
  %10491 = vst.msk [vmem:[#allocation3 + $0xc4] sm:$0xf] %vm4664, %v10349
  %10492 = vst.msk [vmem:[#allocation3 + $0xc8] sm:$0xf] %vm4664, %v10351
  %10493 = vst.msk [vmem:[#allocation3 + $0xcc] sm:$0xf] %vm4664, %v10353
  %10494 = vst.msk [vmem:[#allocation3 + $0xd0] sm:$0xf] %vm4664, %v10355
  %10495 = vst.msk [vmem:[#allocation3 + $0xd4] sm:$0xf] %vm4664, %v10357
  %10496 = vst.msk [vmem:[#allocation3 + $0xd8] sm:$0xf] %vm4664, %v10359
  %10497 = vst.msk [vmem:[#allocation3 + $0xdc] sm:$0xf] %vm4664, %v10361
  %10498 = vst.msk [vmem:[#allocation3 + $0xe0] sm:$0xf] %vm4664, %v10363
  %10499 = vst.msk [vmem:[#allocation3 + $0xe4] sm:$0xf] %vm4664, %v10365
  %10500 = vst.msk [vmem:[#allocation3 + $0xe8] sm:$0xf] %vm4664, %v10367
  %10501 = vst.msk [vmem:[#allocation3 + $0xec] sm:$0xf] %vm4664, %v10369
  %10502 = vst.msk [vmem:[#allocation3 + $0xf0] sm:$0xf] %vm4664, %v10371
  %10503 = vst.msk [vmem:[#allocation3 + $0xf4] sm:$0xf] %vm4664, %v10373
  %10504 = vst.msk [vmem:[#allocation3 + $0xf8] sm:$0xf] %vm4664, %v10375
  %10505 = vst.msk [vmem:[#allocation3 + $0xfc] sm:$0xf] %vm4664, %v10377
  %v10506 = vld [vmem:[#allocation3] sm:$0xf]
  %v10507 = vld [vmem:[#allocation3 + $0x4] sm:$0xf]
  %v10508 = vld [vmem:[#allocation3 + $0x8] sm:$0xf]
  %v10509 = vld [vmem:[#allocation3 + $0xc] sm:$0xf]
  %v10510 = vld [vmem:[#allocation3 + $0x10] sm:$0xf]
  %v10511 = vld [vmem:[#allocation3 + $0x14] sm:$0xf]
  %v10512 = vld [vmem:[#allocation3 + $0x18] sm:$0xf]
  %v10513 = vld [vmem:[#allocation3 + $0x1c] sm:$0xf]
  %v10514 = vld [vmem:[#allocation3 + $0x20] sm:$0xf]
  %v10515 = vld [vmem:[#allocation3 + $0x24] sm:$0xf]
  %v10516 = vld [vmem:[#allocation3 + $0x28] sm:$0xf]
  %v10517 = vld [vmem:[#allocation3 + $0x2c] sm:$0xf]
  %v10518 = vld [vmem:[#allocation3 + $0x30] sm:$0xf]
  %v10519 = vld [vmem:[#allocation3 + $0x34] sm:$0xf]
  %v10520 = vld [vmem:[#allocation3 + $0x38] sm:$0xf]
  %v10521 = vld [vmem:[#allocation3 + $0x3c] sm:$0xf]
  %v10522 = vld [vmem:[#allocation3 + $0x40] sm:$0xf]
  %v10523 = vld [vmem:[#allocation3 + $0x44] sm:$0xf]
  %v10524 = vld [vmem:[#allocation3 + $0x48] sm:$0xf]
  %v10525 = vld [vmem:[#allocation3 + $0x4c] sm:$0xf]
  %v10526 = vld [vmem:[#allocation3 + $0x50] sm:$0xf]
  %v10527 = vld [vmem:[#allocation3 + $0x54] sm:$0xf]
  %v10528 = vld [vmem:[#allocation3 + $0x58] sm:$0xf]
  %v10529 = vld [vmem:[#allocation3 + $0x5c] sm:$0xf]
  %v10530 = vld [vmem:[#allocation3 + $0x60] sm:$0xf]
  %v10531 = vld [vmem:[#allocation3 + $0x64] sm:$0xf]
  %v10532 = vld [vmem:[#allocation3 + $0x68] sm:$0xf]
  %v10533 = vld [vmem:[#allocation3 + $0x6c] sm:$0xf]
  %v10534 = vld [vmem:[#allocation3 + $0x70] sm:$0xf]
  %v10535 = vld [vmem:[#allocation3 + $0x74] sm:$0xf]
  %v10536 = vld [vmem:[#allocation3 + $0x78] sm:$0xf]
  %v10537 = vld [vmem:[#allocation3 + $0x7c] sm:$0xf]
  %v10538 = vld [vmem:[#allocation3 + $0x80] sm:$0xf]
  %v10539 = vld [vmem:[#allocation3 + $0x84] sm:$0xf]
  %v10540 = vld [vmem:[#allocation3 + $0x88] sm:$0xf]
  %v10541 = vld [vmem:[#allocation3 + $0x8c] sm:$0xf]
  %v10542 = vld [vmem:[#allocation3 + $0x90] sm:$0xf]
  %v10543 = vld [vmem:[#allocation3 + $0x94] sm:$0xf]
  %v10544 = vld [vmem:[#allocation3 + $0x98] sm:$0xf]
  %v10545 = vld [vmem:[#allocation3 + $0x9c] sm:$0xf]
  %v10546 = vld [vmem:[#allocation3 + $0xa0] sm:$0xf]
  %v10547 = vld [vmem:[#allocation3 + $0xa4] sm:$0xf]
  %v10548 = vld [vmem:[#allocation3 + $0xa8] sm:$0xf]
  %v10549 = vld [vmem:[#allocation3 + $0xac] sm:$0xf]
  %v10550 = vld [vmem:[#allocation3 + $0xb0] sm:$0xf]
  %v10551 = vld [vmem:[#allocation3 + $0xb4] sm:$0xf]
  %v10552 = vld [vmem:[#allocation3 + $0xb8] sm:$0xf]
  %v10553 = vld [vmem:[#allocation3 + $0xbc] sm:$0xf]
  %v10554 = vld [vmem:[#allocation3 + $0xc0] sm:$0xf]
  %v10555 = vld [vmem:[#allocation3 + $0xc4] sm:$0xf]
  %v10556 = vld [vmem:[#allocation3 + $0xc8] sm:$0xf]
  %v10557 = vld [vmem:[#allocation3 + $0xcc] sm:$0xf]
  %v10558 = vld [vmem:[#allocation3 + $0xd0] sm:$0xf]
  %v10559 = vld [vmem:[#allocation3 + $0xd4] sm:$0xf]
  %v10560 = vld [vmem:[#allocation3 + $0xd8] sm:$0xf]
  %v10561 = vld [vmem:[#allocation3 + $0xdc] sm:$0xf]
  %v10562 = vld [vmem:[#allocation3 + $0xe0] sm:$0xf]
  %v10563 = vld [vmem:[#allocation3 + $0xe4] sm:$0xf]
  %v10564 = vld [vmem:[#allocation3 + $0xe8] sm:$0xf]
  %v10565 = vld [vmem:[#allocation3 + $0xec] sm:$0xf]
  %v10566 = vld [vmem:[#allocation3 + $0xf0] sm:$0xf]
  %v10567 = vld [vmem:[#allocation3 + $0xf4] sm:$0xf]
  %v10568 = vld [vmem:[#allocation3 + $0xf8] sm:$0xf]
  %v10569 = vld [vmem:[#allocation3 + $0xfc] sm:$0xf]
  %v10570 = vld [vmem:[%s2] sm:$0xf]
  %v10571 = vld [vmem:[%s2 + $0x4] sm:$0xf]
  %v10572 = vld [vmem:[%s2 + $0x8] sm:$0xf]
  %v10573 = vld [vmem:[%s2 + $0xc] sm:$0xf]
  %v10574 = vld [vmem:[%s2 + $0x10] sm:$0x3]
  %v10639 = vunpack.c.l.b16 %v10506
  %v10640 = vunpack.c.l.b16 %v10507
  %v10641 = vunpack.c.l.b16 %v10508
  %v10642 = vunpack.c.l.b16 %v10509
  %v10643 = vunpack.c.l.b16 %v10510
  %v10644 = vunpack.c.l.b16 %v10511
  %v10645 = vunpack.c.l.b16 %v10512
  %v10646 = vunpack.c.l.b16 %v10513
  %v10647 = vunpack.c.l.b16 %v10514
  %v10648 = vunpack.c.l.b16 %v10515
  %v10649 = vunpack.c.l.b16 %v10516
  %v10650 = vunpack.c.l.b16 %v10517
  %v10651 = vunpack.c.l.b16 %v10518
  %v10652 = vunpack.c.l.b16 %v10519
  %v10653 = vunpack.c.l.b16 %v10520
  %v10654 = vunpack.c.l.b16 %v10521
  %v10655 = vunpack.c.l.b16 %v10522
  %v10656 = vunpack.c.l.b16 %v10523
  %v10657 = vunpack.c.l.b16 %v10524
  %v10658 = vunpack.c.l.b16 %v10525
  %v10659 = vunpack.c.l.b16 %v10526
  %v10660 = vunpack.c.l.b16 %v10527
  %v10661 = vunpack.c.l.b16 %v10528
  %v10662 = vunpack.c.l.b16 %v10529
  %v10663 = vunpack.c.l.b16 %v10530
  %v10664 = vunpack.c.l.b16 %v10531
  %v10665 = vunpack.c.l.b16 %v10532
  %v10666 = vunpack.c.l.b16 %v10533
  %v10667 = vunpack.c.l.b16 %v10534
  %v10668 = vunpack.c.l.b16 %v10535
  %v10669 = vunpack.c.l.b16 %v10536
  %v10670 = vunpack.c.l.b16 %v10537
  %v10671 = vunpack.c.l.b16 %v10538
  %v10672 = vunpack.c.l.b16 %v10539
  %v10673 = vunpack.c.l.b16 %v10540
  %v10674 = vunpack.c.l.b16 %v10541
  %v10675 = vunpack.c.l.b16 %v10542
  %v10676 = vunpack.c.l.b16 %v10543
  %v10677 = vunpack.c.l.b16 %v10544
  %v10678 = vunpack.c.l.b16 %v10545
  %v10679 = vunpack.c.l.b16 %v10546
  %v10680 = vunpack.c.l.b16 %v10547
  %v10681 = vunpack.c.l.b16 %v10548
  %v10682 = vunpack.c.l.b16 %v10549
  %v10683 = vunpack.c.l.b16 %v10550
  %v10684 = vunpack.c.l.b16 %v10551
  %v10685 = vunpack.c.l.b16 %v10552
  %v10686 = vunpack.c.l.b16 %v10553
  %v10687 = vunpack.c.l.b16 %v10554
  %v10688 = vunpack.c.l.b16 %v10555
  %v10689 = vunpack.c.l.b16 %v10556
  %v10690 = vunpack.c.l.b16 %v10557
  %v10691 = vunpack.c.l.b16 %v10558
  %v10692 = vunpack.c.l.b16 %v10559
  %v10693 = vunpack.c.l.b16 %v10560
  %v10694 = vunpack.c.l.b16 %v10561
  %v10695 = vunpack.c.l.b16 %v10562
  %v10696 = vunpack.c.l.b16 %v10563
  %v10697 = vunpack.c.l.b16 %v10564
  %v10698 = vunpack.c.l.b16 %v10565
  %v10699 = vunpack.c.l.b16 %v10566
  %v10700 = vunpack.c.l.b16 %v10567
  %v10701 = vunpack.c.l.b16 %v10568
  %v10702 = vunpack.c.l.b16 %v10569
  %v10703 = vpack.c.b16 %v10640, %v10639
  %v10704 = vpack.c.b16 %v10642, %v10641
  %v10705 = vpack.c.b16 %v10644, %v10643
  %v10706 = vpack.c.b16 %v10646, %v10645
  %v10707 = vpack.c.b16 %v10648, %v10647
  %v10708 = vpack.c.b16 %v10650, %v10649
  %v10709 = vpack.c.b16 %v10652, %v10651
  %v10710 = vpack.c.b16 %v10654, %v10653
  %v10711 = vpack.c.b16 %v10656, %v10655
  %v10712 = vpack.c.b16 %v10658, %v10657
  %v10713 = vpack.c.b16 %v10660, %v10659
  %v10714 = vpack.c.b16 %v10662, %v10661
  %v10715 = vpack.c.b16 %v10664, %v10663
  %v10716 = vpack.c.b16 %v10666, %v10665
  %v10717 = vpack.c.b16 %v10668, %v10667
  %v10718 = vpack.c.b16 %v10670, %v10669
  %v10719 = vpack.c.b16 %v10672, %v10671
  %v10720 = vpack.c.b16 %v10674, %v10673
  %v10721 = vpack.c.b16 %v10676, %v10675
  %v10722 = vpack.c.b16 %v10678, %v10677
  %v10723 = vpack.c.b16 %v10680, %v10679
  %v10724 = vpack.c.b16 %v10682, %v10681
  %v10725 = vpack.c.b16 %v10684, %v10683
  %v10726 = vpack.c.b16 %v10686, %v10685
  %v10727 = vpack.c.b16 %v10688, %v10687
  %v10728 = vpack.c.b16 %v10690, %v10689
  %v10729 = vpack.c.b16 %v10692, %v10691
  %v10730 = vpack.c.b16 %v10694, %v10693
  %v10731 = vpack.c.b16 %v10696, %v10695
  %v10732 = vpack.c.b16 %v10698, %v10697
  %v10733 = vpack.c.b16 %v10700, %v10699
  %v10734 = vpack.c.b16 %v10702, %v10701
  %v10740 = vunpack.c.l.b16 %v10570
  %v10741 = vunpack.c.l.b16 %v10571
  %v10742 = vunpack.c.l.b16 %v10572
  %v10743 = vunpack.c.l.b16 %v10573
  %v10744 = vunpack.c.l.b16 %v10574
  %v10745 = vpack.c.b16 %v10741, %v10740
  %v10746 = vpack.c.b16 %v10743, %v10742
  %v10747 = vpack.c.b16 %v10744, %v10744
  %v10751 = vsel %vm4973, %v10703, 0
  %v10754 = vsel %vm4973, %v10704, 0
  %v10757 = vsel %vm4973, %v10705, 0
  %v10760 = vsel %vm4973, %v10706, 0
  %v10763 = vsel %vm4973, %v10707, 0
  %v10766 = vsel %vm4973, %v10708, 0
  %v10769 = vsel %vm4973, %v10709, 0
  %v10772 = vsel %vm4973, %v10710, 0
  %v10775 = vsel %vm4973, %v10711, 0
  %v10778 = vsel %vm4973, %v10712, 0
  %v10781 = vsel %vm4973, %v10713, 0
  %v10784 = vsel %vm4973, %v10714, 0
  %v10787 = vsel %vm4973, %v10715, 0
  %v10790 = vsel %vm4973, %v10716, 0
  %v10793 = vsel %vm4973, %v10717, 0
  %v10796 = vsel %vm4973, %v10718, 0
  %v10799 = vsel %vm4973, %v10719, 0
  %v10802 = vsel %vm4973, %v10720, 0
  %v10805 = vsel %vm4973, %v10721, 0
  %v10808 = vsel %vm4973, %v10722, 0
  %v10811 = vsel %vm4973, %v10723, 0
  %v10814 = vsel %vm4973, %v10724, 0
  %v10817 = vsel %vm4973, %v10725, 0
  %v10820 = vsel %vm4973, %v10726, 0
  %v10823 = vsel %vm4973, %v10727, 0
  %v10826 = vsel %vm4973, %v10728, 0
  %v10829 = vsel %vm4973, %v10729, 0
  %v10832 = vsel %vm4973, %v10730, 0
  %v10835 = vsel %vm4973, %v10731, 0
  %v10838 = vsel %vm4973, %v10732, 0
  %v10841 = vsel %vm4973, %v10733, 0
  %v10844 = vsel %vm4973, %v10734, 0
  %v10847 = vsel %vm5070, %v10747, 0
  %10849 = vmatprep.subr.bf16.mxu0 0
  %10850 = vmatpush1.bf16.msra.mxu0 0
  %10851 = vmatprep.subr.bf16.mxu0 0
  %10852 = vmatpush1.bf16.msra.mxu0 0
  %10853 = vmatprep.subr.bf16.mxu0 0
  %10854 = vmatpush1.bf16.msra.mxu0 0
  %10855 = vmatprep.subr.bf16.mxu0 0
  %10856 = vmatpush1.bf16.msra.mxu0 0
  %10857 = vmatprep.subr.bf16.mxu0 0
  %10858 = vmatpush1.bf16.msra.mxu0 0
  %10859 = vmatprep.subr.bf16.mxu0 0
  %10860 = vmatpush1.bf16.msra.mxu0 %v10847
  %10861 = vmatprep.subr.bf16.mxu0 0
  %10862 = vmatpush1.bf16.msra.mxu0 %v10746
  %10863 = vmatprep.subr.bf16.mxu0 0
  %10864 = vmatpush1.bf16.msra.mxu0 %v10745
  %10865 = vmatprep.subr.bf16.mxu0 0
  %10866 = vmatpush2.bf16.msra.mxu0 0
  %10867 = vmatprep.subr.bf16.mxu0 0
  %10868 = vmatpush2.bf16.msra.mxu0 0
  %10869 = vmatprep.subr.bf16.mxu0 0
  %10870 = vmatpush2.bf16.msra.mxu0 0
  %10871 = vmatprep.subr.bf16.mxu0 0
  %10872 = vmatpush2.bf16.msra.mxu0 0
  %10873 = vmatprep.subr.bf16.mxu0 0
  %10874 = vmatpush2.bf16.msra.mxu0 0
  %10875 = vmatprep.subr.bf16.mxu0 0
  %10876 = vmatpush2.bf16.msra.mxu0 0
  %10877 = vmatprep.subr.bf16.mxu0 0
  %10878 = vmatpush2.bf16.msra.mxu0 0
  %10879 = vmatprep.subr.bf16.mxu0 0
  %10880 = vmatpush2.bf16.msra.mxu0 0
  %10881 = vmatprep.mubr.bf16.mxu0 0
  %10882 = vmatmul.mubr.bf16.gmra.mxu0 %v10751
  %v10883 = vpop.f32.mrf.mxu0
  %v10884 = vadd.f32 0.0, %v10883
  %v10885 = vpop.f32.mrf.mxu0
  %v10886 = vpop.f32.mrf.mxu0
  %v10887 = vadd.f32 0.0, %v10886
  %v10888 = vpop.f32.mrf.mxu0
  %10889 = vmatprep.mubr.bf16.mxu0 0
  %10890 = vmatmul.mubr.bf16.gmra.mxu0 %v10754
  %v10891 = vpop.f32.mrf.mxu0
  %v10892 = vadd.f32 0.0, %v10891
  %v10893 = vpop.f32.mrf.mxu0
  %v10894 = vpop.f32.mrf.mxu0
  %v10895 = vadd.f32 0.0, %v10894
  %v10896 = vpop.f32.mrf.mxu0
  %10897 = vmatprep.mubr.bf16.mxu0 0
  %10898 = vmatmul.mubr.bf16.gmra.mxu0 %v10757
  %v10899 = vpop.f32.mrf.mxu0
  %v10900 = vadd.f32 0.0, %v10899
  %v10901 = vpop.f32.mrf.mxu0
  %v10902 = vpop.f32.mrf.mxu0
  %v10903 = vadd.f32 0.0, %v10902
  %v10904 = vpop.f32.mrf.mxu0
  %10905 = vmatprep.mubr.bf16.mxu0 0
  %10906 = vmatmul.mubr.bf16.gmra.mxu0 %v10760
  %v10907 = vpop.f32.mrf.mxu0
  %v10908 = vadd.f32 0.0, %v10907
  %v10909 = vpop.f32.mrf.mxu0
  %v10910 = vpop.f32.mrf.mxu0
  %v10911 = vadd.f32 0.0, %v10910
  %v10912 = vpop.f32.mrf.mxu0
  %10913 = vmatprep.mubr.bf16.mxu0 0
  %10914 = vmatmul.mubr.bf16.gmra.mxu0 %v10763
  %v10915 = vpop.f32.mrf.mxu0
  %v10916 = vadd.f32 0.0, %v10915
  %v10917 = vpop.f32.mrf.mxu0
  %v10918 = vpop.f32.mrf.mxu0
  %v10919 = vadd.f32 0.0, %v10918
  %v10920 = vpop.f32.mrf.mxu0
  %10921 = vmatprep.mubr.bf16.mxu0 0
  %10922 = vmatmul.mubr.bf16.gmra.mxu0 %v10766
  %v10923 = vpop.f32.mrf.mxu0
  %v10924 = vadd.f32 0.0, %v10923
  %v10925 = vpop.f32.mrf.mxu0
  %v10926 = vpop.f32.mrf.mxu0
  %v10927 = vadd.f32 0.0, %v10926
  %v10928 = vpop.f32.mrf.mxu0
  %10929 = vmatprep.mubr.bf16.mxu0 0
  %10930 = vmatmul.mubr.bf16.gmra.mxu0 %v10769
  %v10931 = vpop.f32.mrf.mxu0
  %v10932 = vadd.f32 0.0, %v10931
  %v10933 = vpop.f32.mrf.mxu0
  %v10934 = vpop.f32.mrf.mxu0
  %v10935 = vadd.f32 0.0, %v10934
  %v10936 = vpop.f32.mrf.mxu0
  %10937 = vmatprep.mubr.bf16.mxu0 0
  %10938 = vmatmul.mubr.bf16.gmra.mxu0 %v10772
  %v10939 = vpop.f32.mrf.mxu0
  %v10940 = vadd.f32 0.0, %v10939
  %v10941 = vpop.f32.mrf.mxu0
  %v10942 = vpop.f32.mrf.mxu0
  %v10943 = vadd.f32 0.0, %v10942
  %v10944 = vpop.f32.mrf.mxu0
  %10945 = vmatprep.mubr.bf16.mxu0 0
  %10946 = vmatmul.mubr.bf16.gmra.mxu0 %v10775
  %v10947 = vpop.f32.mrf.mxu0
  %v10948 = vadd.f32 0.0, %v10947
  %v10949 = vpop.f32.mrf.mxu0
  %v10950 = vpop.f32.mrf.mxu0
  %v10951 = vadd.f32 0.0, %v10950
  %v10952 = vpop.f32.mrf.mxu0
  %10953 = vmatprep.mubr.bf16.mxu0 0
  %10954 = vmatmul.mubr.bf16.gmra.mxu0 %v10778
  %v10955 = vpop.f32.mrf.mxu0
  %v10956 = vadd.f32 0.0, %v10955
  %v10957 = vpop.f32.mrf.mxu0
  %v10958 = vpop.f32.mrf.mxu0
  %v10959 = vadd.f32 0.0, %v10958
  %v10960 = vpop.f32.mrf.mxu0
  %10961 = vmatprep.mubr.bf16.mxu0 0
  %10962 = vmatmul.mubr.bf16.gmra.mxu0 %v10781
  %v10963 = vpop.f32.mrf.mxu0
  %v10964 = vadd.f32 0.0, %v10963
  %v10965 = vpop.f32.mrf.mxu0
  %v10966 = vpop.f32.mrf.mxu0
  %v10967 = vadd.f32 0.0, %v10966
  %v10968 = vpop.f32.mrf.mxu0
  %10969 = vmatprep.mubr.bf16.mxu0 0
  %10970 = vmatmul.mubr.bf16.gmra.mxu0 %v10784
  %v10971 = vpop.f32.mrf.mxu0
  %v10972 = vadd.f32 0.0, %v10971
  %v10973 = vpop.f32.mrf.mxu0
  %v10974 = vpop.f32.mrf.mxu0
  %v10975 = vadd.f32 0.0, %v10974
  %v10976 = vpop.f32.mrf.mxu0
  %10977 = vmatprep.mubr.bf16.mxu0 0
  %10978 = vmatmul.mubr.bf16.gmra.mxu0 %v10787
  %v10979 = vpop.f32.mrf.mxu0
  %v10980 = vadd.f32 0.0, %v10979
  %v10981 = vpop.f32.mrf.mxu0
  %v10982 = vpop.f32.mrf.mxu0
  %v10983 = vadd.f32 0.0, %v10982
  %v10984 = vpop.f32.mrf.mxu0
  %10985 = vmatprep.mubr.bf16.mxu0 0
  %10986 = vmatmul.mubr.bf16.gmra.mxu0 %v10790
  %v10987 = vpop.f32.mrf.mxu0
  %v10988 = vadd.f32 0.0, %v10987
  %v10989 = vpop.f32.mrf.mxu0
  %v10990 = vpop.f32.mrf.mxu0
  %v10991 = vadd.f32 0.0, %v10990
  %v10992 = vpop.f32.mrf.mxu0
  %10993 = vmatprep.mubr.bf16.mxu0 0
  %10994 = vmatmul.mubr.bf16.gmra.mxu0 %v10793
  %v10995 = vpop.f32.mrf.mxu0
  %v10996 = vadd.f32 0.0, %v10995
  %v10997 = vpop.f32.mrf.mxu0
  %v10998 = vpop.f32.mrf.mxu0
  %v10999 = vadd.f32 0.0, %v10998
  %v11000 = vpop.f32.mrf.mxu0
  %11001 = vmatprep.mubr.bf16.mxu0 0
  %11002 = vmatmul.mubr.bf16.gmra.mxu0 %v10796
  %v11003 = vpop.f32.mrf.mxu0
  %v11004 = vadd.f32 0.0, %v11003
  %v11005 = vpop.f32.mrf.mxu0
  %v11006 = vpop.f32.mrf.mxu0
  %v11007 = vadd.f32 0.0, %v11006
  %v11008 = vpop.f32.mrf.mxu0
  %11009 = vmatprep.mubr.bf16.mxu0 0
  %11010 = vmatmul.mubr.bf16.gmra.mxu0 %v10799
  %v11011 = vpop.f32.mrf.mxu0
  %v11012 = vadd.f32 0.0, %v11011
  %v11013 = vpop.f32.mrf.mxu0
  %v11014 = vpop.f32.mrf.mxu0
  %v11015 = vadd.f32 0.0, %v11014
  %v11016 = vpop.f32.mrf.mxu0
  %11017 = vmatprep.mubr.bf16.mxu0 0
  %11018 = vmatmul.mubr.bf16.gmra.mxu0 %v10802
  %v11019 = vpop.f32.mrf.mxu0
  %v11020 = vadd.f32 0.0, %v11019
  %v11021 = vpop.f32.mrf.mxu0
  %v11022 = vpop.f32.mrf.mxu0
  %v11023 = vadd.f32 0.0, %v11022
  %v11024 = vpop.f32.mrf.mxu0
  %11025 = vmatprep.mubr.bf16.mxu0 0
  %11026 = vmatmul.mubr.bf16.gmra.mxu0 %v10805
  %v11027 = vpop.f32.mrf.mxu0
  %v11028 = vadd.f32 0.0, %v11027
  %v11029 = vpop.f32.mrf.mxu0
  %v11030 = vpop.f32.mrf.mxu0
  %v11031 = vadd.f32 0.0, %v11030
  %v11032 = vpop.f32.mrf.mxu0
  %11033 = vmatprep.mubr.bf16.mxu0 0
  %11034 = vmatmul.mubr.bf16.gmra.mxu0 %v10808
  %v11035 = vpop.f32.mrf.mxu0
  %v11036 = vadd.f32 0.0, %v11035
  %v11037 = vpop.f32.mrf.mxu0
  %v11038 = vpop.f32.mrf.mxu0
  %v11039 = vadd.f32 0.0, %v11038
  %v11040 = vpop.f32.mrf.mxu0
  %11041 = vmatprep.mubr.bf16.mxu0 0
  %11042 = vmatmul.mubr.bf16.gmra.mxu0 %v10811
  %v11043 = vpop.f32.mrf.mxu0
  %v11044 = vadd.f32 0.0, %v11043
  %v11045 = vpop.f32.mrf.mxu0
  %v11046 = vpop.f32.mrf.mxu0
  %v11047 = vadd.f32 0.0, %v11046
  %v11048 = vpop.f32.mrf.mxu0
  %11049 = vmatprep.mubr.bf16.mxu0 0
  %11050 = vmatmul.mubr.bf16.gmra.mxu0 %v10814
  %v11051 = vpop.f32.mrf.mxu0
  %v11052 = vadd.f32 0.0, %v11051
  %v11053 = vpop.f32.mrf.mxu0
  %v11054 = vpop.f32.mrf.mxu0
  %v11055 = vadd.f32 0.0, %v11054
  %v11056 = vpop.f32.mrf.mxu0
  %11057 = vmatprep.mubr.bf16.mxu0 0
  %11058 = vmatmul.mubr.bf16.gmra.mxu0 %v10817
  %v11059 = vpop.f32.mrf.mxu0
  %v11060 = vadd.f32 0.0, %v11059
  %v11061 = vpop.f32.mrf.mxu0
  %v11062 = vpop.f32.mrf.mxu0
  %v11063 = vadd.f32 0.0, %v11062
  %v11064 = vpop.f32.mrf.mxu0
  %11065 = vmatprep.mubr.bf16.mxu0 0
  %11066 = vmatmul.mubr.bf16.gmra.mxu0 %v10820
  %v11067 = vpop.f32.mrf.mxu0
  %v11068 = vadd.f32 0.0, %v11067
  %v11069 = vpop.f32.mrf.mxu0
  %v11070 = vpop.f32.mrf.mxu0
  %v11071 = vadd.f32 0.0, %v11070
  %v11072 = vpop.f32.mrf.mxu0
  %11073 = vmatprep.mubr.bf16.mxu0 0
  %11074 = vmatmul.mubr.bf16.gmra.mxu0 %v10823
  %v11075 = vpop.f32.mrf.mxu0
  %v11076 = vadd.f32 0.0, %v11075
  %v11077 = vpop.f32.mrf.mxu0
  %v11078 = vpop.f32.mrf.mxu0
  %v11079 = vadd.f32 0.0, %v11078
  %v11080 = vpop.f32.mrf.mxu0
  %11081 = vmatprep.mubr.bf16.mxu0 0
  %11082 = vmatmul.mubr.bf16.gmra.mxu0 %v10826
  %v11083 = vpop.f32.mrf.mxu0
  %v11084 = vadd.f32 0.0, %v11083
  %v11085 = vpop.f32.mrf.mxu0
  %v11086 = vpop.f32.mrf.mxu0
  %v11087 = vadd.f32 0.0, %v11086
  %v11088 = vpop.f32.mrf.mxu0
  %11089 = vmatprep.mubr.bf16.mxu0 0
  %11090 = vmatmul.mubr.bf16.gmra.mxu0 %v10829
  %v11091 = vpop.f32.mrf.mxu0
  %v11092 = vadd.f32 0.0, %v11091
  %v11093 = vpop.f32.mrf.mxu0
  %v11094 = vpop.f32.mrf.mxu0
  %v11095 = vadd.f32 0.0, %v11094
  %v11096 = vpop.f32.mrf.mxu0
  %11097 = vmatprep.mubr.bf16.mxu0 0
  %11098 = vmatmul.mubr.bf16.gmra.mxu0 %v10832
  %v11099 = vpop.f32.mrf.mxu0
  %v11100 = vadd.f32 0.0, %v11099
  %v11101 = vpop.f32.mrf.mxu0
  %v11102 = vpop.f32.mrf.mxu0
  %v11103 = vadd.f32 0.0, %v11102
  %v11104 = vpop.f32.mrf.mxu0
  %11105 = vmatprep.mubr.bf16.mxu0 0
  %11106 = vmatmul.mubr.bf16.gmra.mxu0 %v10835
  %v11107 = vpop.f32.mrf.mxu0
  %v11108 = vadd.f32 0.0, %v11107
  %v11109 = vpop.f32.mrf.mxu0
  %v11110 = vpop.f32.mrf.mxu0
  %v11111 = vadd.f32 0.0, %v11110
  %v11112 = vpop.f32.mrf.mxu0
  %11113 = vmatprep.mubr.bf16.mxu0 0
  %11114 = vmatmul.mubr.bf16.gmra.mxu0 %v10838
  %v11115 = vpop.f32.mrf.mxu0
  %v11116 = vadd.f32 0.0, %v11115
  %v11117 = vpop.f32.mrf.mxu0
  %v11118 = vpop.f32.mrf.mxu0
  %v11119 = vadd.f32 0.0, %v11118
  %v11120 = vpop.f32.mrf.mxu0
  %11121 = vmatprep.mubr.bf16.mxu0 0
  %11122 = vmatmul.mubr.bf16.gmra.mxu0 %v10841
  %v11123 = vpop.f32.mrf.mxu0
  %v11124 = vadd.f32 0.0, %v11123
  %v11125 = vpop.f32.mrf.mxu0
  %v11126 = vpop.f32.mrf.mxu0
  %v11127 = vadd.f32 0.0, %v11126
  %v11128 = vpop.f32.mrf.mxu0
  %11129 = vmatprep.mubr.bf16.mxu0 0
  %11130 = vmatmul.mubr.bf16.gmra.mxu0 %v10844
  %v11131 = vpop.f32.mrf.mxu0
  %v11132 = vadd.f32 0.0, %v11131
  %v11133 = vpop.f32.mrf.mxu0
  %v11134 = vpop.f32.mrf.mxu0
  %v11135 = vadd.f32 0.0, %v11134
  %v11136 = vpop.f32.mrf.mxu0
  %11137 = vdwg.mxu0
  %v11138 = vsel %vm22, %v10884, 0.0
  %v11139 = vsel %vm22, %v10887, 0.0
  %v11140 = vadd.f32 %v11138, %v11139
  %v11141 = vsel %vm22, %v10892, 0.0
  %v11142 = vadd.f32 %v11140, %v11141
  %v11143 = vsel %vm22, %v10895, 0.0
  %v11144 = vadd.f32 %v11142, %v11143
  %v11145 = vsel %vm22, %v10900, 0.0
  %v11146 = vadd.f32 %v11144, %v11145
  %v11147 = vsel %vm22, %v10903, 0.0
  %v11148 = vadd.f32 %v11146, %v11147
  %v11149 = vsel %vm22, %v10908, 0.0
  %v11150 = vadd.f32 %v11148, %v11149
  %v11151 = vsel %vm22, %v10911, 0.0
  %v11152 = vadd.f32 %v11150, %v11151
  %v11153 = vsel %vm22, %v10916, 0.0
  %v11154 = vadd.f32 %v11152, %v11153
  %v11155 = vsel %vm22, %v10919, 0.0
  %v11156 = vadd.f32 %v11154, %v11155
  %v11157 = vsel %vm22, %v10924, 0.0
  %v11158 = vadd.f32 %v11156, %v11157
  %v11159 = vsel %vm22, %v10927, 0.0
  %v11160 = vadd.f32 %v11158, %v11159
  %v11161 = vsel %vm22, %v10932, 0.0
  %v11162 = vadd.f32 %v11160, %v11161
  %v11163 = vsel %vm22, %v10935, 0.0
  %v11164 = vadd.f32 %v11162, %v11163
  %v11165 = vsel %vm22, %v10940, 0.0
  %v11166 = vadd.f32 %v11164, %v11165
  %v11167 = vsel %vm22, %v10943, 0.0
  %v11168 = vadd.f32 %v11166, %v11167
  %v11169 = vsel %vm22, %v10948, 0.0
  %v11170 = vadd.f32 %v11168, %v11169
  %v11171 = vsel %vm22, %v10951, 0.0
  %v11172 = vadd.f32 %v11170, %v11171
  %v11173 = vsel %vm22, %v10956, 0.0
  %v11174 = vadd.f32 %v11172, %v11173
  %v11175 = vsel %vm22, %v10959, 0.0
  %v11176 = vadd.f32 %v11174, %v11175
  %v11177 = vsel %vm22, %v10964, 0.0
  %v11178 = vadd.f32 %v11176, %v11177
  %v11179 = vsel %vm22, %v10967, 0.0
  %v11180 = vadd.f32 %v11178, %v11179
  %v11181 = vsel %vm22, %v10972, 0.0
  %v11182 = vadd.f32 %v11180, %v11181
  %v11183 = vsel %vm22, %v10975, 0.0
  %v11184 = vadd.f32 %v11182, %v11183
  %v11185 = vsel %vm22, %v10980, 0.0
  %v11186 = vadd.f32 %v11184, %v11185
  %v11187 = vsel %vm22, %v10983, 0.0
  %v11188 = vadd.f32 %v11186, %v11187
  %v11189 = vsel %vm22, %v10988, 0.0
  %v11190 = vadd.f32 %v11188, %v11189
  %v11191 = vsel %vm22, %v10991, 0.0
  %v11192 = vadd.f32 %v11190, %v11191
  %v11193 = vsel %vm22, %v10996, 0.0
  %v11194 = vadd.f32 %v11192, %v11193
  %v11195 = vsel %vm22, %v10999, 0.0
  %v11196 = vadd.f32 %v11194, %v11195
  %v11197 = vsel %vm22, %v11004, 0.0
  %v11198 = vadd.f32 %v11196, %v11197
  %v11199 = vsel %vm22, %v11007, 0.0
  %v11200 = vadd.f32 %v11198, %v11199
  %v11201 = vsel %vm22, %v11012, 0.0
  %v11202 = vadd.f32 %v11200, %v11201
  %v11203 = vsel %vm22, %v11015, 0.0
  %v11204 = vadd.f32 %v11202, %v11203
  %v11205 = vsel %vm22, %v11020, 0.0
  %v11206 = vadd.f32 %v11204, %v11205
  %v11207 = vsel %vm22, %v11023, 0.0
  %v11208 = vadd.f32 %v11206, %v11207
  %v11209 = vsel %vm22, %v11028, 0.0
  %v11210 = vadd.f32 %v11208, %v11209
  %v11211 = vsel %vm22, %v11031, 0.0
  %v11212 = vadd.f32 %v11210, %v11211
  %v11213 = vsel %vm22, %v11036, 0.0
  %v11214 = vadd.f32 %v11212, %v11213
  %v11215 = vsel %vm22, %v11039, 0.0
  %v11216 = vadd.f32 %v11214, %v11215
  %v11217 = vsel %vm22, %v11044, 0.0
  %v11218 = vadd.f32 %v11216, %v11217
  %v11219 = vsel %vm22, %v11047, 0.0
  %v11220 = vadd.f32 %v11218, %v11219
  %v11221 = vsel %vm22, %v11052, 0.0
  %v11222 = vadd.f32 %v11220, %v11221
  %v11223 = vsel %vm22, %v11055, 0.0
  %v11224 = vadd.f32 %v11222, %v11223
  %v11225 = vsel %vm22, %v11060, 0.0
  %v11226 = vadd.f32 %v11224, %v11225
  %v11227 = vsel %vm22, %v11063, 0.0
  %v11228 = vadd.f32 %v11226, %v11227
  %v11229 = vsel %vm22, %v11068, 0.0
  %v11230 = vadd.f32 %v11228, %v11229
  %v11231 = vsel %vm22, %v11071, 0.0
  %v11232 = vadd.f32 %v11230, %v11231
  %v11233 = vsel %vm22, %v11076, 0.0
  %v11234 = vadd.f32 %v11232, %v11233
  %v11235 = vsel %vm22, %v11079, 0.0
  %v11236 = vadd.f32 %v11234, %v11235
  %v11237 = vsel %vm22, %v11084, 0.0
  %v11238 = vadd.f32 %v11236, %v11237
  %v11239 = vsel %vm22, %v11087, 0.0
  %v11240 = vadd.f32 %v11238, %v11239
  %v11241 = vsel %vm22, %v11092, 0.0
  %v11242 = vadd.f32 %v11240, %v11241
  %v11243 = vsel %vm22, %v11095, 0.0
  %v11244 = vadd.f32 %v11242, %v11243
  %v11245 = vsel %vm22, %v11100, 0.0
  %v11246 = vadd.f32 %v11244, %v11245
  %v11247 = vsel %vm22, %v11103, 0.0
  %v11248 = vadd.f32 %v11246, %v11247
  %v11249 = vsel %vm22, %v11108, 0.0
  %v11250 = vadd.f32 %v11248, %v11249
  %v11251 = vsel %vm22, %v11111, 0.0
  %v11252 = vadd.f32 %v11250, %v11251
  %v11253 = vsel %vm22, %v11116, 0.0
  %v11254 = vadd.f32 %v11252, %v11253
  %v11255 = vsel %vm22, %v11119, 0.0
  %v11256 = vadd.f32 %v11254, %v11255
  %v11257 = vsel %vm22, %v11124, 0.0
  %v11258 = vadd.f32 %v11256, %v11257
  %v11259 = vsel %vm22, %v11127, 0.0
  %v11260 = vadd.f32 %v11258, %v11259
  %v11261 = vsel %vm22, %v11132, 0.0
  %v11262 = vadd.f32 %v11260, %v11261
  %v11263 = vsel %vm22, %v11135, 0.0
  %v11264 = vadd.f32 %v11262, %v11263
  %v11265 = vrot.slane %v11264, 4
  %v11266 = vadd.f32 %v11264, %v11265
  %v11267 = vrot.slane %v11266, 2
  %v11268 = vadd.f32 %v11266, %v11267
  %v11269 = vrot.slane %v11268, 1
  %v11270 = vadd.f32 %v11268, %v11269
  %v11271 = vmul.f32 %v11270, 0.001953125
  %v11272 = vsub.f32 %v10884, %v11271
  %v11273 = vsub.f32 %v10887, %v11271
  %v11274 = vsub.f32 %v10892, %v11271
  %v11275 = vsub.f32 %v10895, %v11271
  %v11276 = vsub.f32 %v10900, %v11271
  %v11277 = vsub.f32 %v10903, %v11271
  %v11278 = vsub.f32 %v10908, %v11271
  %v11279 = vsub.f32 %v10911, %v11271
  %v11280 = vsub.f32 %v10916, %v11271
  %v11281 = vsub.f32 %v10919, %v11271
  %v11282 = vsub.f32 %v10924, %v11271
  %v11283 = vsub.f32 %v10927, %v11271
  %v11284 = vsub.f32 %v10932, %v11271
  %v11285 = vsub.f32 %v10935, %v11271
  %v11286 = vsub.f32 %v10940, %v11271
  %v11287 = vsub.f32 %v10943, %v11271
  %v11288 = vsub.f32 %v10948, %v11271
  %v11289 = vsub.f32 %v10951, %v11271
  %v11290 = vsub.f32 %v10956, %v11271
  %v11291 = vsub.f32 %v10959, %v11271
  %v11292 = vsub.f32 %v10964, %v11271
  %v11293 = vsub.f32 %v10967, %v11271
  %v11294 = vsub.f32 %v10972, %v11271
  %v11295 = vsub.f32 %v10975, %v11271
  %v11296 = vsub.f32 %v10980, %v11271
  %v11297 = vsub.f32 %v10983, %v11271
  %v11298 = vsub.f32 %v10988, %v11271
  %v11299 = vsub.f32 %v10991, %v11271
  %v11300 = vsub.f32 %v10996, %v11271
  %v11301 = vsub.f32 %v10999, %v11271
  %v11302 = vsub.f32 %v11004, %v11271
  %v11303 = vsub.f32 %v11007, %v11271
  %v11304 = vsub.f32 %v11012, %v11271
  %v11305 = vsub.f32 %v11015, %v11271
  %v11306 = vsub.f32 %v11020, %v11271
  %v11307 = vsub.f32 %v11023, %v11271
  %v11308 = vsub.f32 %v11028, %v11271
  %v11309 = vsub.f32 %v11031, %v11271
  %v11310 = vsub.f32 %v11036, %v11271
  %v11311 = vsub.f32 %v11039, %v11271
  %v11312 = vsub.f32 %v11044, %v11271
  %v11313 = vsub.f32 %v11047, %v11271
  %v11314 = vsub.f32 %v11052, %v11271
  %v11315 = vsub.f32 %v11055, %v11271
  %v11316 = vsub.f32 %v11060, %v11271
  %v11317 = vsub.f32 %v11063, %v11271
  %v11318 = vsub.f32 %v11068, %v11271
  %v11319 = vsub.f32 %v11071, %v11271
  %v11320 = vsub.f32 %v11076, %v11271
  %v11321 = vsub.f32 %v11079, %v11271
  %v11322 = vsub.f32 %v11084, %v11271
  %v11323 = vsub.f32 %v11087, %v11271
  %v11324 = vsub.f32 %v11092, %v11271
  %v11325 = vsub.f32 %v11095, %v11271
  %v11326 = vsub.f32 %v11100, %v11271
  %v11327 = vsub.f32 %v11103, %v11271
  %v11328 = vsub.f32 %v11108, %v11271
  %v11329 = vsub.f32 %v11111, %v11271
  %v11330 = vsub.f32 %v11116, %v11271
  %v11331 = vsub.f32 %v11119, %v11271
  %v11332 = vsub.f32 %v11124, %v11271
  %v11333 = vsub.f32 %v11127, %v11271
  %v11334 = vsub.f32 %v11132, %v11271
  %v11335 = vsub.f32 %v11135, %v11271
  %v11336 = vmul.f32 %v11272, %v11272
  %v11337 = vmul.f32 %v11273, %v11273
  %v11338 = vmul.f32 %v11274, %v11274
  %v11339 = vmul.f32 %v11275, %v11275
  %v11340 = vmul.f32 %v11276, %v11276
  %v11341 = vmul.f32 %v11277, %v11277
  %v11342 = vmul.f32 %v11278, %v11278
  %v11343 = vmul.f32 %v11279, %v11279
  %v11344 = vmul.f32 %v11280, %v11280
  %v11345 = vmul.f32 %v11281, %v11281
  %v11346 = vmul.f32 %v11282, %v11282
  %v11347 = vmul.f32 %v11283, %v11283
  %v11348 = vmul.f32 %v11284, %v11284
  %v11349 = vmul.f32 %v11285, %v11285
  %v11350 = vmul.f32 %v11286, %v11286
  %v11351 = vmul.f32 %v11287, %v11287
  %v11352 = vmul.f32 %v11288, %v11288
  %v11353 = vmul.f32 %v11289, %v11289
  %v11354 = vmul.f32 %v11290, %v11290
  %v11355 = vmul.f32 %v11291, %v11291
  %v11356 = vmul.f32 %v11292, %v11292
  %v11357 = vmul.f32 %v11293, %v11293
  %v11358 = vmul.f32 %v11294, %v11294
  %v11359 = vmul.f32 %v11295, %v11295
  %v11360 = vmul.f32 %v11296, %v11296
  %v11361 = vmul.f32 %v11297, %v11297
  %v11362 = vmul.f32 %v11298, %v11298
  %v11363 = vmul.f32 %v11299, %v11299
  %v11364 = vmul.f32 %v11300, %v11300
  %v11365 = vmul.f32 %v11301, %v11301
  %v11366 = vmul.f32 %v11302, %v11302
  %v11367 = vmul.f32 %v11303, %v11303
  %v11368 = vmul.f32 %v11304, %v11304
  %v11369 = vmul.f32 %v11305, %v11305
  %v11370 = vmul.f32 %v11306, %v11306
  %v11371 = vmul.f32 %v11307, %v11307
  %v11372 = vmul.f32 %v11308, %v11308
  %v11373 = vmul.f32 %v11309, %v11309
  %v11374 = vmul.f32 %v11310, %v11310
  %v11375 = vmul.f32 %v11311, %v11311
  %v11376 = vmul.f32 %v11312, %v11312
  %v11377 = vmul.f32 %v11313, %v11313
  %v11378 = vmul.f32 %v11314, %v11314
  %v11379 = vmul.f32 %v11315, %v11315
  %v11380 = vmul.f32 %v11316, %v11316
  %v11381 = vmul.f32 %v11317, %v11317
  %v11382 = vmul.f32 %v11318, %v11318
  %v11383 = vmul.f32 %v11319, %v11319
  %v11384 = vmul.f32 %v11320, %v11320
  %v11385 = vmul.f32 %v11321, %v11321
  %v11386 = vmul.f32 %v11322, %v11322
  %v11387 = vmul.f32 %v11323, %v11323
  %v11388 = vmul.f32 %v11324, %v11324
  %v11389 = vmul.f32 %v11325, %v11325
  %v11390 = vmul.f32 %v11326, %v11326
  %v11391 = vmul.f32 %v11327, %v11327
  %v11392 = vmul.f32 %v11328, %v11328
  %v11393 = vmul.f32 %v11329, %v11329
  %v11394 = vmul.f32 %v11330, %v11330
  %v11395 = vmul.f32 %v11331, %v11331
  %v11396 = vmul.f32 %v11332, %v11332
  %v11397 = vmul.f32 %v11333, %v11333
  %v11398 = vmul.f32 %v11334, %v11334
  %v11399 = vmul.f32 %v11335, %v11335
  %v11400 = vsel %vm22, %v11336, 0.0
  %v11401 = vsel %vm22, %v11337, 0.0
  %v11402 = vadd.f32 %v11400, %v11401
  %v11403 = vsel %vm22, %v11338, 0.0
  %v11404 = vadd.f32 %v11402, %v11403
  %v11405 = vsel %vm22, %v11339, 0.0
  %v11406 = vadd.f32 %v11404, %v11405
  %v11407 = vsel %vm22, %v11340, 0.0
  %v11408 = vadd.f32 %v11406, %v11407
  %v11409 = vsel %vm22, %v11341, 0.0
  %v11410 = vadd.f32 %v11408, %v11409
  %v11411 = vsel %vm22, %v11342, 0.0
  %v11412 = vadd.f32 %v11410, %v11411
  %v11413 = vsel %vm22, %v11343, 0.0
  %v11414 = vadd.f32 %v11412, %v11413
  %v11415 = vsel %vm22, %v11344, 0.0
  %v11416 = vadd.f32 %v11414, %v11415
  %v11417 = vsel %vm22, %v11345, 0.0
  %v11418 = vadd.f32 %v11416, %v11417
  %v11419 = vsel %vm22, %v11346, 0.0
  %v11420 = vadd.f32 %v11418, %v11419
  %v11421 = vsel %vm22, %v11347, 0.0
  %v11422 = vadd.f32 %v11420, %v11421
  %v11423 = vsel %vm22, %v11348, 0.0
  %v11424 = vadd.f32 %v11422, %v11423
  %v11425 = vsel %vm22, %v11349, 0.0
  %v11426 = vadd.f32 %v11424, %v11425
  %v11427 = vsel %vm22, %v11350, 0.0
  %v11428 = vadd.f32 %v11426, %v11427
  %v11429 = vsel %vm22, %v11351, 0.0
  %v11430 = vadd.f32 %v11428, %v11429
  %v11431 = vsel %vm22, %v11352, 0.0
  %v11432 = vadd.f32 %v11430, %v11431
  %v11433 = vsel %vm22, %v11353, 0.0
  %v11434 = vadd.f32 %v11432, %v11433
  %v11435 = vsel %vm22, %v11354, 0.0
  %v11436 = vadd.f32 %v11434, %v11435
  %v11437 = vsel %vm22, %v11355, 0.0
  %v11438 = vadd.f32 %v11436, %v11437
  %v11439 = vsel %vm22, %v11356, 0.0
  %v11440 = vadd.f32 %v11438, %v11439
  %v11441 = vsel %vm22, %v11357, 0.0
  %v11442 = vadd.f32 %v11440, %v11441
  %v11443 = vsel %vm22, %v11358, 0.0
  %v11444 = vadd.f32 %v11442, %v11443
  %v11445 = vsel %vm22, %v11359, 0.0
  %v11446 = vadd.f32 %v11444, %v11445
  %v11447 = vsel %vm22, %v11360, 0.0
  %v11448 = vadd.f32 %v11446, %v11447
  %v11449 = vsel %vm22, %v11361, 0.0
  %v11450 = vadd.f32 %v11448, %v11449
  %v11451 = vsel %vm22, %v11362, 0.0
  %v11452 = vadd.f32 %v11450, %v11451
  %v11453 = vsel %vm22, %v11363, 0.0
  %v11454 = vadd.f32 %v11452, %v11453
  %v11455 = vsel %vm22, %v11364, 0.0
  %v11456 = vadd.f32 %v11454, %v11455
  %v11457 = vsel %vm22, %v11365, 0.0
  %v11458 = vadd.f32 %v11456, %v11457
  %v11459 = vsel %vm22, %v11366, 0.0
  %v11460 = vadd.f32 %v11458, %v11459
  %v11461 = vsel %vm22, %v11367, 0.0
  %v11462 = vadd.f32 %v11460, %v11461
  %v11463 = vsel %vm22, %v11368, 0.0
  %v11464 = vadd.f32 %v11462, %v11463
  %v11465 = vsel %vm22, %v11369, 0.0
  %v11466 = vadd.f32 %v11464, %v11465
  %v11467 = vsel %vm22, %v11370, 0.0
  %v11468 = vadd.f32 %v11466, %v11467
  %v11469 = vsel %vm22, %v11371, 0.0
  %v11470 = vadd.f32 %v11468, %v11469
  %v11471 = vsel %vm22, %v11372, 0.0
  %v11472 = vadd.f32 %v11470, %v11471
  %v11473 = vsel %vm22, %v11373, 0.0
  %v11474 = vadd.f32 %v11472, %v11473
  %v11475 = vsel %vm22, %v11374, 0.0
  %v11476 = vadd.f32 %v11474, %v11475
  %v11477 = vsel %vm22, %v11375, 0.0
  %v11478 = vadd.f32 %v11476, %v11477
  %v11479 = vsel %vm22, %v11376, 0.0
  %v11480 = vadd.f32 %v11478, %v11479
  %v11481 = vsel %vm22, %v11377, 0.0
  %v11482 = vadd.f32 %v11480, %v11481
  %v11483 = vsel %vm22, %v11378, 0.0
  %v11484 = vadd.f32 %v11482, %v11483
  %v11485 = vsel %vm22, %v11379, 0.0
  %v11486 = vadd.f32 %v11484, %v11485
  %v11487 = vsel %vm22, %v11380, 0.0
  %v11488 = vadd.f32 %v11486, %v11487
  %v11489 = vsel %vm22, %v11381, 0.0
  %v11490 = vadd.f32 %v11488, %v11489
  %v11491 = vsel %vm22, %v11382, 0.0
  %v11492 = vadd.f32 %v11490, %v11491
  %v11493 = vsel %vm22, %v11383, 0.0
  %v11494 = vadd.f32 %v11492, %v11493
  %v11495 = vsel %vm22, %v11384, 0.0
  %v11496 = vadd.f32 %v11494, %v11495
  %v11497 = vsel %vm22, %v11385, 0.0
  %v11498 = vadd.f32 %v11496, %v11497
  %v11499 = vsel %vm22, %v11386, 0.0
  %v11500 = vadd.f32 %v11498, %v11499
  %v11501 = vsel %vm22, %v11387, 0.0
  %v11502 = vadd.f32 %v11500, %v11501
  %v11503 = vsel %vm22, %v11388, 0.0
  %v11504 = vadd.f32 %v11502, %v11503
  %v11505 = vsel %vm22, %v11389, 0.0
  %v11506 = vadd.f32 %v11504, %v11505
  %v11507 = vsel %vm22, %v11390, 0.0
  %v11508 = vadd.f32 %v11506, %v11507
  %v11509 = vsel %vm22, %v11391, 0.0
  %v11510 = vadd.f32 %v11508, %v11509
  %v11511 = vsel %vm22, %v11392, 0.0
  %v11512 = vadd.f32 %v11510, %v11511
  %v11513 = vsel %vm22, %v11393, 0.0
  %v11514 = vadd.f32 %v11512, %v11513
  %v11515 = vsel %vm22, %v11394, 0.0
  %v11516 = vadd.f32 %v11514, %v11515
  %v11517 = vsel %vm22, %v11395, 0.0
  %v11518 = vadd.f32 %v11516, %v11517
  %v11519 = vsel %vm22, %v11396, 0.0
  %v11520 = vadd.f32 %v11518, %v11519
  %v11521 = vsel %vm22, %v11397, 0.0
  %v11522 = vadd.f32 %v11520, %v11521
  %v11523 = vsel %vm22, %v11398, 0.0
  %v11524 = vadd.f32 %v11522, %v11523
  %v11525 = vsel %vm22, %v11399, 0.0
  %v11526 = vadd.f32 %v11524, %v11525
  %v11527 = vrot.slane %v11526, 4
  %v11528 = vadd.f32 %v11526, %v11527
  %v11529 = vrot.slane %v11528, 2
  %v11530 = vadd.f32 %v11528, %v11529
  %v11531 = vrot.slane %v11530, 1
  %v11532 = vadd.f32 %v11530, %v11531
  %v11533 = vmul.f32 %v11532, 0.001953125
  %v11534 = vadd.f32 %v11533, 1e-05
  %v11535 = vrsqrt.pop %v11534
  %v11536 = vmul.f32 %v20, %v11535
  %v11537 = vlaneseq
  %v11538 = vshrl.u32 %v11537, 7
  %v11539 = vsub.s32 0, %v11538
  %v11540 = vrot.slane %v11536, %v11539
  %v11541 = vmul.f32 %v11272, %v11540
  %v11542 = vmul.f32 %v11273, %v11540
  %v11543 = vmul.f32 %v11274, %v11540
  %v11544 = vmul.f32 %v11275, %v11540
  %v11545 = vmul.f32 %v11276, %v11540
  %v11546 = vmul.f32 %v11277, %v11540
  %v11547 = vmul.f32 %v11278, %v11540
  %v11548 = vmul.f32 %v11279, %v11540
  %v11549 = vmul.f32 %v11280, %v11540
  %v11550 = vmul.f32 %v11281, %v11540
  %v11551 = vmul.f32 %v11282, %v11540
  %v11552 = vmul.f32 %v11283, %v11540
  %v11553 = vmul.f32 %v11284, %v11540
  %v11554 = vmul.f32 %v11285, %v11540
  %v11555 = vmul.f32 %v11286, %v11540
  %v11556 = vmul.f32 %v11287, %v11540
  %v11557 = vmul.f32 %v11288, %v11540
  %v11558 = vmul.f32 %v11289, %v11540
  %v11559 = vmul.f32 %v11290, %v11540
  %v11560 = vmul.f32 %v11291, %v11540
  %v11561 = vmul.f32 %v11292, %v11540
  %v11562 = vmul.f32 %v11293, %v11540
  %v11563 = vmul.f32 %v11294, %v11540
  %v11564 = vmul.f32 %v11295, %v11540
  %v11565 = vmul.f32 %v11296, %v11540
  %v11566 = vmul.f32 %v11297, %v11540
  %v11567 = vmul.f32 %v11298, %v11540
  %v11568 = vmul.f32 %v11299, %v11540
  %v11569 = vmul.f32 %v11300, %v11540
  %v11570 = vmul.f32 %v11301, %v11540
  %v11571 = vmul.f32 %v11302, %v11540
  %v11572 = vmul.f32 %v11303, %v11540
  %v11573 = vmul.f32 %v11304, %v11540
  %v11574 = vmul.f32 %v11305, %v11540
  %v11575 = vmul.f32 %v11306, %v11540
  %v11576 = vmul.f32 %v11307, %v11540
  %v11577 = vmul.f32 %v11308, %v11540
  %v11578 = vmul.f32 %v11309, %v11540
  %v11579 = vmul.f32 %v11310, %v11540
  %v11580 = vmul.f32 %v11311, %v11540
  %v11581 = vmul.f32 %v11312, %v11540
  %v11582 = vmul.f32 %v11313, %v11540
  %v11583 = vmul.f32 %v11314, %v11540
  %v11584 = vmul.f32 %v11315, %v11540
  %v11585 = vmul.f32 %v11316, %v11540
  %v11586 = vmul.f32 %v11317, %v11540
  %v11587 = vmul.f32 %v11318, %v11540
  %v11588 = vmul.f32 %v11319, %v11540
  %v11589 = vmul.f32 %v11320, %v11540
  %v11590 = vmul.f32 %v11321, %v11540
  %v11591 = vmul.f32 %v11322, %v11540
  %v11592 = vmul.f32 %v11323, %v11540
  %v11593 = vmul.f32 %v11324, %v11540
  %v11594 = vmul.f32 %v11325, %v11540
  %v11595 = vmul.f32 %v11326, %v11540
  %v11596 = vmul.f32 %v11327, %v11540
  %v11597 = vmul.f32 %v11328, %v11540
  %v11598 = vmul.f32 %v11329, %v11540
  %v11599 = vmul.f32 %v11330, %v11540
  %v11600 = vmul.f32 %v11331, %v11540
  %v11601 = vmul.f32 %v11332, %v11540
  %v11602 = vmul.f32 %v11333, %v11540
  %v11603 = vmul.f32 %v11334, %v11540
  %v11604 = vmul.f32 %v11335, %v11540
  %v11605 = vlaneseq
  %v11606 = vshrl.u32 %v11605, 7
  %v11607 = vsub.s32 0, %v11606
  %v11608 = vrot.slane %v21, %v11607
  %v11609 = vadd.f32 %v11541, %v11608
  %v11610 = vadd.f32 %v11542, %v11608
  %v11611 = vadd.f32 %v11543, %v11608
  %v11612 = vadd.f32 %v11544, %v11608
  %v11613 = vadd.f32 %v11545, %v11608
  %v11614 = vadd.f32 %v11546, %v11608
  %v11615 = vadd.f32 %v11547, %v11608
  %v11616 = vadd.f32 %v11548, %v11608
  %v11617 = vadd.f32 %v11549, %v11608
  %v11618 = vadd.f32 %v11550, %v11608
  %v11619 = vadd.f32 %v11551, %v11608
  %v11620 = vadd.f32 %v11552, %v11608
  %v11621 = vadd.f32 %v11553, %v11608
  %v11622 = vadd.f32 %v11554, %v11608
  %v11623 = vadd.f32 %v11555, %v11608
  %v11624 = vadd.f32 %v11556, %v11608
  %v11625 = vadd.f32 %v11557, %v11608
  %v11626 = vadd.f32 %v11558, %v11608
  %v11627 = vadd.f32 %v11559, %v11608
  %v11628 = vadd.f32 %v11560, %v11608
  %v11629 = vadd.f32 %v11561, %v11608
  %v11630 = vadd.f32 %v11562, %v11608
  %v11631 = vadd.f32 %v11563, %v11608
  %v11632 = vadd.f32 %v11564, %v11608
  %v11633 = vadd.f32 %v11565, %v11608
  %v11634 = vadd.f32 %v11566, %v11608
  %v11635 = vadd.f32 %v11567, %v11608
  %v11636 = vadd.f32 %v11568, %v11608
  %v11637 = vadd.f32 %v11569, %v11608
  %v11638 = vadd.f32 %v11570, %v11608
  %v11639 = vadd.f32 %v11571, %v11608
  %v11640 = vadd.f32 %v11572, %v11608
  %v11641 = vadd.f32 %v11573, %v11608
  %v11642 = vadd.f32 %v11574, %v11608
  %v11643 = vadd.f32 %v11575, %v11608
  %v11644 = vadd.f32 %v11576, %v11608
  %v11645 = vadd.f32 %v11577, %v11608
  %v11646 = vadd.f32 %v11578, %v11608
  %v11647 = vadd.f32 %v11579, %v11608
  %v11648 = vadd.f32 %v11580, %v11608
  %v11649 = vadd.f32 %v11581, %v11608
  %v11650 = vadd.f32 %v11582, %v11608
  %v11651 = vadd.f32 %v11583, %v11608
  %v11652 = vadd.f32 %v11584, %v11608
  %v11653 = vadd.f32 %v11585, %v11608
  %v11654 = vadd.f32 %v11586, %v11608
  %v11655 = vadd.f32 %v11587, %v11608
  %v11656 = vadd.f32 %v11588, %v11608
  %v11657 = vadd.f32 %v11589, %v11608
  %v11658 = vadd.f32 %v11590, %v11608
  %v11659 = vadd.f32 %v11591, %v11608
  %v11660 = vadd.f32 %v11592, %v11608
  %v11661 = vadd.f32 %v11593, %v11608
  %v11662 = vadd.f32 %v11594, %v11608
  %v11663 = vadd.f32 %v11595, %v11608
  %v11664 = vadd.f32 %v11596, %v11608
  %v11665 = vadd.f32 %v11597, %v11608
  %v11666 = vadd.f32 %v11598, %v11608
  %v11667 = vadd.f32 %v11599, %v11608
  %v11668 = vadd.f32 %v11600, %v11608
  %v11669 = vadd.f32 %v11601, %v11608
  %v11670 = vadd.f32 %v11602, %v11608
  %v11671 = vadd.f32 %v11603, %v11608
  %v11672 = vadd.f32 %v11604, %v11608
  %v11673 = vld [vmem:[%s0] sm:$0xff]
  %v11674 = vld [vmem:[%s0 + $0x8] sm:$0xff]
  %v11675 = vld [vmem:[%s0 + $0x10] sm:$0xff]
  %v11676 = vld [vmem:[%s0 + $0x18] sm:$0xff]
  %v11677 = vld [vmem:[%s0 + $0x20] sm:$0xff]
  %v11678 = vld [vmem:[%s0 + $0x28] sm:$0xff]
  %v11679 = vld [vmem:[%s0 + $0x30] sm:$0xff]
  %v11680 = vld [vmem:[%s0 + $0x38] sm:$0xff]
  %v11681 = vld [vmem:[%s0 + $0x40] sm:$0xff]
  %v11682 = vld [vmem:[%s0 + $0x48] sm:$0xff]
  %v11683 = vld [vmem:[%s0 + $0x50] sm:$0xff]
  %v11684 = vld [vmem:[%s0 + $0x58] sm:$0xff]
  %v11685 = vld [vmem:[%s0 + $0x60] sm:$0xff]
  %v11686 = vld [vmem:[%s0 + $0x68] sm:$0xff]
  %v11687 = vld [vmem:[%s0 + $0x70] sm:$0xff]
  %v11688 = vld [vmem:[%s0 + $0x78] sm:$0xff]
  %v11689 = vld [vmem:[%s0 + $0x80] sm:$0xff]
  %v11690 = vld [vmem:[%s0 + $0x88] sm:$0xff]
  %v11691 = vld [vmem:[%s0 + $0x90] sm:$0xff]
  %v11692 = vld [vmem:[%s0 + $0x98] sm:$0xff]
  %v11693 = vld [vmem:[%s0 + $0xa0] sm:$0xff]
  %v11694 = vld [vmem:[%s0 + $0xa8] sm:$0xff]
  %v11695 = vld [vmem:[%s0 + $0xb0] sm:$0xff]
  %v11696 = vld [vmem:[%s0 + $0xb8] sm:$0xff]
  %v11697 = vld [vmem:[%s0 + $0xc0] sm:$0xff]
  %v11698 = vld [vmem:[%s0 + $0xc8] sm:$0xff]
  %v11699 = vld [vmem:[%s0 + $0xd0] sm:$0xff]
  %v11700 = vld [vmem:[%s0 + $0xd8] sm:$0xff]
  %v11701 = vld [vmem:[%s0 + $0xe0] sm:$0xff]
  %v11702 = vld [vmem:[%s0 + $0xe8] sm:$0xff]
  %v11703 = vld [vmem:[%s0 + $0xf0] sm:$0xff]
  %v11704 = vld [vmem:[%s0 + $0xf8] sm:$0xff]
  %v11705 = vld [vmem:[%s0 + $0x100] sm:$0xff]
  %v11706 = vld [vmem:[%s0 + $0x108] sm:$0xff]
  %v11707 = vld [vmem:[%s0 + $0x110] sm:$0xff]
  %v11708 = vld [vmem:[%s0 + $0x118] sm:$0xff]
  %v11709 = vld [vmem:[%s0 + $0x120] sm:$0xff]
  %v11710 = vld [vmem:[%s0 + $0x128] sm:$0xff]
  %v11711 = vld [vmem:[%s0 + $0x130] sm:$0xff]
  %v11712 = vld [vmem:[%s0 + $0x138] sm:$0xff]
  %v11713 = vld [vmem:[%s0 + $0x140] sm:$0xff]
  %v11714 = vld [vmem:[%s0 + $0x148] sm:$0xff]
  %v11715 = vld [vmem:[%s0 + $0x150] sm:$0xff]
  %v11716 = vld [vmem:[%s0 + $0x158] sm:$0xff]
  %v11717 = vld [vmem:[%s0 + $0x160] sm:$0xff]
  %v11718 = vld [vmem:[%s0 + $0x168] sm:$0xff]
  %v11719 = vld [vmem:[%s0 + $0x170] sm:$0xff]
  %v11720 = vld [vmem:[%s0 + $0x178] sm:$0xff]
  %v11721 = vld [vmem:[%s0 + $0x180] sm:$0xff]
  %v11722 = vld [vmem:[%s0 + $0x188] sm:$0xff]
  %v11723 = vld [vmem:[%s0 + $0x190] sm:$0xff]
  %v11724 = vld [vmem:[%s0 + $0x198] sm:$0xff]
  %v11725 = vld [vmem:[%s0 + $0x1a0] sm:$0xff]
  %v11726 = vld [vmem:[%s0 + $0x1a8] sm:$0xff]
  %v11727 = vld [vmem:[%s0 + $0x1b0] sm:$0xff]
  %v11728 = vld [vmem:[%s0 + $0x1b8] sm:$0xff]
  %v11729 = vld [vmem:[%s0 + $0x1c0] sm:$0xff]
  %v11730 = vld [vmem:[%s0 + $0x1c8] sm:$0xff]
  %v11731 = vld [vmem:[%s0 + $0x1d0] sm:$0xff]
  %v11732 = vld [vmem:[%s0 + $0x1d8] sm:$0xff]
  %v11733 = vld [vmem:[%s0 + $0x1e0] sm:$0xff]
  %v11734 = vld [vmem:[%s0 + $0x1e8] sm:$0xff]
  %v11735 = vld [vmem:[%s0 + $0x1f0] sm:$0xff]
  %v11736 = vld [vmem:[%s0 + $0x1f8] sm:$0xff]
  %v11737 = vadd.f32 %v11609, %v11673
  %v11738 = vadd.f32 %v11610, %v11674
  %v11739 = vadd.f32 %v11611, %v11675
  %v11740 = vadd.f32 %v11612, %v11676
  %v11741 = vadd.f32 %v11613, %v11677
  %v11742 = vadd.f32 %v11614, %v11678
  %v11743 = vadd.f32 %v11615, %v11679
  %v11744 = vadd.f32 %v11616, %v11680
  %v11745 = vadd.f32 %v11617, %v11681
  %v11746 = vadd.f32 %v11618, %v11682
  %v11747 = vadd.f32 %v11619, %v11683
  %v11748 = vadd.f32 %v11620, %v11684
  %v11749 = vadd.f32 %v11621, %v11685
  %v11750 = vadd.f32 %v11622, %v11686
  %v11751 = vadd.f32 %v11623, %v11687
  %v11752 = vadd.f32 %v11624, %v11688
  %v11753 = vadd.f32 %v11625, %v11689
  %v11754 = vadd.f32 %v11626, %v11690
  %v11755 = vadd.f32 %v11627, %v11691
  %v11756 = vadd.f32 %v11628, %v11692
  %v11757 = vadd.f32 %v11629, %v11693
  %v11758 = vadd.f32 %v11630, %v11694
  %v11759 = vadd.f32 %v11631, %v11695
  %v11760 = vadd.f32 %v11632, %v11696
  %v11761 = vadd.f32 %v11633, %v11697
  %v11762 = vadd.f32 %v11634, %v11698
  %v11763 = vadd.f32 %v11635, %v11699
  %v11764 = vadd.f32 %v11636, %v11700
  %v11765 = vadd.f32 %v11637, %v11701
  %v11766 = vadd.f32 %v11638, %v11702
  %v11767 = vadd.f32 %v11639, %v11703
  %v11768 = vadd.f32 %v11640, %v11704
  %v11769 = vadd.f32 %v11641, %v11705
  %v11770 = vadd.f32 %v11642, %v11706
  %v11771 = vadd.f32 %v11643, %v11707
  %v11772 = vadd.f32 %v11644, %v11708
  %v11773 = vadd.f32 %v11645, %v11709
  %v11774 = vadd.f32 %v11646, %v11710
  %v11775 = vadd.f32 %v11647, %v11711
  %v11776 = vadd.f32 %v11648, %v11712
  %v11777 = vadd.f32 %v11649, %v11713
  %v11778 = vadd.f32 %v11650, %v11714
  %v11779 = vadd.f32 %v11651, %v11715
  %v11780 = vadd.f32 %v11652, %v11716
  %v11781 = vadd.f32 %v11653, %v11717
  %v11782 = vadd.f32 %v11654, %v11718
  %v11783 = vadd.f32 %v11655, %v11719
  %v11784 = vadd.f32 %v11656, %v11720
  %v11785 = vadd.f32 %v11657, %v11721
  %v11786 = vadd.f32 %v11658, %v11722
  %v11787 = vadd.f32 %v11659, %v11723
  %v11788 = vadd.f32 %v11660, %v11724
  %v11789 = vadd.f32 %v11661, %v11725
  %v11790 = vadd.f32 %v11662, %v11726
  %v11791 = vadd.f32 %v11663, %v11727
  %v11792 = vadd.f32 %v11664, %v11728
  %v11793 = vadd.f32 %v11665, %v11729
  %v11794 = vadd.f32 %v11666, %v11730
  %v11795 = vadd.f32 %v11667, %v11731
  %v11796 = vadd.f32 %v11668, %v11732
  %v11797 = vadd.f32 %v11669, %v11733
  %v11798 = vadd.f32 %v11670, %v11734
  %v11799 = vadd.f32 %v11671, %v11735
  %v11800 = vadd.f32 %v11672, %v11736
  %v11801 = vmax.f32 %v11737, 0.0
  %v11802 = vmax.f32 %v11738, 0.0
  %v11803 = vmax.f32 %v11739, 0.0
  %v11804 = vmax.f32 %v11740, 0.0
  %v11805 = vmax.f32 %v11741, 0.0
  %v11806 = vmax.f32 %v11742, 0.0
  %v11807 = vmax.f32 %v11743, 0.0
  %v11808 = vmax.f32 %v11744, 0.0
  %v11809 = vmax.f32 %v11745, 0.0
  %v11810 = vmax.f32 %v11746, 0.0
  %v11811 = vmax.f32 %v11747, 0.0
  %v11812 = vmax.f32 %v11748, 0.0
  %v11813 = vmax.f32 %v11749, 0.0
  %v11814 = vmax.f32 %v11750, 0.0
  %v11815 = vmax.f32 %v11751, 0.0
  %v11816 = vmax.f32 %v11752, 0.0
  %v11817 = vmax.f32 %v11753, 0.0
  %v11818 = vmax.f32 %v11754, 0.0
  %v11819 = vmax.f32 %v11755, 0.0
  %v11820 = vmax.f32 %v11756, 0.0
  %v11821 = vmax.f32 %v11757, 0.0
  %v11822 = vmax.f32 %v11758, 0.0
  %v11823 = vmax.f32 %v11759, 0.0
  %v11824 = vmax.f32 %v11760, 0.0
  %v11825 = vmax.f32 %v11761, 0.0
  %v11826 = vmax.f32 %v11762, 0.0
  %v11827 = vmax.f32 %v11763, 0.0
  %v11828 = vmax.f32 %v11764, 0.0
  %v11829 = vmax.f32 %v11765, 0.0
  %v11830 = vmax.f32 %v11766, 0.0
  %v11831 = vmax.f32 %v11767, 0.0
  %v11832 = vmax.f32 %v11768, 0.0
  %v11833 = vmax.f32 %v11769, 0.0
  %v11834 = vmax.f32 %v11770, 0.0
  %v11835 = vmax.f32 %v11771, 0.0
  %v11836 = vmax.f32 %v11772, 0.0
  %v11837 = vmax.f32 %v11773, 0.0
  %v11838 = vmax.f32 %v11774, 0.0
  %v11839 = vmax.f32 %v11775, 0.0
  %v11840 = vmax.f32 %v11776, 0.0
  %v11841 = vmax.f32 %v11777, 0.0
  %v11842 = vmax.f32 %v11778, 0.0
  %v11843 = vmax.f32 %v11779, 0.0
  %v11844 = vmax.f32 %v11780, 0.0
  %v11845 = vmax.f32 %v11781, 0.0
  %v11846 = vmax.f32 %v11782, 0.0
  %v11847 = vmax.f32 %v11783, 0.0
  %v11848 = vmax.f32 %v11784, 0.0
  %v11849 = vmax.f32 %v11785, 0.0
  %v11850 = vmax.f32 %v11786, 0.0
  %v11851 = vmax.f32 %v11787, 0.0
  %v11852 = vmax.f32 %v11788, 0.0
  %v11853 = vmax.f32 %v11789, 0.0
  %v11854 = vmax.f32 %v11790, 0.0
  %v11855 = vmax.f32 %v11791, 0.0
  %v11856 = vmax.f32 %v11792, 0.0
  %v11857 = vmax.f32 %v11793, 0.0
  %v11858 = vmax.f32 %v11794, 0.0
  %v11859 = vmax.f32 %v11795, 0.0
  %v11860 = vmax.f32 %v11796, 0.0
  %v11861 = vmax.f32 %v11797, 0.0
  %v11862 = vmax.f32 %v11798, 0.0
  %v11863 = vmax.f32 %v11799, 0.0
  %v11864 = vmax.f32 %v11800, 0.0
  %11865 = vst.msk [vmem:[%s4] sm:$0xff] %vm22, %v11801
  %11866 = vst.msk [vmem:[%s4 + $0x8] sm:$0xff] %vm22, %v11802
  %11867 = vst.msk [vmem:[%s4 + $0x10] sm:$0xff] %vm22, %v11803
  %11868 = vst.msk [vmem:[%s4 + $0x18] sm:$0xff] %vm22, %v11804
  %11869 = vst.msk [vmem:[%s4 + $0x20] sm:$0xff] %vm22, %v11805
  %11870 = vst.msk [vmem:[%s4 + $0x28] sm:$0xff] %vm22, %v11806
  %11871 = vst.msk [vmem:[%s4 + $0x30] sm:$0xff] %vm22, %v11807
  %11872 = vst.msk [vmem:[%s4 + $0x38] sm:$0xff] %vm22, %v11808
  %11873 = vst.msk [vmem:[%s4 + $0x40] sm:$0xff] %vm22, %v11809
  %11874 = vst.msk [vmem:[%s4 + $0x48] sm:$0xff] %vm22, %v11810
  %11875 = vst.msk [vmem:[%s4 + $0x50] sm:$0xff] %vm22, %v11811
  %11876 = vst.msk [vmem:[%s4 + $0x58] sm:$0xff] %vm22, %v11812
  %11877 = vst.msk [vmem:[%s4 + $0x60] sm:$0xff] %vm22, %v11813
  %11878 = vst.msk [vmem:[%s4 + $0x68] sm:$0xff] %vm22, %v11814
  %11879 = vst.msk [vmem:[%s4 + $0x70] sm:$0xff] %vm22, %v11815
  %11880 = vst.msk [vmem:[%s4 + $0x78] sm:$0xff] %vm22, %v11816
  %11881 = vst.msk [vmem:[%s4 + $0x80] sm:$0xff] %vm22, %v11817
  %11882 = vst.msk [vmem:[%s4 + $0x88] sm:$0xff] %vm22, %v11818
  %11883 = vst.msk [vmem:[%s4 + $0x90] sm:$0xff] %vm22, %v11819
  %11884 = vst.msk [vmem:[%s4 + $0x98] sm:$0xff] %vm22, %v11820
  %11885 = vst.msk [vmem:[%s4 + $0xa0] sm:$0xff] %vm22, %v11821
  %11886 = vst.msk [vmem:[%s4 + $0xa8] sm:$0xff] %vm22, %v11822
  %11887 = vst.msk [vmem:[%s4 + $0xb0] sm:$0xff] %vm22, %v11823
  %11888 = vst.msk [vmem:[%s4 + $0xb8] sm:$0xff] %vm22, %v11824
  %11889 = vst.msk [vmem:[%s4 + $0xc0] sm:$0xff] %vm22, %v11825
  %11890 = vst.msk [vmem:[%s4 + $0xc8] sm:$0xff] %vm22, %v11826
  %11891 = vst.msk [vmem:[%s4 + $0xd0] sm:$0xff] %vm22, %v11827
  %11892 = vst.msk [vmem:[%s4 + $0xd8] sm:$0xff] %vm22, %v11828
  %11893 = vst.msk [vmem:[%s4 + $0xe0] sm:$0xff] %vm22, %v11829
  %11894 = vst.msk [vmem:[%s4 + $0xe8] sm:$0xff] %vm22, %v11830
  %11895 = vst.msk [vmem:[%s4 + $0xf0] sm:$0xff] %vm22, %v11831
  %11896 = vst.msk [vmem:[%s4 + $0xf8] sm:$0xff] %vm22, %v11832
  %11897 = vst.msk [vmem:[%s4 + $0x100] sm:$0xff] %vm22, %v11833
  %11898 = vst.msk [vmem:[%s4 + $0x108] sm:$0xff] %vm22, %v11834
  %11899 = vst.msk [vmem:[%s4 + $0x110] sm:$0xff] %vm22, %v11835
  %11900 = vst.msk [vmem:[%s4 + $0x118] sm:$0xff] %vm22, %v11836
  %11901 = vst.msk [vmem:[%s4 + $0x120] sm:$0xff] %vm22, %v11837
  %11902 = vst.msk [vmem:[%s4 + $0x128] sm:$0xff] %vm22, %v11838
  %11903 = vst.msk [vmem:[%s4 + $0x130] sm:$0xff] %vm22, %v11839
  %11904 = vst.msk [vmem:[%s4 + $0x138] sm:$0xff] %vm22, %v11840
  %11905 = vst.msk [vmem:[%s4 + $0x140] sm:$0xff] %vm22, %v11841
  %11906 = vst.msk [vmem:[%s4 + $0x148] sm:$0xff] %vm22, %v11842
  %11907 = vst.msk [vmem:[%s4 + $0x150] sm:$0xff] %vm22, %v11843
  %11908 = vst.msk [vmem:[%s4 + $0x158] sm:$0xff] %vm22, %v11844
  %11909 = vst.msk [vmem:[%s4 + $0x160] sm:$0xff] %vm22, %v11845
  %11910 = vst.msk [vmem:[%s4 + $0x168] sm:$0xff] %vm22, %v11846
  %11911 = vst.msk [vmem:[%s4 + $0x170] sm:$0xff] %vm22, %v11847
  %11912 = vst.msk [vmem:[%s4 + $0x178] sm:$0xff] %vm22, %v11848
  %11913 = vst.msk [vmem:[%s4 + $0x180] sm:$0xff] %vm22, %v11849
  %11914 = vst.msk [vmem:[%s4 + $0x188] sm:$0xff] %vm22, %v11850
  %11915 = vst.msk [vmem:[%s4 + $0x190] sm:$0xff] %vm22, %v11851
  %11916 = vst.msk [vmem:[%s4 + $0x198] sm:$0xff] %vm22, %v11852
  %11917 = vst.msk [vmem:[%s4 + $0x1a0] sm:$0xff] %vm22, %v11853
  %11918 = vst.msk [vmem:[%s4 + $0x1a8] sm:$0xff] %vm22, %v11854
  %11919 = vst.msk [vmem:[%s4 + $0x1b0] sm:$0xff] %vm22, %v11855
  %11920 = vst.msk [vmem:[%s4 + $0x1b8] sm:$0xff] %vm22, %v11856
  %11921 = vst.msk [vmem:[%s4 + $0x1c0] sm:$0xff] %vm22, %v11857
  %11922 = vst.msk [vmem:[%s4 + $0x1c8] sm:$0xff] %vm22, %v11858
  %11923 = vst.msk [vmem:[%s4 + $0x1d0] sm:$0xff] %vm22, %v11859
  %11924 = vst.msk [vmem:[%s4 + $0x1d8] sm:$0xff] %vm22, %v11860
  %11925 = vst.msk [vmem:[%s4 + $0x1e0] sm:$0xff] %vm22, %v11861
  %11926 = vst.msk [vmem:[%s4 + $0x1e8] sm:$0xff] %vm22, %v11862
  %11927 = vst.msk [vmem:[%s4 + $0x1f0] sm:$0xff] %vm22, %v11863
  %11928 = vst.msk [vmem:[%s4 + $0x1f8] sm:$0xff] %vm22, %v11864
  // Predicated region
  $region18: #{tpu_custom_call.1} parent=0 // pred_check
    _
  $region19: #{tpu_custom_call.1} parent=0 // pred_check_branch
    %11930 = sbr.rel (0) target = $region21
  $region20: #{tpu_custom_call.1} parent=0 // pred_region
    _
  $region21: #{tpu_custom_call.1} parent=0 // pred_fallthru
    _
  // Predicated region
  $region22: #{tpu_custom_call.1} parent=0 // pred_check
    _
  $region23: #{tpu_custom_call.1} parent=0 // pred_check_branch
    %11932 = sbr.rel (0) target = $region25
  $region24: #{tpu_custom_call.1} parent=0 // pred_region
    _
  $region25: #{tpu_custom_call.1} parent=0 // pred_fallthru
    _

</llo_original>
